<compile_context>
chip_gen: v7x
topology: tpu7x:2x2x1
jax: 0.10.0
libtpu: 0.0.40
codegen_flags: <defaults>
</compile_context>

<pallas_src>
import numpy as np

import jax
import jax.numpy as jnp
from jax import lax
from jax.experimental import pallas as pl
from jax.experimental.pallas import tpu as pltpu

# -------------------- shapes implied by the module --------------------
EMB_DIM = 200                 # Config.embedding_dim (view(-1,1,10,20), fc(10368,...))
IMG_H, IMG_W = 10, 20         # per-embedding image
STACK_H = 2 * IMG_H           # stacked e1/rel image height = 20
CONV_C = 32                   # conv1 out channels
KH = KW = 3                   # conv1 kernel
OH = STACK_H - KH + 1         # 18
OW = IMG_W - KW + 1           # 18
FLAT = CONV_C * OH * OW       # 10368 == fc in_features
COL = CONV_C * OH             # 576  (feature-map columns: c*18 + i)
COL_PAD = 640                 # 576 padded up to a multiple of 128
MAX_TILE_N = 2048             # entity-score tile width (lane-dense)
EPS = 1e-5

NUM_ENTITIES = 300            # small demo sizes
NUM_RELATIONS = 20
BATCH = 4


def _round_up(x, m):
    return ((x + m - 1) // m) * m


# ============================================================================
# Kernel 1: per-(e1, rel) head  ->  Y = relu(bn2(fc(relu(bn1(conv(bn0(x)))))))
# ============================================================================
def _head_kernel(e1_ids, rel_ids,            # SMEM scalar-prefetch refs (used by index_maps)
                 e1_tab_ref, rel_tab_ref,    # (1, 20, 20) gathered, pre-transposed image halves
                 band_ref,                   # (3, 20, COL_PAD) banded conv(+bn0+bn1) weights f32
                 cbias_ref,                  # (1, COL_PAD)     folded conv+bn1 bias
                 w5_ref,                     # (OW, COL_PAD, EMB_DIM) fc weight (+bn2 scale) bf16
                 hshift_ref,                 # (1, EMB_DIM)     fc bias + bn2 shift
                 y_ref):                     # out (1, 1, EMB_DIM) f32
    # Transposed stacked input image  xt[w, h] = stack(e1, rel)[h, w].
    # Tables are lane-split/zero-padded host-side -> plain add, no transpose.
    xt = e1_tab_ref[0] + rel_tab_ref[0]                                # (20, 20)

    # Conv2d(1->32, 3x3) + bn0 + bn1 as 3 MXU contractions:
    #   fmap[j, c*18 + i] = bn1(conv(bn0(x)))[c, i, j]
    fmap = jnp.dot(xt[0:OW, :], band_ref[0],
                   preferred_element_type=jnp.float32)
    for dj in range(1, KW):
        fmap = fmap + jnp.dot(xt[dj:dj + OW, :], band_ref[dj],
                              preferred_element_type=jnp.float32)
    fmap = jnp.maximum(fmap + cbias_ref[...], 0.0)                     # (OW, COL_PAD)

    # fc + bn2 scale: accumulate per output-column j -- no (1, 11520) flatten,
    # live vregs stay small, contraction accumulates in f32 on the MXU.
    fmap_bf = fmap.astype(jnp.bfloat16)
    y = jnp.dot(fmap_bf[0:1, :], w5_ref[0], preferred_element_type=jnp.float32)
    for j in range(1, OW):
        y = y + jnp.dot(fmap_bf[j:j + 1, :], w5_ref[j],
                        preferred_element_type=jnp.float32)
    y_ref[0] = jnp.maximum(y + hshift_ref[...], 0.0)                   # (1, EMB_DIM)


# ============================================================================
# Kernel 2: entity-score streaming  ->  sigmoid(Y @ emb_e.T + b)
# ============================================================================
def _score_kernel(y_ref,        # (B, EMB_DIM) f32, grid-invariant (fetched once)
                  embT_ref,     # (EMB_DIM, TILE_N) bf16 entity-embedding tile
                  entb_ref,     # (1, TILE_N) f32 entity bias tile (self.b)
                  out_ref):     # (B, TILE_N) f32
    logits = jnp.dot(y_ref[...].astype(jnp.bfloat16), embT_ref[...],
                     preferred_element_type=jnp.float32) + entb_ref[...]
    out_ref[...] = jax.nn.sigmoid(logits)


# ============================================================================
# Host-side, once-per-model parameter folding (eval-mode BN folded away)
# ============================================================================
def fold_parameters(p):
    f = lambda k: np.asarray(p[k], np.float32)
    s0 = f('bn0_g') / np.sqrt(f('bn0_v') + EPS)              # (1,)
    t0 = f('bn0_b') - f('bn0_m') * s0
    s1 = f('bn1_g') / np.sqrt(f('bn1_v') + EPS)              # (32,)
    t1 = f('bn1_b') - f('bn1_m') * s1
    s2 = f('bn2_g') / np.sqrt(f('bn2_v') + EPS)              # (200,)
    t2 = f('bn2_b') - f('bn2_m') * s2

    # fold bn0 (input affine) and bn1 (per-channel affine) into the conv
    w = f('conv_w')[:, 0]                                    # (32, 3, 3)
    w_eff = w * (s0[0] * s1)[:, None, None]
    b_eff = (f('conv_b') + t0[0] * w.sum(axis=(1, 2))) * s1 + t1        # (32,)

    # banded conv matrix:  fmap[j, c*OH+i] = sum_{dj,r} xT[j+dj, r] * band[dj, r, c*OH+i]
    band = np.zeros((KW, STACK_H, COL_PAD), np.float32)
    for c in range(CONV_C):
        for dj in range(KW):
            for di in range(KH):
                for i in range(OH):
                    band[dj, i + di, c * OH + i] = w_eff[c, di, dj]
    bias_col = np.zeros((1, COL_PAD), np.float32)
    bias_col[0, :COL] = np.repeat(b_eff, OH)

    # fc weight in the per-j accumulation order [j, col=(c,i), o], per-j blocks
    # zero-padded to COL_PAD lanes, bn2 scale folded in, stored bf16.
    fcw = f('fc_w').reshape(EMB_DIM, CONV_C, OH, OW)         # [o, c, i, j]
    w5 = np.zeros((OW, COL_PAD, EMB_DIM), np.float32)
    w5[:, :COL, :] = np.transpose(fcw, (3, 1, 2, 0)).reshape(OW, COL, EMB_DIM)
    w5 = w5 * s2[None, None, :]
    head_shift = (f('fc_b') * s2 + t2)[None, :]              # (1, 200)

    # pre-transposed, lane-split stacked-image embedding tables:
    #   e_tab[n, w, h] = emb_e[n, h*20+w] for h<10 (else 0)
    #   r_tab[n, w, h] = emb_rel[n, (h-10)*20+w] for h>=10 (else 0)
    # TODO(synk): these hold the e1 half and rel half in disjoint zero-padded
    # column ranges (2x the raw embedding-table bytes); storage-only cost.
    emb_e, emb_rel = f('emb_e'), f('emb_rel')
    e_imgT = np.transpose(emb_e.reshape(-1, IMG_H, IMG_W), (0, 2, 1))
    r_imgT = np.transpose(emb_rel.reshape(-1, IMG_H, IMG_W), (0, 2, 1))
    e_tab = np.zeros((emb_e.shape[0], IMG_W, STACK_H), np.float32)
    e_tab[:, :, :IMG_H] = e_imgT
    r_tab = np.zeros((emb_rel.shape[0], IMG_W, STACK_H), np.float32)
    r_tab[:, :, IMG_H:] = r_imgT

    # lane-dense, zero-padded entity matrix in bf16 (halves the dominant HBM
    # stream of the score kernel) + entity bias, built once per model.
    num_ent = emb_e.shape[0]
    tile_n = min(MAX_TILE_N, _round_up(num_ent, 128))
    n_pad = _round_up(num_ent, tile_n)
    embT = np.zeros((EMB_DIM, n_pad), np.float32)
    embT[:, :num_ent] = emb_e.T
    entb = np.zeros((1, n_pad), np.float32)
    entb[0, :num_ent] = f('ent_b')

    return dict(band=jnp.asarray(band), bias_col=jnp.asarray(bias_col),
                w5=jnp.asarray(w5, jnp.bfloat16),
                head_shift=jnp.asarray(head_shift),
                e_tab=jnp.asarray(e_tab), r_tab=jnp.asarray(r_tab),
                embT=jnp.asarray(embT, jnp.bfloat16),
                entb=jnp.asarray(entb),
                num_ent=int(num_ent), tile_n=int(tile_n), n_pad=int(n_pad))


# ============================================================================
# Wrapper: head pallas_call + entity-score pallas_call
# ============================================================================
def conve_forward(e1, rel, folded):
    B = int(e1.shape[0])
    num_ent = folded['num_ent']
    tile_n = folded['tile_n']
    n_pad = folded['n_pad']
    n_tiles = n_pad // tile_n

    # ---- kernel 1: per-(e1, rel) head -> Y = (B, 200) ----
    head_grid = pltpu.PrefetchScalarGridSpec(
        num_scalar_prefetch=2,                  # e1 ids, rel ids -> SMEM
        grid=(B,),
        in_specs=[
            # embedding gathers happen here, via the scalar-prefetch refs
            pl.BlockSpec((1, IMG_W, STACK_H), lambda b, e1s, rels: (e1s[b], 0, 0)),
            pl.BlockSpec((1, IMG_W, STACK_H), lambda b, e1s, rels: (rels[b], 0, 0)),
            pl.BlockSpec((KW, STACK_H, COL_PAD), lambda b, e1s, rels: (0, 0, 0)),
            pl.BlockSpec((1, COL_PAD), lambda b, e1s, rels: (0, 0)),
            pl.BlockSpec((OW, COL_PAD, EMB_DIM), lambda b, e1s, rels: (0, 0, 0)),
            pl.BlockSpec((1, EMB_DIM), lambda b, e1s, rels: (0, 0)),
        ],
        out_specs=pl.BlockSpec((1, 1, EMB_DIM), lambda b, e1s, rels: (b, 0, 0)),
    )
    y = pl.pallas_call(
        _head_kernel,
        out_shape=jax.ShapeDtypeStruct((B, 1, EMB_DIM), jnp.float32),
        grid_spec=head_grid,
        compiler_params=pltpu.CompilerParams(
            dimension_semantics=("arbitrary",)),
    )(e1.astype(jnp.int32), rel.astype(jnp.int32),
      folded['e_tab'], folded['r_tab'], folded['band'], folded['bias_col'],
      folded['w5'], folded['head_shift'])
    y = y.reshape(B, EMB_DIM)

    # ---- kernel 2: stream entity matrix ONCE, score all B rows per tile ----
    out = pl.pallas_call(
        _score_kernel,
        out_shape=jax.ShapeDtypeStruct((B, n_pad), jnp.float32),
        grid=(n_tiles,),
        in_specs=[
            pl.BlockSpec((B, EMB_DIM), lambda i: (0, 0)),        # grid-invariant Y
            pl.BlockSpec((EMB_DIM, tile_n), lambda i: (0, i)),   # streaming bf16 tile
            pl.BlockSpec((1, tile_n), lambda i: (0, i)),
        ],
        out_specs=pl.BlockSpec((B, tile_n), lambda i: (0, i)),
        compiler_params=pltpu.CompilerParams(
            dimension_semantics=("parallel",)),                  # v7x: split entity dim
    )(y, folded['embT'], folded['entb'])

    return out[:, :num_ent]


# ============================================================================
# Pure-JAX reference (mirrors the PyTorch forward, unfolded params)
# ============================================================================
def conve_reference(e1, rel, p):
    hi = lax.Precision.HIGHEST
    s0 = p['bn0_g'] / jnp.sqrt(p['bn0_v'] + EPS); t0 = p['bn0_b'] - p['bn0_m'] * s0
    s1 = p['bn1_g'] / jnp.sqrt(p['bn1_v'] + EPS); t1 = p['bn1_b'] - p['bn1_m'] * s1
    s2 = p['bn2_g'] / jnp.sqrt(p['bn2_v'] + EPS); t2 = p['bn2_b'] - p['bn2_m'] * s2

    B = e1.shape[0]
    e1_img = p['emb_e'][e1].reshape(B, 1, IMG_H, IMG_W)
    rel_img = p['emb_rel'][rel].reshape(B, 1, IMG_H, IMG_W)
    x = jnp.concatenate([e1_img, rel_img], axis=2)            # (B,1,20,20)
    x = x * s0 + t0                                           # bn0 (eval); inp_drop = id
    x = lax.conv_general_dilated(x, p['conv_w'], (1, 1), 'VALID',
                                 dimension_numbers=('NCHW', 'OIHW', 'NCHW'),
                                 precision=hi)
    x = x + p['conv_b'][None, :, None, None]
    x = x * s1[None, :, None, None] + t1[None, :, None, None] # bn1
    x = jnp.maximum(x, 0.0)                                   # relu; feature_map_drop = id
    x = x.reshape(B, FLAT)
    x = jnp.dot(x, p['fc_w'].T, precision=hi) + p['fc_b']     # fc; hidden_drop = id
    x = x * s2 + t2                                           # bn2
    x = jnp.maximum(x, 0.0)
    logits = jnp.dot(x, p['emb_e'].T, precision=hi) + p['ent_b'][None, :]
    return jax.nn.sigmoid(logits)


# ============================================================================
# Deterministic parameter init (mirrors the module's __init__ shapes)
# ============================================================================
def init_params(key):
    ks = iter(jax.random.split(key, 24))
    nrm = lambda shape, s=0.1: s * jax.random.normal(next(ks), shape, jnp.float32)
    p = {}
    p['emb_e'] = nrm((NUM_ENTITIES, EMB_DIM)).at[0].set(0.0)     # padding_idx=0
    p['emb_rel'] = nrm((NUM_RELATIONS, EMB_DIM)).at[0].set(0.0)  # padding_idx=0
    p['conv_w'] = nrm((CONV_C, 1, KH, KW))
    p['conv_b'] = nrm((CONV_C,))                                 # Config.use_bias=True
    p['fc_w'] = nrm((EMB_DIM, FLAT), 0.02)
    p['fc_b'] = nrm((EMB_DIM,))
    p['ent_b'] = nrm((NUM_ENTITIES,))                            # self.b

    def bn(name, dim):
        p[f'{name}_g'] = 1.0 + nrm((dim,))
        p[f'{name}_b'] = nrm((dim,))
        p[f'{name}_m'] = nrm((dim,))
        p[f'{name}_v'] = 1.0 + jnp.abs(nrm((dim,)))

    bn('bn0', 1)
    bn('bn1', CONV_C)
    bn('bn2', EMB_DIM)
    # TODO(synk): BCELoss and the Dropout layers have no role in the inference
    # forward pass (loss module / eval-mode identity) and are not implemented.
    return p


if __name__ == "__main__":
    key = jax.random.PRNGKey(0)
    pkey, ikey = jax.random.split(key)
    params = init_params(pkey)
    folded = fold_parameters(params)

    k1, k2 = jax.random.split(ikey)
    e1 = jax.random.randint(k1, (BATCH,), 0, NUM_ENTITIES, dtype=jnp.int32)
    rel = jax.random.randint(k2, (BATCH,), 0, NUM_RELATIONS, dtype=jnp.int32)

    fwd = jax.jit(lambda a, b: conve_forward(a, b, folded))
    pred = jax.block_until_ready(fwd(e1, rel))

    ref = jax.block_until_ready(conve_reference(e1, rel, params))

    assert pred.shape == (BATCH, NUM_ENTITIES), pred.shape
    assert bool(jnp.all(jnp.isfinite(pred)))
    assert bool(jnp.all((pred >= 0.0) & (pred <= 1.0)))
    np.testing.assert_allclose(np.asarray(pred), np.asarray(ref), atol=3e-3, rtol=0.0)
    print("KERNEL_OK")
</pallas_src>

<mosaic_0001>
module attributes {stable_mosaic.version = 11 : i64} {
  func.func @_score_kernel(%arg0: i32, %arg1: memref<4x200xf32, #tpu.memory_space<vmem>>, %arg2: memref<200x384xbf16, #tpu.memory_space<vmem>>, %arg3: memref<1x384xf32, #tpu.memory_space<vmem>>, %arg4: memref<4x384xf32, #tpu.memory_space<vmem>>) attributes {dimension_semantics = [#tpu.dimension_semantics<parallel>], iteration_bounds = array<i64: 1>, scalar_prefetch = 0 : i64, scratch_operands = 0 : i64, tpu.core_type = #tpu.core_type<tc>, window_params = [{pipeline_mode = #tpu.pipeline_mode<synchronous>, transform_indices = @transform_0, window_bounds = array<i64: 4, 200>}, {transform_indices = @transform_1, window_bounds = array<i64: 200, 384>}, {transform_indices = @transform_2, window_bounds = array<i64: 1, 384>}, {transform_indices = @transform_3, window_bounds = array<i64: 4, 384>}]} {
    %c0 = arith.constant 0 : index
    %c0_0 = arith.constant 0 : index
    %0 = vector.load %arg1[%c0, %c0_0] : memref<4x200xf32, #tpu.memory_space<vmem>>, vector<4x200xf32>
    %1 = arith.truncf %0 : vector<4x200xf32> to vector<4x200xbf16>
    %c0_1 = arith.constant 0 : index
    %c0_2 = arith.constant 0 : index
    %2 = vector.load %arg2[%c0_1, %c0_2] : memref<200x384xbf16, #tpu.memory_space<vmem>>, vector<200x384xbf16>
    %cst = arith.constant dense<0.000000e+00> : vector<4x384xf32>
    %3 = tpu.matmul %1, %2, %cst {dimension_numbers = #tpu.dot_dimension_numbers<[1], [0], [0], [1], [0, 0, 1, 1], [], []>} : vector<4x200xbf16>, vector<200x384xbf16>, vector<4x384xf32> -> vector<4x384xf32>
    %c0_3 = arith.constant 0 : index
    %c0_4 = arith.constant 0 : index
    %4 = vector.load %arg3[%c0_3, %c0_4] : memref<1x384xf32, #tpu.memory_space<vmem>>, vector<1x384xf32>
    %5 = vector.broadcast %4 : vector<1x384xf32> to vector<4x384xf32>
    %6 = arith.addf %3, %5 : vector<4x384xf32>
    %7 = arith.negf %6 : vector<4x384xf32>
    %8 = math.exp %7 : vector<4x384xf32>
    %cst_5 = arith.constant 1.000000e+00 : f32
    %9 = vector.broadcast %cst_5 : f32 to vector<4x384xf32>
    %10 = arith.addf %9, %8 : vector<4x384xf32>
    %11 = arith.divf %9, %10 : vector<4x384xf32>
    %c0_6 = arith.constant 0 : index
    %c0_7 = arith.constant 0 : index
    %12 = vector.load %arg4[%c0_6, %c0_7] : memref<4x384xf32, #tpu.memory_space<vmem>>, vector<4x384xf32>
    tpu.vector_store %arg4[%c0_6, %c0_7], %11 {strides = array<i32>} : memref<4x384xf32, #tpu.memory_space<vmem>>, vector<4x384xf32>,
    return
  }
  func.func @transform_0(%arg0: i32) -> (i32, i32) {
    %c0_i32 = arith.constant 0 : i32
    %c0_i32_0 = arith.constant 0 : i32
    %c0_i32_1 = arith.constant 0 : i32
    return %c0_i32, %c0_i32_0 : i32, i32
  }
  func.func @transform_1(%arg0: i32) -> (i32, i32) {
    %c0_i32 = arith.constant 0 : i32
    %c0_i32_0 = arith.constant 0 : i32
    return %c0_i32, %arg0 : i32, i32
  }
  func.func @transform_2(%arg0: i32) -> (i32, i32) {
    %c0_i32 = arith.constant 0 : i32
    %c0_i32_0 = arith.constant 0 : i32
    return %c0_i32, %arg0 : i32, i32
  }
  func.func @transform_3(%arg0: i32) -> (i32, i32) {
    %c0_i32 = arith.constant 0 : i32
    %c0_i32_0 = arith.constant 0 : i32
    return %c0_i32, %arg0 : i32, i32
  }
}

module attributes {stable_mosaic.version = 11 : i64} {
  func.func @_head_kernel(%arg0: i32, %arg1: memref<4xi32, #tpu.memory_space<smem>>, %arg2: memref<4xi32, #tpu.memory_space<smem>>, %arg3: memref<1x20x20xf32, #tpu.memory_space<vmem>>, %arg4: memref<1x20x20xf32, #tpu.memory_space<vmem>>, %arg5: memref<3x20x640xf32, #tpu.memory_space<vmem>>, %arg6: memref<1x640xf32, #tpu.memory_space<vmem>>, %arg7: memref<18x640x200xbf16, #tpu.memory_space<vmem>>, %arg8: memref<1x200xf32, #tpu.memory_space<vmem>>, %arg9: memref<1x1x200xf32, #tpu.memory_space<vmem>>) attributes {dimension_semantics = [#tpu.dimension_semantics<arbitrary>], iteration_bounds = array<i64: 4>, scalar_prefetch = 2 : i64, scratch_operands = 0 : i64, tpu.core_type = #tpu.core_type<tc>, window_params = [{transform_indices = @transform_0, window_bounds = array<i64: 1, 20, 20>}, {transform_indices = @transform_1, window_bounds = array<i64: 1, 20, 20>}, {pipeline_mode = #tpu.pipeline_mode<synchronous>, transform_indices = @transform_2, window_bounds = array<i64: 3, 20, 640>}, {pipeline_mode = #tpu.pipeline_mode<synchronous>, transform_indices = @transform_3, window_bounds = array<i64: 1, 640>}, {pipeline_mode = #tpu.pipeline_mode<synchronous>, transform_indices = @transform_4, window_bounds = array<i64: 18, 640, 200>}, {pipeline_mode = #tpu.pipeline_mode<synchronous>, transform_indices = @transform_5, window_bounds = array<i64: 1, 200>}, {transform_indices = @transform_6, window_bounds = array<i64: 1, 1, 200>}]} {
    %c0 = arith.constant 0 : index
    %c0_0 = arith.constant 0 : index
    %c0_1 = arith.constant 0 : index
    %0 = vector.load %arg3[%c0, %c0_0, %c0_1] : memref<1x20x20xf32, #tpu.memory_space<vmem>>, vector<1x20x20xf32>
    %1 = vector.shape_cast %0 : vector<1x20x20xf32> to vector<20x20xf32>
    %c0_2 = arith.constant 0 : index
    %c0_3 = arith.constant 0 : index
    %c0_4 = arith.constant 0 : index
    %2 = vector.load %arg4[%c0_2, %c0_3, %c0_4] : memref<1x20x20xf32, #tpu.memory_space<vmem>>, vector<1x20x20xf32>
    %3 = vector.shape_cast %2 : vector<1x20x20xf32> to vector<20x20xf32>
    %4 = arith.addf %1, %3 : vector<20x20xf32>
    %5 = vector.extract_strided_slice %4 {offsets = [0, 0], sizes = [18, 20], strides = [1, 1]} : vector<20x20xf32> to vector<18x20xf32>
    %c0_5 = arith.constant 0 : index
    %c0_6 = arith.constant 0 : index
    %c0_7 = arith.constant 0 : index
    %6 = vector.load %arg5[%c0_5, %c0_6, %c0_7] : memref<3x20x640xf32, #tpu.memory_space<vmem>>, vector<1x20x640xf32>
    %7 = vector.shape_cast %6 : vector<1x20x640xf32> to vector<20x640xf32>
    %cst = arith.constant dense<0.000000e+00> : vector<18x640xf32>
    %8 = tpu.matmul %5, %7, %cst {dimension_numbers = #tpu.dot_dimension_numbers<[1], [0], [0], [1], [0, 0, 1, 1], [], []>} : vector<18x20xf32>, vector<20x640xf32>, vector<18x640xf32> -> vector<18x640xf32>
    %9 = vector.extract_strided_slice %4 {offsets = [1, 0], sizes = [18, 20], strides = [1, 1]} : vector<20x20xf32> to vector<18x20xf32>
    %c1 = arith.constant 1 : index
    %c0_8 = arith.constant 0 : index
    %c0_9 = arith.constant 0 : index
    %10 = vector.load %arg5[%c1, %c0_8, %c0_9] : memref<3x20x640xf32, #tpu.memory_space<vmem>>, vector<1x20x640xf32>
    %11 = vector.shape_cast %10 : vector<1x20x640xf32> to vector<20x640xf32>
    %cst_10 = arith.constant dense<0.000000e+00> : vector<18x640xf32>
    %12 = tpu.matmul %9, %11, %cst_10 {dimension_numbers = #tpu.dot_dimension_numbers<[1], [0], [0], [1], [0, 0, 1, 1], [], []>} : vector<18x20xf32>, vector<20x640xf32>, vector<18x640xf32> -> vector<18x640xf32>
    %13 = arith.addf %8, %12 : vector<18x640xf32>
    %14 = vector.extract_strided_slice %4 {offsets = [2, 0], sizes = [18, 20], strides = [1, 1]} : vector<20x20xf32> to vector<18x20xf32>
    %c2 = arith.constant 2 : index
    %c0_11 = arith.constant 0 : index
    %c0_12 = arith.constant 0 : index
    %15 = vector.load %arg5[%c2, %c0_11, %c0_12] : memref<3x20x640xf32, #tpu.memory_space<vmem>>, vector<1x20x640xf32>
    %16 = vector.shape_cast %15 : vector<1x20x640xf32> to vector<20x640xf32>
    %cst_13 = arith.constant dense<0.000000e+00> : vector<18x640xf32>
    %17 = tpu.matmul %14, %16, %cst_13 {dimension_numbers = #tpu.dot_dimension_numbers<[1], [0], [0], [1], [0, 0, 1, 1], [], []>} : vector<18x20xf32>, vector<20x640xf32>, vector<18x640xf32> -> vector<18x640xf32>
    %18 = arith.addf %13, %17 : vector<18x640xf32>
    %c0_14 = arith.constant 0 : index
    %c0_15 = arith.constant 0 : index
    %19 = vector.load %arg6[%c0_14, %c0_15] : memref<1x640xf32, #tpu.memory_space<vmem>>, vector<1x640xf32>
    %20 = vector.broadcast %19 : vector<1x640xf32> to vector<18x640xf32>
    %21 = arith.addf %18, %20 : vector<18x640xf32>
    %cst_16 = arith.constant 0.000000e+00 : f32
    %22 = vector.broadcast %cst_16 : f32 to vector<18x640xf32>
    %23 = arith.maximumf %21, %22 : vector<18x640xf32>
    %24 = arith.truncf %23 : vector<18x640xf32> to vector<18x640xbf16>
    %25 = vector.extract_strided_slice %24 {offsets = [0, 0], sizes = [1, 640], strides = [1, 1]} : vector<18x640xbf16> to vector<1x640xbf16>
    %c0_17 = arith.constant 0 : index
    %c0_18 = arith.constant 0 : index
    %c0_19 = arith.constant 0 : index
    %26 = vector.load %arg7[%c0_17, %c0_18, %c0_19] : memref<18x640x200xbf16, #tpu.memory_space<vmem>>, vector<1x640x200xbf16>
    %27 = vector.shape_cast %26 : vector<1x640x200xbf16> to vector<640x200xbf16>
    %cst_20 = arith.constant dense<0.000000e+00> : vector<1x200xf32>
    %28 = tpu.matmul %25, %27, %cst_20 {dimension_numbers = #tpu.dot_dimension_numbers<[1], [0], [0], [1], [0, 0, 1, 1], [], []>} : vector<1x640xbf16>, vector<640x200xbf16>, vector<1x200xf32> -> vector<1x200xf32>
    %29 = vector.extract_strided_slice %24 {offsets = [1, 0], sizes = [1, 640], strides = [1, 1]} : vector<18x640xbf16> to vector<1x640xbf16>
    %c1_21 = arith.constant 1 : index
    %c0_22 = arith.constant 0 : index
    %c0_23 = arith.constant 0 : index
    %30 = vector.load %arg7[%c1_21, %c0_22, %c0_23] : memref<18x640x200xbf16, #tpu.memory_space<vmem>>, vector<1x640x200xbf16>
    %31 = vector.shape_cast %30 : vector<1x640x200xbf16> to vector<640x200xbf16>
    %cst_24 = arith.constant dense<0.000000e+00> : vector<1x200xf32>
    %32 = tpu.matmul %29, %31, %cst_24 {dimension_numbers = #tpu.dot_dimension_numbers<[1], [0], [0], [1], [0, 0, 1, 1], [], []>} : vector<1x640xbf16>, vector<640x200xbf16>, vector<1x200xf32> -> vector<1x200xf32>
    %33 = arith.addf %28, %32 : vector<1x200xf32>
    %34 = vector.extract_strided_slice %24 {offsets = [2, 0], sizes = [1, 640], strides = [1, 1]} : vector<18x640xbf16> to vector<1x640xbf16>
    %c2_25 = arith.constant 2 : index
    %c0_26 = arith.constant 0 : index
    %c0_27 = arith.constant 0 : index
    %35 = vector.load %arg7[%c2_25, %c0_26, %c0_27] : memref<18x640x200xbf16, #tpu.memory_space<vmem>>, vector<1x640x200xbf16>
    %36 = vector.shape_cast %35 : vector<1x640x200xbf16> to vector<640x200xbf16>
    %cst_28 = arith.constant dense<0.000000e+00> : vector<1x200xf32>
    %37 = tpu.matmul %34, %36, %cst_28 {dimension_numbers = #tpu.dot_dimension_numbers<[1], [0], [0], [1], [0, 0, 1, 1], [], []>} : vector<1x640xbf16>, vector<640x200xbf16>, vector<1x200xf32> -> vector<1x200xf32>
    %38 = arith.addf %33, %37 : vector<1x200xf32>
    %39 = vector.extract_strided_slice %24 {offsets = [3, 0], sizes = [1, 640], strides = [1, 1]} : vector<18x640xbf16> to vector<1x640xbf16>
    %c3 = arith.constant 3 : index
    %c0_29 = arith.constant 0 : index
    %c0_30 = arith.constant 0 : index
    %40 = vector.load %arg7[%c3, %c0_29, %c0_30] : memref<18x640x200xbf16, #tpu.memory_space<vmem>>, vector<1x640x200xbf16>
    %41 = vector.shape_cast %40 : vector<1x640x200xbf16> to vector<640x200xbf16>
    %cst_31 = arith.constant dense<0.000000e+00> : vector<1x200xf32>
    %42 = tpu.matmul %39, %41, %cst_31 {dimension_numbers = #tpu.dot_dimension_numbers<[1], [0], [0], [1], [0, 0, 1, 1], [], []>} : vector<1x640xbf16>, vector<640x200xbf16>, vector<1x200xf32> -> vector<1x200xf32>
    %43 = arith.addf %38, %42 : vector<1x200xf32>
    %44 = vector.extract_strided_slice %24 {offsets = [4, 0], sizes = [1, 640], strides = [1, 1]} : vector<18x640xbf16> to vector<1x640xbf16>
    %c4 = arith.constant 4 : index
    %c0_32 = arith.constant 0 : index
    %c0_33 = arith.constant 0 : index
    %45 = vector.load %arg7[%c4, %c0_32, %c0_33] : memref<18x640x200xbf16, #tpu.memory_space<vmem>>, vector<1x640x200xbf16>
    %46 = vector.shape_cast %45 : vector<1x640x200xbf16> to vector<640x200xbf16>
    %cst_34 = arith.constant dense<0.000000e+00> : vector<1x200xf32>
    %47 = tpu.matmul %44, %46, %cst_34 {dimension_numbers = #tpu.dot_dimension_numbers<[1], [0], [0], [1], [0, 0, 1, 1], [], []>} : vector<1x640xbf16>, vector<640x200xbf16>, vector<1x200xf32> -> vector<1x200xf32>
    %48 = arith.addf %43, %47 : vector<1x200xf32>
    %49 = vector.extract_strided_slice %24 {offsets = [5, 0], sizes = [1, 640], strides = [1, 1]} : vector<18x640xbf16> to vector<1x640xbf16>
    %c5 = arith.constant 5 : index
    %c0_35 = arith.constant 0 : index
    %c0_36 = arith.constant 0 : index
    %50 = vector.load %arg7[%c5, %c0_35, %c0_36] : memref<18x640x200xbf16, #tpu.memory_space<vmem>>, vector<1x640x200xbf16>
    %51 = vector.shape_cast %50 : vector<1x640x200xbf16> to vector<640x200xbf16>
    %cst_37 = arith.constant dense<0.000000e+00> : vector<1x200xf32>
    %52 = tpu.matmul %49, %51, %cst_37 {dimension_numbers = #tpu.dot_dimension_numbers<[1], [0], [0], [1], [0, 0, 1, 1], [], []>} : vector<1x640xbf16>, vector<640x200xbf16>, vector<1x200xf32> -> vector<1x200xf32>
    %53 = arith.addf %48, %52 : vector<1x200xf32>
    %54 = vector.extract_strided_slice %24 {offsets = [6, 0], sizes = [1, 640], strides = [1, 1]} : vector<18x640xbf16> to vector<1x640xbf16>
    %c6 = arith.constant 6 : index
    %c0_38 = arith.constant 0 : index
    %c0_39 = arith.constant 0 : index
    %55 = vector.load %arg7[%c6, %c0_38, %c0_39] : memref<18x640x200xbf16, #tpu.memory_space<vmem>>, vector<1x640x200xbf16>
    %56 = vector.shape_cast %55 : vector<1x640x200xbf16> to vector<640x200xbf16>
    %cst_40 = arith.constant dense<0.000000e+00> : vector<1x200xf32>
    %57 = tpu.matmul %54, %56, %cst_40 {dimension_numbers = #tpu.dot_dimension_numbers<[1], [0], [0], [1], [0, 0, 1, 1], [], []>} : vector<1x640xbf16>, vector<640x200xbf16>, vector<1x200xf32> -> vector<1x200xf32>
    %58 = arith.addf %53, %57 : vector<1x200xf32>
    %59 = vector.extract_strided_slice %24 {offsets = [7, 0], sizes = [1, 640], strides = [1, 1]} : vector<18x640xbf16> to vector<1x640xbf16>
    %c7 = arith.constant 7 : index
    %c0_41 = arith.constant 0 : index
    %c0_42 = arith.constant 0 : index
    %60 = vector.load %arg7[%c7, %c0_41, %c0_42] : memref<18x640x200xbf16, #tpu.memory_space<vmem>>, vector<1x640x200xbf16>
    %61 = vector.shape_cast %60 : vector<1x640x200xbf16> to vector<640x200xbf16>
    %cst_43 = arith.constant dense<0.000000e+00> : vector<1x200xf32>
    %62 = tpu.matmul %59, %61, %cst_43 {dimension_numbers = #tpu.dot_dimension_numbers<[1], [0], [0], [1], [0, 0, 1, 1], [], []>} : vector<1x640xbf16>, vector<640x200xbf16>, vector<1x200xf32> -> vector<1x200xf32>
    %63 = arith.addf %58, %62 : vector<1x200xf32>
    %64 = vector.extract_strided_slice %24 {offsets = [8, 0], sizes = [1, 640], strides = [1, 1]} : vector<18x640xbf16> to vector<1x640xbf16>
    %c8 = arith.constant 8 : index
    %c0_44 = arith.constant 0 : index
    %c0_45 = arith.constant 0 : index
    %65 = vector.load %arg7[%c8, %c0_44, %c0_45] : memref<18x640x200xbf16, #tpu.memory_space<vmem>>, vector<1x640x200xbf16>
    %66 = vector.shape_cast %65 : vector<1x640x200xbf16> to vector<640x200xbf16>
    %cst_46 = arith.constant dense<0.000000e+00> : vector<1x200xf32>
    %67 = tpu.matmul %64, %66, %cst_46 {dimension_numbers = #tpu.dot_dimension_numbers<[1], [0], [0], [1], [0, 0, 1, 1], [], []>} : vector<1x640xbf16>, vector<640x200xbf16>, vector<1x200xf32> -> vector<1x200xf32>
    %68 = arith.addf %63, %67 : vector<1x200xf32>
    %69 = vector.extract_strided_slice %24 {offsets = [9, 0], sizes = [1, 640], strides = [1, 1]} : vector<18x640xbf16> to vector<1x640xbf16>
    %c9 = arith.constant 9 : index
    %c0_47 = arith.constant 0 : index
    %c0_48 = arith.constant 0 : index
    %70 = vector.load %arg7[%c9, %c0_47, %c0_48] : memref<18x640x200xbf16, #tpu.memory_space<vmem>>, vector<1x640x200xbf16>
    %71 = vector.shape_cast %70 : vector<1x640x200xbf16> to vector<640x200xbf16>
    %cst_49 = arith.constant dense<0.000000e+00> : vector<1x200xf32>
    %72 = tpu.matmul %69, %71, %cst_49 {dimension_numbers = #tpu.dot_dimension_numbers<[1], [0], [0], [1], [0, 0, 1, 1], [], []>} : vector<1x640xbf16>, vector<640x200xbf16>, vector<1x200xf32> -> vector<1x200xf32>
    %73 = arith.addf %68, %72 : vector<1x200xf32>
    %74 = vector.extract_strided_slice %24 {offsets = [10, 0], sizes = [1, 640], strides = [1, 1]} : vector<18x640xbf16> to vector<1x640xbf16>
    %c10 = arith.constant 10 : index
    %c0_50 = arith.constant 0 : index
    %c0_51 = arith.constant 0 : index
    %75 = vector.load %arg7[%c10, %c0_50, %c0_51] : memref<18x640x200xbf16, #tpu.memory_space<vmem>>, vector<1x640x200xbf16>
    %76 = vector.shape_cast %75 : vector<1x640x200xbf16> to vector<640x200xbf16>
    %cst_52 = arith.constant dense<0.000000e+00> : vector<1x200xf32>
    %77 = tpu.matmul %74, %76, %cst_52 {dimension_numbers = #tpu.dot_dimension_numbers<[1], [0], [0], [1], [0, 0, 1, 1], [], []>} : vector<1x640xbf16>, vector<640x200xbf16>, vector<1x200xf32> -> vector<1x200xf32>
    %78 = arith.addf %73, %77 : vector<1x200xf32>
    %79 = vector.extract_strided_slice %24 {offsets = [11, 0], sizes = [1, 640], strides = [1, 1]} : vector<18x640xbf16> to vector<1x640xbf16>
    %c11 = arith.constant 11 : index
    %c0_53 = arith.constant 0 : index
    %c0_54 = arith.constant 0 : index
    %80 = vector.load %arg7[%c11, %c0_53, %c0_54] : memref<18x640x200xbf16, #tpu.memory_space<vmem>>, vector<1x640x200xbf16>
    %81 = vector.shape_cast %80 : vector<1x640x200xbf16> to vector<640x200xbf16>
    %cst_55 = arith.constant dense<0.000000e+00> : vector<1x200xf32>
    %82 = tpu.matmul %79, %81, %cst_55 {dimension_numbers = #tpu.dot_dimension_numbers<[1], [0], [0], [1], [0, 0, 1, 1], [], []>} : vector<1x640xbf16>, vector<640x200xbf16>, vector<1x200xf32> -> vector<1x200xf32>
    %83 = arith.addf %78, %82 : vector<1x200xf32>
    %84 = vector.extract_strided_slice %24 {offsets = [12, 0], sizes = [1, 640], strides = [1, 1]} : vector<18x640xbf16> to vector<1x640xbf16>
    %c12 = arith.constant 12 : index
    %c0_56 = arith.constant 0 : index
    %c0_57 = arith.constant 0 : index
    %85 = vector.load %arg7[%c12, %c0_56, %c0_57] : memref<18x640x200xbf16, #tpu.memory_space<vmem>>, vector<1x640x200xbf16>
    %86 = vector.shape_cast %85 : vector<1x640x200xbf16> to vector<640x200xbf16>
    %cst_58 = arith.constant dense<0.000000e+00> : vector<1x200xf32>
    %87 = tpu.matmul %84, %86, %cst_58 {dimension_numbers = #tpu.dot_dimension_numbers<[1], [0], [0], [1], [0, 0, 1, 1], [], []>} : vector<1x640xbf16>, vector<640x200xbf16>, vector<1x200xf32> -> vector<1x200xf32>
    %88 = arith.addf %83, %87 : vector<1x200xf32>
    %89 = vector.extract_strided_slice %24 {offsets = [13, 0], sizes = [1, 640], strides = [1, 1]} : vector<18x640xbf16> to vector<1x640xbf16>
    %c13 = arith.constant 13 : index
    %c0_59 = arith.constant 0 : index
    %c0_60 = arith.constant 0 : index
    %90 = vector.load %arg7[%c13, %c0_59, %c0_60] : memref<18x640x200xbf16, #tpu.memory_space<vmem>>, vector<1x640x200xbf16>
    %91 = vector.shape_cast %90 : vector<1x640x200xbf16> to vector<640x200xbf16>
    %cst_61 = arith.constant dense<0.000000e+00> : vector<1x200xf32>
    %92 = tpu.matmul %89, %91, %cst_61 {dimension_numbers = #tpu.dot_dimension_numbers<[1], [0], [0], [1], [0, 0, 1, 1], [], []>} : vector<1x640xbf16>, vector<640x200xbf16>, vector<1x200xf32> -> vector<1x200xf32>
    %93 = arith.addf %88, %92 : vector<1x200xf32>
    %94 = vector.extract_strided_slice %24 {offsets = [14, 0], sizes = [1, 640], strides = [1, 1]} : vector<18x640xbf16> to vector<1x640xbf16>
    %c14 = arith.constant 14 : index
    %c0_62 = arith.constant 0 : index
    %c0_63 = arith.constant 0 : index
    %95 = vector.load %arg7[%c14, %c0_62, %c0_63] : memref<18x640x200xbf16, #tpu.memory_space<vmem>>, vector<1x640x200xbf16>
    %96 = vector.shape_cast %95 : vector<1x640x200xbf16> to vector<640x200xbf16>
    %cst_64 = arith.constant dense<0.000000e+00> : vector<1x200xf32>
    %97 = tpu.matmul %94, %96, %cst_64 {dimension_numbers = #tpu.dot_dimension_numbers<[1], [0], [0], [1], [0, 0, 1, 1], [], []>} : vector<1x640xbf16>, vector<640x200xbf16>, vector<1x200xf32> -> vector<1x200xf32>
    %98 = arith.addf %93, %97 : vector<1x200xf32>
    %99 = vector.extract_strided_slice %24 {offsets = [15, 0], sizes = [1, 640], strides = [1, 1]} : vector<18x640xbf16> to vector<1x640xbf16>
    %c15 = arith.constant 15 : index
    %c0_65 = arith.constant 0 : index
    %c0_66 = arith.constant 0 : index
    %100 = vector.load %arg7[%c15, %c0_65, %c0_66] : memref<18x640x200xbf16, #tpu.memory_space<vmem>>, vector<1x640x200xbf16>
    %101 = vector.shape_cast %100 : vector<1x640x200xbf16> to vector<640x200xbf16>
    %cst_67 = arith.constant dense<0.000000e+00> : vector<1x200xf32>
    %102 = tpu.matmul %99, %101, %cst_67 {dimension_numbers = #tpu.dot_dimension_numbers<[1], [0], [0], [1], [0, 0, 1, 1], [], []>} : vector<1x640xbf16>, vector<640x200xbf16>, vector<1x200xf32> -> vector<1x200xf32>
    %103 = arith.addf %98, %102 : vector<1x200xf32>
    %104 = vector.extract_strided_slice %24 {offsets = [16, 0], sizes = [1, 640], strides = [1, 1]} : vector<18x640xbf16> to vector<1x640xbf16>
    %c16 = arith.constant 16 : index
    %c0_68 = arith.constant 0 : index
    %c0_69 = arith.constant 0 : index
    %105 = vector.load %arg7[%c16, %c0_68, %c0_69] : memref<18x640x200xbf16, #tpu.memory_space<vmem>>, vector<1x640x200xbf16>
    %106 = vector.shape_cast %105 : vector<1x640x200xbf16> to vector<640x200xbf16>
    %cst_70 = arith.constant dense<0.000000e+00> : vector<1x200xf32>
    %107 = tpu.matmul %104, %106, %cst_70 {dimension_numbers = #tpu.dot_dimension_numbers<[1], [0], [0], [1], [0, 0, 1, 1], [], []>} : vector<1x640xbf16>, vector<640x200xbf16>, vector<1x200xf32> -> vector<1x200xf32>
    %108 = arith.addf %103, %107 : vector<1x200xf32>
    %109 = vector.extract_strided_slice %24 {offsets = [17, 0], sizes = [1, 640], strides = [1, 1]} : vector<18x640xbf16> to vector<1x640xbf16>
    %c17 = arith.constant 17 : index
    %c0_71 = arith.constant 0 : index
    %c0_72 = arith.constant 0 : index
    %110 = vector.load %arg7[%c17, %c0_71, %c0_72] : memref<18x640x200xbf16, #tpu.memory_space<vmem>>, vector<1x640x200xbf16>
    %111 = vector.shape_cast %110 : vector<1x640x200xbf16> to vector<640x200xbf16>
    %cst_73 = arith.constant dense<0.000000e+00> : vector<1x200xf32>
    %112 = tpu.matmul %109, %111, %cst_73 {dimension_numbers = #tpu.dot_dimension_numbers<[1], [0], [0], [1], [0, 0, 1, 1], [], []>} : vector<1x640xbf16>, vector<640x200xbf16>, vector<1x200xf32> -> vector<1x200xf32>
    %113 = arith.addf %108, %112 : vector<1x200xf32>
    %c0_74 = arith.constant 0 : index
    %c0_75 = arith.constant 0 : index
    %114 = vector.load %arg8[%c0_74, %c0_75] : memref<1x200xf32, #tpu.memory_space<vmem>>, vector<1x200xf32>
    %115 = arith.addf %113, %114 : vector<1x200xf32>
    %cst_76 = arith.constant 0.000000e+00 : f32
    %116 = vector.broadcast %cst_76 : f32 to vector<1x200xf32>
    %117 = arith.maximumf %115, %116 : vector<1x200xf32>
    %c0_77 = arith.constant 0 : index
    %c0_78 = arith.constant 0 : index
    %c0_79 = arith.constant 0 : index
    %118 = vector.load %arg9[%c0_77, %c0_78, %c0_79] : memref<1x1x200xf32, #tpu.memory_space<vmem>>, vector<1x1x200xf32>
    %119 = vector.shape_cast %118 : vector<1x1x200xf32> to vector<1x200xf32>
    %120 = vector.shape_cast %117 : vector<1x200xf32> to vector<1x1x200xf32>
    tpu.vector_store %arg9[%c0_77, %c0_78, %c0_79], %120 {strides = array<i32>} : memref<1x1x200xf32, #tpu.memory_space<vmem>>, vector<1x1x200xf32>,
    return
  }
  func.func @transform_0(%arg0: i32, %arg1: memref<4xi32, #tpu.memory_space<smem>>, %arg2: memref<4xi32, #tpu.memory_space<smem>>) -> (i32, i32, i32) {
    %0 = arith.index_cast %arg0 : i32 to index
    %1 = memref.load %arg1[%0] : memref<4xi32, #tpu.memory_space<smem>>
    %c0_i32 = arith.constant 0 : i32
    %c0_i32_0 = arith.constant 0 : i32
    %c0_i32_1 = arith.constant 0 : i32
    return %1, %c0_i32, %c0_i32_0 : i32, i32, i32
  }
  func.func @transform_1(%arg0: i32, %arg1: memref<4xi32, #tpu.memory_space<smem>>, %arg2: memref<4xi32, #tpu.memory_space<smem>>) -> (i32, i32, i32) {
    %0 = arith.index_cast %arg0 : i32 to index
    %1 = memref.load %arg2[%0] : memref<4xi32, #tpu.memory_space<smem>>
    %c0_i32 = arith.constant 0 : i32
    %c0_i32_0 = arith.constant 0 : i32
    %c0_i32_1 = arith.constant 0 : i32
    return %1, %c0_i32, %c0_i32_0 : i32, i32, i32
  }
  func.func @transform_2(%arg0: i32, %arg1: memref<4xi32, #tpu.memory_space<smem>>, %arg2: memref<4xi32, #tpu.memory_space<smem>>) -> (i32, i32, i32) {
    %c0_i32 = arith.constant 0 : i32
    %c0_i32_0 = arith.constant 0 : i32
    %c0_i32_1 = arith.constant 0 : i32
    %c0_i32_2 = arith.constant 0 : i32
    return %c0_i32, %c0_i32_0, %c0_i32_1 : i32, i32, i32
  }
  func.func @transform_3(%arg0: i32, %arg1: memref<4xi32, #tpu.memory_space<smem>>, %arg2: memref<4xi32, #tpu.memory_space<smem>>) -> (i32, i32) {
    %c0_i32 = arith.constant 0 : i32
    %c0_i32_0 = arith.constant 0 : i32
    %c0_i32_1 = arith.constant 0 : i32
    return %c0_i32, %c0_i32_0 : i32, i32
  }
  func.func @transform_4(%arg0: i32, %arg1: memref<4xi32, #tpu.memory_space<smem>>, %arg2: memref<4xi32, #tpu.memory_space<smem>>) -> (i32, i32, i32) {
    %c0_i32 = arith.constant 0 : i32
    %c0_i32_0 = arith.constant 0 : i32
    %c0_i32_1 = arith.constant 0 : i32
    %c0_i32_2 = arith.constant 0 : i32
    return %c0_i32, %c0_i32_0, %c0_i32_1 : i32, i32, i32
  }
  func.func @transform_5(%arg0: i32, %arg1: memref<4xi32, #tpu.memory_space<smem>>, %arg2: memref<4xi32, #tpu.memory_space<smem>>) -> (i32, i32) {
    %c0_i32 = arith.constant 0 : i32
    %c0_i32_0 = arith.constant 0 : i32
    %c0_i32_1 = arith.constant 0 : i32
    return %c0_i32, %c0_i32_0 : i32, i32
  }
  func.func @transform_6(%arg0: i32, %arg1: memref<4xi32, #tpu.memory_space<smem>>, %arg2: memref<4xi32, #tpu.memory_space<smem>>) -> (i32, i32, i32) {
    %c0_i32 = arith.constant 0 : i32
    %c0_i32_0 = arith.constant 0 : i32
    %c0_i32_1 = arith.constant 0 : i32
    return %arg0, %c0_i32, %c0_i32_0 : i32, i32, i32
  }
}

</mosaic_0001>

<llo_original>
// kernel: _lambda_.3
$region0: #{_lambda_.3}
  #allocation0 [shape = 'u32[]', space=smem, size = 0x4, offset = 0x4, fixed_abs, tag = 'smem constant byte address 0x4 - core index']
  #allocation1 [shape = 'u32[144,128]{1,0:T(1,128)}', space=vmem, size = 0x12000, scoped, tag = 'internal scratch']
  %s0 = inlined_call_operand.vmem [shape: f32[4,200], index: 0, kind: input, shape index: {}]
  %s1 = inlined_call_operand.vmem [shape: bf16[200,384], index: 1, kind: input, shape index: {}]
  %s2 = inlined_call_operand.vmem [shape: f32[1,384], index: 2, kind: input, shape index: {}]
  %s3 = inlined_call_operand.hbm [shape: f32[4,384], index: 3, kind: output, shape index: {}]
  %s4 = sld [smem:[#allocation0]]
  $region22: #{_lambda_.3} parent=0
    _
  %s6 = ssub.s32 1, %s4
  %s7 = scalar_select 0, %s6, %s4
  $region1: #{_lambda_.3} parent=0
    #allocation2 [shape = 'u8[6144]{0}', space=vmem, size = 0x1800, scoped, tag = 'output window, operand 0, single buffered']
    #allocation3 [shape = 's32[1]{0}', space=sflag, size = 0x4, scoped, tag = 'scoped memory for _lambda_.3']
    %8 = vsyncpa [#allocation3], 0
    // Predicated region
    $region2: #{_lambda_.3} parent=1 // pred_check
      _
    $region3: #{_lambda_.3} parent=1 // pred_check_branch
      %10 = sbr.rel (0) target = $region5
    $region4: #{_lambda_.3} parent=1 // pred_region
      _
    $region5: #{_lambda_.3} parent=1 // pred_fallthru
      _
    // Predicated region
    $region6: #{_lambda_.3} parent=1 // pred_check
      _
    $region7: #{_lambda_.3} parent=1 // pred_check_branch
      %12 = sbr.rel (0) target = $region9
    $region8: #{_lambda_.3} parent=1 // pred_region
      _
    $region9: #{_lambda_.3} parent=1 // pred_fallthru
      _
    // Predicated region
    $region10: #{_lambda_.3} parent=1 // pred_check
      _
    $region11: #{_lambda_.3} parent=1 // pred_check_branch
      %14 = sbr.rel (0) target = $region13
    $region12: #{_lambda_.3} parent=1 // pred_region
      _
    $region13: #{_lambda_.3} parent=1 // pred_fallthru
      _
    %v16 = vld [vmem:[%s0] sm:$0xff]
    %v18 = vcombine.high %v16, %v16
    %v20 = vpack.c.bf16 %v16, %v16
    %v21 = vpack.c.bf16 %v18, %v18
    %v22 = vld [vmem:[%s1] sm:$0xff]
    %v23 = vld [vmem:[%s1 + $0x8] sm:$0xf]
    %v24 = vld [vmem:[%s1 + $0xc] sm:$0xff]
    %v25 = vld [vmem:[%s1 + $0x14] sm:$0xf]
    %v26 = vld [vmem:[%s1 + $0x18] sm:$0xff]
    %v27 = vld [vmem:[%s1 + $0x20] sm:$0xf]
    %v28 = vld [vmem:[%s1 + $0x24] sm:$0xff]
    %v29 = vld [vmem:[%s1 + $0x2c] sm:$0xf]
    %v30 = vld [vmem:[%s1 + $0x30] sm:$0xff]
    %v31 = vld [vmem:[%s1 + $0x38] sm:$0xf]
    %v32 = vld [vmem:[%s1 + $0x3c] sm:$0xff]
    %v33 = vld [vmem:[%s1 + $0x44] sm:$0xf]
    %v34 = vld [vmem:[%s1 + $0x48] sm:$0xff]
    %v35 = vld [vmem:[%s1 + $0x50] sm:$0xf]
    %v36 = vld [vmem:[%s1 + $0x54] sm:$0xff]
    %v37 = vld [vmem:[%s1 + $0x5c] sm:$0xf]
    %v38 = vld [vmem:[%s1 + $0x60] sm:$0xff]
    %v39 = vld [vmem:[%s1 + $0x68] sm:$0xf]
    %v40 = vld [vmem:[%s1 + $0x6c] sm:$0xff]
    %v41 = vld [vmem:[%s1 + $0x74] sm:$0xf]
    %v42 = vld [vmem:[%s1 + $0x78] sm:$0xff]
    %v43 = vld [vmem:[%s1 + $0x80] sm:$0xf]
    %v44 = vld [vmem:[%s1 + $0x84] sm:$0xff]
    %v45 = vld [vmem:[%s1 + $0x8c] sm:$0xf]
    %v46 = vld [vmem:[%s1 + $0x90] sm:$0xff]
    %v47 = vld [vmem:[%s1 + $0x98] sm:$0xf]
    %v48 = vld [vmem:[%s1 + $0x9c] sm:$0xff]
    %v49 = vld [vmem:[%s1 + $0xa4] sm:$0xf]
    %v50 = vld [vmem:[%s1 + $0xa8] sm:$0xff]
    %v51 = vld [vmem:[%s1 + $0xb0] sm:$0xf]
    %v52 = vld [vmem:[%s1 + $0xb4] sm:$0xff]
    %v53 = vld [vmem:[%s1 + $0xbc] sm:$0xf]
    %v54 = vld [vmem:[%s1 + $0xc0] sm:$0xff]
    %v55 = vld [vmem:[%s1 + $0xc8] sm:$0xf]
    %v56 = vld [vmem:[%s1 + $0xcc] sm:$0xff]
    %v57 = vld [vmem:[%s1 + $0xd4] sm:$0xf]
    %v58 = vld [vmem:[%s1 + $0xd8] sm:$0xff]
    %v59 = vld [vmem:[%s1 + $0xe0] sm:$0xf]
    %v60 = vld [vmem:[%s1 + $0xe4] sm:$0xff]
    %v61 = vld [vmem:[%s1 + $0xec] sm:$0xf]
    %v62 = vld [vmem:[%s1 + $0xf0] sm:$0xff]
    %v63 = vld [vmem:[%s1 + $0xf8] sm:$0xf]
    %v64 = vld [vmem:[%s1 + $0xfc] sm:$0xff]
    %v65 = vld [vmem:[%s1 + $0x104] sm:$0xf]
    %v66 = vld [vmem:[%s1 + $0x108] sm:$0xff]
    %v67 = vld [vmem:[%s1 + $0x110] sm:$0xf]
    %v68 = vld [vmem:[%s1 + $0x114] sm:$0xff]
    %v69 = vld [vmem:[%s1 + $0x11c] sm:$0xf]
    %v70 = vld [vmem:[%s1 + $0x120] sm:$0xff]
    %v71 = vld [vmem:[%s1 + $0x128] sm:$0xf]
    %v72 = vld [vmem:[%s2] sm:$0x7]
    %v74 = vlaneseq
    %v75 = vshrl.u32 %v74, 7
    %v76 = vsub.s32 0, %v75
    %v77 = vrot.slane %v72, %v76
    %v78 = vlaneseq
    %v79 = vshrl.u32 %v78, 7
    %v80 = vsub.s32 1, %v79
    %v81 = vrot.slane %v72, %v80
    %v82 = vlaneseq
    %v83 = vshrl.u32 %v82, 7
    %v84 = vsub.s32 2, %v83
    %v85 = vrot.slane %v72, %v84
    %v139 = vunpack.c.l.b16 %v22
    %v140 = vunpack.c.h.b16 %v22
    %v141 = vunpack.c.l.b16 %v23
    %v142 = vunpack.c.l.b16 %v24
    %v143 = vunpack.c.h.b16 %v24
    %v144 = vunpack.c.l.b16 %v25
    %v145 = vunpack.c.l.b16 %v26
    %v146 = vunpack.c.h.b16 %v26
    %v147 = vunpack.c.l.b16 %v27
    %v148 = vunpack.c.l.b16 %v28
    %v149 = vunpack.c.h.b16 %v28
    %v150 = vunpack.c.l.b16 %v29
    %v151 = vunpack.c.l.b16 %v30
    %v152 = vunpack.c.h.b16 %v30
    %v153 = vunpack.c.l.b16 %v31
    %v154 = vunpack.c.l.b16 %v32
    %v155 = vunpack.c.h.b16 %v32
    %v156 = vunpack.c.l.b16 %v33
    %v157 = vunpack.c.l.b16 %v34
    %v158 = vunpack.c.h.b16 %v34
    %v159 = vunpack.c.l.b16 %v35
    %v160 = vunpack.c.l.b16 %v36
    %v161 = vunpack.c.h.b16 %v36
    %v162 = vunpack.c.l.b16 %v37
    %v163 = vunpack.c.l.b16 %v38
    %v164 = vunpack.c.h.b16 %v38
    %v165 = vunpack.c.l.b16 %v39
    %v166 = vunpack.c.l.b16 %v40
    %v167 = vunpack.c.h.b16 %v40
    %v168 = vunpack.c.l.b16 %v41
    %v169 = vunpack.c.l.b16 %v42
    %v170 = vunpack.c.h.b16 %v42
    %v171 = vunpack.c.l.b16 %v43
    %v172 = vunpack.c.l.b16 %v44
    %v173 = vunpack.c.h.b16 %v44
    %v174 = vunpack.c.l.b16 %v45
    %v175 = vunpack.c.l.b16 %v46
    %v176 = vunpack.c.h.b16 %v46
    %v177 = vunpack.c.l.b16 %v47
    %v178 = vunpack.c.l.b16 %v48
    %v179 = vunpack.c.h.b16 %v48
    %v180 = vunpack.c.l.b16 %v49
    %v181 = vunpack.c.l.b16 %v50
    %v182 = vunpack.c.h.b16 %v50
    %v183 = vunpack.c.l.b16 %v51
    %v184 = vunpack.c.l.b16 %v52
    %v185 = vunpack.c.h.b16 %v52
    %v186 = vunpack.c.l.b16 %v53
    %v187 = vunpack.c.l.b16 %v54
    %v188 = vunpack.c.h.b16 %v54
    %v189 = vunpack.c.l.b16 %v55
    %v190 = vunpack.c.l.b16 %v56
    %v191 = vunpack.c.h.b16 %v56
    %v192 = vunpack.c.l.b16 %v57
    %v193 = vunpack.c.l.b16 %v58
    %v194 = vunpack.c.h.b16 %v58
    %v195 = vunpack.c.l.b16 %v59
    %v196 = vunpack.c.l.b16 %v60
    %v197 = vunpack.c.h.b16 %v60
    %v198 = vunpack.c.l.b16 %v61
    %v199 = vunpack.c.l.b16 %v62
    %v200 = vunpack.c.h.b16 %v62
    %v201 = vunpack.c.l.b16 %v63
    %v202 = vunpack.c.l.b16 %v64
    %v203 = vunpack.c.h.b16 %v64
    %v204 = vunpack.c.l.b16 %v65
    %v205 = vunpack.c.l.b16 %v66
    %v206 = vunpack.c.h.b16 %v66
    %v207 = vunpack.c.l.b16 %v67
    %v208 = vunpack.c.l.b16 %v68
    %v209 = vunpack.c.h.b16 %v68
    %v210 = vunpack.c.l.b16 %v69
    %v211 = vunpack.c.l.b16 %v70
    %v212 = vunpack.c.h.b16 %v70
    %v213 = vunpack.c.l.b16 %v71
    %v214 = vpack.c.b16 %v142, %v139
    %v215 = vpack.c.b16 %v143, %v140
    %v216 = vpack.c.b16 %v144, %v141
    %v217 = vpack.c.b16 %v148, %v145
    %v218 = vpack.c.b16 %v149, %v146
    %v219 = vpack.c.b16 %v150, %v147
    %v220 = vpack.c.b16 %v154, %v151
    %v221 = vpack.c.b16 %v155, %v152
    %v222 = vpack.c.b16 %v156, %v153
    %v223 = vpack.c.b16 %v160, %v157
    %v224 = vpack.c.b16 %v161, %v158
    %v225 = vpack.c.b16 %v162, %v159
    %v226 = vpack.c.b16 %v166, %v163
    %v227 = vpack.c.b16 %v167, %v164
    %v228 = vpack.c.b16 %v168, %v165
    %v229 = vpack.c.b16 %v172, %v169
    %v230 = vpack.c.b16 %v173, %v170
    %v231 = vpack.c.b16 %v174, %v171
    %v232 = vpack.c.b16 %v178, %v175
    %v233 = vpack.c.b16 %v179, %v176
    %v234 = vpack.c.b16 %v180, %v177
    %v235 = vpack.c.b16 %v184, %v181
    %v236 = vpack.c.b16 %v185, %v182
    %v237 = vpack.c.b16 %v186, %v183
    %v238 = vpack.c.b16 %v190, %v187
    %v239 = vpack.c.b16 %v191, %v188
    %v240 = vpack.c.b16 %v192, %v189
    %v241 = vpack.c.b16 %v196, %v193
    %v242 = vpack.c.b16 %v197, %v194
    %v243 = vpack.c.b16 %v198, %v195
    %v244 = vpack.c.b16 %v202, %v199
    %v245 = vpack.c.b16 %v203, %v200
    %v246 = vpack.c.b16 %v204, %v201
    %v247 = vpack.c.b16 %v208, %v205
    %v248 = vpack.c.b16 %v209, %v206
    %v249 = vpack.c.b16 %v210, %v207
    %v250 = vpack.c.b16 %v211, %v211
    %v251 = vpack.c.b16 %v212, %v212
    %v252 = vpack.c.b16 %v213, %v213
    %vm289 = vcmask 588800
    %v291 = vsel %vm289, %v21, 0
    %vm293 = vcmask 1043456
    %v295 = vsel %vm293, %v250, 0
    %v298 = vsel %vm293, %v251, 0
    %v301 = vsel %vm293, %v252, 0
    %303 = vmatprep.subr.bf16.mxu0 %v215
    %304 = vmatpush1.bf16.msra.mxu0 %v214
    %305 = vmatprep.subr.bf16.mxu0 %v218
    %306 = vmatpush1.bf16.msra.mxu0 %v217
    %307 = vmatprep.subr.bf16.mxu0 %v221
    %308 = vmatpush1.bf16.msra.mxu0 %v220
    %309 = vmatprep.subr.bf16.mxu0 %v224
    %310 = vmatpush1.bf16.msra.mxu0 %v223
    %311 = vmatprep.subr.bf16.mxu0 %v227
    %312 = vmatpush1.bf16.msra.mxu0 %v226
    %313 = vmatprep.subr.bf16.mxu0 %v230
    %314 = vmatpush1.bf16.msra.mxu0 %v229
    %315 = vmatprep.subr.bf16.mxu0 %v233
    %316 = vmatpush1.bf16.msra.mxu0 %v232
    %317 = vmatprep.subr.bf16.mxu0 %v236
    %318 = vmatpush1.bf16.msra.mxu0 %v235
    %319 = vmatprep.subr.bf16.mxu0 %v239
    %320 = vmatpush1.bf16.msra.mxu0 %v238
    %321 = vmatprep.subr.bf16.mxu0 %v242
    %322 = vmatpush1.bf16.msra.mxu0 %v241
    %323 = vmatprep.subr.bf16.mxu0 %v245
    %324 = vmatpush1.bf16.msra.mxu0 %v244
    %325 = vmatprep.subr.bf16.mxu0 %v248
    %326 = vmatpush1.bf16.msra.mxu0 %v247
    %327 = vmatprep.subr.bf16.mxu0 %v298
    %328 = vmatpush1.bf16.msra.mxu0 %v295
    %329 = vmatprep.subr.bf16.mxu0 0
    %330 = vmatpush1.bf16.msra.mxu0 0
    %331 = vmatprep.subr.bf16.mxu0 0
    %332 = vmatpush1.bf16.msra.mxu0 0
    %333 = vmatprep.subr.bf16.mxu0 0
    %334 = vmatpush1.bf16.msra.mxu0 0
    %335 = vmatprep.mubr.bf16.mxu0 %v291
    %336 = vmatmul.mubr.bf16.gmra.mrb[0].mxu0 %v20
    %v337 = vpop.f32.mrb[0].mxu0
    %v338 = vadd.f32 %v77, %v337
    %v339 = vpop.f32.mrb[0].mxu0
    %v340 = vadd.f32 %v81, %v339
    %v341 = vpop.f32.mrb[0].mxu0
    %v342 = vpop.f32.mrb[0].mxu0
    %343 = vdwg.mxu0
    %344 = vmatprep.subr.bf16.mxu0 0
    %345 = vmatpush1.bf16.msra.mxu0 %v216
    %346 = vmatprep.subr.bf16.mxu0 0
    %347 = vmatpush1.bf16.msra.mxu0 %v219
    %348 = vmatprep.subr.bf16.mxu0 0
    %349 = vmatpush1.bf16.msra.mxu0 %v222
    %350 = vmatprep.subr.bf16.mxu0 0
    %351 = vmatpush1.bf16.msra.mxu0 %v225
    %352 = vmatprep.subr.bf16.mxu0 0
    %353 = vmatpush1.bf16.msra.mxu0 %v228
    %354 = vmatprep.subr.bf16.mxu0 0
    %355 = vmatpush1.bf16.msra.mxu0 %v231
    %356 = vmatprep.subr.bf16.mxu0 0
    %357 = vmatpush1.bf16.msra.mxu0 %v234
    %358 = vmatprep.subr.bf16.mxu0 0
    %359 = vmatpush1.bf16.msra.mxu0 %v237
    %360 = vmatprep.subr.bf16.mxu0 0
    %361 = vmatpush1.bf16.msra.mxu0 %v240
    %362 = vmatprep.subr.bf16.mxu0 0
    %363 = vmatpush1.bf16.msra.mxu0 %v243
    %364 = vmatprep.subr.bf16.mxu0 0
    %365 = vmatpush1.bf16.msra.mxu0 %v246
    %366 = vmatprep.subr.bf16.mxu0 0
    %367 = vmatpush1.bf16.msra.mxu0 %v249
    %368 = vmatprep.subr.bf16.mxu0 0
    %369 = vmatpush1.bf16.msra.mxu0 %v301
    %370 = vmatprep.subr.bf16.mxu0 0
    %371 = vmatpush1.bf16.msra.mxu0 0
    %372 = vmatprep.subr.bf16.mxu0 0
    %373 = vmatpush1.bf16.msra.mxu0 0
    %374 = vmatprep.subr.bf16.mxu0 0
    %375 = vmatpush1.bf16.msra.mxu0 0
    %376 = vmatprep.mubr.bf16.mxu0 %v291
    %377 = vmatmul.mubr.bf16.gmra.mrb[0].mxu0 %v20
    %v378 = vpop.f32.mrb[0].mxu0
    %v379 = vadd.f32 %v85, %v378
    %v380 = vpop.f32.mrb[0].mxu0
    %v381 = vpop.f32.mrb[0].mxu0
    %v382 = vpop.f32.mrb[0].mxu0
    %383 = vdwg.mxu0
    %v384 = vxor.u32 %v338, 2147483648
    %v385 = vxor.u32 %v340, 2147483648
    %v386 = vxor.u32 %v379, 2147483648
    %v387 = vmul.f32 %v384, 1.442695
    %v388 = vpow.pop %v387
    %v389 = vmul.f32 %v385, 1.442695
    %v390 = vpow.pop %v389
    %v391 = vmul.f32 %v386, 1.442695
    %v392 = vpow.pop %v391
    %v393 = vadd.f32 %v388, 1.0
    %v394 = vadd.f32 %v390, 1.0
    %v395 = vadd.f32 %v392, 1.0
    %v396 = vrcp.pop %v393
    %v397 = vmul.f32 1.0, %v396
    %v398 = vrcp.pop %v394
    %v399 = vmul.f32 1.0, %v398
    %v400 = vrcp.pop %v395
    %v401 = vmul.f32 1.0, %v400
    %v404 = vcombine.low %v397, %v399
    %406 = vst [vmem:[#allocation2] sm:$0xff] %v404
    %407 = vst [vmem:[#allocation2 + $0x8] sm:$0xf] %v401
    // Predicated region
    $region14: #{_lambda_.3} parent=1 // pred_check
      _
    $region15: #{_lambda_.3} parent=1 // pred_check_branch
      %409 = sbr.rel (0) target = $region17
    $region16: #{_lambda_.3} parent=1 // pred_region
      %s411 = ssub.s32 192, 192
      %412 = vsyncadd [#allocation3], %s411
      %s414 = sshll.u32 [#allocation2], 4
      %s415 = int_to_ptr.vmem [resolvable:$true] %s414
      %417 = dma.vmem_to_hbm [thread:$0]  %s415, 192, %s3, [#allocation3]
    $region17: #{_lambda_.3} parent=1 // pred_fallthru
      _
    // Predicated region
    $region18: #{_lambda_.3} parent=1 // pred_check
      _
    $region19: #{_lambda_.3} parent=1 // pred_check_branch
      %419 = sbr.rel (0) target = $region21
    $region20: #{_lambda_.3} parent=1 // pred_region
      %420 = dma.done [#allocation3], 192
    $region21: #{_lambda_.3} parent=1 // pred_fallthru
      _
    %421 = vsyncpa [#allocation3], 1

// kernel: _lambda_.2
$region0: #{_lambda_.2}
  #allocation0 [shape = 'u32[]', space=smem, size = 0x4, offset = 0x4, fixed_abs, tag = 'smem constant byte address 0x4 - core index']
  #allocation1 [shape = 'u32[144,128]{1,0:T(1,128)}', space=vmem, size = 0x12000, scoped, tag = 'internal scratch']
  #allocation2 [shape = 's32[1]{0}', space=sflag, size = 0x4, scoped, tag = 'scoped memory for _lambda_.2']
  #allocation3 [shape = 'u8[512]{0}', space=smem, size = 0x200, scoped, tag = 'prefetched SMEM operand 0']
  #allocation4 [shape = 'u8[512]{0}', space=smem, size = 0x200, scoped, tag = 'prefetched SMEM operand 1']
  %s0 = inlined_call_operand.vmem [shape: s32[4], index: 0, kind: input, shape index: {}]
  %s1 = inlined_call_operand.vmem [shape: s32[4], index: 1, kind: input, shape index: {}]
  %s2 = inlined_call_operand.vmem [shape: f32[300,20,20], index: 2, kind: input, shape index: {}]
  %s3 = inlined_call_operand.vmem [shape: f32[20,20,20], index: 3, kind: input, shape index: {}]
  %s4 = inlined_call_operand.vmem [shape: f32[3,20,640], index: 4, kind: input, shape index: {}]
  %s5 = inlined_call_operand.vmem [shape: f32[1,640], index: 5, kind: input, shape index: {}]
  %s6 = inlined_call_operand.vmem [shape: bf16[18,640,200], index: 6, kind: input, shape index: {}]
  %s7 = inlined_call_operand.vmem [shape: f32[1,200], index: 7, kind: input, shape index: {}]
  %s8 = inlined_call_operand.vmem [shape: f32[4,1,200], index: 8, kind: output, shape index: {}]
  %s9 = sld [smem:[#allocation0]]
  $region57: #{_lambda_.2} parent=0
    _
  %s11 = ssub.s32 1, %s9
  %s12 = scalar_select 0, %s11, %s9
  %s13 = sshll.u32 %s0, 4
  %s14 = int_to_ptr.vmem [resolvable:$true] %s13
  %16 = dma.vmem_to_smem %s14, 16, [#allocation3], [#allocation2]
  %s17 = sshll.u32 %s1, 4
  %s18 = int_to_ptr.vmem [resolvable:$true] %s17
  %20 = dma.vmem_to_smem %s18, 16, [#allocation4], [#allocation2]
  %21 = dma.done [#allocation2], 32
  %22 = sfence
  loop: start=0, step=1, limit=6
  $region2: #{_lambda_.2} parent=0 // loop_pre_header
    _
  $region3: #{_lambda_.2} parent=0 // loop_header
    %s24 = sphi 0, %s28
    %p25 = scmp.ge.s32.totalorder %s24, 6
    %s36 = sphi 0, %s38
    %s39 = sphi 0, %s36
    %s40 = sphi 0, %s39
    %s56 = sphi 0, %s40
    %s64 = sphi 0, %s66
    %s67 = sphi 0, %s64
    %s68 = sphi 0, %s67
    %s84 = sphi 0, %s68
    %s88 = sphi 0, %s88
    %s90 = sphi 0, %s88
    %s91 = sphi 0, %s90
    %s105 = sphi 0, %s91
    %s109 = sphi 0, %s109
    %s111 = sphi 0, %s109
    %s112 = sphi 0, %s111
    %s126 = sphi 0, %s112
    %s130 = sphi 0, %s130
    %s132 = sphi 0, %s130
    %s133 = sphi 0, %s132
    %s147 = sphi 0, %s133
    %s151 = sphi 0, %s151
    %s153 = sphi 0, %s151
    %s154 = sphi 0, %s153
    %s168 = sphi 0, %s154
    %s174 = sphi 0, %s176
    %s177 = sphi 0, %s174
    %s178 = sphi 0, %s177
    %s194 = sphi 0, %s178
  $region4: #{_lambda_.2} parent=0 // loop_header_branch
    %27 = sbr.rel (%p25) target = $region8
  $region5: #{_lambda_.2} parent=0 // loop_body
    %s29 = ssub.s32 %s24, 1
    %s30 = ssub.s32 %s24, 2
    %s31 = sadd.s32 %s24, 1
    %s32 = sld [smem:[#allocation3 + %s24]]
    %s33 = sld [smem:[#allocation3 + %s31]]
    %s34 = ssub.s32 %s32, %s33
    %p35 = scmp.eq.s32.totalorder %s34, 0
    %s37 = sadd.s32 %s36, 1
    %s38 = scalar_select %p35, %s36, %s37
    %p41 = pneg %p35
    %p42 = scmp.eq.s32.totalorder %s24, 3
    %p43 = por %p41, %p42
    %p44 = scmp.ne.s32.totalorder %s36, %s39
    %p45 = scmp.eq.s32.totalorder %s24, 0
    %p46 = por %p44, %p45
    %p47 = scmp.ne.s32.totalorder %s36, %s39
    %p48 = scmp.eq.s32.totalorder %s29, 3
    %p49 = por %p47, %p48
    %p50 = scmp.ne.s32.totalorder %s39, %s40
    %p51 = scmp.eq.s32.totalorder %s29, 0
    %p52 = por %p50, %p51
    %p53 = scmp.ne.s32.totalorder %s39, %s40
    %p54 = scmp.eq.s32.totalorder %s30, 3
    %p55 = por %p53, %p54
    %p57 = scmp.ne.s32.totalorder %s40, %s56
    %p58 = scmp.eq.s32.totalorder %s30, 0
    %p59 = por %p57, %p58
    %s60 = sld [smem:[#allocation4 + %s24]]
    %s61 = sld [smem:[#allocation4 + %s31]]
    %s62 = ssub.s32 %s60, %s61
    %p63 = scmp.eq.s32.totalorder %s62, 0
    %s65 = sadd.s32 %s64, 1
    %s66 = scalar_select %p63, %s64, %s65
    %p69 = pneg %p63
    %p70 = scmp.eq.s32.totalorder %s24, 3
    %p71 = por %p69, %p70
    %p72 = scmp.ne.s32.totalorder %s64, %s67
    %p73 = scmp.eq.s32.totalorder %s24, 0
    %p74 = por %p72, %p73
    %p75 = scmp.ne.s32.totalorder %s64, %s67
    %p76 = scmp.eq.s32.totalorder %s29, 3
    %p77 = por %p75, %p76
    %p78 = scmp.ne.s32.totalorder %s67, %s68
    %p79 = scmp.eq.s32.totalorder %s29, 0
    %p80 = por %p78, %p79
    %p81 = scmp.ne.s32.totalorder %s67, %s68
    %p82 = scmp.eq.s32.totalorder %s30, 3
    %p83 = por %p81, %p82
    %p85 = scmp.ne.s32.totalorder %s68, %s84
    %p86 = scmp.eq.s32.totalorder %s30, 0
    %p87 = por %p85, %p86
    %s89 = sadd.s32 %s88, 1
    %p92 = scmp.eq.s32.totalorder %s24, 3
    %p93 = scmp.ne.s32.totalorder %s88, %s90
    %p94 = scmp.eq.s32.totalorder %s24, 0
    %p95 = por %p93, %p94
    %p96 = scmp.ne.s32.totalorder %s88, %s90
    %p97 = scmp.eq.s32.totalorder %s29, 3
    %p98 = por %p96, %p97
    %p99 = scmp.ne.s32.totalorder %s90, %s91
    %p100 = scmp.eq.s32.totalorder %s29, 0
    %p101 = por %p99, %p100
    %p102 = scmp.ne.s32.totalorder %s90, %s91
    %p103 = scmp.eq.s32.totalorder %s30, 3
    %p104 = por %p102, %p103
    %p106 = scmp.ne.s32.totalorder %s91, %s105
    %p107 = scmp.eq.s32.totalorder %s30, 0
    %p108 = por %p106, %p107
    %s110 = sadd.s32 %s109, 1
    %p113 = scmp.eq.s32.totalorder %s24, 3
    %p114 = scmp.ne.s32.totalorder %s109, %s111
    %p115 = scmp.eq.s32.totalorder %s24, 0
    %p116 = por %p114, %p115
    %p117 = scmp.ne.s32.totalorder %s109, %s111
    %p118 = scmp.eq.s32.totalorder %s29, 3
    %p119 = por %p117, %p118
    %p120 = scmp.ne.s32.totalorder %s111, %s112
    %p121 = scmp.eq.s32.totalorder %s29, 0
    %p122 = por %p120, %p121
    %p123 = scmp.ne.s32.totalorder %s111, %s112
    %p124 = scmp.eq.s32.totalorder %s30, 3
    %p125 = por %p123, %p124
    %p127 = scmp.ne.s32.totalorder %s112, %s126
    %p128 = scmp.eq.s32.totalorder %s30, 0
    %p129 = por %p127, %p128
    %s131 = sadd.s32 %s130, 1
    %p134 = scmp.eq.s32.totalorder %s24, 3
    %p135 = scmp.ne.s32.totalorder %s130, %s132
    %p136 = scmp.eq.s32.totalorder %s24, 0
    %p137 = por %p135, %p136
    %p138 = scmp.ne.s32.totalorder %s130, %s132
    %p139 = scmp.eq.s32.totalorder %s29, 3
    %p140 = por %p138, %p139
    %p141 = scmp.ne.s32.totalorder %s132, %s133
    %p142 = scmp.eq.s32.totalorder %s29, 0
    %p143 = por %p141, %p142
    %p144 = scmp.ne.s32.totalorder %s132, %s133
    %p145 = scmp.eq.s32.totalorder %s30, 3
    %p146 = por %p144, %p145
    %p148 = scmp.ne.s32.totalorder %s133, %s147
    %p149 = scmp.eq.s32.totalorder %s30, 0
    %p150 = por %p148, %p149
    %s152 = sadd.s32 %s151, 1
    %p155 = scmp.eq.s32.totalorder %s24, 3
    %p156 = scmp.ne.s32.totalorder %s151, %s153
    %p157 = scmp.eq.s32.totalorder %s24, 0
    %p158 = por %p156, %p157
    %p159 = scmp.ne.s32.totalorder %s151, %s153
    %p160 = scmp.eq.s32.totalorder %s29, 3
    %p161 = por %p159, %p160
    %p162 = scmp.ne.s32.totalorder %s153, %s154
    %p163 = scmp.eq.s32.totalorder %s29, 0
    %p164 = por %p162, %p163
    %p165 = scmp.ne.s32.totalorder %s153, %s154
    %p166 = scmp.eq.s32.totalorder %s30, 3
    %p167 = por %p165, %p166
    %p169 = scmp.ne.s32.totalorder %s154, %s168
    %p170 = scmp.eq.s32.totalorder %s30, 0
    %p171 = por %p169, %p170
    %s172 = ssub.s32 %s24, %s31
    %p173 = scmp.eq.s32.totalorder %s172, 0
    %s175 = sadd.s32 %s174, 1
    %s176 = scalar_select %p173, %s174, %s175
    %p179 = pneg %p173
    %p180 = scmp.eq.s32.totalorder %s24, 3
    %p181 = por %p179, %p180
    %p182 = scmp.ne.s32.totalorder %s174, %s177
    %p183 = scmp.eq.s32.totalorder %s24, 0
    %p184 = por %p182, %p183
    %p185 = scmp.ne.s32.totalorder %s174, %s177
    %p186 = scmp.eq.s32.totalorder %s29, 3
    %p187 = por %p185, %p186
    %p188 = scmp.ne.s32.totalorder %s177, %s178
    %p189 = scmp.eq.s32.totalorder %s29, 0
    %p190 = por %p188, %p189
    %p191 = scmp.ne.s32.totalorder %s177, %s178
    %p192 = scmp.eq.s32.totalorder %s30, 3
    %p193 = por %p191, %p192
    %p195 = scmp.ne.s32.totalorder %s178, %s194
    %p196 = scmp.eq.s32.totalorder %s30, 0
    %p197 = por %p195, %p196
    %p198 = scmp.le.s32.totalorder 1, %s24
    %p199 = scmp.lt.s32.totalorder %s24, 5
    %p200 = pnand %p198, %p199
    %p201 = pneg %p200
    // Predicated region
    $region9: #{_lambda_.2} parent=5 // pred_check
      _
    $region10: #{_lambda_.2} parent=5 // pred_check_branch
      %203 = sbr.rel (%p200) target = $region12
    $region11: #{_lambda_.2} parent=5 // pred_region
      %s204 = ssub.s32 %s24, 1
      // Predicated region
      $region13: #{_lambda_.2} parent=11 // pred_check
        %p205 = pneg %p101
      $region14: #{_lambda_.2} parent=11 // pred_check_branch
        %207 = sbr.rel (%p205) target = $region16
      $region15: #{_lambda_.2} parent=11 // pred_region
        _
      $region16: #{_lambda_.2} parent=11 // pred_fallthru
        _
      // Predicated region
      $region17: #{_lambda_.2} parent=11 // pred_check
        %p208 = pneg %p122
      $region18: #{_lambda_.2} parent=11 // pred_check_branch
        %210 = sbr.rel (%p208) target = $region20
      $region19: #{_lambda_.2} parent=11 // pred_region
        _
      $region20: #{_lambda_.2} parent=11 // pred_fallthru
        _
      // Predicated region
      $region21: #{_lambda_.2} parent=11 // pred_check
        %p211 = pneg %p143
      $region22: #{_lambda_.2} parent=11 // pred_check_branch
        %213 = sbr.rel (%p211) target = $region24
      $region23: #{_lambda_.2} parent=11 // pred_region
        _
      $region24: #{_lambda_.2} parent=11 // pred_fallthru
        _
      // Predicated region
      $region25: #{_lambda_.2} parent=11 // pred_check
        %p214 = pneg %p164
      $region26: #{_lambda_.2} parent=11 // pred_check_branch
        %216 = sbr.rel (%p214) target = $region28
      $region27: #{_lambda_.2} parent=11 // pred_region
        _
      $region28: #{_lambda_.2} parent=11 // pred_fallthru
        _
    $region12: #{_lambda_.2} parent=5 // pred_fallthru
      _
    %p217 = scmp.lt.s32.totalorder %s24, 4
    // Predicated region
    $region29: #{_lambda_.2} parent=5 // pred_check
      %p218 = pneg %p217
    $region30: #{_lambda_.2} parent=5 // pred_check_branch
      %220 = sbr.rel (%p218) target = $region32
    $region31: #{_lambda_.2} parent=5 // pred_region
      // Predicated region
      $region33: #{_lambda_.2} parent=31 // pred_check
        %p221 = pneg %p46
      $region34: #{_lambda_.2} parent=31 // pred_check_branch
        %223 = sbr.rel (%p221) target = $region36
      $region35: #{_lambda_.2} parent=31 // pred_region
        %s224 = sld [smem:[#allocation3 + %s24]]
        %p225 = scmp.lt.s32.totalorder %s224, 299
        %s226 = scalar_select %p225, %s224, 299
        %s227 = smul.addr %s226, 3
        %s228 = smul.addr %s227, 8
        %s229 = scalar_lea.vmem %s2, %s228
        %s230 = sld [smem:[#allocation3 + %s24]]
      $region36: #{_lambda_.2} parent=31 // pred_fallthru
        _
      // Predicated region
      $region37: #{_lambda_.2} parent=31 // pred_check
        %p231 = pneg %p74
      $region38: #{_lambda_.2} parent=31 // pred_check_branch
        %233 = sbr.rel (%p231) target = $region40
      $region39: #{_lambda_.2} parent=31 // pred_region
        %s234 = sld [smem:[#allocation4 + %s24]]
        %p235 = scmp.lt.s32.totalorder %s234, 19
        %s236 = scalar_select %p235, %s234, 19
        %s237 = smul.addr %s236, 3
        %s238 = smul.addr %s237, 8
        %s239 = scalar_lea.vmem %s3, %s238
        %s240 = sld [smem:[#allocation4 + %s24]]
      $region40: #{_lambda_.2} parent=31 // pred_fallthru
        _
    $region32: #{_lambda_.2} parent=5 // pred_fallthru
      _
    %p241 = scmp.le.s32.totalorder 1, %s24
    %p242 = scmp.lt.s32.totalorder %s24, 5
    %p243 = pnand %p241, %p242
    %p244 = pneg %p243
    // Predicated region
    $region41: #{_lambda_.2} parent=5 // pred_check
      _
    $region42: #{_lambda_.2} parent=5 // pred_check_branch
      %246 = sbr.rel (%p243) target = $region44
    $region43: #{_lambda_.2} parent=5 // pred_region
      %s247 = ssub.s32 %s24, 1
      %s248 = sld [smem:[#allocation3 + %s29]]
      %p249 = scmp.lt.s32.totalorder %s248, 299
      %s250 = scalar_select %p249, %s248, 299
      %s251 = smul.addr %s250, 3
      %s252 = smul.addr %s251, 8
      %s253 = scalar_lea.vmem %s2, %s252
      %p254 = pneg %p52
      %p255 = pneg %p49
      %s256 = sld [smem:[#allocation4 + %s29]]
      %p257 = scmp.lt.s32.totalorder %s256, 19
      %s258 = scalar_select %p257, %s256, 19
      %s259 = smul.addr %s258, 3
      %s260 = smul.addr %s259, 8
      %s261 = scalar_lea.vmem %s3, %s260
      %p262 = pneg %p80
      %p263 = pneg %p77
      %p264 = pneg %p101
      %p265 = pneg %p98
      %p266 = pneg %p122
      %p267 = pneg %p119
      %p268 = pneg %p143
      %p269 = pneg %p140
      %p270 = pneg %p164
      %p271 = pneg %p161
      %p272 = pneg %p190
      %p273 = pneg %p187
      %p274 = scmp.lt.s32.totalorder %s29, 3
      %s275 = scalar_select %p274, %s29, 3
      %s276 = smul.addr %s275, 2
      %s277 = scalar_lea.vmem %s8, %s276
      %s278 = sld [smem:[#allocation3 + %s29]]
      %p279 = scmp.lt.s32.totalorder %s278, 299
      %s280 = scalar_select %p279, %s278, 299
      %s281 = smul.addr %s280, 3
      %s282 = smul.addr %s281, 8
      %s283 = scalar_lea.vmem %s2, %s282
      %s284 = sld [smem:[#allocation3 + %s29]]
      %s285 = sld [smem:[#allocation4 + %s29]]
      %p286 = scmp.lt.s32.totalorder %s285, 19
      %s287 = scalar_select %p286, %s285, 19
      %s288 = smul.addr %s287, 3
      %s289 = smul.addr %s288, 8
      %s290 = scalar_lea.vmem %s3, %s289
      %s291 = sld [smem:[#allocation4 + %s29]]
      %p292 = scmp.lt.s32.totalorder %s29, 3
      %s293 = scalar_select %p292, %s29, 3
      %s294 = smul.addr %s293, 2
      %s295 = scalar_lea.vmem %s8, %s294
      %v297 = vld [vmem:[%s283] sm:$0xff]
      %v298 = vld [vmem:[%s283 + $0x8] sm:$0xff]
      %v299 = vld [vmem:[%s283 + $0x10] sm:$0xf]
      %v300 = vld [vmem:[%s290] sm:$0xff]
      %v301 = vld [vmem:[%s290 + $0x8] sm:$0xff]
      %v302 = vld [vmem:[%s290 + $0x10] sm:$0xf]
      %v303 = vadd.f32 %v297, %v300
      %v304 = vadd.f32 %v298, %v301
      %v305 = vadd.f32 %v299, %v302
      %v306 = vld [vmem:[%s4] sm:$0xff]
      %v307 = vld [vmem:[%s4 + $0x8] sm:$0xff]
      %v308 = vld [vmem:[%s4 + $0x10] sm:$0xff]
      %v309 = vld [vmem:[%s4 + $0x18] sm:$0xff]
      %v310 = vld [vmem:[%s4 + $0x20] sm:$0xff]
      %v311 = vld [vmem:[%s4 + $0x28] sm:$0xff]
      %v312 = vld [vmem:[%s4 + $0x30] sm:$0xff]
      %v313 = vld [vmem:[%s4 + $0x38] sm:$0xff]
      %v314 = vld [vmem:[%s4 + $0x40] sm:$0xff]
      %v315 = vld [vmem:[%s4 + $0x48] sm:$0xff]
      %v316 = vld [vmem:[%s4 + $0x50] sm:$0xf]
      %v317 = vld [vmem:[%s4 + $0x58] sm:$0xf]
      %v318 = vld [vmem:[%s4 + $0x60] sm:$0xf]
      %v319 = vld [vmem:[%s4 + $0x68] sm:$0xf]
      %v320 = vld [vmem:[%s4 + $0x70] sm:$0xf]
      %s321 = scalar_lea.vmem %s4, 120
      %v322 = vld [vmem:[%s321] sm:$0xff]
      %v323 = vld [vmem:[%s321 + $0x8] sm:$0xff]
      %v324 = vld [vmem:[%s321 + $0x10] sm:$0xff]
      %v325 = vld [vmem:[%s321 + $0x18] sm:$0xff]
      %v326 = vld [vmem:[%s321 + $0x20] sm:$0xff]
      %v327 = vld [vmem:[%s321 + $0x28] sm:$0xff]
      %v328 = vld [vmem:[%s321 + $0x30] sm:$0xff]
      %v329 = vld [vmem:[%s321 + $0x38] sm:$0xff]
      %v330 = vld [vmem:[%s321 + $0x40] sm:$0xff]
      %v331 = vld [vmem:[%s321 + $0x48] sm:$0xff]
      %v332 = vld [vmem:[%s321 + $0x50] sm:$0xf]
      %v333 = vld [vmem:[%s321 + $0x58] sm:$0xf]
      %v334 = vld [vmem:[%s321 + $0x60] sm:$0xf]
      %v335 = vld [vmem:[%s321 + $0x68] sm:$0xf]
      %v336 = vld [vmem:[%s321 + $0x70] sm:$0xf]
      %vm340 = vcmask 1046528
      %v341 = vrot.slane %v303, 1
      %v342 = vrot.slane %v304, 1
      %v343 = vsel %vm340, %v341, %v342
      %v344 = vrot.slane %v305, 1
      %v345 = vsel %vm340, %v342, %v344
      %vm346 = vcmask 162816
      %v347 = vsel %vm346, %v343, 0
      %v349 = vsel %vm346, %v345, 0
      %v351 = vsel %vm346, %v344, 0
      %vm353 = vcmask 1043456
      %v355 = vsel %vm353, %v332, 0
      %v358 = vsel %vm353, %v333, 0
      %v361 = vsel %vm353, %v334, 0
      %v364 = vsel %vm353, %v335, 0
      %v367 = vsel %vm353, %v336, 0
      %369 = vmatprep.subr.mxu0 %v323
      %370 = vmatpush1.msra.mxu0 %v322
      %371 = vmatprep.subr.mxu0 %v328
      %372 = vmatpush1.msra.mxu0 %v327
      %373 = vmatprep.subr.mxu0 %v358
      %374 = vmatpush1.msra.mxu0 %v355
      %375 = vmatprep.subr.mxu0 0.0
      %376 = vmatpush1.msra.mxu0 0.0
      %377 = vmatprep.subr.mxu0 0.0
      %378 = vmatpush1.msra.mxu0 0.0
      %379 = vmatprep.subr.mxu0 0.0
      %380 = vmatpush1.msra.mxu0 0.0
      %381 = vmatprep.subr.mxu0 0.0
      %382 = vmatpush1.msra.mxu0 0.0
      %383 = vmatprep.subr.mxu0 0.0
      %384 = vmatpush1.msra.mxu0 0.0
      %385 = vmatprep.subr.mxu0 0.0
      %386 = vmatpush1.msra.mxu0 0.0
      %387 = vmatprep.subr.mxu0 0.0
      %388 = vmatpush1.msra.mxu0 0.0
      %389 = vmatprep.subr.mxu0 0.0
      %390 = vmatpush1.msra.mxu0 0.0
      %391 = vmatprep.subr.mxu0 0.0
      %392 = vmatpush1.msra.mxu0 0.0
      %393 = vmatprep.subr.mxu0 0.0
      %394 = vmatpush1.msra.mxu0 0.0
      %395 = vmatprep.subr.mxu0 0.0
      %396 = vmatpush1.msra.mxu0 0.0
      %397 = vmatprep.subr.mxu0 0.0
      %398 = vmatpush1.msra.mxu0 0.0
      %399 = vmatprep.subr.mxu0 0.0
      %400 = vmatpush1.msra.mxu0 0.0
      %401 = vmatprep.subr.mxu0 0.0
      %402 = vmatpush1.msra.mxu0 0.0
      %403 = vmatprep.subr.mxu0 0.0
      %404 = vmatpush1.msra.mxu0 0.0
      %405 = vmatprep.subr.mxu0 0.0
      %406 = vmatpush1.msra.mxu0 0.0
      %407 = vmatprep.subr.mxu0 0.0
      %408 = vmatpush1.msra.mxu0 0.0
      %409 = vmatprep.subr.mxu0 0.0
      %410 = vmatpush1.msra.mxu0 0.0
      %411 = vmatprep.subr.mxu0 0.0
      %412 = vmatpush1.msra.mxu0 0.0
      %413 = vmatprep.subr.mxu0 0.0
      %414 = vmatpush1.msra.mxu0 0.0
      %415 = vmatprep.subr.mxu0 0.0
      %416 = vmatpush1.msra.mxu0 0.0
      %417 = vmatprep.subr.mxu0 0.0
      %418 = vmatpush1.msra.mxu0 0.0
      %419 = vmatprep.subr.mxu0 0.0
      %420 = vmatpush1.msra.mxu0 0.0
      %421 = vmatprep.subr.mxu0 0.0
      %422 = vmatpush1.msra.mxu0 0.0
      %423 = vmatprep.subr.mxu0 0.0
      %424 = vmatpush1.msra.mxu0 0.0
      %425 = vmatprep.subr.mxu0 0.0
      %426 = vmatpush1.msra.mxu0 0.0
      %427 = vmatprep.subr.mxu0 0.0
      %428 = vmatpush1.msra.mxu0 0.0
      %429 = vmatprep.subr.mxu0 0.0
      %430 = vmatpush1.msra.mxu0 0.0
      %431 = vmatprep.subr.mxu0 0.0
      %432 = vmatpush1.msra.mxu0 0.0
      %433 = vmatprep.mubr.f32.mxu0 0.0
      %434 = vmatmul.mubr.f32.gmra.mrb[0].mxu0 %v347
      %v435 = vpop.f32.mrb[0].mxu0
      %v436 = vadd.f32 0.0, %v435
      %v437 = vpop.f32.mrb[0].mxu0
      %v438 = vadd.f32 0.0, %v437
      %439 = vmatprep.mubr.f32.mxu0 0.0
      %440 = vmatmul.mubr.f32.gmra.mrb[0].mxu0 %v349
      %v441 = vpop.f32.mrb[0].mxu0
      %v442 = vadd.f32 0.0, %v441
      %v443 = vpop.f32.mrb[0].mxu0
      %v444 = vadd.f32 0.0, %v443
      %445 = vmatprep.mubr.f32.mxu0 0.0
      %446 = vmatmul.mubr.f32.gmra.mrb[0].mxu0 %v351
      %v447 = vpop.f32.mrb[0].mxu0
      %v448 = vadd.f32 0.0, %v447
      %v449 = vpop.f32.mrb[0].mxu0
      %v450 = vadd.f32 0.0, %v449
      %451 = vdwg.mxu0
      %452 = vmatprep.subr.mxu0 %v325
      %453 = vmatpush1.msra.mxu0 %v324
      %454 = vmatprep.subr.mxu0 %v330
      %455 = vmatpush1.msra.mxu0 %v329
      %456 = vmatprep.subr.mxu0 %v364
      %457 = vmatpush1.msra.mxu0 %v361
      %458 = vmatprep.subr.mxu0 0.0
      %459 = vmatpush1.msra.mxu0 0.0
      %460 = vmatprep.subr.mxu0 0.0
      %461 = vmatpush1.msra.mxu0 0.0
      %462 = vmatprep.subr.mxu0 0.0
      %463 = vmatpush1.msra.mxu0 0.0
      %464 = vmatprep.subr.mxu0 0.0
      %465 = vmatpush1.msra.mxu0 0.0
      %466 = vmatprep.subr.mxu0 0.0
      %467 = vmatpush1.msra.mxu0 0.0
      %468 = vmatprep.subr.mxu0 0.0
      %469 = vmatpush1.msra.mxu0 0.0
      %470 = vmatprep.subr.mxu0 0.0
      %471 = vmatpush1.msra.mxu0 0.0
      %472 = vmatprep.subr.mxu0 0.0
      %473 = vmatpush1.msra.mxu0 0.0
      %474 = vmatprep.subr.mxu0 0.0
      %475 = vmatpush1.msra.mxu0 0.0
      %476 = vmatprep.subr.mxu0 0.0
      %477 = vmatpush1.msra.mxu0 0.0
      %478 = vmatprep.subr.mxu0 0.0
      %479 = vmatpush1.msra.mxu0 0.0
      %480 = vmatprep.subr.mxu0 0.0
      %481 = vmatpush1.msra.mxu0 0.0
      %482 = vmatprep.subr.mxu0 0.0
      %483 = vmatpush1.msra.mxu0 0.0
      %484 = vmatprep.subr.mxu0 0.0
      %485 = vmatpush1.msra.mxu0 0.0
      %486 = vmatprep.subr.mxu0 0.0
      %487 = vmatpush1.msra.mxu0 0.0
      %488 = vmatprep.subr.mxu0 0.0
      %489 = vmatpush1.msra.mxu0 0.0
      %490 = vmatprep.subr.mxu0 0.0
      %491 = vmatpush1.msra.mxu0 0.0
      %492 = vmatprep.subr.mxu0 0.0
      %493 = vmatpush1.msra.mxu0 0.0
      %494 = vmatprep.subr.mxu0 0.0
      %495 = vmatpush1.msra.mxu0 0.0
      %496 = vmatprep.subr.mxu0 0.0
      %497 = vmatpush1.msra.mxu0 0.0
      %498 = vmatprep.subr.mxu0 0.0
      %499 = vmatpush1.msra.mxu0 0.0
      %500 = vmatprep.subr.mxu0 0.0
      %501 = vmatpush1.msra.mxu0 0.0
      %502 = vmatprep.subr.mxu0 0.0
      %503 = vmatpush1.msra.mxu0 0.0
      %504 = vmatprep.subr.mxu0 0.0
      %505 = vmatpush1.msra.mxu0 0.0
      %506 = vmatprep.subr.mxu0 0.0
      %507 = vmatpush1.msra.mxu0 0.0
      %508 = vmatprep.subr.mxu0 0.0
      %509 = vmatpush1.msra.mxu0 0.0
      %510 = vmatprep.subr.mxu0 0.0
      %511 = vmatpush1.msra.mxu0 0.0
      %512 = vmatprep.subr.mxu0 0.0
      %513 = vmatpush1.msra.mxu0 0.0
      %514 = vmatprep.subr.mxu0 0.0
      %515 = vmatpush1.msra.mxu0 0.0
      %516 = vmatprep.mubr.f32.mxu0 0.0
      %517 = vmatmul.mubr.f32.gmra.mrb[0].mxu0 %v347
      %v518 = vpop.f32.mrb[0].mxu0
      %v519 = vadd.f32 0.0, %v518
      %v520 = vpop.f32.mrb[0].mxu0
      %v521 = vadd.f32 0.0, %v520
      %522 = vmatprep.mubr.f32.mxu0 0.0
      %523 = vmatmul.mubr.f32.gmra.mrb[0].mxu0 %v349
      %v524 = vpop.f32.mrb[0].mxu0
      %v525 = vadd.f32 0.0, %v524
      %v526 = vpop.f32.mrb[0].mxu0
      %v527 = vadd.f32 0.0, %v526
      %528 = vmatprep.mubr.f32.mxu0 0.0
      %529 = vmatmul.mubr.f32.gmra.mrb[0].mxu0 %v351
      %v530 = vpop.f32.mrb[0].mxu0
      %v531 = vadd.f32 0.0, %v530
      %v532 = vpop.f32.mrb[0].mxu0
      %v533 = vadd.f32 0.0, %v532
      %534 = vdwg.mxu0
      %535 = vmatprep.subr.mxu0 0.0
      %536 = vmatpush1.msra.mxu0 %v326
      %537 = vmatprep.subr.mxu0 0.0
      %538 = vmatpush1.msra.mxu0 %v331
      %539 = vmatprep.subr.mxu0 0.0
      %540 = vmatpush1.msra.mxu0 %v367
      %541 = vmatprep.subr.mxu0 0.0
      %542 = vmatpush1.msra.mxu0 0.0
      %543 = vmatprep.subr.mxu0 0.0
      %544 = vmatpush1.msra.mxu0 0.0
      %545 = vmatprep.subr.mxu0 0.0
      %546 = vmatpush1.msra.mxu0 0.0
      %547 = vmatprep.subr.mxu0 0.0
      %548 = vmatpush1.msra.mxu0 0.0
      %549 = vmatprep.subr.mxu0 0.0
      %550 = vmatpush1.msra.mxu0 0.0
      %551 = vmatprep.subr.mxu0 0.0
      %552 = vmatpush1.msra.mxu0 0.0
      %553 = vmatprep.subr.mxu0 0.0
      %554 = vmatpush1.msra.mxu0 0.0
      %555 = vmatprep.subr.mxu0 0.0
      %556 = vmatpush1.msra.mxu0 0.0
      %557 = vmatprep.subr.mxu0 0.0
      %558 = vmatpush1.msra.mxu0 0.0
      %559 = vmatprep.subr.mxu0 0.0
      %560 = vmatpush1.msra.mxu0 0.0
      %561 = vmatprep.subr.mxu0 0.0
      %562 = vmatpush1.msra.mxu0 0.0
      %563 = vmatprep.subr.mxu0 0.0
      %564 = vmatpush1.msra.mxu0 0.0
      %565 = vmatprep.subr.mxu0 0.0
      %566 = vmatpush1.msra.mxu0 0.0
      %567 = vmatprep.subr.mxu0 0.0
      %568 = vmatpush1.msra.mxu0 0.0
      %569 = vmatprep.subr.mxu0 0.0
      %570 = vmatpush1.msra.mxu0 0.0
      %571 = vmatprep.subr.mxu0 0.0
      %572 = vmatpush1.msra.mxu0 0.0
      %573 = vmatprep.subr.mxu0 0.0
      %574 = vmatpush1.msra.mxu0 0.0
      %575 = vmatprep.subr.mxu0 0.0
      %576 = vmatpush1.msra.mxu0 0.0
      %577 = vmatprep.subr.mxu0 0.0
      %578 = vmatpush1.msra.mxu0 0.0
      %579 = vmatprep.subr.mxu0 0.0
      %580 = vmatpush1.msra.mxu0 0.0
      %581 = vmatprep.subr.mxu0 0.0
      %582 = vmatpush1.msra.mxu0 0.0
      %583 = vmatprep.subr.mxu0 0.0
      %584 = vmatpush1.msra.mxu0 0.0
      %585 = vmatprep.subr.mxu0 0.0
      %586 = vmatpush1.msra.mxu0 0.0
      %587 = vmatprep.subr.mxu0 0.0
      %588 = vmatpush1.msra.mxu0 0.0
      %589 = vmatprep.subr.mxu0 0.0
      %590 = vmatpush1.msra.mxu0 0.0
      %591 = vmatprep.subr.mxu0 0.0
      %592 = vmatpush1.msra.mxu0 0.0
      %593 = vmatprep.subr.mxu0 0.0
      %594 = vmatpush1.msra.mxu0 0.0
      %595 = vmatprep.subr.mxu0 0.0
      %596 = vmatpush1.msra.mxu0 0.0
      %597 = vmatprep.subr.mxu0 0.0
      %598 = vmatpush1.msra.mxu0 0.0
      %599 = vmatprep.mubr.f32.mxu0 0.0
      %600 = vmatmul.mubr.f32.gmra.mrb[0].mxu0 %v347
      %v601 = vpop.f32.mrb[0].mxu0
      %v602 = vadd.f32 0.0, %v601
      %v603 = vpop.f32.mrb[0].mxu0
      %604 = vmatprep.mubr.f32.mxu0 0.0
      %605 = vmatmul.mubr.f32.gmra.mrb[0].mxu0 %v349
      %v606 = vpop.f32.mrb[0].mxu0
      %v607 = vadd.f32 0.0, %v606
      %v608 = vpop.f32.mrb[0].mxu0
      %609 = vmatprep.mubr.f32.mxu0 0.0
      %610 = vmatmul.mubr.f32.gmra.mrb[0].mxu0 %v351
      %v611 = vpop.f32.mrb[0].mxu0
      %v612 = vadd.f32 0.0, %v611
      %v613 = vpop.f32.mrb[0].mxu0
      %614 = vdwg.mxu0
      %v615 = vsel %vm346, %v303, 0
      %v617 = vsel %vm346, %v304, 0
      %v619 = vsel %vm346, %v305, 0
      %v622 = vsel %vm353, %v316, 0
      %v625 = vsel %vm353, %v317, 0
      %v628 = vsel %vm353, %v318, 0
      %v631 = vsel %vm353, %v319, 0
      %v634 = vsel %vm353, %v320, 0
      %636 = vmatprep.subr.mxu0 %v307
      %637 = vmatpush1.msra.mxu0 %v306
      %638 = vmatprep.subr.mxu0 %v312
      %639 = vmatpush1.msra.mxu0 %v311
      %640 = vmatprep.subr.mxu0 %v625
      %641 = vmatpush1.msra.mxu0 %v622
      %642 = vmatprep.subr.mxu0 0.0
      %643 = vmatpush1.msra.mxu0 0.0
      %644 = vmatprep.subr.mxu0 0.0
      %645 = vmatpush1.msra.mxu0 0.0
      %646 = vmatprep.subr.mxu0 0.0
      %647 = vmatpush1.msra.mxu0 0.0
      %648 = vmatprep.subr.mxu0 0.0
      %649 = vmatpush1.msra.mxu0 0.0
      %650 = vmatprep.subr.mxu0 0.0
      %651 = vmatpush1.msra.mxu0 0.0
      %652 = vmatprep.subr.mxu0 0.0
      %653 = vmatpush1.msra.mxu0 0.0
      %654 = vmatprep.subr.mxu0 0.0
      %655 = vmatpush1.msra.mxu0 0.0
      %656 = vmatprep.subr.mxu0 0.0
      %657 = vmatpush1.msra.mxu0 0.0
      %658 = vmatprep.subr.mxu0 0.0
      %659 = vmatpush1.msra.mxu0 0.0
      %660 = vmatprep.subr.mxu0 0.0
      %661 = vmatpush1.msra.mxu0 0.0
      %662 = vmatprep.subr.mxu0 0.0
      %663 = vmatpush1.msra.mxu0 0.0
      %664 = vmatprep.subr.mxu0 0.0
      %665 = vmatpush1.msra.mxu0 0.0
      %666 = vmatprep.subr.mxu0 0.0
      %667 = vmatpush1.msra.mxu0 0.0
      %668 = vmatprep.subr.mxu0 0.0
      %669 = vmatpush1.msra.mxu0 0.0
      %670 = vmatprep.subr.mxu0 0.0
      %671 = vmatpush1.msra.mxu0 0.0
      %672 = vmatprep.subr.mxu0 0.0
      %673 = vmatpush1.msra.mxu0 0.0
      %674 = vmatprep.subr.mxu0 0.0
      %675 = vmatpush1.msra.mxu0 0.0
      %676 = vmatprep.subr.mxu0 0.0
      %677 = vmatpush1.msra.mxu0 0.0
      %678 = vmatprep.subr.mxu0 0.0
      %679 = vmatpush1.msra.mxu0 0.0
      %680 = vmatprep.subr.mxu0 0.0
      %681 = vmatpush1.msra.mxu0 0.0
      %682 = vmatprep.subr.mxu0 0.0
      %683 = vmatpush1.msra.mxu0 0.0
      %684 = vmatprep.subr.mxu0 0.0
      %685 = vmatpush1.msra.mxu0 0.0
      %686 = vmatprep.subr.mxu0 0.0
      %687 = vmatpush1.msra.mxu0 0.0
      %688 = vmatprep.subr.mxu0 0.0
      %689 = vmatpush1.msra.mxu0 0.0
      %690 = vmatprep.subr.mxu0 0.0
      %691 = vmatpush1.msra.mxu0 0.0
      %692 = vmatprep.subr.mxu0 0.0
      %693 = vmatpush1.msra.mxu0 0.0
      %694 = vmatprep.subr.mxu0 0.0
      %695 = vmatpush1.msra.mxu0 0.0
      %696 = vmatprep.subr.mxu0 0.0
      %697 = vmatpush1.msra.mxu0 0.0
      %698 = vmatprep.subr.mxu0 0.0
      %699 = vmatpush1.msra.mxu0 0.0
      %700 = vmatprep.mubr.f32.mxu0 0.0
      %701 = vmatmul.mubr.f32.gmra.mrb[0].mxu0 %v615
      %v702 = vpop.f32.mrb[0].mxu0
      %v703 = vadd.f32 %v436, %v702
      %v704 = vpop.f32.mrb[0].mxu0
      %v705 = vadd.f32 %v438, %v704
      %706 = vmatprep.mubr.f32.mxu0 0.0
      %707 = vmatmul.mubr.f32.gmra.mrb[0].mxu0 %v617
      %v708 = vpop.f32.mrb[0].mxu0
      %v709 = vadd.f32 %v442, %v708
      %v710 = vpop.f32.mrb[0].mxu0
      %v711 = vadd.f32 %v444, %v710
      %712 = vmatprep.mubr.f32.mxu0 0.0
      %713 = vmatmul.mubr.f32.gmra.mrb[0].mxu0 %v619
      %v714 = vpop.f32.mrb[0].mxu0
      %v715 = vadd.f32 %v448, %v714
      %v716 = vpop.f32.mrb[0].mxu0
      %v717 = vadd.f32 %v450, %v716
      %718 = vdwg.mxu0
      %719 = vmatprep.subr.mxu0 %v309
      %720 = vmatpush1.msra.mxu0 %v308
      %721 = vmatprep.subr.mxu0 %v314
      %722 = vmatpush1.msra.mxu0 %v313
      %723 = vmatprep.subr.mxu0 %v631
      %724 = vmatpush1.msra.mxu0 %v628
      %725 = vmatprep.subr.mxu0 0.0
      %726 = vmatpush1.msra.mxu0 0.0
      %727 = vmatprep.subr.mxu0 0.0
      %728 = vmatpush1.msra.mxu0 0.0
      %729 = vmatprep.subr.mxu0 0.0
      %730 = vmatpush1.msra.mxu0 0.0
      %731 = vmatprep.subr.mxu0 0.0
      %732 = vmatpush1.msra.mxu0 0.0
      %733 = vmatprep.subr.mxu0 0.0
      %734 = vmatpush1.msra.mxu0 0.0
      %735 = vmatprep.subr.mxu0 0.0
      %736 = vmatpush1.msra.mxu0 0.0
      %737 = vmatprep.subr.mxu0 0.0
      %738 = vmatpush1.msra.mxu0 0.0
      %739 = vmatprep.subr.mxu0 0.0
      %740 = vmatpush1.msra.mxu0 0.0
      %741 = vmatprep.subr.mxu0 0.0
      %742 = vmatpush1.msra.mxu0 0.0
      %743 = vmatprep.subr.mxu0 0.0
      %744 = vmatpush1.msra.mxu0 0.0
      %745 = vmatprep.subr.mxu0 0.0
      %746 = vmatpush1.msra.mxu0 0.0
      %747 = vmatprep.subr.mxu0 0.0
      %748 = vmatpush1.msra.mxu0 0.0
      %749 = vmatprep.subr.mxu0 0.0
      %750 = vmatpush1.msra.mxu0 0.0
      %751 = vmatprep.subr.mxu0 0.0
      %752 = vmatpush1.msra.mxu0 0.0
      %753 = vmatprep.subr.mxu0 0.0
      %754 = vmatpush1.msra.mxu0 0.0
      %755 = vmatprep.subr.mxu0 0.0
      %756 = vmatpush1.msra.mxu0 0.0
      %757 = vmatprep.subr.mxu0 0.0
      %758 = vmatpush1.msra.mxu0 0.0
      %759 = vmatprep.subr.mxu0 0.0
      %760 = vmatpush1.msra.mxu0 0.0
      %761 = vmatprep.subr.mxu0 0.0
      %762 = vmatpush1.msra.mxu0 0.0
      %763 = vmatprep.subr.mxu0 0.0
      %764 = vmatpush1.msra.mxu0 0.0
      %765 = vmatprep.subr.mxu0 0.0
      %766 = vmatpush1.msra.mxu0 0.0
      %767 = vmatprep.subr.mxu0 0.0
      %768 = vmatpush1.msra.mxu0 0.0
      %769 = vmatprep.subr.mxu0 0.0
      %770 = vmatpush1.msra.mxu0 0.0
      %771 = vmatprep.subr.mxu0 0.0
      %772 = vmatpush1.msra.mxu0 0.0
      %773 = vmatprep.subr.mxu0 0.0
      %774 = vmatpush1.msra.mxu0 0.0
      %775 = vmatprep.subr.mxu0 0.0
      %776 = vmatpush1.msra.mxu0 0.0
      %777 = vmatprep.subr.mxu0 0.0
      %778 = vmatpush1.msra.mxu0 0.0
      %779 = vmatprep.subr.mxu0 0.0
      %780 = vmatpush1.msra.mxu0 0.0
      %781 = vmatprep.subr.mxu0 0.0
      %782 = vmatpush1.msra.mxu0 0.0
      %783 = vmatprep.mubr.f32.mxu0 0.0
      %784 = vmatmul.mubr.f32.gmra.mrb[0].mxu0 %v615
      %v785 = vpop.f32.mrb[0].mxu0
      %v786 = vadd.f32 %v519, %v785
      %v787 = vpop.f32.mrb[0].mxu0
      %v788 = vadd.f32 %v521, %v787
      %789 = vmatprep.mubr.f32.mxu0 0.0
      %790 = vmatmul.mubr.f32.gmra.mrb[0].mxu0 %v617
      %v791 = vpop.f32.mrb[0].mxu0
      %v792 = vadd.f32 %v525, %v791
      %v793 = vpop.f32.mrb[0].mxu0
      %v794 = vadd.f32 %v527, %v793
      %795 = vmatprep.mubr.f32.mxu0 0.0
      %796 = vmatmul.mubr.f32.gmra.mrb[0].mxu0 %v619
      %v797 = vpop.f32.mrb[0].mxu0
      %v798 = vadd.f32 %v531, %v797
      %v799 = vpop.f32.mrb[0].mxu0
      %v800 = vadd.f32 %v533, %v799
      %801 = vdwg.mxu0
      %802 = vmatprep.subr.mxu0 0.0
      %803 = vmatpush1.msra.mxu0 %v310
      %804 = vmatprep.subr.mxu0 0.0
      %805 = vmatpush1.msra.mxu0 %v315
      %806 = vmatprep.subr.mxu0 0.0
      %807 = vmatpush1.msra.mxu0 %v634
      %808 = vmatprep.subr.mxu0 0.0
      %809 = vmatpush1.msra.mxu0 0.0
      %810 = vmatprep.subr.mxu0 0.0
      %811 = vmatpush1.msra.mxu0 0.0
      %812 = vmatprep.subr.mxu0 0.0
      %813 = vmatpush1.msra.mxu0 0.0
      %814 = vmatprep.subr.mxu0 0.0
      %815 = vmatpush1.msra.mxu0 0.0
      %816 = vmatprep.subr.mxu0 0.0
      %817 = vmatpush1.msra.mxu0 0.0
      %818 = vmatprep.subr.mxu0 0.0
      %819 = vmatpush1.msra.mxu0 0.0
      %820 = vmatprep.subr.mxu0 0.0
      %821 = vmatpush1.msra.mxu0 0.0
      %822 = vmatprep.subr.mxu0 0.0
      %823 = vmatpush1.msra.mxu0 0.0
      %824 = vmatprep.subr.mxu0 0.0
      %825 = vmatpush1.msra.mxu0 0.0
      %826 = vmatprep.subr.mxu0 0.0
      %827 = vmatpush1.msra.mxu0 0.0
      %828 = vmatprep.subr.mxu0 0.0
      %829 = vmatpush1.msra.mxu0 0.0
      %830 = vmatprep.subr.mxu0 0.0
      %831 = vmatpush1.msra.mxu0 0.0
      %832 = vmatprep.subr.mxu0 0.0
      %833 = vmatpush1.msra.mxu0 0.0
      %834 = vmatprep.subr.mxu0 0.0
      %835 = vmatpush1.msra.mxu0 0.0
      %836 = vmatprep.subr.mxu0 0.0
      %837 = vmatpush1.msra.mxu0 0.0
      %838 = vmatprep.subr.mxu0 0.0
      %839 = vmatpush1.msra.mxu0 0.0
      %840 = vmatprep.subr.mxu0 0.0
      %841 = vmatpush1.msra.mxu0 0.0
      %842 = vmatprep.subr.mxu0 0.0
      %843 = vmatpush1.msra.mxu0 0.0
      %844 = vmatprep.subr.mxu0 0.0
      %845 = vmatpush1.msra.mxu0 0.0
      %846 = vmatprep.subr.mxu0 0.0
      %847 = vmatpush1.msra.mxu0 0.0
      %848 = vmatprep.subr.mxu0 0.0
      %849 = vmatpush1.msra.mxu0 0.0
      %850 = vmatprep.subr.mxu0 0.0
      %851 = vmatpush1.msra.mxu0 0.0
      %852 = vmatprep.subr.mxu0 0.0
      %853 = vmatpush1.msra.mxu0 0.0
      %854 = vmatprep.subr.mxu0 0.0
      %855 = vmatpush1.msra.mxu0 0.0
      %856 = vmatprep.subr.mxu0 0.0
      %857 = vmatpush1.msra.mxu0 0.0
      %858 = vmatprep.subr.mxu0 0.0
      %859 = vmatpush1.msra.mxu0 0.0
      %860 = vmatprep.subr.mxu0 0.0
      %861 = vmatpush1.msra.mxu0 0.0
      %862 = vmatprep.subr.mxu0 0.0
      %863 = vmatpush1.msra.mxu0 0.0
      %864 = vmatprep.subr.mxu0 0.0
      %865 = vmatpush1.msra.mxu0 0.0
      %866 = vmatprep.mubr.f32.mxu0 0.0
      %867 = vmatmul.mubr.f32.gmra.mrb[0].mxu0 %v615
      %v868 = vpop.f32.mrb[0].mxu0
      %v869 = vadd.f32 %v602, %v868
      %v870 = vpop.f32.mrb[0].mxu0
      %871 = vmatprep.mubr.f32.mxu0 0.0
      %872 = vmatmul.mubr.f32.gmra.mrb[0].mxu0 %v617
      %v873 = vpop.f32.mrb[0].mxu0
      %v874 = vadd.f32 %v607, %v873
      %v875 = vpop.f32.mrb[0].mxu0
      %876 = vmatprep.mubr.f32.mxu0 0.0
      %877 = vmatmul.mubr.f32.gmra.mrb[0].mxu0 %v619
      %v878 = vpop.f32.mrb[0].mxu0
      %v879 = vadd.f32 %v612, %v878
      %v880 = vpop.f32.mrb[0].mxu0
      %881 = vdwg.mxu0
      %s882 = scalar_lea.vmem %s4, 240
      %v883 = vld [vmem:[%s882] sm:$0xff]
      %v884 = vld [vmem:[%s882 + $0x8] sm:$0xff]
      %v885 = vld [vmem:[%s882 + $0x10] sm:$0xff]
      %v886 = vld [vmem:[%s882 + $0x18] sm:$0xff]
      %v887 = vld [vmem:[%s882 + $0x20] sm:$0xff]
      %v888 = vld [vmem:[%s882 + $0x28] sm:$0xff]
      %v889 = vld [vmem:[%s882 + $0x30] sm:$0xff]
      %v890 = vld [vmem:[%s882 + $0x38] sm:$0xff]
      %v891 = vld [vmem:[%s882 + $0x40] sm:$0xff]
      %v892 = vld [vmem:[%s882 + $0x48] sm:$0xff]
      %v893 = vld [vmem:[%s882 + $0x50] sm:$0xf]
      %v894 = vld [vmem:[%s882 + $0x58] sm:$0xf]
      %v895 = vld [vmem:[%s882 + $0x60] sm:$0xf]
      %v896 = vld [vmem:[%s882 + $0x68] sm:$0xf]
      %v897 = vld [vmem:[%s882 + $0x70] sm:$0xf]
      %vm898 = vcmask 1045504
      %v899 = vrot.slane %v303, 2
      %v900 = vrot.slane %v304, 2
      %v901 = vsel %vm898, %v899, %v900
      %v902 = vrot.slane %v305, 2
      %v903 = vsel %vm898, %v900, %v902
      %v904 = vsel %vm346, %v901, 0
      %v906 = vsel %vm346, %v903, 0
      %v908 = vsel %vm346, %v902, 0
      %v911 = vsel %vm353, %v893, 0
      %v914 = vsel %vm353, %v894, 0
      %v917 = vsel %vm353, %v895, 0
      %v920 = vsel %vm353, %v896, 0
      %v923 = vsel %vm353, %v897, 0
      %925 = vmatprep.subr.mxu0 %v884
      %926 = vmatpush1.msra.mxu0 %v883
      %927 = vmatprep.subr.mxu0 %v889
      %928 = vmatpush1.msra.mxu0 %v888
      %929 = vmatprep.subr.mxu0 %v914
      %930 = vmatpush1.msra.mxu0 %v911
      %931 = vmatprep.subr.mxu0 0.0
      %932 = vmatpush1.msra.mxu0 0.0
      %933 = vmatprep.subr.mxu0 0.0
      %934 = vmatpush1.msra.mxu0 0.0
      %935 = vmatprep.subr.mxu0 0.0
      %936 = vmatpush1.msra.mxu0 0.0
      %937 = vmatprep.subr.mxu0 0.0
      %938 = vmatpush1.msra.mxu0 0.0
      %939 = vmatprep.subr.mxu0 0.0
      %940 = vmatpush1.msra.mxu0 0.0
      %941 = vmatprep.subr.mxu0 0.0
      %942 = vmatpush1.msra.mxu0 0.0
      %943 = vmatprep.subr.mxu0 0.0
      %944 = vmatpush1.msra.mxu0 0.0
      %945 = vmatprep.subr.mxu0 0.0
      %946 = vmatpush1.msra.mxu0 0.0
      %947 = vmatprep.subr.mxu0 0.0
      %948 = vmatpush1.msra.mxu0 0.0
      %949 = vmatprep.subr.mxu0 0.0
      %950 = vmatpush1.msra.mxu0 0.0
      %951 = vmatprep.subr.mxu0 0.0
      %952 = vmatpush1.msra.mxu0 0.0
      %953 = vmatprep.subr.mxu0 0.0
      %954 = vmatpush1.msra.mxu0 0.0
      %955 = vmatprep.subr.mxu0 0.0
      %956 = vmatpush1.msra.mxu0 0.0
      %957 = vmatprep.subr.mxu0 0.0
      %958 = vmatpush1.msra.mxu0 0.0
      %959 = vmatprep.subr.mxu0 0.0
      %960 = vmatpush1.msra.mxu0 0.0
      %961 = vmatprep.subr.mxu0 0.0
      %962 = vmatpush1.msra.mxu0 0.0
      %963 = vmatprep.subr.mxu0 0.0
      %964 = vmatpush1.msra.mxu0 0.0
      %965 = vmatprep.subr.mxu0 0.0
      %966 = vmatpush1.msra.mxu0 0.0
      %967 = vmatprep.subr.mxu0 0.0
      %968 = vmatpush1.msra.mxu0 0.0
      %969 = vmatprep.subr.mxu0 0.0
      %970 = vmatpush1.msra.mxu0 0.0
      %971 = vmatprep.subr.mxu0 0.0
      %972 = vmatpush1.msra.mxu0 0.0
      %973 = vmatprep.subr.mxu0 0.0
      %974 = vmatpush1.msra.mxu0 0.0
      %975 = vmatprep.subr.mxu0 0.0
      %976 = vmatpush1.msra.mxu0 0.0
      %977 = vmatprep.subr.mxu0 0.0
      %978 = vmatpush1.msra.mxu0 0.0
      %979 = vmatprep.subr.mxu0 0.0
      %980 = vmatpush1.msra.mxu0 0.0
      %981 = vmatprep.subr.mxu0 0.0
      %982 = vmatpush1.msra.mxu0 0.0
      %983 = vmatprep.subr.mxu0 0.0
      %984 = vmatpush1.msra.mxu0 0.0
      %985 = vmatprep.subr.mxu0 0.0
      %986 = vmatpush1.msra.mxu0 0.0
      %987 = vmatprep.subr.mxu0 0.0
      %988 = vmatpush1.msra.mxu0 0.0
      %989 = vmatprep.mubr.f32.mxu0 0.0
      %990 = vmatmul.mubr.f32.gmra.mrb[0].mxu0 %v904
      %v991 = vpop.f32.mrb[0].mxu0
      %v992 = vadd.f32 0.0, %v991
      %v993 = vpop.f32.mrb[0].mxu0
      %v994 = vadd.f32 0.0, %v993
      %995 = vmatprep.mubr.f32.mxu0 0.0
      %996 = vmatmul.mubr.f32.gmra.mrb[0].mxu0 %v906
      %v997 = vpop.f32.mrb[0].mxu0
      %v998 = vadd.f32 0.0, %v997
      %v999 = vpop.f32.mrb[0].mxu0
      %v1000 = vadd.f32 0.0, %v999
      %1001 = vmatprep.mubr.f32.mxu0 0.0
      %1002 = vmatmul.mubr.f32.gmra.mrb[0].mxu0 %v908
      %v1003 = vpop.f32.mrb[0].mxu0
      %v1004 = vadd.f32 0.0, %v1003
      %v1005 = vpop.f32.mrb[0].mxu0
      %v1006 = vadd.f32 0.0, %v1005
      %1007 = vdwg.mxu0
      %1008 = vmatprep.subr.mxu0 %v886
      %1009 = vmatpush1.msra.mxu0 %v885
      %1010 = vmatprep.subr.mxu0 %v891
      %1011 = vmatpush1.msra.mxu0 %v890
      %1012 = vmatprep.subr.mxu0 %v920
      %1013 = vmatpush1.msra.mxu0 %v917
      %1014 = vmatprep.subr.mxu0 0.0
      %1015 = vmatpush1.msra.mxu0 0.0
      %1016 = vmatprep.subr.mxu0 0.0
      %1017 = vmatpush1.msra.mxu0 0.0
      %1018 = vmatprep.subr.mxu0 0.0
      %1019 = vmatpush1.msra.mxu0 0.0
      %1020 = vmatprep.subr.mxu0 0.0
      %1021 = vmatpush1.msra.mxu0 0.0
      %1022 = vmatprep.subr.mxu0 0.0
      %1023 = vmatpush1.msra.mxu0 0.0
      %1024 = vmatprep.subr.mxu0 0.0
      %1025 = vmatpush1.msra.mxu0 0.0
      %1026 = vmatprep.subr.mxu0 0.0
      %1027 = vmatpush1.msra.mxu0 0.0
      %1028 = vmatprep.subr.mxu0 0.0
      %1029 = vmatpush1.msra.mxu0 0.0
      %1030 = vmatprep.subr.mxu0 0.0
      %1031 = vmatpush1.msra.mxu0 0.0
      %1032 = vmatprep.subr.mxu0 0.0
      %1033 = vmatpush1.msra.mxu0 0.0
      %1034 = vmatprep.subr.mxu0 0.0
      %1035 = vmatpush1.msra.mxu0 0.0
      %1036 = vmatprep.subr.mxu0 0.0
      %1037 = vmatpush1.msra.mxu0 0.0
      %1038 = vmatprep.subr.mxu0 0.0
      %1039 = vmatpush1.msra.mxu0 0.0
      %1040 = vmatprep.subr.mxu0 0.0
      %1041 = vmatpush1.msra.mxu0 0.0
      %1042 = vmatprep.subr.mxu0 0.0
      %1043 = vmatpush1.msra.mxu0 0.0
      %1044 = vmatprep.subr.mxu0 0.0
      %1045 = vmatpush1.msra.mxu0 0.0
      %1046 = vmatprep.subr.mxu0 0.0
      %1047 = vmatpush1.msra.mxu0 0.0
      %1048 = vmatprep.subr.mxu0 0.0
      %1049 = vmatpush1.msra.mxu0 0.0
      %1050 = vmatprep.subr.mxu0 0.0
      %1051 = vmatpush1.msra.mxu0 0.0
      %1052 = vmatprep.subr.mxu0 0.0
      %1053 = vmatpush1.msra.mxu0 0.0
      %1054 = vmatprep.subr.mxu0 0.0
      %1055 = vmatpush1.msra.mxu0 0.0
      %1056 = vmatprep.subr.mxu0 0.0
      %1057 = vmatpush1.msra.mxu0 0.0
      %1058 = vmatprep.subr.mxu0 0.0
      %1059 = vmatpush1.msra.mxu0 0.0
      %1060 = vmatprep.subr.mxu0 0.0
      %1061 = vmatpush1.msra.mxu0 0.0
      %1062 = vmatprep.subr.mxu0 0.0
      %1063 = vmatpush1.msra.mxu0 0.0
      %1064 = vmatprep.subr.mxu0 0.0
      %1065 = vmatpush1.msra.mxu0 0.0
      %1066 = vmatprep.subr.mxu0 0.0
      %1067 = vmatpush1.msra.mxu0 0.0
      %1068 = vmatprep.subr.mxu0 0.0
      %1069 = vmatpush1.msra.mxu0 0.0
      %1070 = vmatprep.subr.mxu0 0.0
      %1071 = vmatpush1.msra.mxu0 0.0
      %1072 = vmatprep.mubr.f32.mxu0 0.0
      %1073 = vmatmul.mubr.f32.gmra.mrb[0].mxu0 %v904
      %v1074 = vpop.f32.mrb[0].mxu0
      %v1075 = vadd.f32 0.0, %v1074
      %v1076 = vpop.f32.mrb[0].mxu0
      %v1077 = vadd.f32 0.0, %v1076
      %1078 = vmatprep.mubr.f32.mxu0 0.0
      %1079 = vmatmul.mubr.f32.gmra.mrb[0].mxu0 %v906
      %v1080 = vpop.f32.mrb[0].mxu0
      %v1081 = vadd.f32 0.0, %v1080
      %v1082 = vpop.f32.mrb[0].mxu0
      %v1083 = vadd.f32 0.0, %v1082
      %1084 = vmatprep.mubr.f32.mxu0 0.0
      %1085 = vmatmul.mubr.f32.gmra.mrb[0].mxu0 %v908
      %v1086 = vpop.f32.mrb[0].mxu0
      %v1087 = vadd.f32 0.0, %v1086
      %v1088 = vpop.f32.mrb[0].mxu0
      %v1089 = vadd.f32 0.0, %v1088
      %1090 = vdwg.mxu0
      %1091 = vmatprep.subr.mxu0 0.0
      %1092 = vmatpush1.msra.mxu0 %v887
      %1093 = vmatprep.subr.mxu0 0.0
      %1094 = vmatpush1.msra.mxu0 %v892
      %1095 = vmatprep.subr.mxu0 0.0
      %1096 = vmatpush1.msra.mxu0 %v923
      %1097 = vmatprep.subr.mxu0 0.0
      %1098 = vmatpush1.msra.mxu0 0.0
      %1099 = vmatprep.subr.mxu0 0.0
      %1100 = vmatpush1.msra.mxu0 0.0
      %1101 = vmatprep.subr.mxu0 0.0
      %1102 = vmatpush1.msra.mxu0 0.0
      %1103 = vmatprep.subr.mxu0 0.0
      %1104 = vmatpush1.msra.mxu0 0.0
      %1105 = vmatprep.subr.mxu0 0.0
      %1106 = vmatpush1.msra.mxu0 0.0
      %1107 = vmatprep.subr.mxu0 0.0
      %1108 = vmatpush1.msra.mxu0 0.0
      %1109 = vmatprep.subr.mxu0 0.0
      %1110 = vmatpush1.msra.mxu0 0.0
      %1111 = vmatprep.subr.mxu0 0.0
      %1112 = vmatpush1.msra.mxu0 0.0
      %1113 = vmatprep.subr.mxu0 0.0
      %1114 = vmatpush1.msra.mxu0 0.0
      %1115 = vmatprep.subr.mxu0 0.0
      %1116 = vmatpush1.msra.mxu0 0.0
      %1117 = vmatprep.subr.mxu0 0.0
      %1118 = vmatpush1.msra.mxu0 0.0
      %1119 = vmatprep.subr.mxu0 0.0
      %1120 = vmatpush1.msra.mxu0 0.0
      %1121 = vmatprep.subr.mxu0 0.0
      %1122 = vmatpush1.msra.mxu0 0.0
      %1123 = vmatprep.subr.mxu0 0.0
      %1124 = vmatpush1.msra.mxu0 0.0
      %1125 = vmatprep.subr.mxu0 0.0
      %1126 = vmatpush1.msra.mxu0 0.0
      %1127 = vmatprep.subr.mxu0 0.0
      %1128 = vmatpush1.msra.mxu0 0.0
      %1129 = vmatprep.subr.mxu0 0.0
      %1130 = vmatpush1.msra.mxu0 0.0
      %1131 = vmatprep.subr.mxu0 0.0
      %1132 = vmatpush1.msra.mxu0 0.0
      %1133 = vmatprep.subr.mxu0 0.0
      %1134 = vmatpush1.msra.mxu0 0.0
      %1135 = vmatprep.subr.mxu0 0.0
      %1136 = vmatpush1.msra.mxu0 0.0
      %1137 = vmatprep.subr.mxu0 0.0
      %1138 = vmatpush1.msra.mxu0 0.0
      %1139 = vmatprep.subr.mxu0 0.0
      %1140 = vmatpush1.msra.mxu0 0.0
      %1141 = vmatprep.subr.mxu0 0.0
      %1142 = vmatpush1.msra.mxu0 0.0
      %1143 = vmatprep.subr.mxu0 0.0
      %1144 = vmatpush1.msra.mxu0 0.0
      %1145 = vmatprep.subr.mxu0 0.0
      %1146 = vmatpush1.msra.mxu0 0.0
      %1147 = vmatprep.subr.mxu0 0.0
      %1148 = vmatpush1.msra.mxu0 0.0
      %1149 = vmatprep.subr.mxu0 0.0
      %1150 = vmatpush1.msra.mxu0 0.0
      %1151 = vmatprep.subr.mxu0 0.0
      %1152 = vmatpush1.msra.mxu0 0.0
      %1153 = vmatprep.subr.mxu0 0.0
      %1154 = vmatpush1.msra.mxu0 0.0
      %1155 = vmatprep.mubr.f32.mxu0 0.0
      %1156 = vmatmul.mubr.f32.gmra.mrb[0].mxu0 %v904
      %v1157 = vpop.f32.mrb[0].mxu0
      %v1158 = vadd.f32 0.0, %v1157
      %v1159 = vpop.f32.mrb[0].mxu0
      %1160 = vmatprep.mubr.f32.mxu0 0.0
      %1161 = vmatmul.mubr.f32.gmra.mrb[0].mxu0 %v906
      %v1162 = vpop.f32.mrb[0].mxu0
      %v1163 = vadd.f32 0.0, %v1162
      %v1164 = vpop.f32.mrb[0].mxu0
      %1165 = vmatprep.mubr.f32.mxu0 0.0
      %1166 = vmatmul.mubr.f32.gmra.mrb[0].mxu0 %v908
      %v1167 = vpop.f32.mrb[0].mxu0
      %v1168 = vadd.f32 0.0, %v1167
      %v1169 = vpop.f32.mrb[0].mxu0
      %1170 = vdwg.mxu0
      %v1171 = vadd.f32 %v703, %v992
      %v1172 = vadd.f32 %v705, %v994
      %v1173 = vadd.f32 %v786, %v1075
      %v1174 = vadd.f32 %v788, %v1077
      %v1175 = vadd.f32 %v869, %v1158
      %v1176 = vadd.f32 %v709, %v998
      %v1177 = vadd.f32 %v711, %v1000
      %v1178 = vadd.f32 %v792, %v1081
      %v1179 = vadd.f32 %v794, %v1083
      %v1180 = vadd.f32 %v874, %v1163
      %v1181 = vadd.f32 %v715, %v1004
      %v1182 = vadd.f32 %v717, %v1006
      %v1183 = vadd.f32 %v798, %v1087
      %v1184 = vadd.f32 %v800, %v1089
      %v1185 = vadd.f32 %v879, %v1168
      %v1186 = vld [vmem:[%s5] sm:$0x1f]
      %v1188 = vlaneseq
      %v1189 = vshrl.u32 %v1188, 7
      %v1190 = vsub.s32 0, %v1189
      %v1191 = vrot.slane %v1186, %v1190
      %v1192 = vlaneseq
      %v1193 = vshrl.u32 %v1192, 7
      %v1194 = vsub.s32 1, %v1193
      %v1195 = vrot.slane %v1186, %v1194
      %v1196 = vlaneseq
      %v1197 = vshrl.u32 %v1196, 7
      %v1198 = vsub.s32 2, %v1197
      %v1199 = vrot.slane %v1186, %v1198
      %v1200 = vlaneseq
      %v1201 = vshrl.u32 %v1200, 7
      %v1202 = vsub.s32 3, %v1201
      %v1203 = vrot.slane %v1186, %v1202
      %v1204 = vlaneseq
      %v1205 = vshrl.u32 %v1204, 7
      %v1206 = vsub.s32 4, %v1205
      %v1207 = vrot.slane %v1186, %v1206
      %v1213 = vadd.f32 %v1171, %v1191
      %v1214 = vadd.f32 %v1172, %v1195
      %v1215 = vadd.f32 %v1173, %v1199
      %v1216 = vadd.f32 %v1174, %v1203
      %v1217 = vadd.f32 %v1175, %v1207
      %v1218 = vadd.f32 %v1176, %v1191
      %v1219 = vadd.f32 %v1177, %v1195
      %v1220 = vadd.f32 %v1178, %v1199
      %v1221 = vadd.f32 %v1179, %v1203
      %v1222 = vadd.f32 %v1180, %v1207
      %v1223 = vadd.f32 %v1181, %v1191
      %v1224 = vadd.f32 %v1182, %v1195
      %v1225 = vadd.f32 %v1183, %v1199
      %v1226 = vadd.f32 %v1184, %v1203
      %v1227 = vadd.f32 %v1185, %v1207
      %v1228 = vmax.f32 %v1213, 0.0
      %v1229 = vmax.f32 %v1214, 0.0
      %v1230 = vmax.f32 %v1215, 0.0
      %v1231 = vmax.f32 %v1216, 0.0
      %v1232 = vmax.f32 %v1217, 0.0
      %v1233 = vmax.f32 %v1218, 0.0
      %v1234 = vmax.f32 %v1219, 0.0
      %v1235 = vmax.f32 %v1220, 0.0
      %v1236 = vmax.f32 %v1221, 0.0
      %v1237 = vmax.f32 %v1222, 0.0
      %v1238 = vmax.f32 %v1223, 0.0
      %v1239 = vmax.f32 %v1224, 0.0
      %v1240 = vmax.f32 %v1225, 0.0
      %v1241 = vmax.f32 %v1226, 0.0
      %v1242 = vmax.f32 %v1227, 0.0
      %v1243 = vpack.c.bf16 %v1233, %v1228
      %v1244 = vpack.c.bf16 %v1234, %v1229
      %v1245 = vpack.c.bf16 %v1235, %v1230
      %v1246 = vpack.c.bf16 %v1236, %v1231
      %v1247 = vpack.c.bf16 %v1237, %v1232
      %v1248 = vpack.c.bf16 %v1238, %v1238
      %v1249 = vpack.c.bf16 %v1239, %v1239
      %v1250 = vpack.c.bf16 %v1240, %v1240
      %v1251 = vpack.c.bf16 %v1241, %v1241
      %v1252 = vpack.c.bf16 %v1242, %v1242
      %v1253 = vld [vmem:[%s6] sm:$0xff]
      %v1254 = vld [vmem:[%s6 + $0x8] sm:$0xff]
      %v1255 = vld [vmem:[%s6 + $0x10] sm:$0xff]
      %v1256 = vld [vmem:[%s6 + $0x18] sm:$0xff]
      %v1257 = vld [vmem:[%s6 + $0x20] sm:$0xff]
      %v1258 = vld [vmem:[%s6 + $0x28] sm:$0xff]
      %v1259 = vld [vmem:[%s6 + $0x30] sm:$0xff]
      %v1260 = vld [vmem:[%s6 + $0x38] sm:$0xff]
      %v1261 = vld [vmem:[%s6 + $0x40] sm:$0xff]
      %v1262 = vld [vmem:[%s6 + $0x48] sm:$0xff]
      %v1263 = vld [vmem:[%s6 + $0x50] sm:$0xff]
      %v1264 = vld [vmem:[%s6 + $0x58] sm:$0xff]
      %v1265 = vld [vmem:[%s6 + $0x60] sm:$0xff]
      %v1266 = vld [vmem:[%s6 + $0x68] sm:$0xff]
      %v1267 = vld [vmem:[%s6 + $0x70] sm:$0xff]
      %v1268 = vld [vmem:[%s6 + $0x78] sm:$0xff]
      %v1269 = vld [vmem:[%s6 + $0x80] sm:$0xff]
      %v1270 = vld [vmem:[%s6 + $0x88] sm:$0xff]
      %v1271 = vld [vmem:[%s6 + $0x90] sm:$0xff]
      %v1272 = vld [vmem:[%s6 + $0x98] sm:$0xff]
      %v1273 = vld [vmem:[%s6 + $0xa0] sm:$0xff]
      %v1274 = vld [vmem:[%s6 + $0xa8] sm:$0xff]
      %v1275 = vld [vmem:[%s6 + $0xb0] sm:$0xff]
      %v1276 = vld [vmem:[%s6 + $0xb8] sm:$0xff]
      %v1277 = vld [vmem:[%s6 + $0xc0] sm:$0xff]
      %v1278 = vld [vmem:[%s6 + $0xc8] sm:$0xff]
      %v1279 = vld [vmem:[%s6 + $0xd0] sm:$0xff]
      %v1280 = vld [vmem:[%s6 + $0xd8] sm:$0xff]
      %v1281 = vld [vmem:[%s6 + $0xe0] sm:$0xff]
      %v1282 = vld [vmem:[%s6 + $0xe8] sm:$0xff]
      %v1283 = vld [vmem:[%s6 + $0xf0] sm:$0xff]
      %v1284 = vld [vmem:[%s6 + $0xf8] sm:$0xff]
      %v1285 = vld [vmem:[%s6 + $0x100] sm:$0xff]
      %v1286 = vld [vmem:[%s6 + $0x108] sm:$0xff]
      %v1287 = vld [vmem:[%s6 + $0x110] sm:$0xff]
      %v1288 = vld [vmem:[%s6 + $0x118] sm:$0xff]
      %v1289 = vld [vmem:[%s6 + $0x120] sm:$0xff]
      %v1290 = vld [vmem:[%s6 + $0x128] sm:$0xff]
      %v1291 = vld [vmem:[%s6 + $0x130] sm:$0xff]
      %v1292 = vld [vmem:[%s6 + $0x138] sm:$0xff]
      %v1293 = vld [vmem:[%s6 + $0x140] sm:$0xff]
      %v1294 = vld [vmem:[%s6 + $0x148] sm:$0xff]
      %v1295 = vld [vmem:[%s6 + $0x150] sm:$0xff]
      %v1296 = vld [vmem:[%s6 + $0x158] sm:$0xff]
      %v1297 = vld [vmem:[%s6 + $0x160] sm:$0xff]
      %v1298 = vld [vmem:[%s6 + $0x168] sm:$0xff]
      %v1299 = vld [vmem:[%s6 + $0x170] sm:$0xff]
      %v1300 = vld [vmem:[%s6 + $0x178] sm:$0xff]
      %v1301 = vld [vmem:[%s6 + $0x180] sm:$0xff]
      %v1302 = vld [vmem:[%s6 + $0x188] sm:$0xff]
      %v1303 = vld [vmem:[%s6 + $0x190] sm:$0xff]
      %v1304 = vld [vmem:[%s6 + $0x198] sm:$0xff]
      %v1305 = vld [vmem:[%s6 + $0x1a0] sm:$0xff]
      %v1306 = vld [vmem:[%s6 + $0x1a8] sm:$0xff]
      %v1307 = vld [vmem:[%s6 + $0x1b0] sm:$0xff]
      %v1308 = vld [vmem:[%s6 + $0x1b8] sm:$0xff]
      %v1309 = vld [vmem:[%s6 + $0x1c0] sm:$0xff]
      %v1310 = vld [vmem:[%s6 + $0x1c8] sm:$0xff]
      %v1311 = vld [vmem:[%s6 + $0x1d0] sm:$0xff]
      %v1312 = vld [vmem:[%s6 + $0x1d8] sm:$0xff]
      %v1313 = vld [vmem:[%s6 + $0x1e0] sm:$0xff]
      %v1314 = vld [vmem:[%s6 + $0x1e8] sm:$0xff]
      %v1315 = vld [vmem:[%s6 + $0x1f0] sm:$0xff]
      %v1316 = vld [vmem:[%s6 + $0x1f8] sm:$0xff]
      %v1317 = vld [vmem:[%s6 + $0x200] sm:$0xff]
      %v1318 = vld [vmem:[%s6 + $0x208] sm:$0xff]
      %v1319 = vld [vmem:[%s6 + $0x210] sm:$0xff]
      %v1320 = vld [vmem:[%s6 + $0x218] sm:$0xff]
      %v1321 = vld [vmem:[%s6 + $0x220] sm:$0xff]
      %v1322 = vld [vmem:[%s6 + $0x228] sm:$0xff]
      %v1323 = vld [vmem:[%s6 + $0x230] sm:$0xff]
      %v1324 = vld [vmem:[%s6 + $0x238] sm:$0xff]
      %v1325 = vld [vmem:[%s6 + $0x240] sm:$0xff]
      %v1326 = vld [vmem:[%s6 + $0x248] sm:$0xff]
      %v1327 = vld [vmem:[%s6 + $0x250] sm:$0xff]
      %v1328 = vld [vmem:[%s6 + $0x258] sm:$0xff]
      %v1329 = vld [vmem:[%s6 + $0x260] sm:$0xff]
      %v1330 = vld [vmem:[%s6 + $0x268] sm:$0xff]
      %v1331 = vld [vmem:[%s6 + $0x270] sm:$0xff]
      %v1332 = vld [vmem:[%s6 + $0x278] sm:$0xff]
      %s1333 = scalar_lea.vmem %s6, 640
      %v1334 = vld [vmem:[%s1333] sm:$0xff]
      %v1335 = vld [vmem:[%s1333 + $0x8] sm:$0xff]
      %v1336 = vld [vmem:[%s1333 + $0x10] sm:$0xff]
      %v1337 = vld [vmem:[%s1333 + $0x18] sm:$0xff]
      %v1338 = vld [vmem:[%s1333 + $0x20] sm:$0xff]
      %v1339 = vld [vmem:[%s1333 + $0x28] sm:$0xff]
      %v1340 = vld [vmem:[%s1333 + $0x30] sm:$0xff]
      %v1341 = vld [vmem:[%s1333 + $0x38] sm:$0xff]
      %v1342 = vld [vmem:[%s1333 + $0x40] sm:$0xff]
      %v1343 = vld [vmem:[%s1333 + $0x48] sm:$0xff]
      %v1344 = vld [vmem:[%s1333 + $0x50] sm:$0xff]
      %v1345 = vld [vmem:[%s1333 + $0x58] sm:$0xff]
      %v1346 = vld [vmem:[%s1333 + $0x60] sm:$0xff]
      %v1347 = vld [vmem:[%s1333 + $0x68] sm:$0xff]
      %v1348 = vld [vmem:[%s1333 + $0x70] sm:$0xff]
      %v1349 = vld [vmem:[%s1333 + $0x78] sm:$0xff]
      %v1350 = vld [vmem:[%s1333 + $0x80] sm:$0xff]
      %v1351 = vld [vmem:[%s1333 + $0x88] sm:$0xff]
      %v1352 = vld [vmem:[%s1333 + $0x90] sm:$0xff]
      %v1353 = vld [vmem:[%s1333 + $0x98] sm:$0xff]
      %v1354 = vld [vmem:[%s1333 + $0xa0] sm:$0xff]
      %v1355 = vld [vmem:[%s1333 + $0xa8] sm:$0xff]
      %v1356 = vld [vmem:[%s1333 + $0xb0] sm:$0xff]
      %v1357 = vld [vmem:[%s1333 + $0xb8] sm:$0xff]
      %v1358 = vld [vmem:[%s1333 + $0xc0] sm:$0xff]
      %v1359 = vld [vmem:[%s1333 + $0xc8] sm:$0xff]
      %v1360 = vld [vmem:[%s1333 + $0xd0] sm:$0xff]
      %v1361 = vld [vmem:[%s1333 + $0xd8] sm:$0xff]
      %v1362 = vld [vmem:[%s1333 + $0xe0] sm:$0xff]
      %v1363 = vld [vmem:[%s1333 + $0xe8] sm:$0xff]
      %v1364 = vld [vmem:[%s1333 + $0xf0] sm:$0xff]
      %v1365 = vld [vmem:[%s1333 + $0xf8] sm:$0xff]
      %v1366 = vld [vmem:[%s1333 + $0x100] sm:$0xff]
      %v1367 = vld [vmem:[%s1333 + $0x108] sm:$0xff]
      %v1368 = vld [vmem:[%s1333 + $0x110] sm:$0xff]
      %v1369 = vld [vmem:[%s1333 + $0x118] sm:$0xff]
      %v1370 = vld [vmem:[%s1333 + $0x120] sm:$0xff]
      %v1371 = vld [vmem:[%s1333 + $0x128] sm:$0xff]
      %v1372 = vld [vmem:[%s1333 + $0x130] sm:$0xff]
      %v1373 = vld [vmem:[%s1333 + $0x138] sm:$0xff]
      %v1374 = vld [vmem:[%s1333 + $0x140] sm:$0xff]
      %v1375 = vld [vmem:[%s1333 + $0x148] sm:$0xff]
      %v1376 = vld [vmem:[%s1333 + $0x150] sm:$0xff]
      %v1377 = vld [vmem:[%s1333 + $0x158] sm:$0xff]
      %v1378 = vld [vmem:[%s1333 + $0x160] sm:$0xff]
      %v1379 = vld [vmem:[%s1333 + $0x168] sm:$0xff]
      %v1380 = vld [vmem:[%s1333 + $0x170] sm:$0xff]
      %v1381 = vld [vmem:[%s1333 + $0x178] sm:$0xff]
      %v1382 = vld [vmem:[%s1333 + $0x180] sm:$0xff]
      %v1383 = vld [vmem:[%s1333 + $0x188] sm:$0xff]
      %v1384 = vld [vmem:[%s1333 + $0x190] sm:$0xff]
      %v1385 = vld [vmem:[%s1333 + $0x198] sm:$0xff]
      %v1386 = vld [vmem:[%s1333 + $0x1a0] sm:$0xff]
      %v1387 = vld [vmem:[%s1333 + $0x1a8] sm:$0xff]
      %v1388 = vld [vmem:[%s1333 + $0x1b0] sm:$0xff]
      %v1389 = vld [vmem:[%s1333 + $0x1b8] sm:$0xff]
      %v1390 = vld [vmem:[%s1333 + $0x1c0] sm:$0xff]
      %v1391 = vld [vmem:[%s1333 + $0x1c8] sm:$0xff]
      %v1392 = vld [vmem:[%s1333 + $0x1d0] sm:$0xff]
      %v1393 = vld [vmem:[%s1333 + $0x1d8] sm:$0xff]
      %v1394 = vld [vmem:[%s1333 + $0x1e0] sm:$0xff]
      %v1395 = vld [vmem:[%s1333 + $0x1e8] sm:$0xff]
      %v1396 = vld [vmem:[%s1333 + $0x1f0] sm:$0xff]
      %v1397 = vld [vmem:[%s1333 + $0x1f8] sm:$0xff]
      %v1398 = vld [vmem:[%s1333 + $0x200] sm:$0xff]
      %v1399 = vld [vmem:[%s1333 + $0x208] sm:$0xff]
      %v1400 = vld [vmem:[%s1333 + $0x210] sm:$0xff]
      %v1401 = vld [vmem:[%s1333 + $0x218] sm:$0xff]
      %v1402 = vld [vmem:[%s1333 + $0x220] sm:$0xff]
      %v1403 = vld [vmem:[%s1333 + $0x228] sm:$0xff]
      %v1404 = vld [vmem:[%s1333 + $0x230] sm:$0xff]
      %v1405 = vld [vmem:[%s1333 + $0x238] sm:$0xff]
      %v1406 = vld [vmem:[%s1333 + $0x240] sm:$0xff]
      %v1407 = vld [vmem:[%s1333 + $0x248] sm:$0xff]
      %v1408 = vld [vmem:[%s1333 + $0x250] sm:$0xff]
      %v1409 = vld [vmem:[%s1333 + $0x258] sm:$0xff]
      %v1410 = vld [vmem:[%s1333 + $0x260] sm:$0xff]
      %v1411 = vld [vmem:[%s1333 + $0x268] sm:$0xff]
      %v1412 = vld [vmem:[%s1333 + $0x270] sm:$0xff]
      %v1413 = vld [vmem:[%s1333 + $0x278] sm:$0xff]
      %v1415 = vshrl.u32 %v1243, 16
      %v1418 = vshrl.u32 %v1244, 16
      %v1421 = vshrl.u32 %v1245, 16
      %v1424 = vshrl.u32 %v1246, 16
      %v1427 = vshrl.u32 %v1247, 16
      %v1514 = vunpack.c.l.b16 %v1334
      %v1515 = vunpack.c.h.b16 %v1334
      %v1516 = vunpack.c.l.b16 %v1335
      %v1517 = vunpack.c.h.b16 %v1335
      %v1518 = vunpack.c.l.b16 %v1336
      %v1519 = vunpack.c.h.b16 %v1336
      %v1520 = vunpack.c.l.b16 %v1337
      %v1521 = vunpack.c.h.b16 %v1337
      %v1522 = vunpack.c.l.b16 %v1338
      %v1523 = vunpack.c.h.b16 %v1338
      %v1524 = vunpack.c.l.b16 %v1339
      %v1525 = vunpack.c.h.b16 %v1339
      %v1526 = vunpack.c.l.b16 %v1340
      %v1527 = vunpack.c.h.b16 %v1340
      %v1528 = vunpack.c.l.b16 %v1341
      %v1529 = vunpack.c.h.b16 %v1341
      %v1530 = vunpack.c.l.b16 %v1342
      %v1531 = vunpack.c.h.b16 %v1342
      %v1532 = vunpack.c.l.b16 %v1343
      %v1533 = vunpack.c.h.b16 %v1343
      %v1534 = vunpack.c.l.b16 %v1344
      %v1535 = vunpack.c.h.b16 %v1344
      %v1536 = vunpack.c.l.b16 %v1345
      %v1537 = vunpack.c.h.b16 %v1345
      %v1538 = vunpack.c.l.b16 %v1346
      %v1539 = vunpack.c.h.b16 %v1346
      %v1540 = vunpack.c.l.b16 %v1347
      %v1541 = vunpack.c.h.b16 %v1347
      %v1542 = vunpack.c.l.b16 %v1348
      %v1543 = vunpack.c.h.b16 %v1348
      %v1544 = vunpack.c.l.b16 %v1349
      %v1545 = vunpack.c.h.b16 %v1349
      %v1546 = vunpack.c.l.b16 %v1350
      %v1547 = vunpack.c.h.b16 %v1350
      %v1548 = vunpack.c.l.b16 %v1351
      %v1549 = vunpack.c.h.b16 %v1351
      %v1550 = vunpack.c.l.b16 %v1352
      %v1551 = vunpack.c.h.b16 %v1352
      %v1552 = vunpack.c.l.b16 %v1353
      %v1553 = vunpack.c.h.b16 %v1353
      %v1554 = vunpack.c.l.b16 %v1354
      %v1555 = vunpack.c.h.b16 %v1354
      %v1556 = vunpack.c.l.b16 %v1355
      %v1557 = vunpack.c.h.b16 %v1355
      %v1558 = vunpack.c.l.b16 %v1356
      %v1559 = vunpack.c.h.b16 %v1356
      %v1560 = vunpack.c.l.b16 %v1357
      %v1561 = vunpack.c.h.b16 %v1357
      %v1562 = vunpack.c.l.b16 %v1358
      %v1563 = vunpack.c.h.b16 %v1358
      %v1564 = vunpack.c.l.b16 %v1359
      %v1565 = vunpack.c.h.b16 %v1359
      %v1566 = vunpack.c.l.b16 %v1360
      %v1567 = vunpack.c.h.b16 %v1360
      %v1568 = vunpack.c.l.b16 %v1361
      %v1569 = vunpack.c.h.b16 %v1361
      %v1570 = vunpack.c.l.b16 %v1362
      %v1571 = vunpack.c.h.b16 %v1362
      %v1572 = vunpack.c.l.b16 %v1363
      %v1573 = vunpack.c.h.b16 %v1363
      %v1574 = vunpack.c.l.b16 %v1364
      %v1575 = vunpack.c.h.b16 %v1364
      %v1576 = vunpack.c.l.b16 %v1365
      %v1577 = vunpack.c.h.b16 %v1365
      %v1578 = vunpack.c.l.b16 %v1366
      %v1579 = vunpack.c.h.b16 %v1366
      %v1580 = vunpack.c.l.b16 %v1367
      %v1581 = vunpack.c.h.b16 %v1367
      %v1582 = vunpack.c.l.b16 %v1368
      %v1583 = vunpack.c.h.b16 %v1368
      %v1584 = vunpack.c.l.b16 %v1369
      %v1585 = vunpack.c.h.b16 %v1369
      %v1586 = vunpack.c.l.b16 %v1370
      %v1587 = vunpack.c.h.b16 %v1370
      %v1588 = vunpack.c.l.b16 %v1371
      %v1589 = vunpack.c.h.b16 %v1371
      %v1590 = vunpack.c.l.b16 %v1372
      %v1591 = vunpack.c.h.b16 %v1372
      %v1592 = vunpack.c.l.b16 %v1373
      %v1593 = vunpack.c.h.b16 %v1373
      %v1594 = vunpack.c.l.b16 %v1374
      %v1595 = vunpack.c.h.b16 %v1374
      %v1596 = vunpack.c.l.b16 %v1375
      %v1597 = vunpack.c.h.b16 %v1375
      %v1598 = vunpack.c.l.b16 %v1376
      %v1599 = vunpack.c.h.b16 %v1376
      %v1600 = vunpack.c.l.b16 %v1377
      %v1601 = vunpack.c.h.b16 %v1377
      %v1602 = vunpack.c.l.b16 %v1378
      %v1603 = vunpack.c.h.b16 %v1378
      %v1604 = vunpack.c.l.b16 %v1379
      %v1605 = vunpack.c.h.b16 %v1379
      %v1606 = vunpack.c.l.b16 %v1380
      %v1607 = vunpack.c.h.b16 %v1380
      %v1608 = vunpack.c.l.b16 %v1381
      %v1609 = vunpack.c.h.b16 %v1381
      %v1610 = vunpack.c.l.b16 %v1382
      %v1611 = vunpack.c.h.b16 %v1382
      %v1612 = vunpack.c.l.b16 %v1383
      %v1613 = vunpack.c.h.b16 %v1383
      %v1614 = vunpack.c.l.b16 %v1384
      %v1615 = vunpack.c.h.b16 %v1384
      %v1616 = vunpack.c.l.b16 %v1385
      %v1617 = vunpack.c.h.b16 %v1385
      %v1618 = vunpack.c.l.b16 %v1386
      %v1619 = vunpack.c.h.b16 %v1386
      %v1620 = vunpack.c.l.b16 %v1387
      %v1621 = vunpack.c.h.b16 %v1387
      %v1622 = vunpack.c.l.b16 %v1388
      %v1623 = vunpack.c.h.b16 %v1388
      %v1624 = vunpack.c.l.b16 %v1389
      %v1625 = vunpack.c.h.b16 %v1389
      %v1626 = vunpack.c.l.b16 %v1390
      %v1627 = vunpack.c.h.b16 %v1390
      %v1628 = vunpack.c.l.b16 %v1391
      %v1629 = vunpack.c.h.b16 %v1391
      %v1630 = vunpack.c.l.b16 %v1392
      %v1631 = vunpack.c.h.b16 %v1392
      %v1632 = vunpack.c.l.b16 %v1393
      %v1633 = vunpack.c.h.b16 %v1393
      %v1634 = vunpack.c.l.b16 %v1394
      %v1635 = vunpack.c.h.b16 %v1394
      %v1636 = vunpack.c.l.b16 %v1395
      %v1637 = vunpack.c.h.b16 %v1395
      %v1638 = vunpack.c.l.b16 %v1396
      %v1639 = vunpack.c.h.b16 %v1396
      %v1640 = vunpack.c.l.b16 %v1397
      %v1641 = vunpack.c.h.b16 %v1397
      %v1642 = vunpack.c.l.b16 %v1398
      %v1643 = vunpack.c.h.b16 %v1398
      %v1644 = vunpack.c.l.b16 %v1399
      %v1645 = vunpack.c.h.b16 %v1399
      %v1646 = vunpack.c.l.b16 %v1400
      %v1647 = vunpack.c.h.b16 %v1400
      %v1648 = vunpack.c.l.b16 %v1401
      %v1649 = vunpack.c.h.b16 %v1401
      %v1650 = vunpack.c.l.b16 %v1402
      %v1651 = vunpack.c.h.b16 %v1402
      %v1652 = vunpack.c.l.b16 %v1403
      %v1653 = vunpack.c.h.b16 %v1403
      %v1654 = vunpack.c.l.b16 %v1404
      %v1655 = vunpack.c.h.b16 %v1404
      %v1656 = vunpack.c.l.b16 %v1405
      %v1657 = vunpack.c.h.b16 %v1405
      %v1658 = vunpack.c.l.b16 %v1406
      %v1659 = vunpack.c.h.b16 %v1406
      %v1660 = vunpack.c.l.b16 %v1407
      %v1661 = vunpack.c.h.b16 %v1407
      %v1662 = vunpack.c.l.b16 %v1408
      %v1663 = vunpack.c.h.b16 %v1408
      %v1664 = vunpack.c.l.b16 %v1409
      %v1665 = vunpack.c.h.b16 %v1409
      %v1666 = vunpack.c.l.b16 %v1410
      %v1667 = vunpack.c.h.b16 %v1410
      %v1668 = vunpack.c.l.b16 %v1411
      %v1669 = vunpack.c.h.b16 %v1411
      %v1670 = vunpack.c.l.b16 %v1412
      %v1671 = vunpack.c.h.b16 %v1412
      %v1672 = vunpack.c.l.b16 %v1413
      %v1673 = vunpack.c.h.b16 %v1413
      %v1674 = vpack.c.b16 %v1516, %v1514
      %v1675 = vpack.c.b16 %v1517, %v1515
      %v1676 = vpack.c.b16 %v1520, %v1518
      %v1677 = vpack.c.b16 %v1521, %v1519
      %v1678 = vpack.c.b16 %v1524, %v1522
      %v1679 = vpack.c.b16 %v1525, %v1523
      %v1680 = vpack.c.b16 %v1528, %v1526
      %v1681 = vpack.c.b16 %v1529, %v1527
      %v1682 = vpack.c.b16 %v1532, %v1530
      %v1683 = vpack.c.b16 %v1533, %v1531
      %v1684 = vpack.c.b16 %v1536, %v1534
      %v1685 = vpack.c.b16 %v1537, %v1535
      %v1686 = vpack.c.b16 %v1540, %v1538
      %v1687 = vpack.c.b16 %v1541, %v1539
      %v1688 = vpack.c.b16 %v1544, %v1542
      %v1689 = vpack.c.b16 %v1545, %v1543
      %v1690 = vpack.c.b16 %v1548, %v1546
      %v1691 = vpack.c.b16 %v1549, %v1547
      %v1692 = vpack.c.b16 %v1552, %v1550
      %v1693 = vpack.c.b16 %v1553, %v1551
      %v1694 = vpack.c.b16 %v1556, %v1554
      %v1695 = vpack.c.b16 %v1557, %v1555
      %v1696 = vpack.c.b16 %v1560, %v1558
      %v1697 = vpack.c.b16 %v1561, %v1559
      %v1698 = vpack.c.b16 %v1564, %v1562
      %v1699 = vpack.c.b16 %v1565, %v1563
      %v1700 = vpack.c.b16 %v1568, %v1566
      %v1701 = vpack.c.b16 %v1569, %v1567
      %v1702 = vpack.c.b16 %v1572, %v1570
      %v1703 = vpack.c.b16 %v1573, %v1571
      %v1704 = vpack.c.b16 %v1576, %v1574
      %v1705 = vpack.c.b16 %v1577, %v1575
      %v1706 = vpack.c.b16 %v1580, %v1578
      %v1707 = vpack.c.b16 %v1581, %v1579
      %v1708 = vpack.c.b16 %v1584, %v1582
      %v1709 = vpack.c.b16 %v1585, %v1583
      %v1710 = vpack.c.b16 %v1588, %v1586
      %v1711 = vpack.c.b16 %v1589, %v1587
      %v1712 = vpack.c.b16 %v1592, %v1590
      %v1713 = vpack.c.b16 %v1593, %v1591
      %v1714 = vpack.c.b16 %v1596, %v1594
      %v1715 = vpack.c.b16 %v1597, %v1595
      %v1716 = vpack.c.b16 %v1600, %v1598
      %v1717 = vpack.c.b16 %v1601, %v1599
      %v1718 = vpack.c.b16 %v1604, %v1602
      %v1719 = vpack.c.b16 %v1605, %v1603
      %v1720 = vpack.c.b16 %v1608, %v1606
      %v1721 = vpack.c.b16 %v1609, %v1607
      %v1722 = vpack.c.b16 %v1612, %v1610
      %v1723 = vpack.c.b16 %v1613, %v1611
      %v1724 = vpack.c.b16 %v1616, %v1614
      %v1725 = vpack.c.b16 %v1617, %v1615
      %v1726 = vpack.c.b16 %v1620, %v1618
      %v1727 = vpack.c.b16 %v1621, %v1619
      %v1728 = vpack.c.b16 %v1624, %v1622
      %v1729 = vpack.c.b16 %v1625, %v1623
      %v1730 = vpack.c.b16 %v1628, %v1626
      %v1731 = vpack.c.b16 %v1629, %v1627
      %v1732 = vpack.c.b16 %v1632, %v1630
      %v1733 = vpack.c.b16 %v1633, %v1631
      %v1734 = vpack.c.b16 %v1636, %v1634
      %v1735 = vpack.c.b16 %v1637, %v1635
      %v1736 = vpack.c.b16 %v1640, %v1638
      %v1737 = vpack.c.b16 %v1641, %v1639
      %v1738 = vpack.c.b16 %v1644, %v1642
      %v1739 = vpack.c.b16 %v1645, %v1643
      %v1740 = vpack.c.b16 %v1648, %v1646
      %v1741 = vpack.c.b16 %v1649, %v1647
      %v1742 = vpack.c.b16 %v1652, %v1650
      %v1743 = vpack.c.b16 %v1653, %v1651
      %v1744 = vpack.c.b16 %v1656, %v1654
      %v1745 = vpack.c.b16 %v1657, %v1655
      %v1746 = vpack.c.b16 %v1660, %v1658
      %v1747 = vpack.c.b16 %v1661, %v1659
      %v1748 = vpack.c.b16 %v1664, %v1662
      %v1749 = vpack.c.b16 %v1665, %v1663
      %v1750 = vpack.c.b16 %v1668, %v1666
      %v1751 = vpack.c.b16 %v1669, %v1667
      %v1752 = vpack.c.b16 %v1672, %v1670
      %v1753 = vpack.c.b16 %v1673, %v1671
      %1834 = vmatprep.subr.bf16.mxu0 %v1675
      %1835 = vmatpush1.bf16.msra.mxu0 %v1674
      %1836 = vmatprep.subr.bf16.mxu0 %v1677
      %1837 = vmatpush1.bf16.msra.mxu0 %v1676
      %1838 = vmatprep.subr.bf16.mxu0 %v1679
      %1839 = vmatpush1.bf16.msra.mxu0 %v1678
      %1840 = vmatprep.subr.bf16.mxu0 %v1681
      %1841 = vmatpush1.bf16.msra.mxu0 %v1680
      %1842 = vmatprep.subr.bf16.mxu0 %v1683
      %1843 = vmatpush1.bf16.msra.mxu0 %v1682
      %1844 = vmatprep.subr.bf16.mxu0 %v1685
      %1845 = vmatpush1.bf16.msra.mxu0 %v1684
      %1846 = vmatprep.subr.bf16.mxu0 %v1687
      %1847 = vmatpush1.bf16.msra.mxu0 %v1686
      %1848 = vmatprep.subr.bf16.mxu0 %v1689
      %1849 = vmatpush1.bf16.msra.mxu0 %v1688
      %1850 = vmatprep.subr.bf16.mxu0 %v1691
      %1851 = vmatpush1.bf16.msra.mxu0 %v1690
      %1852 = vmatprep.subr.bf16.mxu0 %v1693
      %1853 = vmatpush1.bf16.msra.mxu0 %v1692
      %1854 = vmatprep.subr.bf16.mxu0 %v1695
      %1855 = vmatpush1.bf16.msra.mxu0 %v1694
      %1856 = vmatprep.subr.bf16.mxu0 %v1697
      %1857 = vmatpush1.bf16.msra.mxu0 %v1696
      %1858 = vmatprep.subr.bf16.mxu0 %v1699
      %1859 = vmatpush1.bf16.msra.mxu0 %v1698
      %1860 = vmatprep.subr.bf16.mxu0 %v1701
      %1861 = vmatpush1.bf16.msra.mxu0 %v1700
      %1862 = vmatprep.subr.bf16.mxu0 %v1703
      %1863 = vmatpush1.bf16.msra.mxu0 %v1702
      %1864 = vmatprep.subr.bf16.mxu0 %v1705
      %1865 = vmatpush1.bf16.msra.mxu0 %v1704
      %1866 = vmatprep.mubr.bf16.mxu0 %v1418
      %1867 = vmatmul.mubr.bf16.gmra.mrb[0].mxu0 %v1415
      %v1868 = vpop.f32.mrb[0].mxu0
      %v1869 = vadd.f32 0.0, %v1868
      %v1870 = vpop.f32.mrb[0].mxu0
      %v1871 = vadd.f32 0.0, %v1870
      %v1872 = vpop.f32.mrb[0].mxu0
      %v1873 = vpop.f32.mrb[0].mxu0
      %1874 = vdwg.mxu0
      %1875 = vmatprep.subr.bf16.mxu0 %v1707
      %1876 = vmatpush1.bf16.msra.mxu0 %v1706
      %1877 = vmatprep.subr.bf16.mxu0 %v1709
      %1878 = vmatpush1.bf16.msra.mxu0 %v1708
      %1879 = vmatprep.subr.bf16.mxu0 %v1711
      %1880 = vmatpush1.bf16.msra.mxu0 %v1710
      %1881 = vmatprep.subr.bf16.mxu0 %v1713
      %1882 = vmatpush1.bf16.msra.mxu0 %v1712
      %1883 = vmatprep.subr.bf16.mxu0 %v1715
      %1884 = vmatpush1.bf16.msra.mxu0 %v1714
      %1885 = vmatprep.subr.bf16.mxu0 %v1717
      %1886 = vmatpush1.bf16.msra.mxu0 %v1716
      %1887 = vmatprep.subr.bf16.mxu0 %v1719
      %1888 = vmatpush1.bf16.msra.mxu0 %v1718
      %1889 = vmatprep.subr.bf16.mxu0 %v1721
      %1890 = vmatpush1.bf16.msra.mxu0 %v1720
      %1891 = vmatprep.subr.bf16.mxu0 %v1723
      %1892 = vmatpush1.bf16.msra.mxu0 %v1722
      %1893 = vmatprep.subr.bf16.mxu0 %v1725
      %1894 = vmatpush1.bf16.msra.mxu0 %v1724
      %1895 = vmatprep.subr.bf16.mxu0 %v1727
      %1896 = vmatpush1.bf16.msra.mxu0 %v1726
      %1897 = vmatprep.subr.bf16.mxu0 %v1729
      %1898 = vmatpush1.bf16.msra.mxu0 %v1728
      %1899 = vmatprep.subr.bf16.mxu0 %v1731
      %1900 = vmatpush1.bf16.msra.mxu0 %v1730
      %1901 = vmatprep.subr.bf16.mxu0 %v1733
      %1902 = vmatpush1.bf16.msra.mxu0 %v1732
      %1903 = vmatprep.subr.bf16.mxu0 %v1735
      %1904 = vmatpush1.bf16.msra.mxu0 %v1734
      %1905 = vmatprep.subr.bf16.mxu0 %v1737
      %1906 = vmatpush1.bf16.msra.mxu0 %v1736
      %1907 = vmatprep.mubr.bf16.mxu0 %v1424
      %1908 = vmatmul.mubr.bf16.gmra.mrb[0].mxu0 %v1421
      %v1909 = vpop.f32.mrb[0].mxu0
      %v1910 = vadd.f32 %v1869, %v1909
      %v1911 = vpop.f32.mrb[0].mxu0
      %v1912 = vadd.f32 %v1871, %v1911
      %v1913 = vpop.f32.mrb[0].mxu0
      %v1914 = vpop.f32.mrb[0].mxu0
      %1915 = vdwg.mxu0
      %1916 = vmatprep.subr.bf16.mxu0 %v1739
      %1917 = vmatpush1.bf16.msra.mxu0 %v1738
      %1918 = vmatprep.subr.bf16.mxu0 %v1741
      %1919 = vmatpush1.bf16.msra.mxu0 %v1740
      %1920 = vmatprep.subr.bf16.mxu0 %v1743
      %1921 = vmatpush1.bf16.msra.mxu0 %v1742
      %1922 = vmatprep.subr.bf16.mxu0 %v1745
      %1923 = vmatpush1.bf16.msra.mxu0 %v1744
      %1924 = vmatprep.subr.bf16.mxu0 %v1747
      %1925 = vmatpush1.bf16.msra.mxu0 %v1746
      %1926 = vmatprep.subr.bf16.mxu0 %v1749
      %1927 = vmatpush1.bf16.msra.mxu0 %v1748
      %1928 = vmatprep.subr.bf16.mxu0 %v1751
      %1929 = vmatpush1.bf16.msra.mxu0 %v1750
      %1930 = vmatprep.subr.bf16.mxu0 %v1753
      %1931 = vmatpush1.bf16.msra.mxu0 %v1752
      %1932 = vmatprep.subr.bf16.mxu0 0
      %1933 = vmatpush1.bf16.msra.mxu0 0
      %1934 = vmatprep.subr.bf16.mxu0 0
      %1935 = vmatpush1.bf16.msra.mxu0 0
      %1936 = vmatprep.subr.bf16.mxu0 0
      %1937 = vmatpush1.bf16.msra.mxu0 0
      %1938 = vmatprep.subr.bf16.mxu0 0
      %1939 = vmatpush1.bf16.msra.mxu0 0
      %1940 = vmatprep.subr.bf16.mxu0 0
      %1941 = vmatpush1.bf16.msra.mxu0 0
      %1942 = vmatprep.subr.bf16.mxu0 0
      %1943 = vmatpush1.bf16.msra.mxu0 0
      %1944 = vmatprep.subr.bf16.mxu0 0
      %1945 = vmatpush1.bf16.msra.mxu0 0
      %1946 = vmatprep.subr.bf16.mxu0 0
      %1947 = vmatpush1.bf16.msra.mxu0 0
      %1948 = vmatprep.mubr.bf16.mxu0 0
      %1949 = vmatmul.mubr.bf16.gmra.mrb[0].mxu0 %v1427
      %v1950 = vpop.f32.mrb[0].mxu0
      %v1951 = vadd.f32 %v1910, %v1950
      %v1952 = vpop.f32.mrb[0].mxu0
      %v1953 = vadd.f32 %v1912, %v1952
      %v1954 = vpop.f32.mrb[0].mxu0
      %v1955 = vpop.f32.mrb[0].mxu0
      %1956 = vdwg.mxu0
      %v2037 = vunpack.c.l.b16 %v1253
      %v2038 = vunpack.c.h.b16 %v1253
      %v2039 = vunpack.c.l.b16 %v1254
      %v2040 = vunpack.c.h.b16 %v1254
      %v2041 = vunpack.c.l.b16 %v1255
      %v2042 = vunpack.c.h.b16 %v1255
      %v2043 = vunpack.c.l.b16 %v1256
      %v2044 = vunpack.c.h.b16 %v1256
      %v2045 = vunpack.c.l.b16 %v1257
      %v2046 = vunpack.c.h.b16 %v1257
      %v2047 = vunpack.c.l.b16 %v1258
      %v2048 = vunpack.c.h.b16 %v1258
      %v2049 = vunpack.c.l.b16 %v1259
      %v2050 = vunpack.c.h.b16 %v1259
      %v2051 = vunpack.c.l.b16 %v1260
      %v2052 = vunpack.c.h.b16 %v1260
      %v2053 = vunpack.c.l.b16 %v1261
      %v2054 = vunpack.c.h.b16 %v1261
      %v2055 = vunpack.c.l.b16 %v1262
      %v2056 = vunpack.c.h.b16 %v1262
      %v2057 = vunpack.c.l.b16 %v1263
      %v2058 = vunpack.c.h.b16 %v1263
      %v2059 = vunpack.c.l.b16 %v1264
      %v2060 = vunpack.c.h.b16 %v1264
      %v2061 = vunpack.c.l.b16 %v1265
      %v2062 = vunpack.c.h.b16 %v1265
      %v2063 = vunpack.c.l.b16 %v1266
      %v2064 = vunpack.c.h.b16 %v1266
      %v2065 = vunpack.c.l.b16 %v1267
      %v2066 = vunpack.c.h.b16 %v1267
      %v2067 = vunpack.c.l.b16 %v1268
      %v2068 = vunpack.c.h.b16 %v1268
      %v2069 = vunpack.c.l.b16 %v1269
      %v2070 = vunpack.c.h.b16 %v1269
      %v2071 = vunpack.c.l.b16 %v1270
      %v2072 = vunpack.c.h.b16 %v1270
      %v2073 = vunpack.c.l.b16 %v1271
      %v2074 = vunpack.c.h.b16 %v1271
      %v2075 = vunpack.c.l.b16 %v1272
      %v2076 = vunpack.c.h.b16 %v1272
      %v2077 = vunpack.c.l.b16 %v1273
      %v2078 = vunpack.c.h.b16 %v1273
      %v2079 = vunpack.c.l.b16 %v1274
      %v2080 = vunpack.c.h.b16 %v1274
      %v2081 = vunpack.c.l.b16 %v1275
      %v2082 = vunpack.c.h.b16 %v1275
      %v2083 = vunpack.c.l.b16 %v1276
      %v2084 = vunpack.c.h.b16 %v1276
      %v2085 = vunpack.c.l.b16 %v1277
      %v2086 = vunpack.c.h.b16 %v1277
      %v2087 = vunpack.c.l.b16 %v1278
      %v2088 = vunpack.c.h.b16 %v1278
      %v2089 = vunpack.c.l.b16 %v1279
      %v2090 = vunpack.c.h.b16 %v1279
      %v2091 = vunpack.c.l.b16 %v1280
      %v2092 = vunpack.c.h.b16 %v1280
      %v2093 = vunpack.c.l.b16 %v1281
      %v2094 = vunpack.c.h.b16 %v1281
      %v2095 = vunpack.c.l.b16 %v1282
      %v2096 = vunpack.c.h.b16 %v1282
      %v2097 = vunpack.c.l.b16 %v1283
      %v2098 = vunpack.c.h.b16 %v1283
      %v2099 = vunpack.c.l.b16 %v1284
      %v2100 = vunpack.c.h.b16 %v1284
      %v2101 = vunpack.c.l.b16 %v1285
      %v2102 = vunpack.c.h.b16 %v1285
      %v2103 = vunpack.c.l.b16 %v1286
      %v2104 = vunpack.c.h.b16 %v1286
      %v2105 = vunpack.c.l.b16 %v1287
      %v2106 = vunpack.c.h.b16 %v1287
      %v2107 = vunpack.c.l.b16 %v1288
      %v2108 = vunpack.c.h.b16 %v1288
      %v2109 = vunpack.c.l.b16 %v1289
      %v2110 = vunpack.c.h.b16 %v1289
      %v2111 = vunpack.c.l.b16 %v1290
      %v2112 = vunpack.c.h.b16 %v1290
      %v2113 = vunpack.c.l.b16 %v1291
      %v2114 = vunpack.c.h.b16 %v1291
      %v2115 = vunpack.c.l.b16 %v1292
      %v2116 = vunpack.c.h.b16 %v1292
      %v2117 = vunpack.c.l.b16 %v1293
      %v2118 = vunpack.c.h.b16 %v1293
      %v2119 = vunpack.c.l.b16 %v1294
      %v2120 = vunpack.c.h.b16 %v1294
      %v2121 = vunpack.c.l.b16 %v1295
      %v2122 = vunpack.c.h.b16 %v1295
      %v2123 = vunpack.c.l.b16 %v1296
      %v2124 = vunpack.c.h.b16 %v1296
      %v2125 = vunpack.c.l.b16 %v1297
      %v2126 = vunpack.c.h.b16 %v1297
      %v2127 = vunpack.c.l.b16 %v1298
      %v2128 = vunpack.c.h.b16 %v1298
      %v2129 = vunpack.c.l.b16 %v1299
      %v2130 = vunpack.c.h.b16 %v1299
      %v2131 = vunpack.c.l.b16 %v1300
      %v2132 = vunpack.c.h.b16 %v1300
      %v2133 = vunpack.c.l.b16 %v1301
      %v2134 = vunpack.c.h.b16 %v1301
      %v2135 = vunpack.c.l.b16 %v1302
      %v2136 = vunpack.c.h.b16 %v1302
      %v2137 = vunpack.c.l.b16 %v1303
      %v2138 = vunpack.c.h.b16 %v1303
      %v2139 = vunpack.c.l.b16 %v1304
      %v2140 = vunpack.c.h.b16 %v1304
      %v2141 = vunpack.c.l.b16 %v1305
      %v2142 = vunpack.c.h.b16 %v1305
      %v2143 = vunpack.c.l.b16 %v1306
      %v2144 = vunpack.c.h.b16 %v1306
      %v2145 = vunpack.c.l.b16 %v1307
      %v2146 = vunpack.c.h.b16 %v1307
      %v2147 = vunpack.c.l.b16 %v1308
      %v2148 = vunpack.c.h.b16 %v1308
      %v2149 = vunpack.c.l.b16 %v1309
      %v2150 = vunpack.c.h.b16 %v1309
      %v2151 = vunpack.c.l.b16 %v1310
      %v2152 = vunpack.c.h.b16 %v1310
      %v2153 = vunpack.c.l.b16 %v1311
      %v2154 = vunpack.c.h.b16 %v1311
      %v2155 = vunpack.c.l.b16 %v1312
      %v2156 = vunpack.c.h.b16 %v1312
      %v2157 = vunpack.c.l.b16 %v1313
      %v2158 = vunpack.c.h.b16 %v1313
      %v2159 = vunpack.c.l.b16 %v1314
      %v2160 = vunpack.c.h.b16 %v1314
      %v2161 = vunpack.c.l.b16 %v1315
      %v2162 = vunpack.c.h.b16 %v1315
      %v2163 = vunpack.c.l.b16 %v1316
      %v2164 = vunpack.c.h.b16 %v1316
      %v2165 = vunpack.c.l.b16 %v1317
      %v2166 = vunpack.c.h.b16 %v1317
      %v2167 = vunpack.c.l.b16 %v1318
      %v2168 = vunpack.c.h.b16 %v1318
      %v2169 = vunpack.c.l.b16 %v1319
      %v2170 = vunpack.c.h.b16 %v1319
      %v2171 = vunpack.c.l.b16 %v1320
      %v2172 = vunpack.c.h.b16 %v1320
      %v2173 = vunpack.c.l.b16 %v1321
      %v2174 = vunpack.c.h.b16 %v1321
      %v2175 = vunpack.c.l.b16 %v1322
      %v2176 = vunpack.c.h.b16 %v1322
      %v2177 = vunpack.c.l.b16 %v1323
      %v2178 = vunpack.c.h.b16 %v1323
      %v2179 = vunpack.c.l.b16 %v1324
      %v2180 = vunpack.c.h.b16 %v1324
      %v2181 = vunpack.c.l.b16 %v1325
      %v2182 = vunpack.c.h.b16 %v1325
      %v2183 = vunpack.c.l.b16 %v1326
      %v2184 = vunpack.c.h.b16 %v1326
      %v2185 = vunpack.c.l.b16 %v1327
      %v2186 = vunpack.c.h.b16 %v1327
      %v2187 = vunpack.c.l.b16 %v1328
      %v2188 = vunpack.c.h.b16 %v1328
      %v2189 = vunpack.c.l.b16 %v1329
      %v2190 = vunpack.c.h.b16 %v1329
      %v2191 = vunpack.c.l.b16 %v1330
      %v2192 = vunpack.c.h.b16 %v1330
      %v2193 = vunpack.c.l.b16 %v1331
      %v2194 = vunpack.c.h.b16 %v1331
      %v2195 = vunpack.c.l.b16 %v1332
      %v2196 = vunpack.c.h.b16 %v1332
      %v2197 = vpack.c.b16 %v2039, %v2037
      %v2198 = vpack.c.b16 %v2040, %v2038
      %v2199 = vpack.c.b16 %v2043, %v2041
      %v2200 = vpack.c.b16 %v2044, %v2042
      %v2201 = vpack.c.b16 %v2047, %v2045
      %v2202 = vpack.c.b16 %v2048, %v2046
      %v2203 = vpack.c.b16 %v2051, %v2049
      %v2204 = vpack.c.b16 %v2052, %v2050
      %v2205 = vpack.c.b16 %v2055, %v2053
      %v2206 = vpack.c.b16 %v2056, %v2054
      %v2207 = vpack.c.b16 %v2059, %v2057
      %v2208 = vpack.c.b16 %v2060, %v2058
      %v2209 = vpack.c.b16 %v2063, %v2061
      %v2210 = vpack.c.b16 %v2064, %v2062
      %v2211 = vpack.c.b16 %v2067, %v2065
      %v2212 = vpack.c.b16 %v2068, %v2066
      %v2213 = vpack.c.b16 %v2071, %v2069
      %v2214 = vpack.c.b16 %v2072, %v2070
      %v2215 = vpack.c.b16 %v2075, %v2073
      %v2216 = vpack.c.b16 %v2076, %v2074
      %v2217 = vpack.c.b16 %v2079, %v2077
      %v2218 = vpack.c.b16 %v2080, %v2078
      %v2219 = vpack.c.b16 %v2083, %v2081
      %v2220 = vpack.c.b16 %v2084, %v2082
      %v2221 = vpack.c.b16 %v2087, %v2085
      %v2222 = vpack.c.b16 %v2088, %v2086
      %v2223 = vpack.c.b16 %v2091, %v2089
      %v2224 = vpack.c.b16 %v2092, %v2090
      %v2225 = vpack.c.b16 %v2095, %v2093
      %v2226 = vpack.c.b16 %v2096, %v2094
      %v2227 = vpack.c.b16 %v2099, %v2097
      %v2228 = vpack.c.b16 %v2100, %v2098
      %v2229 = vpack.c.b16 %v2103, %v2101
      %v2230 = vpack.c.b16 %v2104, %v2102
      %v2231 = vpack.c.b16 %v2107, %v2105
      %v2232 = vpack.c.b16 %v2108, %v2106
      %v2233 = vpack.c.b16 %v2111, %v2109
      %v2234 = vpack.c.b16 %v2112, %v2110
      %v2235 = vpack.c.b16 %v2115, %v2113
      %v2236 = vpack.c.b16 %v2116, %v2114
      %v2237 = vpack.c.b16 %v2119, %v2117
      %v2238 = vpack.c.b16 %v2120, %v2118
      %v2239 = vpack.c.b16 %v2123, %v2121
      %v2240 = vpack.c.b16 %v2124, %v2122
      %v2241 = vpack.c.b16 %v2127, %v2125
      %v2242 = vpack.c.b16 %v2128, %v2126
      %v2243 = vpack.c.b16 %v2131, %v2129
      %v2244 = vpack.c.b16 %v2132, %v2130
      %v2245 = vpack.c.b16 %v2135, %v2133
      %v2246 = vpack.c.b16 %v2136, %v2134
      %v2247 = vpack.c.b16 %v2139, %v2137
      %v2248 = vpack.c.b16 %v2140, %v2138
      %v2249 = vpack.c.b16 %v2143, %v2141
      %v2250 = vpack.c.b16 %v2144, %v2142
      %v2251 = vpack.c.b16 %v2147, %v2145
      %v2252 = vpack.c.b16 %v2148, %v2146
      %v2253 = vpack.c.b16 %v2151, %v2149
      %v2254 = vpack.c.b16 %v2152, %v2150
      %v2255 = vpack.c.b16 %v2155, %v2153
      %v2256 = vpack.c.b16 %v2156, %v2154
      %v2257 = vpack.c.b16 %v2159, %v2157
      %v2258 = vpack.c.b16 %v2160, %v2158
      %v2259 = vpack.c.b16 %v2163, %v2161
      %v2260 = vpack.c.b16 %v2164, %v2162
      %v2261 = vpack.c.b16 %v2167, %v2165
      %v2262 = vpack.c.b16 %v2168, %v2166
      %v2263 = vpack.c.b16 %v2171, %v2169
      %v2264 = vpack.c.b16 %v2172, %v2170
      %v2265 = vpack.c.b16 %v2175, %v2173
      %v2266 = vpack.c.b16 %v2176, %v2174
      %v2267 = vpack.c.b16 %v2179, %v2177
      %v2268 = vpack.c.b16 %v2180, %v2178
      %v2269 = vpack.c.b16 %v2183, %v2181
      %v2270 = vpack.c.b16 %v2184, %v2182
      %v2271 = vpack.c.b16 %v2187, %v2185
      %v2272 = vpack.c.b16 %v2188, %v2186
      %v2273 = vpack.c.b16 %v2191, %v2189
      %v2274 = vpack.c.b16 %v2192, %v2190
      %v2275 = vpack.c.b16 %v2195, %v2193
      %v2276 = vpack.c.b16 %v2196, %v2194
      %2357 = vmatprep.subr.bf16.mxu0 %v2198
      %2358 = vmatpush1.bf16.msra.mxu0 %v2197
      %2359 = vmatprep.subr.bf16.mxu0 %v2200
      %2360 = vmatpush1.bf16.msra.mxu0 %v2199
      %2361 = vmatprep.subr.bf16.mxu0 %v2202
      %2362 = vmatpush1.bf16.msra.mxu0 %v2201
      %2363 = vmatprep.subr.bf16.mxu0 %v2204
      %2364 = vmatpush1.bf16.msra.mxu0 %v2203
      %2365 = vmatprep.subr.bf16.mxu0 %v2206
      %2366 = vmatpush1.bf16.msra.mxu0 %v2205
      %2367 = vmatprep.subr.bf16.mxu0 %v2208
      %2368 = vmatpush1.bf16.msra.mxu0 %v2207
      %2369 = vmatprep.subr.bf16.mxu0 %v2210
      %2370 = vmatpush1.bf16.msra.mxu0 %v2209
      %2371 = vmatprep.subr.bf16.mxu0 %v2212
      %2372 = vmatpush1.bf16.msra.mxu0 %v2211
      %2373 = vmatprep.subr.bf16.mxu0 %v2214
      %2374 = vmatpush1.bf16.msra.mxu0 %v2213
      %2375 = vmatprep.subr.bf16.mxu0 %v2216
      %2376 = vmatpush1.bf16.msra.mxu0 %v2215
      %2377 = vmatprep.subr.bf16.mxu0 %v2218
      %2378 = vmatpush1.bf16.msra.mxu0 %v2217
      %2379 = vmatprep.subr.bf16.mxu0 %v2220
      %2380 = vmatpush1.bf16.msra.mxu0 %v2219
      %2381 = vmatprep.subr.bf16.mxu0 %v2222
      %2382 = vmatpush1.bf16.msra.mxu0 %v2221
      %2383 = vmatprep.subr.bf16.mxu0 %v2224
      %2384 = vmatpush1.bf16.msra.mxu0 %v2223
      %2385 = vmatprep.subr.bf16.mxu0 %v2226
      %2386 = vmatpush1.bf16.msra.mxu0 %v2225
      %2387 = vmatprep.subr.bf16.mxu0 %v2228
      %2388 = vmatpush1.bf16.msra.mxu0 %v2227
      %2389 = vmatprep.mubr.bf16.mxu0 %v1244
      %2390 = vmatmul.mubr.bf16.gmra.mrb[0].mxu0 %v1243
      %v2391 = vpop.f32.mrb[0].mxu0
      %v2392 = vadd.f32 %v1951, %v2391
      %v2393 = vpop.f32.mrb[0].mxu0
      %v2394 = vadd.f32 %v1953, %v2393
      %v2395 = vpop.f32.mrb[0].mxu0
      %v2396 = vpop.f32.mrb[0].mxu0
      %2397 = vdwg.mxu0
      %2398 = vmatprep.subr.bf16.mxu0 %v2230
      %2399 = vmatpush1.bf16.msra.mxu0 %v2229
      %2400 = vmatprep.subr.bf16.mxu0 %v2232
      %2401 = vmatpush1.bf16.msra.mxu0 %v2231
      %2402 = vmatprep.subr.bf16.mxu0 %v2234
      %2403 = vmatpush1.bf16.msra.mxu0 %v2233
      %2404 = vmatprep.subr.bf16.mxu0 %v2236
      %2405 = vmatpush1.bf16.msra.mxu0 %v2235
      %2406 = vmatprep.subr.bf16.mxu0 %v2238
      %2407 = vmatpush1.bf16.msra.mxu0 %v2237
      %2408 = vmatprep.subr.bf16.mxu0 %v2240
      %2409 = vmatpush1.bf16.msra.mxu0 %v2239
      %2410 = vmatprep.subr.bf16.mxu0 %v2242
      %2411 = vmatpush1.bf16.msra.mxu0 %v2241
      %2412 = vmatprep.subr.bf16.mxu0 %v2244
      %2413 = vmatpush1.bf16.msra.mxu0 %v2243
      %2414 = vmatprep.subr.bf16.mxu0 %v2246
      %2415 = vmatpush1.bf16.msra.mxu0 %v2245
      %2416 = vmatprep.subr.bf16.mxu0 %v2248
      %2417 = vmatpush1.bf16.msra.mxu0 %v2247
      %2418 = vmatprep.subr.bf16.mxu0 %v2250
      %2419 = vmatpush1.bf16.msra.mxu0 %v2249
      %2420 = vmatprep.subr.bf16.mxu0 %v2252
      %2421 = vmatpush1.bf16.msra.mxu0 %v2251
      %2422 = vmatprep.subr.bf16.mxu0 %v2254
      %2423 = vmatpush1.bf16.msra.mxu0 %v2253
      %2424 = vmatprep.subr.bf16.mxu0 %v2256
      %2425 = vmatpush1.bf16.msra.mxu0 %v2255
      %2426 = vmatprep.subr.bf16.mxu0 %v2258
      %2427 = vmatpush1.bf16.msra.mxu0 %v2257
      %2428 = vmatprep.subr.bf16.mxu0 %v2260
      %2429 = vmatpush1.bf16.msra.mxu0 %v2259
      %2430 = vmatprep.mubr.bf16.mxu0 %v1246
      %2431 = vmatmul.mubr.bf16.gmra.mrb[0].mxu0 %v1245
      %v2432 = vpop.f32.mrb[0].mxu0
      %v2433 = vadd.f32 %v2392, %v2432
      %v2434 = vpop.f32.mrb[0].mxu0
      %v2435 = vadd.f32 %v2394, %v2434
      %v2436 = vpop.f32.mrb[0].mxu0
      %v2437 = vpop.f32.mrb[0].mxu0
      %2438 = vdwg.mxu0
      %2439 = vmatprep.subr.bf16.mxu0 %v2262
      %2440 = vmatpush1.bf16.msra.mxu0 %v2261
      %2441 = vmatprep.subr.bf16.mxu0 %v2264
      %2442 = vmatpush1.bf16.msra.mxu0 %v2263
      %2443 = vmatprep.subr.bf16.mxu0 %v2266
      %2444 = vmatpush1.bf16.msra.mxu0 %v2265
      %2445 = vmatprep.subr.bf16.mxu0 %v2268
      %2446 = vmatpush1.bf16.msra.mxu0 %v2267
      %2447 = vmatprep.subr.bf16.mxu0 %v2270
      %2448 = vmatpush1.bf16.msra.mxu0 %v2269
      %2449 = vmatprep.subr.bf16.mxu0 %v2272
      %2450 = vmatpush1.bf16.msra.mxu0 %v2271
      %2451 = vmatprep.subr.bf16.mxu0 %v2274
      %2452 = vmatpush1.bf16.msra.mxu0 %v2273
      %2453 = vmatprep.subr.bf16.mxu0 %v2276
      %2454 = vmatpush1.bf16.msra.mxu0 %v2275
      %2455 = vmatprep.subr.bf16.mxu0 0
      %2456 = vmatpush1.bf16.msra.mxu0 0
      %2457 = vmatprep.subr.bf16.mxu0 0
      %2458 = vmatpush1.bf16.msra.mxu0 0
      %2459 = vmatprep.subr.bf16.mxu0 0
      %2460 = vmatpush1.bf16.msra.mxu0 0
      %2461 = vmatprep.subr.bf16.mxu0 0
      %2462 = vmatpush1.bf16.msra.mxu0 0
      %2463 = vmatprep.subr.bf16.mxu0 0
      %2464 = vmatpush1.bf16.msra.mxu0 0
      %2465 = vmatprep.subr.bf16.mxu0 0
      %2466 = vmatpush1.bf16.msra.mxu0 0
      %2467 = vmatprep.subr.bf16.mxu0 0
      %2468 = vmatpush1.bf16.msra.mxu0 0
      %2469 = vmatprep.subr.bf16.mxu0 0
      %2470 = vmatpush1.bf16.msra.mxu0 0
      %2471 = vmatprep.mubr.bf16.mxu0 0
      %2472 = vmatmul.mubr.bf16.gmra.mrb[0].mxu0 %v1247
      %v2473 = vpop.f32.mrb[0].mxu0
      %v2474 = vadd.f32 %v2433, %v2473
      %v2475 = vpop.f32.mrb[0].mxu0
      %v2476 = vadd.f32 %v2435, %v2475
      %v2477 = vpop.f32.mrb[0].mxu0
      %v2478 = vpop.f32.mrb[0].mxu0
      %2479 = vdwg.mxu0
      %s2480 = scalar_lea.vmem %s6, 1280
      %v2481 = vld [vmem:[%s2480] sm:$0xff]
      %v2482 = vld [vmem:[%s2480 + $0x8] sm:$0xff]
      %v2483 = vld [vmem:[%s2480 + $0x10] sm:$0xff]
      %v2484 = vld [vmem:[%s2480 + $0x18] sm:$0xff]
      %v2485 = vld [vmem:[%s2480 + $0x20] sm:$0xff]
      %v2486 = vld [vmem:[%s2480 + $0x28] sm:$0xff]
      %v2487 = vld [vmem:[%s2480 + $0x30] sm:$0xff]
      %v2488 = vld [vmem:[%s2480 + $0x38] sm:$0xff]
      %v2489 = vld [vmem:[%s2480 + $0x40] sm:$0xff]
      %v2490 = vld [vmem:[%s2480 + $0x48] sm:$0xff]
      %v2491 = vld [vmem:[%s2480 + $0x50] sm:$0xff]
      %v2492 = vld [vmem:[%s2480 + $0x58] sm:$0xff]
      %v2493 = vld [vmem:[%s2480 + $0x60] sm:$0xff]
      %v2494 = vld [vmem:[%s2480 + $0x68] sm:$0xff]
      %v2495 = vld [vmem:[%s2480 + $0x70] sm:$0xff]
      %v2496 = vld [vmem:[%s2480 + $0x78] sm:$0xff]
      %v2497 = vld [vmem:[%s2480 + $0x80] sm:$0xff]
      %v2498 = vld [vmem:[%s2480 + $0x88] sm:$0xff]
      %v2499 = vld [vmem:[%s2480 + $0x90] sm:$0xff]
      %v2500 = vld [vmem:[%s2480 + $0x98] sm:$0xff]
      %v2501 = vld [vmem:[%s2480 + $0xa0] sm:$0xff]
      %v2502 = vld [vmem:[%s2480 + $0xa8] sm:$0xff]
      %v2503 = vld [vmem:[%s2480 + $0xb0] sm:$0xff]
      %v2504 = vld [vmem:[%s2480 + $0xb8] sm:$0xff]
      %v2505 = vld [vmem:[%s2480 + $0xc0] sm:$0xff]
      %v2506 = vld [vmem:[%s2480 + $0xc8] sm:$0xff]
      %v2507 = vld [vmem:[%s2480 + $0xd0] sm:$0xff]
      %v2508 = vld [vmem:[%s2480 + $0xd8] sm:$0xff]
      %v2509 = vld [vmem:[%s2480 + $0xe0] sm:$0xff]
      %v2510 = vld [vmem:[%s2480 + $0xe8] sm:$0xff]
      %v2511 = vld [vmem:[%s2480 + $0xf0] sm:$0xff]
      %v2512 = vld [vmem:[%s2480 + $0xf8] sm:$0xff]
      %v2513 = vld [vmem:[%s2480 + $0x100] sm:$0xff]
      %v2514 = vld [vmem:[%s2480 + $0x108] sm:$0xff]
      %v2515 = vld [vmem:[%s2480 + $0x110] sm:$0xff]
      %v2516 = vld [vmem:[%s2480 + $0x118] sm:$0xff]
      %v2517 = vld [vmem:[%s2480 + $0x120] sm:$0xff]
      %v2518 = vld [vmem:[%s2480 + $0x128] sm:$0xff]
      %v2519 = vld [vmem:[%s2480 + $0x130] sm:$0xff]
      %v2520 = vld [vmem:[%s2480 + $0x138] sm:$0xff]
      %v2521 = vld [vmem:[%s2480 + $0x140] sm:$0xff]
      %v2522 = vld [vmem:[%s2480 + $0x148] sm:$0xff]
      %v2523 = vld [vmem:[%s2480 + $0x150] sm:$0xff]
      %v2524 = vld [vmem:[%s2480 + $0x158] sm:$0xff]
      %v2525 = vld [vmem:[%s2480 + $0x160] sm:$0xff]
      %v2526 = vld [vmem:[%s2480 + $0x168] sm:$0xff]
      %v2527 = vld [vmem:[%s2480 + $0x170] sm:$0xff]
      %v2528 = vld [vmem:[%s2480 + $0x178] sm:$0xff]
      %v2529 = vld [vmem:[%s2480 + $0x180] sm:$0xff]
      %v2530 = vld [vmem:[%s2480 + $0x188] sm:$0xff]
      %v2531 = vld [vmem:[%s2480 + $0x190] sm:$0xff]
      %v2532 = vld [vmem:[%s2480 + $0x198] sm:$0xff]
      %v2533 = vld [vmem:[%s2480 + $0x1a0] sm:$0xff]
      %v2534 = vld [vmem:[%s2480 + $0x1a8] sm:$0xff]
      %v2535 = vld [vmem:[%s2480 + $0x1b0] sm:$0xff]
      %v2536 = vld [vmem:[%s2480 + $0x1b8] sm:$0xff]
      %v2537 = vld [vmem:[%s2480 + $0x1c0] sm:$0xff]
      %v2538 = vld [vmem:[%s2480 + $0x1c8] sm:$0xff]
      %v2539 = vld [vmem:[%s2480 + $0x1d0] sm:$0xff]
      %v2540 = vld [vmem:[%s2480 + $0x1d8] sm:$0xff]
      %v2541 = vld [vmem:[%s2480 + $0x1e0] sm:$0xff]
      %v2542 = vld [vmem:[%s2480 + $0x1e8] sm:$0xff]
      %v2543 = vld [vmem:[%s2480 + $0x1f0] sm:$0xff]
      %v2544 = vld [vmem:[%s2480 + $0x1f8] sm:$0xff]
      %v2545 = vld [vmem:[%s2480 + $0x200] sm:$0xff]
      %v2546 = vld [vmem:[%s2480 + $0x208] sm:$0xff]
      %v2547 = vld [vmem:[%s2480 + $0x210] sm:$0xff]
      %v2548 = vld [vmem:[%s2480 + $0x218] sm:$0xff]
      %v2549 = vld [vmem:[%s2480 + $0x220] sm:$0xff]
      %v2550 = vld [vmem:[%s2480 + $0x228] sm:$0xff]
      %v2551 = vld [vmem:[%s2480 + $0x230] sm:$0xff]
      %v2552 = vld [vmem:[%s2480 + $0x238] sm:$0xff]
      %v2553 = vld [vmem:[%s2480 + $0x240] sm:$0xff]
      %v2554 = vld [vmem:[%s2480 + $0x248] sm:$0xff]
      %v2555 = vld [vmem:[%s2480 + $0x250] sm:$0xff]
      %v2556 = vld [vmem:[%s2480 + $0x258] sm:$0xff]
      %v2557 = vld [vmem:[%s2480 + $0x260] sm:$0xff]
      %v2558 = vld [vmem:[%s2480 + $0x268] sm:$0xff]
      %v2559 = vld [vmem:[%s2480 + $0x270] sm:$0xff]
      %v2560 = vld [vmem:[%s2480 + $0x278] sm:$0xff]
      %v2566 = vrot.slane %v1243, 1
      %v2567 = vrot.slane %v1244, 1
      %v2568 = vrot.slane %v1245, 1
      %v2569 = vrot.slane %v1246, 1
      %v2570 = vrot.slane %v1247, 1
      %v2656 = vunpack.c.l.b16 %v2481
      %v2657 = vunpack.c.h.b16 %v2481
      %v2658 = vunpack.c.l.b16 %v2482
      %v2659 = vunpack.c.h.b16 %v2482
      %v2660 = vunpack.c.l.b16 %v2483
      %v2661 = vunpack.c.h.b16 %v2483
      %v2662 = vunpack.c.l.b16 %v2484
      %v2663 = vunpack.c.h.b16 %v2484
      %v2664 = vunpack.c.l.b16 %v2485
      %v2665 = vunpack.c.h.b16 %v2485
      %v2666 = vunpack.c.l.b16 %v2486
      %v2667 = vunpack.c.h.b16 %v2486
      %v2668 = vunpack.c.l.b16 %v2487
      %v2669 = vunpack.c.h.b16 %v2487
      %v2670 = vunpack.c.l.b16 %v2488
      %v2671 = vunpack.c.h.b16 %v2488
      %v2672 = vunpack.c.l.b16 %v2489
      %v2673 = vunpack.c.h.b16 %v2489
      %v2674 = vunpack.c.l.b16 %v2490
      %v2675 = vunpack.c.h.b16 %v2490
      %v2676 = vunpack.c.l.b16 %v2491
      %v2677 = vunpack.c.h.b16 %v2491
      %v2678 = vunpack.c.l.b16 %v2492
      %v2679 = vunpack.c.h.b16 %v2492
      %v2680 = vunpack.c.l.b16 %v2493
      %v2681 = vunpack.c.h.b16 %v2493
      %v2682 = vunpack.c.l.b16 %v2494
      %v2683 = vunpack.c.h.b16 %v2494
      %v2684 = vunpack.c.l.b16 %v2495
      %v2685 = vunpack.c.h.b16 %v2495
      %v2686 = vunpack.c.l.b16 %v2496
      %v2687 = vunpack.c.h.b16 %v2496
      %v2688 = vunpack.c.l.b16 %v2497
      %v2689 = vunpack.c.h.b16 %v2497
      %v2690 = vunpack.c.l.b16 %v2498
      %v2691 = vunpack.c.h.b16 %v2498
      %v2692 = vunpack.c.l.b16 %v2499
      %v2693 = vunpack.c.h.b16 %v2499
      %v2694 = vunpack.c.l.b16 %v2500
      %v2695 = vunpack.c.h.b16 %v2500
      %v2696 = vunpack.c.l.b16 %v2501
      %v2697 = vunpack.c.h.b16 %v2501
      %v2698 = vunpack.c.l.b16 %v2502
      %v2699 = vunpack.c.h.b16 %v2502
      %v2700 = vunpack.c.l.b16 %v2503
      %v2701 = vunpack.c.h.b16 %v2503
      %v2702 = vunpack.c.l.b16 %v2504
      %v2703 = vunpack.c.h.b16 %v2504
      %v2704 = vunpack.c.l.b16 %v2505
      %v2705 = vunpack.c.h.b16 %v2505
      %v2706 = vunpack.c.l.b16 %v2506
      %v2707 = vunpack.c.h.b16 %v2506
      %v2708 = vunpack.c.l.b16 %v2507
      %v2709 = vunpack.c.h.b16 %v2507
      %v2710 = vunpack.c.l.b16 %v2508
      %v2711 = vunpack.c.h.b16 %v2508
      %v2712 = vunpack.c.l.b16 %v2509
      %v2713 = vunpack.c.h.b16 %v2509
      %v2714 = vunpack.c.l.b16 %v2510
      %v2715 = vunpack.c.h.b16 %v2510
      %v2716 = vunpack.c.l.b16 %v2511
      %v2717 = vunpack.c.h.b16 %v2511
      %v2718 = vunpack.c.l.b16 %v2512
      %v2719 = vunpack.c.h.b16 %v2512
      %v2720 = vunpack.c.l.b16 %v2513
      %v2721 = vunpack.c.h.b16 %v2513
      %v2722 = vunpack.c.l.b16 %v2514
      %v2723 = vunpack.c.h.b16 %v2514
      %v2724 = vunpack.c.l.b16 %v2515
      %v2725 = vunpack.c.h.b16 %v2515
      %v2726 = vunpack.c.l.b16 %v2516
      %v2727 = vunpack.c.h.b16 %v2516
      %v2728 = vunpack.c.l.b16 %v2517
      %v2729 = vunpack.c.h.b16 %v2517
      %v2730 = vunpack.c.l.b16 %v2518
      %v2731 = vunpack.c.h.b16 %v2518
      %v2732 = vunpack.c.l.b16 %v2519
      %v2733 = vunpack.c.h.b16 %v2519
      %v2734 = vunpack.c.l.b16 %v2520
      %v2735 = vunpack.c.h.b16 %v2520
      %v2736 = vunpack.c.l.b16 %v2521
      %v2737 = vunpack.c.h.b16 %v2521
      %v2738 = vunpack.c.l.b16 %v2522
      %v2739 = vunpack.c.h.b16 %v2522
      %v2740 = vunpack.c.l.b16 %v2523
      %v2741 = vunpack.c.h.b16 %v2523
      %v2742 = vunpack.c.l.b16 %v2524
      %v2743 = vunpack.c.h.b16 %v2524
      %v2744 = vunpack.c.l.b16 %v2525
      %v2745 = vunpack.c.h.b16 %v2525
      %v2746 = vunpack.c.l.b16 %v2526
      %v2747 = vunpack.c.h.b16 %v2526
      %v2748 = vunpack.c.l.b16 %v2527
      %v2749 = vunpack.c.h.b16 %v2527
      %v2750 = vunpack.c.l.b16 %v2528
      %v2751 = vunpack.c.h.b16 %v2528
      %v2752 = vunpack.c.l.b16 %v2529
      %v2753 = vunpack.c.h.b16 %v2529
      %v2754 = vunpack.c.l.b16 %v2530
      %v2755 = vunpack.c.h.b16 %v2530
      %v2756 = vunpack.c.l.b16 %v2531
      %v2757 = vunpack.c.h.b16 %v2531
      %v2758 = vunpack.c.l.b16 %v2532
      %v2759 = vunpack.c.h.b16 %v2532
      %v2760 = vunpack.c.l.b16 %v2533
      %v2761 = vunpack.c.h.b16 %v2533
      %v2762 = vunpack.c.l.b16 %v2534
      %v2763 = vunpack.c.h.b16 %v2534
      %v2764 = vunpack.c.l.b16 %v2535
      %v2765 = vunpack.c.h.b16 %v2535
      %v2766 = vunpack.c.l.b16 %v2536
      %v2767 = vunpack.c.h.b16 %v2536
      %v2768 = vunpack.c.l.b16 %v2537
      %v2769 = vunpack.c.h.b16 %v2537
      %v2770 = vunpack.c.l.b16 %v2538
      %v2771 = vunpack.c.h.b16 %v2538
      %v2772 = vunpack.c.l.b16 %v2539
      %v2773 = vunpack.c.h.b16 %v2539
      %v2774 = vunpack.c.l.b16 %v2540
      %v2775 = vunpack.c.h.b16 %v2540
      %v2776 = vunpack.c.l.b16 %v2541
      %v2777 = vunpack.c.h.b16 %v2541
      %v2778 = vunpack.c.l.b16 %v2542
      %v2779 = vunpack.c.h.b16 %v2542
      %v2780 = vunpack.c.l.b16 %v2543
      %v2781 = vunpack.c.h.b16 %v2543
      %v2782 = vunpack.c.l.b16 %v2544
      %v2783 = vunpack.c.h.b16 %v2544
      %v2784 = vunpack.c.l.b16 %v2545
      %v2785 = vunpack.c.h.b16 %v2545
      %v2786 = vunpack.c.l.b16 %v2546
      %v2787 = vunpack.c.h.b16 %v2546
      %v2788 = vunpack.c.l.b16 %v2547
      %v2789 = vunpack.c.h.b16 %v2547
      %v2790 = vunpack.c.l.b16 %v2548
      %v2791 = vunpack.c.h.b16 %v2548
      %v2792 = vunpack.c.l.b16 %v2549
      %v2793 = vunpack.c.h.b16 %v2549
      %v2794 = vunpack.c.l.b16 %v2550
      %v2795 = vunpack.c.h.b16 %v2550
      %v2796 = vunpack.c.l.b16 %v2551
      %v2797 = vunpack.c.h.b16 %v2551
      %v2798 = vunpack.c.l.b16 %v2552
      %v2799 = vunpack.c.h.b16 %v2552
      %v2800 = vunpack.c.l.b16 %v2553
      %v2801 = vunpack.c.h.b16 %v2553
      %v2802 = vunpack.c.l.b16 %v2554
      %v2803 = vunpack.c.h.b16 %v2554
      %v2804 = vunpack.c.l.b16 %v2555
      %v2805 = vunpack.c.h.b16 %v2555
      %v2806 = vunpack.c.l.b16 %v2556
      %v2807 = vunpack.c.h.b16 %v2556
      %v2808 = vunpack.c.l.b16 %v2557
      %v2809 = vunpack.c.h.b16 %v2557
      %v2810 = vunpack.c.l.b16 %v2558
      %v2811 = vunpack.c.h.b16 %v2558
      %v2812 = vunpack.c.l.b16 %v2559
      %v2813 = vunpack.c.h.b16 %v2559
      %v2814 = vunpack.c.l.b16 %v2560
      %v2815 = vunpack.c.h.b16 %v2560
      %v2816 = vpack.c.b16 %v2658, %v2656
      %v2817 = vpack.c.b16 %v2659, %v2657
      %v2818 = vpack.c.b16 %v2662, %v2660
      %v2819 = vpack.c.b16 %v2663, %v2661
      %v2820 = vpack.c.b16 %v2666, %v2664
      %v2821 = vpack.c.b16 %v2667, %v2665
      %v2822 = vpack.c.b16 %v2670, %v2668
      %v2823 = vpack.c.b16 %v2671, %v2669
      %v2824 = vpack.c.b16 %v2674, %v2672
      %v2825 = vpack.c.b16 %v2675, %v2673
      %v2826 = vpack.c.b16 %v2678, %v2676
      %v2827 = vpack.c.b16 %v2679, %v2677
      %v2828 = vpack.c.b16 %v2682, %v2680
      %v2829 = vpack.c.b16 %v2683, %v2681
      %v2830 = vpack.c.b16 %v2686, %v2684
      %v2831 = vpack.c.b16 %v2687, %v2685
      %v2832 = vpack.c.b16 %v2690, %v2688
      %v2833 = vpack.c.b16 %v2691, %v2689
      %v2834 = vpack.c.b16 %v2694, %v2692
      %v2835 = vpack.c.b16 %v2695, %v2693
      %v2836 = vpack.c.b16 %v2698, %v2696
      %v2837 = vpack.c.b16 %v2699, %v2697
      %v2838 = vpack.c.b16 %v2702, %v2700
      %v2839 = vpack.c.b16 %v2703, %v2701
      %v2840 = vpack.c.b16 %v2706, %v2704
      %v2841 = vpack.c.b16 %v2707, %v2705
      %v2842 = vpack.c.b16 %v2710, %v2708
      %v2843 = vpack.c.b16 %v2711, %v2709
      %v2844 = vpack.c.b16 %v2714, %v2712
      %v2845 = vpack.c.b16 %v2715, %v2713
      %v2846 = vpack.c.b16 %v2718, %v2716
      %v2847 = vpack.c.b16 %v2719, %v2717
      %v2848 = vpack.c.b16 %v2722, %v2720
      %v2849 = vpack.c.b16 %v2723, %v2721
      %v2850 = vpack.c.b16 %v2726, %v2724
      %v2851 = vpack.c.b16 %v2727, %v2725
      %v2852 = vpack.c.b16 %v2730, %v2728
      %v2853 = vpack.c.b16 %v2731, %v2729
      %v2854 = vpack.c.b16 %v2734, %v2732
      %v2855 = vpack.c.b16 %v2735, %v2733
      %v2856 = vpack.c.b16 %v2738, %v2736
      %v2857 = vpack.c.b16 %v2739, %v2737
      %v2858 = vpack.c.b16 %v2742, %v2740
      %v2859 = vpack.c.b16 %v2743, %v2741
      %v2860 = vpack.c.b16 %v2746, %v2744
      %v2861 = vpack.c.b16 %v2747, %v2745
      %v2862 = vpack.c.b16 %v2750, %v2748
      %v2863 = vpack.c.b16 %v2751, %v2749
      %v2864 = vpack.c.b16 %v2754, %v2752
      %v2865 = vpack.c.b16 %v2755, %v2753
      %v2866 = vpack.c.b16 %v2758, %v2756
      %v2867 = vpack.c.b16 %v2759, %v2757
      %v2868 = vpack.c.b16 %v2762, %v2760
      %v2869 = vpack.c.b16 %v2763, %v2761
      %v2870 = vpack.c.b16 %v2766, %v2764
      %v2871 = vpack.c.b16 %v2767, %v2765
      %v2872 = vpack.c.b16 %v2770, %v2768
      %v2873 = vpack.c.b16 %v2771, %v2769
      %v2874 = vpack.c.b16 %v2774, %v2772
      %v2875 = vpack.c.b16 %v2775, %v2773
      %v2876 = vpack.c.b16 %v2778, %v2776
      %v2877 = vpack.c.b16 %v2779, %v2777
      %v2878 = vpack.c.b16 %v2782, %v2780
      %v2879 = vpack.c.b16 %v2783, %v2781
      %v2880 = vpack.c.b16 %v2786, %v2784
      %v2881 = vpack.c.b16 %v2787, %v2785
      %v2882 = vpack.c.b16 %v2790, %v2788
      %v2883 = vpack.c.b16 %v2791, %v2789
      %v2884 = vpack.c.b16 %v2794, %v2792
      %v2885 = vpack.c.b16 %v2795, %v2793
      %v2886 = vpack.c.b16 %v2798, %v2796
      %v2887 = vpack.c.b16 %v2799, %v2797
      %v2888 = vpack.c.b16 %v2802, %v2800
      %v2889 = vpack.c.b16 %v2803, %v2801
      %v2890 = vpack.c.b16 %v2806, %v2804
      %v2891 = vpack.c.b16 %v2807, %v2805
      %v2892 = vpack.c.b16 %v2810, %v2808
      %v2893 = vpack.c.b16 %v2811, %v2809
      %v2894 = vpack.c.b16 %v2814, %v2812
      %v2895 = vpack.c.b16 %v2815, %v2813
      %2976 = vmatprep.subr.bf16.mxu0 %v2817
      %2977 = vmatpush1.bf16.msra.mxu0 %v2816
      %2978 = vmatprep.subr.bf16.mxu0 %v2819
      %2979 = vmatpush1.bf16.msra.mxu0 %v2818
      %2980 = vmatprep.subr.bf16.mxu0 %v2821
      %2981 = vmatpush1.bf16.msra.mxu0 %v2820
      %2982 = vmatprep.subr.bf16.mxu0 %v2823
      %2983 = vmatpush1.bf16.msra.mxu0 %v2822
      %2984 = vmatprep.subr.bf16.mxu0 %v2825
      %2985 = vmatpush1.bf16.msra.mxu0 %v2824
      %2986 = vmatprep.subr.bf16.mxu0 %v2827
      %2987 = vmatpush1.bf16.msra.mxu0 %v2826
      %2988 = vmatprep.subr.bf16.mxu0 %v2829
      %2989 = vmatpush1.bf16.msra.mxu0 %v2828
      %2990 = vmatprep.subr.bf16.mxu0 %v2831
      %2991 = vmatpush1.bf16.msra.mxu0 %v2830
      %2992 = vmatprep.subr.bf16.mxu0 %v2833
      %2993 = vmatpush1.bf16.msra.mxu0 %v2832
      %2994 = vmatprep.subr.bf16.mxu0 %v2835
      %2995 = vmatpush1.bf16.msra.mxu0 %v2834
      %2996 = vmatprep.subr.bf16.mxu0 %v2837
      %2997 = vmatpush1.bf16.msra.mxu0 %v2836
      %2998 = vmatprep.subr.bf16.mxu0 %v2839
      %2999 = vmatpush1.bf16.msra.mxu0 %v2838
      %3000 = vmatprep.subr.bf16.mxu0 %v2841
      %3001 = vmatpush1.bf16.msra.mxu0 %v2840
      %3002 = vmatprep.subr.bf16.mxu0 %v2843
      %3003 = vmatpush1.bf16.msra.mxu0 %v2842
      %3004 = vmatprep.subr.bf16.mxu0 %v2845
      %3005 = vmatpush1.bf16.msra.mxu0 %v2844
      %3006 = vmatprep.subr.bf16.mxu0 %v2847
      %3007 = vmatpush1.bf16.msra.mxu0 %v2846
      %3008 = vmatprep.mubr.bf16.mxu0 %v2567
      %3009 = vmatmul.mubr.bf16.gmra.mrb[0].mxu0 %v2566
      %v3010 = vpop.f32.mrb[0].mxu0
      %v3011 = vadd.f32 0.0, %v3010
      %v3012 = vpop.f32.mrb[0].mxu0
      %v3013 = vadd.f32 0.0, %v3012
      %v3014 = vpop.f32.mrb[0].mxu0
      %v3015 = vpop.f32.mrb[0].mxu0
      %3016 = vdwg.mxu0
      %3017 = vmatprep.subr.bf16.mxu0 %v2849
      %3018 = vmatpush1.bf16.msra.mxu0 %v2848
      %3019 = vmatprep.subr.bf16.mxu0 %v2851
      %3020 = vmatpush1.bf16.msra.mxu0 %v2850
      %3021 = vmatprep.subr.bf16.mxu0 %v2853
      %3022 = vmatpush1.bf16.msra.mxu0 %v2852
      %3023 = vmatprep.subr.bf16.mxu0 %v2855
      %3024 = vmatpush1.bf16.msra.mxu0 %v2854
      %3025 = vmatprep.subr.bf16.mxu0 %v2857
      %3026 = vmatpush1.bf16.msra.mxu0 %v2856
      %3027 = vmatprep.subr.bf16.mxu0 %v2859
      %3028 = vmatpush1.bf16.msra.mxu0 %v2858
      %3029 = vmatprep.subr.bf16.mxu0 %v2861
      %3030 = vmatpush1.bf16.msra.mxu0 %v2860
      %3031 = vmatprep.subr.bf16.mxu0 %v2863
      %3032 = vmatpush1.bf16.msra.mxu0 %v2862
      %3033 = vmatprep.subr.bf16.mxu0 %v2865
      %3034 = vmatpush1.bf16.msra.mxu0 %v2864
      %3035 = vmatprep.subr.bf16.mxu0 %v2867
      %3036 = vmatpush1.bf16.msra.mxu0 %v2866
      %3037 = vmatprep.subr.bf16.mxu0 %v2869
      %3038 = vmatpush1.bf16.msra.mxu0 %v2868
      %3039 = vmatprep.subr.bf16.mxu0 %v2871
      %3040 = vmatpush1.bf16.msra.mxu0 %v2870
      %3041 = vmatprep.subr.bf16.mxu0 %v2873
      %3042 = vmatpush1.bf16.msra.mxu0 %v2872
      %3043 = vmatprep.subr.bf16.mxu0 %v2875
      %3044 = vmatpush1.bf16.msra.mxu0 %v2874
      %3045 = vmatprep.subr.bf16.mxu0 %v2877
      %3046 = vmatpush1.bf16.msra.mxu0 %v2876
      %3047 = vmatprep.subr.bf16.mxu0 %v2879
      %3048 = vmatpush1.bf16.msra.mxu0 %v2878
      %3049 = vmatprep.mubr.bf16.mxu0 %v2569
      %3050 = vmatmul.mubr.bf16.gmra.mrb[0].mxu0 %v2568
      %v3051 = vpop.f32.mrb[0].mxu0
      %v3052 = vadd.f32 %v3011, %v3051
      %v3053 = vpop.f32.mrb[0].mxu0
      %v3054 = vadd.f32 %v3013, %v3053
      %v3055 = vpop.f32.mrb[0].mxu0
      %v3056 = vpop.f32.mrb[0].mxu0
      %3057 = vdwg.mxu0
      %3058 = vmatprep.subr.bf16.mxu0 %v2881
      %3059 = vmatpush1.bf16.msra.mxu0 %v2880
      %3060 = vmatprep.subr.bf16.mxu0 %v2883
      %3061 = vmatpush1.bf16.msra.mxu0 %v2882
      %3062 = vmatprep.subr.bf16.mxu0 %v2885
      %3063 = vmatpush1.bf16.msra.mxu0 %v2884
      %3064 = vmatprep.subr.bf16.mxu0 %v2887
      %3065 = vmatpush1.bf16.msra.mxu0 %v2886
      %3066 = vmatprep.subr.bf16.mxu0 %v2889
      %3067 = vmatpush1.bf16.msra.mxu0 %v2888
      %3068 = vmatprep.subr.bf16.mxu0 %v2891
      %3069 = vmatpush1.bf16.msra.mxu0 %v2890
      %3070 = vmatprep.subr.bf16.mxu0 %v2893
      %3071 = vmatpush1.bf16.msra.mxu0 %v2892
      %3072 = vmatprep.subr.bf16.mxu0 %v2895
      %3073 = vmatpush1.bf16.msra.mxu0 %v2894
      %3074 = vmatprep.subr.bf16.mxu0 0
      %3075 = vmatpush1.bf16.msra.mxu0 0
      %3076 = vmatprep.subr.bf16.mxu0 0
      %3077 = vmatpush1.bf16.msra.mxu0 0
      %3078 = vmatprep.subr.bf16.mxu0 0
      %3079 = vmatpush1.bf16.msra.mxu0 0
      %3080 = vmatprep.subr.bf16.mxu0 0
      %3081 = vmatpush1.bf16.msra.mxu0 0
      %3082 = vmatprep.subr.bf16.mxu0 0
      %3083 = vmatpush1.bf16.msra.mxu0 0
      %3084 = vmatprep.subr.bf16.mxu0 0
      %3085 = vmatpush1.bf16.msra.mxu0 0
      %3086 = vmatprep.subr.bf16.mxu0 0
      %3087 = vmatpush1.bf16.msra.mxu0 0
      %3088 = vmatprep.subr.bf16.mxu0 0
      %3089 = vmatpush1.bf16.msra.mxu0 0
      %3090 = vmatprep.mubr.bf16.mxu0 0
      %3091 = vmatmul.mubr.bf16.gmra.mrb[0].mxu0 %v2570
      %v3092 = vpop.f32.mrb[0].mxu0
      %v3093 = vadd.f32 %v3052, %v3092
      %v3094 = vpop.f32.mrb[0].mxu0
      %v3095 = vadd.f32 %v3054, %v3094
      %v3096 = vpop.f32.mrb[0].mxu0
      %v3097 = vpop.f32.mrb[0].mxu0
      %3098 = vdwg.mxu0
      %v3099 = vadd.f32 %v2474, %v3093
      %v3100 = vadd.f32 %v2476, %v3095
      %s3101 = scalar_lea.vmem %s6, 1920
      %v3102 = vld [vmem:[%s3101] sm:$0xff]
      %v3103 = vld [vmem:[%s3101 + $0x8] sm:$0xff]
      %v3104 = vld [vmem:[%s3101 + $0x10] sm:$0xff]
      %v3105 = vld [vmem:[%s3101 + $0x18] sm:$0xff]
      %v3106 = vld [vmem:[%s3101 + $0x20] sm:$0xff]
      %v3107 = vld [vmem:[%s3101 + $0x28] sm:$0xff]
      %v3108 = vld [vmem:[%s3101 + $0x30] sm:$0xff]
      %v3109 = vld [vmem:[%s3101 + $0x38] sm:$0xff]
      %v3110 = vld [vmem:[%s3101 + $0x40] sm:$0xff]
      %v3111 = vld [vmem:[%s3101 + $0x48] sm:$0xff]
      %v3112 = vld [vmem:[%s3101 + $0x50] sm:$0xff]
      %v3113 = vld [vmem:[%s3101 + $0x58] sm:$0xff]
      %v3114 = vld [vmem:[%s3101 + $0x60] sm:$0xff]
      %v3115 = vld [vmem:[%s3101 + $0x68] sm:$0xff]
      %v3116 = vld [vmem:[%s3101 + $0x70] sm:$0xff]
      %v3117 = vld [vmem:[%s3101 + $0x78] sm:$0xff]
      %v3118 = vld [vmem:[%s3101 + $0x80] sm:$0xff]
      %v3119 = vld [vmem:[%s3101 + $0x88] sm:$0xff]
      %v3120 = vld [vmem:[%s3101 + $0x90] sm:$0xff]
      %v3121 = vld [vmem:[%s3101 + $0x98] sm:$0xff]
      %v3122 = vld [vmem:[%s3101 + $0xa0] sm:$0xff]
      %v3123 = vld [vmem:[%s3101 + $0xa8] sm:$0xff]
      %v3124 = vld [vmem:[%s3101 + $0xb0] sm:$0xff]
      %v3125 = vld [vmem:[%s3101 + $0xb8] sm:$0xff]
      %v3126 = vld [vmem:[%s3101 + $0xc0] sm:$0xff]
      %v3127 = vld [vmem:[%s3101 + $0xc8] sm:$0xff]
      %v3128 = vld [vmem:[%s3101 + $0xd0] sm:$0xff]
      %v3129 = vld [vmem:[%s3101 + $0xd8] sm:$0xff]
      %v3130 = vld [vmem:[%s3101 + $0xe0] sm:$0xff]
      %v3131 = vld [vmem:[%s3101 + $0xe8] sm:$0xff]
      %v3132 = vld [vmem:[%s3101 + $0xf0] sm:$0xff]
      %v3133 = vld [vmem:[%s3101 + $0xf8] sm:$0xff]
      %v3134 = vld [vmem:[%s3101 + $0x100] sm:$0xff]
      %v3135 = vld [vmem:[%s3101 + $0x108] sm:$0xff]
      %v3136 = vld [vmem:[%s3101 + $0x110] sm:$0xff]
      %v3137 = vld [vmem:[%s3101 + $0x118] sm:$0xff]
      %v3138 = vld [vmem:[%s3101 + $0x120] sm:$0xff]
      %v3139 = vld [vmem:[%s3101 + $0x128] sm:$0xff]
      %v3140 = vld [vmem:[%s3101 + $0x130] sm:$0xff]
      %v3141 = vld [vmem:[%s3101 + $0x138] sm:$0xff]
      %v3142 = vld [vmem:[%s3101 + $0x140] sm:$0xff]
      %v3143 = vld [vmem:[%s3101 + $0x148] sm:$0xff]
      %v3144 = vld [vmem:[%s3101 + $0x150] sm:$0xff]
      %v3145 = vld [vmem:[%s3101 + $0x158] sm:$0xff]
      %v3146 = vld [vmem:[%s3101 + $0x160] sm:$0xff]
      %v3147 = vld [vmem:[%s3101 + $0x168] sm:$0xff]
      %v3148 = vld [vmem:[%s3101 + $0x170] sm:$0xff]
      %v3149 = vld [vmem:[%s3101 + $0x178] sm:$0xff]
      %v3150 = vld [vmem:[%s3101 + $0x180] sm:$0xff]
      %v3151 = vld [vmem:[%s3101 + $0x188] sm:$0xff]
      %v3152 = vld [vmem:[%s3101 + $0x190] sm:$0xff]
      %v3153 = vld [vmem:[%s3101 + $0x198] sm:$0xff]
      %v3154 = vld [vmem:[%s3101 + $0x1a0] sm:$0xff]
      %v3155 = vld [vmem:[%s3101 + $0x1a8] sm:$0xff]
      %v3156 = vld [vmem:[%s3101 + $0x1b0] sm:$0xff]
      %v3157 = vld [vmem:[%s3101 + $0x1b8] sm:$0xff]
      %v3158 = vld [vmem:[%s3101 + $0x1c0] sm:$0xff]
      %v3159 = vld [vmem:[%s3101 + $0x1c8] sm:$0xff]
      %v3160 = vld [vmem:[%s3101 + $0x1d0] sm:$0xff]
      %v3161 = vld [vmem:[%s3101 + $0x1d8] sm:$0xff]
      %v3162 = vld [vmem:[%s3101 + $0x1e0] sm:$0xff]
      %v3163 = vld [vmem:[%s3101 + $0x1e8] sm:$0xff]
      %v3164 = vld [vmem:[%s3101 + $0x1f0] sm:$0xff]
      %v3165 = vld [vmem:[%s3101 + $0x1f8] sm:$0xff]
      %v3166 = vld [vmem:[%s3101 + $0x200] sm:$0xff]
      %v3167 = vld [vmem:[%s3101 + $0x208] sm:$0xff]
      %v3168 = vld [vmem:[%s3101 + $0x210] sm:$0xff]
      %v3169 = vld [vmem:[%s3101 + $0x218] sm:$0xff]
      %v3170 = vld [vmem:[%s3101 + $0x220] sm:$0xff]
      %v3171 = vld [vmem:[%s3101 + $0x228] sm:$0xff]
      %v3172 = vld [vmem:[%s3101 + $0x230] sm:$0xff]
      %v3173 = vld [vmem:[%s3101 + $0x238] sm:$0xff]
      %v3174 = vld [vmem:[%s3101 + $0x240] sm:$0xff]
      %v3175 = vld [vmem:[%s3101 + $0x248] sm:$0xff]
      %v3176 = vld [vmem:[%s3101 + $0x250] sm:$0xff]
      %v3177 = vld [vmem:[%s3101 + $0x258] sm:$0xff]
      %v3178 = vld [vmem:[%s3101 + $0x260] sm:$0xff]
      %v3179 = vld [vmem:[%s3101 + $0x268] sm:$0xff]
      %v3180 = vld [vmem:[%s3101 + $0x270] sm:$0xff]
      %v3181 = vld [vmem:[%s3101 + $0x278] sm:$0xff]
      %v3182 = vrot.slane %v1415, 1
      %v3183 = vrot.slane %v1418, 1
      %v3184 = vrot.slane %v1421, 1
      %v3185 = vrot.slane %v1424, 1
      %v3186 = vrot.slane %v1427, 1
      %v3272 = vunpack.c.l.b16 %v3102
      %v3273 = vunpack.c.h.b16 %v3102
      %v3274 = vunpack.c.l.b16 %v3103
      %v3275 = vunpack.c.h.b16 %v3103
      %v3276 = vunpack.c.l.b16 %v3104
      %v3277 = vunpack.c.h.b16 %v3104
      %v3278 = vunpack.c.l.b16 %v3105
      %v3279 = vunpack.c.h.b16 %v3105
      %v3280 = vunpack.c.l.b16 %v3106
      %v3281 = vunpack.c.h.b16 %v3106
      %v3282 = vunpack.c.l.b16 %v3107
      %v3283 = vunpack.c.h.b16 %v3107
      %v3284 = vunpack.c.l.b16 %v3108
      %v3285 = vunpack.c.h.b16 %v3108
      %v3286 = vunpack.c.l.b16 %v3109
      %v3287 = vunpack.c.h.b16 %v3109
      %v3288 = vunpack.c.l.b16 %v3110
      %v3289 = vunpack.c.h.b16 %v3110
      %v3290 = vunpack.c.l.b16 %v3111
      %v3291 = vunpack.c.h.b16 %v3111
      %v3292 = vunpack.c.l.b16 %v3112
      %v3293 = vunpack.c.h.b16 %v3112
      %v3294 = vunpack.c.l.b16 %v3113
      %v3295 = vunpack.c.h.b16 %v3113
      %v3296 = vunpack.c.l.b16 %v3114
      %v3297 = vunpack.c.h.b16 %v3114
      %v3298 = vunpack.c.l.b16 %v3115
      %v3299 = vunpack.c.h.b16 %v3115
      %v3300 = vunpack.c.l.b16 %v3116
      %v3301 = vunpack.c.h.b16 %v3116
      %v3302 = vunpack.c.l.b16 %v3117
      %v3303 = vunpack.c.h.b16 %v3117
      %v3304 = vunpack.c.l.b16 %v3118
      %v3305 = vunpack.c.h.b16 %v3118
      %v3306 = vunpack.c.l.b16 %v3119
      %v3307 = vunpack.c.h.b16 %v3119
      %v3308 = vunpack.c.l.b16 %v3120
      %v3309 = vunpack.c.h.b16 %v3120
      %v3310 = vunpack.c.l.b16 %v3121
      %v3311 = vunpack.c.h.b16 %v3121
      %v3312 = vunpack.c.l.b16 %v3122
      %v3313 = vunpack.c.h.b16 %v3122
      %v3314 = vunpack.c.l.b16 %v3123
      %v3315 = vunpack.c.h.b16 %v3123
      %v3316 = vunpack.c.l.b16 %v3124
      %v3317 = vunpack.c.h.b16 %v3124
      %v3318 = vunpack.c.l.b16 %v3125
      %v3319 = vunpack.c.h.b16 %v3125
      %v3320 = vunpack.c.l.b16 %v3126
      %v3321 = vunpack.c.h.b16 %v3126
      %v3322 = vunpack.c.l.b16 %v3127
      %v3323 = vunpack.c.h.b16 %v3127
      %v3324 = vunpack.c.l.b16 %v3128
      %v3325 = vunpack.c.h.b16 %v3128
      %v3326 = vunpack.c.l.b16 %v3129
      %v3327 = vunpack.c.h.b16 %v3129
      %v3328 = vunpack.c.l.b16 %v3130
      %v3329 = vunpack.c.h.b16 %v3130
      %v3330 = vunpack.c.l.b16 %v3131
      %v3331 = vunpack.c.h.b16 %v3131
      %v3332 = vunpack.c.l.b16 %v3132
      %v3333 = vunpack.c.h.b16 %v3132
      %v3334 = vunpack.c.l.b16 %v3133
      %v3335 = vunpack.c.h.b16 %v3133
      %v3336 = vunpack.c.l.b16 %v3134
      %v3337 = vunpack.c.h.b16 %v3134
      %v3338 = vunpack.c.l.b16 %v3135
      %v3339 = vunpack.c.h.b16 %v3135
      %v3340 = vunpack.c.l.b16 %v3136
      %v3341 = vunpack.c.h.b16 %v3136
      %v3342 = vunpack.c.l.b16 %v3137
      %v3343 = vunpack.c.h.b16 %v3137
      %v3344 = vunpack.c.l.b16 %v3138
      %v3345 = vunpack.c.h.b16 %v3138
      %v3346 = vunpack.c.l.b16 %v3139
      %v3347 = vunpack.c.h.b16 %v3139
      %v3348 = vunpack.c.l.b16 %v3140
      %v3349 = vunpack.c.h.b16 %v3140
      %v3350 = vunpack.c.l.b16 %v3141
      %v3351 = vunpack.c.h.b16 %v3141
      %v3352 = vunpack.c.l.b16 %v3142
      %v3353 = vunpack.c.h.b16 %v3142
      %v3354 = vunpack.c.l.b16 %v3143
      %v3355 = vunpack.c.h.b16 %v3143
      %v3356 = vunpack.c.l.b16 %v3144
      %v3357 = vunpack.c.h.b16 %v3144
      %v3358 = vunpack.c.l.b16 %v3145
      %v3359 = vunpack.c.h.b16 %v3145
      %v3360 = vunpack.c.l.b16 %v3146
      %v3361 = vunpack.c.h.b16 %v3146
      %v3362 = vunpack.c.l.b16 %v3147
      %v3363 = vunpack.c.h.b16 %v3147
      %v3364 = vunpack.c.l.b16 %v3148
      %v3365 = vunpack.c.h.b16 %v3148
      %v3366 = vunpack.c.l.b16 %v3149
      %v3367 = vunpack.c.h.b16 %v3149
      %v3368 = vunpack.c.l.b16 %v3150
      %v3369 = vunpack.c.h.b16 %v3150
      %v3370 = vunpack.c.l.b16 %v3151
      %v3371 = vunpack.c.h.b16 %v3151
      %v3372 = vunpack.c.l.b16 %v3152
      %v3373 = vunpack.c.h.b16 %v3152
      %v3374 = vunpack.c.l.b16 %v3153
      %v3375 = vunpack.c.h.b16 %v3153
      %v3376 = vunpack.c.l.b16 %v3154
      %v3377 = vunpack.c.h.b16 %v3154
      %v3378 = vunpack.c.l.b16 %v3155
      %v3379 = vunpack.c.h.b16 %v3155
      %v3380 = vunpack.c.l.b16 %v3156
      %v3381 = vunpack.c.h.b16 %v3156
      %v3382 = vunpack.c.l.b16 %v3157
      %v3383 = vunpack.c.h.b16 %v3157
      %v3384 = vunpack.c.l.b16 %v3158
      %v3385 = vunpack.c.h.b16 %v3158
      %v3386 = vunpack.c.l.b16 %v3159
      %v3387 = vunpack.c.h.b16 %v3159
      %v3388 = vunpack.c.l.b16 %v3160
      %v3389 = vunpack.c.h.b16 %v3160
      %v3390 = vunpack.c.l.b16 %v3161
      %v3391 = vunpack.c.h.b16 %v3161
      %v3392 = vunpack.c.l.b16 %v3162
      %v3393 = vunpack.c.h.b16 %v3162
      %v3394 = vunpack.c.l.b16 %v3163
      %v3395 = vunpack.c.h.b16 %v3163
      %v3396 = vunpack.c.l.b16 %v3164
      %v3397 = vunpack.c.h.b16 %v3164
      %v3398 = vunpack.c.l.b16 %v3165
      %v3399 = vunpack.c.h.b16 %v3165
      %v3400 = vunpack.c.l.b16 %v3166
      %v3401 = vunpack.c.h.b16 %v3166
      %v3402 = vunpack.c.l.b16 %v3167
      %v3403 = vunpack.c.h.b16 %v3167
      %v3404 = vunpack.c.l.b16 %v3168
      %v3405 = vunpack.c.h.b16 %v3168
      %v3406 = vunpack.c.l.b16 %v3169
      %v3407 = vunpack.c.h.b16 %v3169
      %v3408 = vunpack.c.l.b16 %v3170
      %v3409 = vunpack.c.h.b16 %v3170
      %v3410 = vunpack.c.l.b16 %v3171
      %v3411 = vunpack.c.h.b16 %v3171
      %v3412 = vunpack.c.l.b16 %v3172
      %v3413 = vunpack.c.h.b16 %v3172
      %v3414 = vunpack.c.l.b16 %v3173
      %v3415 = vunpack.c.h.b16 %v3173
      %v3416 = vunpack.c.l.b16 %v3174
      %v3417 = vunpack.c.h.b16 %v3174
      %v3418 = vunpack.c.l.b16 %v3175
      %v3419 = vunpack.c.h.b16 %v3175
      %v3420 = vunpack.c.l.b16 %v3176
      %v3421 = vunpack.c.h.b16 %v3176
      %v3422 = vunpack.c.l.b16 %v3177
      %v3423 = vunpack.c.h.b16 %v3177
      %v3424 = vunpack.c.l.b16 %v3178
      %v3425 = vunpack.c.h.b16 %v3178
      %v3426 = vunpack.c.l.b16 %v3179
      %v3427 = vunpack.c.h.b16 %v3179
      %v3428 = vunpack.c.l.b16 %v3180
      %v3429 = vunpack.c.h.b16 %v3180
      %v3430 = vunpack.c.l.b16 %v3181
      %v3431 = vunpack.c.h.b16 %v3181
      %v3432 = vpack.c.b16 %v3274, %v3272
      %v3433 = vpack.c.b16 %v3275, %v3273
      %v3434 = vpack.c.b16 %v3278, %v3276
      %v3435 = vpack.c.b16 %v3279, %v3277
      %v3436 = vpack.c.b16 %v3282, %v3280
      %v3437 = vpack.c.b16 %v3283, %v3281
      %v3438 = vpack.c.b16 %v3286, %v3284
      %v3439 = vpack.c.b16 %v3287, %v3285
      %v3440 = vpack.c.b16 %v3290, %v3288
      %v3441 = vpack.c.b16 %v3291, %v3289
      %v3442 = vpack.c.b16 %v3294, %v3292
      %v3443 = vpack.c.b16 %v3295, %v3293
      %v3444 = vpack.c.b16 %v3298, %v3296
      %v3445 = vpack.c.b16 %v3299, %v3297
      %v3446 = vpack.c.b16 %v3302, %v3300
      %v3447 = vpack.c.b16 %v3303, %v3301
      %v3448 = vpack.c.b16 %v3306, %v3304
      %v3449 = vpack.c.b16 %v3307, %v3305
      %v3450 = vpack.c.b16 %v3310, %v3308
      %v3451 = vpack.c.b16 %v3311, %v3309
      %v3452 = vpack.c.b16 %v3314, %v3312
      %v3453 = vpack.c.b16 %v3315, %v3313
      %v3454 = vpack.c.b16 %v3318, %v3316
      %v3455 = vpack.c.b16 %v3319, %v3317
      %v3456 = vpack.c.b16 %v3322, %v3320
      %v3457 = vpack.c.b16 %v3323, %v3321
      %v3458 = vpack.c.b16 %v3326, %v3324
      %v3459 = vpack.c.b16 %v3327, %v3325
      %v3460 = vpack.c.b16 %v3330, %v3328
      %v3461 = vpack.c.b16 %v3331, %v3329
      %v3462 = vpack.c.b16 %v3334, %v3332
      %v3463 = vpack.c.b16 %v3335, %v3333
      %v3464 = vpack.c.b16 %v3338, %v3336
      %v3465 = vpack.c.b16 %v3339, %v3337
      %v3466 = vpack.c.b16 %v3342, %v3340
      %v3467 = vpack.c.b16 %v3343, %v3341
      %v3468 = vpack.c.b16 %v3346, %v3344
      %v3469 = vpack.c.b16 %v3347, %v3345
      %v3470 = vpack.c.b16 %v3350, %v3348
      %v3471 = vpack.c.b16 %v3351, %v3349
      %v3472 = vpack.c.b16 %v3354, %v3352
      %v3473 = vpack.c.b16 %v3355, %v3353
      %v3474 = vpack.c.b16 %v3358, %v3356
      %v3475 = vpack.c.b16 %v3359, %v3357
      %v3476 = vpack.c.b16 %v3362, %v3360
      %v3477 = vpack.c.b16 %v3363, %v3361
      %v3478 = vpack.c.b16 %v3366, %v3364
      %v3479 = vpack.c.b16 %v3367, %v3365
      %v3480 = vpack.c.b16 %v3370, %v3368
      %v3481 = vpack.c.b16 %v3371, %v3369
      %v3482 = vpack.c.b16 %v3374, %v3372
      %v3483 = vpack.c.b16 %v3375, %v3373
      %v3484 = vpack.c.b16 %v3378, %v3376
      %v3485 = vpack.c.b16 %v3379, %v3377
      %v3486 = vpack.c.b16 %v3382, %v3380
      %v3487 = vpack.c.b16 %v3383, %v3381
      %v3488 = vpack.c.b16 %v3386, %v3384
      %v3489 = vpack.c.b16 %v3387, %v3385
      %v3490 = vpack.c.b16 %v3390, %v3388
      %v3491 = vpack.c.b16 %v3391, %v3389
      %v3492 = vpack.c.b16 %v3394, %v3392
      %v3493 = vpack.c.b16 %v3395, %v3393
      %v3494 = vpack.c.b16 %v3398, %v3396
      %v3495 = vpack.c.b16 %v3399, %v3397
      %v3496 = vpack.c.b16 %v3402, %v3400
      %v3497 = vpack.c.b16 %v3403, %v3401
      %v3498 = vpack.c.b16 %v3406, %v3404
      %v3499 = vpack.c.b16 %v3407, %v3405
      %v3500 = vpack.c.b16 %v3410, %v3408
      %v3501 = vpack.c.b16 %v3411, %v3409
      %v3502 = vpack.c.b16 %v3414, %v3412
      %v3503 = vpack.c.b16 %v3415, %v3413
      %v3504 = vpack.c.b16 %v3418, %v3416
      %v3505 = vpack.c.b16 %v3419, %v3417
      %v3506 = vpack.c.b16 %v3422, %v3420
      %v3507 = vpack.c.b16 %v3423, %v3421
      %v3508 = vpack.c.b16 %v3426, %v3424
      %v3509 = vpack.c.b16 %v3427, %v3425
      %v3510 = vpack.c.b16 %v3430, %v3428
      %v3511 = vpack.c.b16 %v3431, %v3429
      %3592 = vmatprep.subr.bf16.mxu0 %v3433
      %3593 = vmatpush1.bf16.msra.mxu0 %v3432
      %3594 = vmatprep.subr.bf16.mxu0 %v3435
      %3595 = vmatpush1.bf16.msra.mxu0 %v3434
      %3596 = vmatprep.subr.bf16.mxu0 %v3437
      %3597 = vmatpush1.bf16.msra.mxu0 %v3436
      %3598 = vmatprep.subr.bf16.mxu0 %v3439
      %3599 = vmatpush1.bf16.msra.mxu0 %v3438
      %3600 = vmatprep.subr.bf16.mxu0 %v3441
      %3601 = vmatpush1.bf16.msra.mxu0 %v3440
      %3602 = vmatprep.subr.bf16.mxu0 %v3443
      %3603 = vmatpush1.bf16.msra.mxu0 %v3442
      %3604 = vmatprep.subr.bf16.mxu0 %v3445
      %3605 = vmatpush1.bf16.msra.mxu0 %v3444
      %3606 = vmatprep.subr.bf16.mxu0 %v3447
      %3607 = vmatpush1.bf16.msra.mxu0 %v3446
      %3608 = vmatprep.subr.bf16.mxu0 %v3449
      %3609 = vmatpush1.bf16.msra.mxu0 %v3448
      %3610 = vmatprep.subr.bf16.mxu0 %v3451
      %3611 = vmatpush1.bf16.msra.mxu0 %v3450
      %3612 = vmatprep.subr.bf16.mxu0 %v3453
      %3613 = vmatpush1.bf16.msra.mxu0 %v3452
      %3614 = vmatprep.subr.bf16.mxu0 %v3455
      %3615 = vmatpush1.bf16.msra.mxu0 %v3454
      %3616 = vmatprep.subr.bf16.mxu0 %v3457
      %3617 = vmatpush1.bf16.msra.mxu0 %v3456
      %3618 = vmatprep.subr.bf16.mxu0 %v3459
      %3619 = vmatpush1.bf16.msra.mxu0 %v3458
      %3620 = vmatprep.subr.bf16.mxu0 %v3461
      %3621 = vmatpush1.bf16.msra.mxu0 %v3460
      %3622 = vmatprep.subr.bf16.mxu0 %v3463
      %3623 = vmatpush1.bf16.msra.mxu0 %v3462
      %3624 = vmatprep.mubr.bf16.mxu0 %v3183
      %3625 = vmatmul.mubr.bf16.gmra.mrb[0].mxu0 %v3182
      %v3626 = vpop.f32.mrb[0].mxu0
      %v3627 = vadd.f32 0.0, %v3626
      %v3628 = vpop.f32.mrb[0].mxu0
      %v3629 = vadd.f32 0.0, %v3628
      %v3630 = vpop.f32.mrb[0].mxu0
      %v3631 = vpop.f32.mrb[0].mxu0
      %3632 = vdwg.mxu0
      %3633 = vmatprep.subr.bf16.mxu0 %v3465
      %3634 = vmatpush1.bf16.msra.mxu0 %v3464
      %3635 = vmatprep.subr.bf16.mxu0 %v3467
      %3636 = vmatpush1.bf16.msra.mxu0 %v3466
      %3637 = vmatprep.subr.bf16.mxu0 %v3469
      %3638 = vmatpush1.bf16.msra.mxu0 %v3468
      %3639 = vmatprep.subr.bf16.mxu0 %v3471
      %3640 = vmatpush1.bf16.msra.mxu0 %v3470
      %3641 = vmatprep.subr.bf16.mxu0 %v3473
      %3642 = vmatpush1.bf16.msra.mxu0 %v3472
      %3643 = vmatprep.subr.bf16.mxu0 %v3475
      %3644 = vmatpush1.bf16.msra.mxu0 %v3474
      %3645 = vmatprep.subr.bf16.mxu0 %v3477
      %3646 = vmatpush1.bf16.msra.mxu0 %v3476
      %3647 = vmatprep.subr.bf16.mxu0 %v3479
      %3648 = vmatpush1.bf16.msra.mxu0 %v3478
      %3649 = vmatprep.subr.bf16.mxu0 %v3481
      %3650 = vmatpush1.bf16.msra.mxu0 %v3480
      %3651 = vmatprep.subr.bf16.mxu0 %v3483
      %3652 = vmatpush1.bf16.msra.mxu0 %v3482
      %3653 = vmatprep.subr.bf16.mxu0 %v3485
      %3654 = vmatpush1.bf16.msra.mxu0 %v3484
      %3655 = vmatprep.subr.bf16.mxu0 %v3487
      %3656 = vmatpush1.bf16.msra.mxu0 %v3486
      %3657 = vmatprep.subr.bf16.mxu0 %v3489
      %3658 = vmatpush1.bf16.msra.mxu0 %v3488
      %3659 = vmatprep.subr.bf16.mxu0 %v3491
      %3660 = vmatpush1.bf16.msra.mxu0 %v3490
      %3661 = vmatprep.subr.bf16.mxu0 %v3493
      %3662 = vmatpush1.bf16.msra.mxu0 %v3492
      %3663 = vmatprep.subr.bf16.mxu0 %v3495
      %3664 = vmatpush1.bf16.msra.mxu0 %v3494
      %3665 = vmatprep.mubr.bf16.mxu0 %v3185
      %3666 = vmatmul.mubr.bf16.gmra.mrb[0].mxu0 %v3184
      %v3667 = vpop.f32.mrb[0].mxu0
      %v3668 = vadd.f32 %v3627, %v3667
      %v3669 = vpop.f32.mrb[0].mxu0
      %v3670 = vadd.f32 %v3629, %v3669
      %v3671 = vpop.f32.mrb[0].mxu0
      %v3672 = vpop.f32.mrb[0].mxu0
      %3673 = vdwg.mxu0
      %3674 = vmatprep.subr.bf16.mxu0 %v3497
      %3675 = vmatpush1.bf16.msra.mxu0 %v3496
      %3676 = vmatprep.subr.bf16.mxu0 %v3499
      %3677 = vmatpush1.bf16.msra.mxu0 %v3498
      %3678 = vmatprep.subr.bf16.mxu0 %v3501
      %3679 = vmatpush1.bf16.msra.mxu0 %v3500
      %3680 = vmatprep.subr.bf16.mxu0 %v3503
      %3681 = vmatpush1.bf16.msra.mxu0 %v3502
      %3682 = vmatprep.subr.bf16.mxu0 %v3505
      %3683 = vmatpush1.bf16.msra.mxu0 %v3504
      %3684 = vmatprep.subr.bf16.mxu0 %v3507
      %3685 = vmatpush1.bf16.msra.mxu0 %v3506
      %3686 = vmatprep.subr.bf16.mxu0 %v3509
      %3687 = vmatpush1.bf16.msra.mxu0 %v3508
      %3688 = vmatprep.subr.bf16.mxu0 %v3511
      %3689 = vmatpush1.bf16.msra.mxu0 %v3510
      %3690 = vmatprep.subr.bf16.mxu0 0
      %3691 = vmatpush1.bf16.msra.mxu0 0
      %3692 = vmatprep.subr.bf16.mxu0 0
      %3693 = vmatpush1.bf16.msra.mxu0 0
      %3694 = vmatprep.subr.bf16.mxu0 0
      %3695 = vmatpush1.bf16.msra.mxu0 0
      %3696 = vmatprep.subr.bf16.mxu0 0
      %3697 = vmatpush1.bf16.msra.mxu0 0
      %3698 = vmatprep.subr.bf16.mxu0 0
      %3699 = vmatpush1.bf16.msra.mxu0 0
      %3700 = vmatprep.subr.bf16.mxu0 0
      %3701 = vmatpush1.bf16.msra.mxu0 0
      %3702 = vmatprep.subr.bf16.mxu0 0
      %3703 = vmatpush1.bf16.msra.mxu0 0
      %3704 = vmatprep.subr.bf16.mxu0 0
      %3705 = vmatpush1.bf16.msra.mxu0 0
      %3706 = vmatprep.mubr.bf16.mxu0 0
      %3707 = vmatmul.mubr.bf16.gmra.mrb[0].mxu0 %v3186
      %v3708 = vpop.f32.mrb[0].mxu0
      %v3709 = vadd.f32 %v3668, %v3708
      %v3710 = vpop.f32.mrb[0].mxu0
      %v3711 = vadd.f32 %v3670, %v3710
      %v3712 = vpop.f32.mrb[0].mxu0
      %v3713 = vpop.f32.mrb[0].mxu0
      %3714 = vdwg.mxu0
      %v3715 = vadd.f32 %v3099, %v3709
      %v3716 = vadd.f32 %v3100, %v3711
      %s3717 = scalar_lea.vmem %s6, 2560
      %v3718 = vld [vmem:[%s3717] sm:$0xff]
      %v3719 = vld [vmem:[%s3717 + $0x8] sm:$0xff]
      %v3720 = vld [vmem:[%s3717 + $0x10] sm:$0xff]
      %v3721 = vld [vmem:[%s3717 + $0x18] sm:$0xff]
      %v3722 = vld [vmem:[%s3717 + $0x20] sm:$0xff]
      %v3723 = vld [vmem:[%s3717 + $0x28] sm:$0xff]
      %v3724 = vld [vmem:[%s3717 + $0x30] sm:$0xff]
      %v3725 = vld [vmem:[%s3717 + $0x38] sm:$0xff]
      %v3726 = vld [vmem:[%s3717 + $0x40] sm:$0xff]
      %v3727 = vld [vmem:[%s3717 + $0x48] sm:$0xff]
      %v3728 = vld [vmem:[%s3717 + $0x50] sm:$0xff]
      %v3729 = vld [vmem:[%s3717 + $0x58] sm:$0xff]
      %v3730 = vld [vmem:[%s3717 + $0x60] sm:$0xff]
      %v3731 = vld [vmem:[%s3717 + $0x68] sm:$0xff]
      %v3732 = vld [vmem:[%s3717 + $0x70] sm:$0xff]
      %v3733 = vld [vmem:[%s3717 + $0x78] sm:$0xff]
      %v3734 = vld [vmem:[%s3717 + $0x80] sm:$0xff]
      %v3735 = vld [vmem:[%s3717 + $0x88] sm:$0xff]
      %v3736 = vld [vmem:[%s3717 + $0x90] sm:$0xff]
      %v3737 = vld [vmem:[%s3717 + $0x98] sm:$0xff]
      %v3738 = vld [vmem:[%s3717 + $0xa0] sm:$0xff]
      %v3739 = vld [vmem:[%s3717 + $0xa8] sm:$0xff]
      %v3740 = vld [vmem:[%s3717 + $0xb0] sm:$0xff]
      %v3741 = vld [vmem:[%s3717 + $0xb8] sm:$0xff]
      %v3742 = vld [vmem:[%s3717 + $0xc0] sm:$0xff]
      %v3743 = vld [vmem:[%s3717 + $0xc8] sm:$0xff]
      %v3744 = vld [vmem:[%s3717 + $0xd0] sm:$0xff]
      %v3745 = vld [vmem:[%s3717 + $0xd8] sm:$0xff]
      %v3746 = vld [vmem:[%s3717 + $0xe0] sm:$0xff]
      %v3747 = vld [vmem:[%s3717 + $0xe8] sm:$0xff]
      %v3748 = vld [vmem:[%s3717 + $0xf0] sm:$0xff]
      %v3749 = vld [vmem:[%s3717 + $0xf8] sm:$0xff]
      %v3750 = vld [vmem:[%s3717 + $0x100] sm:$0xff]
      %v3751 = vld [vmem:[%s3717 + $0x108] sm:$0xff]
      %v3752 = vld [vmem:[%s3717 + $0x110] sm:$0xff]
      %v3753 = vld [vmem:[%s3717 + $0x118] sm:$0xff]
      %v3754 = vld [vmem:[%s3717 + $0x120] sm:$0xff]
      %v3755 = vld [vmem:[%s3717 + $0x128] sm:$0xff]
      %v3756 = vld [vmem:[%s3717 + $0x130] sm:$0xff]
      %v3757 = vld [vmem:[%s3717 + $0x138] sm:$0xff]
      %v3758 = vld [vmem:[%s3717 + $0x140] sm:$0xff]
      %v3759 = vld [vmem:[%s3717 + $0x148] sm:$0xff]
      %v3760 = vld [vmem:[%s3717 + $0x150] sm:$0xff]
      %v3761 = vld [vmem:[%s3717 + $0x158] sm:$0xff]
      %v3762 = vld [vmem:[%s3717 + $0x160] sm:$0xff]
      %v3763 = vld [vmem:[%s3717 + $0x168] sm:$0xff]
      %v3764 = vld [vmem:[%s3717 + $0x170] sm:$0xff]
      %v3765 = vld [vmem:[%s3717 + $0x178] sm:$0xff]
      %v3766 = vld [vmem:[%s3717 + $0x180] sm:$0xff]
      %v3767 = vld [vmem:[%s3717 + $0x188] sm:$0xff]
      %v3768 = vld [vmem:[%s3717 + $0x190] sm:$0xff]
      %v3769 = vld [vmem:[%s3717 + $0x198] sm:$0xff]
      %v3770 = vld [vmem:[%s3717 + $0x1a0] sm:$0xff]
      %v3771 = vld [vmem:[%s3717 + $0x1a8] sm:$0xff]
      %v3772 = vld [vmem:[%s3717 + $0x1b0] sm:$0xff]
      %v3773 = vld [vmem:[%s3717 + $0x1b8] sm:$0xff]
      %v3774 = vld [vmem:[%s3717 + $0x1c0] sm:$0xff]
      %v3775 = vld [vmem:[%s3717 + $0x1c8] sm:$0xff]
      %v3776 = vld [vmem:[%s3717 + $0x1d0] sm:$0xff]
      %v3777 = vld [vmem:[%s3717 + $0x1d8] sm:$0xff]
      %v3778 = vld [vmem:[%s3717 + $0x1e0] sm:$0xff]
      %v3779 = vld [vmem:[%s3717 + $0x1e8] sm:$0xff]
      %v3780 = vld [vmem:[%s3717 + $0x1f0] sm:$0xff]
      %v3781 = vld [vmem:[%s3717 + $0x1f8] sm:$0xff]
      %v3782 = vld [vmem:[%s3717 + $0x200] sm:$0xff]
      %v3783 = vld [vmem:[%s3717 + $0x208] sm:$0xff]
      %v3784 = vld [vmem:[%s3717 + $0x210] sm:$0xff]
      %v3785 = vld [vmem:[%s3717 + $0x218] sm:$0xff]
      %v3786 = vld [vmem:[%s3717 + $0x220] sm:$0xff]
      %v3787 = vld [vmem:[%s3717 + $0x228] sm:$0xff]
      %v3788 = vld [vmem:[%s3717 + $0x230] sm:$0xff]
      %v3789 = vld [vmem:[%s3717 + $0x238] sm:$0xff]
      %v3790 = vld [vmem:[%s3717 + $0x240] sm:$0xff]
      %v3791 = vld [vmem:[%s3717 + $0x248] sm:$0xff]
      %v3792 = vld [vmem:[%s3717 + $0x250] sm:$0xff]
      %v3793 = vld [vmem:[%s3717 + $0x258] sm:$0xff]
      %v3794 = vld [vmem:[%s3717 + $0x260] sm:$0xff]
      %v3795 = vld [vmem:[%s3717 + $0x268] sm:$0xff]
      %v3796 = vld [vmem:[%s3717 + $0x270] sm:$0xff]
      %v3797 = vld [vmem:[%s3717 + $0x278] sm:$0xff]
      %v3798 = vrot.slane %v1243, 2
      %v3799 = vrot.slane %v1244, 2
      %v3800 = vrot.slane %v1245, 2
      %v3801 = vrot.slane %v1246, 2
      %v3802 = vrot.slane %v1247, 2
      %v3888 = vunpack.c.l.b16 %v3718
      %v3889 = vunpack.c.h.b16 %v3718
      %v3890 = vunpack.c.l.b16 %v3719
      %v3891 = vunpack.c.h.b16 %v3719
      %v3892 = vunpack.c.l.b16 %v3720
      %v3893 = vunpack.c.h.b16 %v3720
      %v3894 = vunpack.c.l.b16 %v3721
      %v3895 = vunpack.c.h.b16 %v3721
      %v3896 = vunpack.c.l.b16 %v3722
      %v3897 = vunpack.c.h.b16 %v3722
      %v3898 = vunpack.c.l.b16 %v3723
      %v3899 = vunpack.c.h.b16 %v3723
      %v3900 = vunpack.c.l.b16 %v3724
      %v3901 = vunpack.c.h.b16 %v3724
      %v3902 = vunpack.c.l.b16 %v3725
      %v3903 = vunpack.c.h.b16 %v3725
      %v3904 = vunpack.c.l.b16 %v3726
      %v3905 = vunpack.c.h.b16 %v3726
      %v3906 = vunpack.c.l.b16 %v3727
      %v3907 = vunpack.c.h.b16 %v3727
      %v3908 = vunpack.c.l.b16 %v3728
      %v3909 = vunpack.c.h.b16 %v3728
      %v3910 = vunpack.c.l.b16 %v3729
      %v3911 = vunpack.c.h.b16 %v3729
      %v3912 = vunpack.c.l.b16 %v3730
      %v3913 = vunpack.c.h.b16 %v3730
      %v3914 = vunpack.c.l.b16 %v3731
      %v3915 = vunpack.c.h.b16 %v3731
      %v3916 = vunpack.c.l.b16 %v3732
      %v3917 = vunpack.c.h.b16 %v3732
      %v3918 = vunpack.c.l.b16 %v3733
      %v3919 = vunpack.c.h.b16 %v3733
      %v3920 = vunpack.c.l.b16 %v3734
      %v3921 = vunpack.c.h.b16 %v3734
      %v3922 = vunpack.c.l.b16 %v3735
      %v3923 = vunpack.c.h.b16 %v3735
      %v3924 = vunpack.c.l.b16 %v3736
      %v3925 = vunpack.c.h.b16 %v3736
      %v3926 = vunpack.c.l.b16 %v3737
      %v3927 = vunpack.c.h.b16 %v3737
      %v3928 = vunpack.c.l.b16 %v3738
      %v3929 = vunpack.c.h.b16 %v3738
      %v3930 = vunpack.c.l.b16 %v3739
      %v3931 = vunpack.c.h.b16 %v3739
      %v3932 = vunpack.c.l.b16 %v3740
      %v3933 = vunpack.c.h.b16 %v3740
      %v3934 = vunpack.c.l.b16 %v3741
      %v3935 = vunpack.c.h.b16 %v3741
      %v3936 = vunpack.c.l.b16 %v3742
      %v3937 = vunpack.c.h.b16 %v3742
      %v3938 = vunpack.c.l.b16 %v3743
      %v3939 = vunpack.c.h.b16 %v3743
      %v3940 = vunpack.c.l.b16 %v3744
      %v3941 = vunpack.c.h.b16 %v3744
      %v3942 = vunpack.c.l.b16 %v3745
      %v3943 = vunpack.c.h.b16 %v3745
      %v3944 = vunpack.c.l.b16 %v3746
      %v3945 = vunpack.c.h.b16 %v3746
      %v3946 = vunpack.c.l.b16 %v3747
      %v3947 = vunpack.c.h.b16 %v3747
      %v3948 = vunpack.c.l.b16 %v3748
      %v3949 = vunpack.c.h.b16 %v3748
      %v3950 = vunpack.c.l.b16 %v3749
      %v3951 = vunpack.c.h.b16 %v3749
      %v3952 = vunpack.c.l.b16 %v3750
      %v3953 = vunpack.c.h.b16 %v3750
      %v3954 = vunpack.c.l.b16 %v3751
      %v3955 = vunpack.c.h.b16 %v3751
      %v3956 = vunpack.c.l.b16 %v3752
      %v3957 = vunpack.c.h.b16 %v3752
      %v3958 = vunpack.c.l.b16 %v3753
      %v3959 = vunpack.c.h.b16 %v3753
      %v3960 = vunpack.c.l.b16 %v3754
      %v3961 = vunpack.c.h.b16 %v3754
      %v3962 = vunpack.c.l.b16 %v3755
      %v3963 = vunpack.c.h.b16 %v3755
      %v3964 = vunpack.c.l.b16 %v3756
      %v3965 = vunpack.c.h.b16 %v3756
      %v3966 = vunpack.c.l.b16 %v3757
      %v3967 = vunpack.c.h.b16 %v3757
      %v3968 = vunpack.c.l.b16 %v3758
      %v3969 = vunpack.c.h.b16 %v3758
      %v3970 = vunpack.c.l.b16 %v3759
      %v3971 = vunpack.c.h.b16 %v3759
      %v3972 = vunpack.c.l.b16 %v3760
      %v3973 = vunpack.c.h.b16 %v3760
      %v3974 = vunpack.c.l.b16 %v3761
      %v3975 = vunpack.c.h.b16 %v3761
      %v3976 = vunpack.c.l.b16 %v3762
      %v3977 = vunpack.c.h.b16 %v3762
      %v3978 = vunpack.c.l.b16 %v3763
      %v3979 = vunpack.c.h.b16 %v3763
      %v3980 = vunpack.c.l.b16 %v3764
      %v3981 = vunpack.c.h.b16 %v3764
      %v3982 = vunpack.c.l.b16 %v3765
      %v3983 = vunpack.c.h.b16 %v3765
      %v3984 = vunpack.c.l.b16 %v3766
      %v3985 = vunpack.c.h.b16 %v3766
      %v3986 = vunpack.c.l.b16 %v3767
      %v3987 = vunpack.c.h.b16 %v3767
      %v3988 = vunpack.c.l.b16 %v3768
      %v3989 = vunpack.c.h.b16 %v3768
      %v3990 = vunpack.c.l.b16 %v3769
      %v3991 = vunpack.c.h.b16 %v3769
      %v3992 = vunpack.c.l.b16 %v3770
      %v3993 = vunpack.c.h.b16 %v3770
      %v3994 = vunpack.c.l.b16 %v3771
      %v3995 = vunpack.c.h.b16 %v3771
      %v3996 = vunpack.c.l.b16 %v3772
      %v3997 = vunpack.c.h.b16 %v3772
      %v3998 = vunpack.c.l.b16 %v3773
      %v3999 = vunpack.c.h.b16 %v3773
      %v4000 = vunpack.c.l.b16 %v3774
      %v4001 = vunpack.c.h.b16 %v3774
      %v4002 = vunpack.c.l.b16 %v3775
      %v4003 = vunpack.c.h.b16 %v3775
      %v4004 = vunpack.c.l.b16 %v3776
      %v4005 = vunpack.c.h.b16 %v3776
      %v4006 = vunpack.c.l.b16 %v3777
      %v4007 = vunpack.c.h.b16 %v3777
      %v4008 = vunpack.c.l.b16 %v3778
      %v4009 = vunpack.c.h.b16 %v3778
      %v4010 = vunpack.c.l.b16 %v3779
      %v4011 = vunpack.c.h.b16 %v3779
      %v4012 = vunpack.c.l.b16 %v3780
      %v4013 = vunpack.c.h.b16 %v3780
      %v4014 = vunpack.c.l.b16 %v3781
      %v4015 = vunpack.c.h.b16 %v3781
      %v4016 = vunpack.c.l.b16 %v3782
      %v4017 = vunpack.c.h.b16 %v3782
      %v4018 = vunpack.c.l.b16 %v3783
      %v4019 = vunpack.c.h.b16 %v3783
      %v4020 = vunpack.c.l.b16 %v3784
      %v4021 = vunpack.c.h.b16 %v3784
      %v4022 = vunpack.c.l.b16 %v3785
      %v4023 = vunpack.c.h.b16 %v3785
      %v4024 = vunpack.c.l.b16 %v3786
      %v4025 = vunpack.c.h.b16 %v3786
      %v4026 = vunpack.c.l.b16 %v3787
      %v4027 = vunpack.c.h.b16 %v3787
      %v4028 = vunpack.c.l.b16 %v3788
      %v4029 = vunpack.c.h.b16 %v3788
      %v4030 = vunpack.c.l.b16 %v3789
      %v4031 = vunpack.c.h.b16 %v3789
      %v4032 = vunpack.c.l.b16 %v3790
      %v4033 = vunpack.c.h.b16 %v3790
      %v4034 = vunpack.c.l.b16 %v3791
      %v4035 = vunpack.c.h.b16 %v3791
      %v4036 = vunpack.c.l.b16 %v3792
      %v4037 = vunpack.c.h.b16 %v3792
      %v4038 = vunpack.c.l.b16 %v3793
      %v4039 = vunpack.c.h.b16 %v3793
      %v4040 = vunpack.c.l.b16 %v3794
      %v4041 = vunpack.c.h.b16 %v3794
      %v4042 = vunpack.c.l.b16 %v3795
      %v4043 = vunpack.c.h.b16 %v3795
      %v4044 = vunpack.c.l.b16 %v3796
      %v4045 = vunpack.c.h.b16 %v3796
      %v4046 = vunpack.c.l.b16 %v3797
      %v4047 = vunpack.c.h.b16 %v3797
      %v4048 = vpack.c.b16 %v3890, %v3888
      %v4049 = vpack.c.b16 %v3891, %v3889
      %v4050 = vpack.c.b16 %v3894, %v3892
      %v4051 = vpack.c.b16 %v3895, %v3893
      %v4052 = vpack.c.b16 %v3898, %v3896
      %v4053 = vpack.c.b16 %v3899, %v3897
      %v4054 = vpack.c.b16 %v3902, %v3900
      %v4055 = vpack.c.b16 %v3903, %v3901
      %v4056 = vpack.c.b16 %v3906, %v3904
      %v4057 = vpack.c.b16 %v3907, %v3905
      %v4058 = vpack.c.b16 %v3910, %v3908
      %v4059 = vpack.c.b16 %v3911, %v3909
      %v4060 = vpack.c.b16 %v3914, %v3912
      %v4061 = vpack.c.b16 %v3915, %v3913
      %v4062 = vpack.c.b16 %v3918, %v3916
      %v4063 = vpack.c.b16 %v3919, %v3917
      %v4064 = vpack.c.b16 %v3922, %v3920
      %v4065 = vpack.c.b16 %v3923, %v3921
      %v4066 = vpack.c.b16 %v3926, %v3924
      %v4067 = vpack.c.b16 %v3927, %v3925
      %v4068 = vpack.c.b16 %v3930, %v3928
      %v4069 = vpack.c.b16 %v3931, %v3929
      %v4070 = vpack.c.b16 %v3934, %v3932
      %v4071 = vpack.c.b16 %v3935, %v3933
      %v4072 = vpack.c.b16 %v3938, %v3936
      %v4073 = vpack.c.b16 %v3939, %v3937
      %v4074 = vpack.c.b16 %v3942, %v3940
      %v4075 = vpack.c.b16 %v3943, %v3941
      %v4076 = vpack.c.b16 %v3946, %v3944
      %v4077 = vpack.c.b16 %v3947, %v3945
      %v4078 = vpack.c.b16 %v3950, %v3948
      %v4079 = vpack.c.b16 %v3951, %v3949
      %v4080 = vpack.c.b16 %v3954, %v3952
      %v4081 = vpack.c.b16 %v3955, %v3953
      %v4082 = vpack.c.b16 %v3958, %v3956
      %v4083 = vpack.c.b16 %v3959, %v3957
      %v4084 = vpack.c.b16 %v3962, %v3960
      %v4085 = vpack.c.b16 %v3963, %v3961
      %v4086 = vpack.c.b16 %v3966, %v3964
      %v4087 = vpack.c.b16 %v3967, %v3965
      %v4088 = vpack.c.b16 %v3970, %v3968
      %v4089 = vpack.c.b16 %v3971, %v3969
      %v4090 = vpack.c.b16 %v3974, %v3972
      %v4091 = vpack.c.b16 %v3975, %v3973
      %v4092 = vpack.c.b16 %v3978, %v3976
      %v4093 = vpack.c.b16 %v3979, %v3977
      %v4094 = vpack.c.b16 %v3982, %v3980
      %v4095 = vpack.c.b16 %v3983, %v3981
      %v4096 = vpack.c.b16 %v3986, %v3984
      %v4097 = vpack.c.b16 %v3987, %v3985
      %v4098 = vpack.c.b16 %v3990, %v3988
      %v4099 = vpack.c.b16 %v3991, %v3989
      %v4100 = vpack.c.b16 %v3994, %v3992
      %v4101 = vpack.c.b16 %v3995, %v3993
      %v4102 = vpack.c.b16 %v3998, %v3996
      %v4103 = vpack.c.b16 %v3999, %v3997
      %v4104 = vpack.c.b16 %v4002, %v4000
      %v4105 = vpack.c.b16 %v4003, %v4001
      %v4106 = vpack.c.b16 %v4006, %v4004
      %v4107 = vpack.c.b16 %v4007, %v4005
      %v4108 = vpack.c.b16 %v4010, %v4008
      %v4109 = vpack.c.b16 %v4011, %v4009
      %v4110 = vpack.c.b16 %v4014, %v4012
      %v4111 = vpack.c.b16 %v4015, %v4013
      %v4112 = vpack.c.b16 %v4018, %v4016
      %v4113 = vpack.c.b16 %v4019, %v4017
      %v4114 = vpack.c.b16 %v4022, %v4020
      %v4115 = vpack.c.b16 %v4023, %v4021
      %v4116 = vpack.c.b16 %v4026, %v4024
      %v4117 = vpack.c.b16 %v4027, %v4025
      %v4118 = vpack.c.b16 %v4030, %v4028
      %v4119 = vpack.c.b16 %v4031, %v4029
      %v4120 = vpack.c.b16 %v4034, %v4032
      %v4121 = vpack.c.b16 %v4035, %v4033
      %v4122 = vpack.c.b16 %v4038, %v4036
      %v4123 = vpack.c.b16 %v4039, %v4037
      %v4124 = vpack.c.b16 %v4042, %v4040
      %v4125 = vpack.c.b16 %v4043, %v4041
      %v4126 = vpack.c.b16 %v4046, %v4044
      %v4127 = vpack.c.b16 %v4047, %v4045
      %4208 = vmatprep.subr.bf16.mxu0 %v4049
      %4209 = vmatpush1.bf16.msra.mxu0 %v4048
      %4210 = vmatprep.subr.bf16.mxu0 %v4051
      %4211 = vmatpush1.bf16.msra.mxu0 %v4050
      %4212 = vmatprep.subr.bf16.mxu0 %v4053
      %4213 = vmatpush1.bf16.msra.mxu0 %v4052
      %4214 = vmatprep.subr.bf16.mxu0 %v4055
      %4215 = vmatpush1.bf16.msra.mxu0 %v4054
      %4216 = vmatprep.subr.bf16.mxu0 %v4057
      %4217 = vmatpush1.bf16.msra.mxu0 %v4056
      %4218 = vmatprep.subr.bf16.mxu0 %v4059
      %4219 = vmatpush1.bf16.msra.mxu0 %v4058
      %4220 = vmatprep.subr.bf16.mxu0 %v4061
      %4221 = vmatpush1.bf16.msra.mxu0 %v4060
      %4222 = vmatprep.subr.bf16.mxu0 %v4063
      %4223 = vmatpush1.bf16.msra.mxu0 %v4062
      %4224 = vmatprep.subr.bf16.mxu0 %v4065
      %4225 = vmatpush1.bf16.msra.mxu0 %v4064
      %4226 = vmatprep.subr.bf16.mxu0 %v4067
      %4227 = vmatpush1.bf16.msra.mxu0 %v4066
      %4228 = vmatprep.subr.bf16.mxu0 %v4069
      %4229 = vmatpush1.bf16.msra.mxu0 %v4068
      %4230 = vmatprep.subr.bf16.mxu0 %v4071
      %4231 = vmatpush1.bf16.msra.mxu0 %v4070
      %4232 = vmatprep.subr.bf16.mxu0 %v4073
      %4233 = vmatpush1.bf16.msra.mxu0 %v4072
      %4234 = vmatprep.subr.bf16.mxu0 %v4075
      %4235 = vmatpush1.bf16.msra.mxu0 %v4074
      %4236 = vmatprep.subr.bf16.mxu0 %v4077
      %4237 = vmatpush1.bf16.msra.mxu0 %v4076
      %4238 = vmatprep.subr.bf16.mxu0 %v4079
      %4239 = vmatpush1.bf16.msra.mxu0 %v4078
      %4240 = vmatprep.mubr.bf16.mxu0 %v3799
      %4241 = vmatmul.mubr.bf16.gmra.mrb[0].mxu0 %v3798
      %v4242 = vpop.f32.mrb[0].mxu0
      %v4243 = vadd.f32 0.0, %v4242
      %v4244 = vpop.f32.mrb[0].mxu0
      %v4245 = vadd.f32 0.0, %v4244
      %v4246 = vpop.f32.mrb[0].mxu0
      %v4247 = vpop.f32.mrb[0].mxu0
      %4248 = vdwg.mxu0
      %4249 = vmatprep.subr.bf16.mxu0 %v4081
      %4250 = vmatpush1.bf16.msra.mxu0 %v4080
      %4251 = vmatprep.subr.bf16.mxu0 %v4083
      %4252 = vmatpush1.bf16.msra.mxu0 %v4082
      %4253 = vmatprep.subr.bf16.mxu0 %v4085
      %4254 = vmatpush1.bf16.msra.mxu0 %v4084
      %4255 = vmatprep.subr.bf16.mxu0 %v4087
      %4256 = vmatpush1.bf16.msra.mxu0 %v4086
      %4257 = vmatprep.subr.bf16.mxu0 %v4089
      %4258 = vmatpush1.bf16.msra.mxu0 %v4088
      %4259 = vmatprep.subr.bf16.mxu0 %v4091
      %4260 = vmatpush1.bf16.msra.mxu0 %v4090
      %4261 = vmatprep.subr.bf16.mxu0 %v4093
      %4262 = vmatpush1.bf16.msra.mxu0 %v4092
      %4263 = vmatprep.subr.bf16.mxu0 %v4095
      %4264 = vmatpush1.bf16.msra.mxu0 %v4094
      %4265 = vmatprep.subr.bf16.mxu0 %v4097
      %4266 = vmatpush1.bf16.msra.mxu0 %v4096
      %4267 = vmatprep.subr.bf16.mxu0 %v4099
      %4268 = vmatpush1.bf16.msra.mxu0 %v4098
      %4269 = vmatprep.subr.bf16.mxu0 %v4101
      %4270 = vmatpush1.bf16.msra.mxu0 %v4100
      %4271 = vmatprep.subr.bf16.mxu0 %v4103
      %4272 = vmatpush1.bf16.msra.mxu0 %v4102
      %4273 = vmatprep.subr.bf16.mxu0 %v4105
      %4274 = vmatpush1.bf16.msra.mxu0 %v4104
      %4275 = vmatprep.subr.bf16.mxu0 %v4107
      %4276 = vmatpush1.bf16.msra.mxu0 %v4106
      %4277 = vmatprep.subr.bf16.mxu0 %v4109
      %4278 = vmatpush1.bf16.msra.mxu0 %v4108
      %4279 = vmatprep.subr.bf16.mxu0 %v4111
      %4280 = vmatpush1.bf16.msra.mxu0 %v4110
      %4281 = vmatprep.mubr.bf16.mxu0 %v3801
      %4282 = vmatmul.mubr.bf16.gmra.mrb[0].mxu0 %v3800
      %v4283 = vpop.f32.mrb[0].mxu0
      %v4284 = vadd.f32 %v4243, %v4283
      %v4285 = vpop.f32.mrb[0].mxu0
      %v4286 = vadd.f32 %v4245, %v4285
      %v4287 = vpop.f32.mrb[0].mxu0
      %v4288 = vpop.f32.mrb[0].mxu0
      %4289 = vdwg.mxu0
      %4290 = vmatprep.subr.bf16.mxu0 %v4113
      %4291 = vmatpush1.bf16.msra.mxu0 %v4112
      %4292 = vmatprep.subr.bf16.mxu0 %v4115
      %4293 = vmatpush1.bf16.msra.mxu0 %v4114
      %4294 = vmatprep.subr.bf16.mxu0 %v4117
      %4295 = vmatpush1.bf16.msra.mxu0 %v4116
      %4296 = vmatprep.subr.bf16.mxu0 %v4119
      %4297 = vmatpush1.bf16.msra.mxu0 %v4118
      %4298 = vmatprep.subr.bf16.mxu0 %v4121
      %4299 = vmatpush1.bf16.msra.mxu0 %v4120
      %4300 = vmatprep.subr.bf16.mxu0 %v4123
      %4301 = vmatpush1.bf16.msra.mxu0 %v4122
      %4302 = vmatprep.subr.bf16.mxu0 %v4125
      %4303 = vmatpush1.bf16.msra.mxu0 %v4124
      %4304 = vmatprep.subr.bf16.mxu0 %v4127
      %4305 = vmatpush1.bf16.msra.mxu0 %v4126
      %4306 = vmatprep.subr.bf16.mxu0 0
      %4307 = vmatpush1.bf16.msra.mxu0 0
      %4308 = vmatprep.subr.bf16.mxu0 0
      %4309 = vmatpush1.bf16.msra.mxu0 0
      %4310 = vmatprep.subr.bf16.mxu0 0
      %4311 = vmatpush1.bf16.msra.mxu0 0
      %4312 = vmatprep.subr.bf16.mxu0 0
      %4313 = vmatpush1.bf16.msra.mxu0 0
      %4314 = vmatprep.subr.bf16.mxu0 0
      %4315 = vmatpush1.bf16.msra.mxu0 0
      %4316 = vmatprep.subr.bf16.mxu0 0
      %4317 = vmatpush1.bf16.msra.mxu0 0
      %4318 = vmatprep.subr.bf16.mxu0 0
      %4319 = vmatpush1.bf16.msra.mxu0 0
      %4320 = vmatprep.subr.bf16.mxu0 0
      %4321 = vmatpush1.bf16.msra.mxu0 0
      %4322 = vmatprep.mubr.bf16.mxu0 0
      %4323 = vmatmul.mubr.bf16.gmra.mrb[0].mxu0 %v3802
      %v4324 = vpop.f32.mrb[0].mxu0
      %v4325 = vadd.f32 %v4284, %v4324
      %v4326 = vpop.f32.mrb[0].mxu0
      %v4327 = vadd.f32 %v4286, %v4326
      %v4328 = vpop.f32.mrb[0].mxu0
      %v4329 = vpop.f32.mrb[0].mxu0
      %4330 = vdwg.mxu0
      %v4331 = vadd.f32 %v3715, %v4325
      %v4332 = vadd.f32 %v3716, %v4327
      %s4333 = scalar_lea.vmem %s6, 3200
      %v4334 = vld [vmem:[%s4333] sm:$0xff]
      %v4335 = vld [vmem:[%s4333 + $0x8] sm:$0xff]
      %v4336 = vld [vmem:[%s4333 + $0x10] sm:$0xff]
      %v4337 = vld [vmem:[%s4333 + $0x18] sm:$0xff]
      %v4338 = vld [vmem:[%s4333 + $0x20] sm:$0xff]
      %v4339 = vld [vmem:[%s4333 + $0x28] sm:$0xff]
      %v4340 = vld [vmem:[%s4333 + $0x30] sm:$0xff]
      %v4341 = vld [vmem:[%s4333 + $0x38] sm:$0xff]
      %v4342 = vld [vmem:[%s4333 + $0x40] sm:$0xff]
      %v4343 = vld [vmem:[%s4333 + $0x48] sm:$0xff]
      %v4344 = vld [vmem:[%s4333 + $0x50] sm:$0xff]
      %v4345 = vld [vmem:[%s4333 + $0x58] sm:$0xff]
      %v4346 = vld [vmem:[%s4333 + $0x60] sm:$0xff]
      %v4347 = vld [vmem:[%s4333 + $0x68] sm:$0xff]
      %v4348 = vld [vmem:[%s4333 + $0x70] sm:$0xff]
      %v4349 = vld [vmem:[%s4333 + $0x78] sm:$0xff]
      %v4350 = vld [vmem:[%s4333 + $0x80] sm:$0xff]
      %v4351 = vld [vmem:[%s4333 + $0x88] sm:$0xff]
      %v4352 = vld [vmem:[%s4333 + $0x90] sm:$0xff]
      %v4353 = vld [vmem:[%s4333 + $0x98] sm:$0xff]
      %v4354 = vld [vmem:[%s4333 + $0xa0] sm:$0xff]
      %v4355 = vld [vmem:[%s4333 + $0xa8] sm:$0xff]
      %v4356 = vld [vmem:[%s4333 + $0xb0] sm:$0xff]
      %v4357 = vld [vmem:[%s4333 + $0xb8] sm:$0xff]
      %v4358 = vld [vmem:[%s4333 + $0xc0] sm:$0xff]
      %v4359 = vld [vmem:[%s4333 + $0xc8] sm:$0xff]
      %v4360 = vld [vmem:[%s4333 + $0xd0] sm:$0xff]
      %v4361 = vld [vmem:[%s4333 + $0xd8] sm:$0xff]
      %v4362 = vld [vmem:[%s4333 + $0xe0] sm:$0xff]
      %v4363 = vld [vmem:[%s4333 + $0xe8] sm:$0xff]
      %v4364 = vld [vmem:[%s4333 + $0xf0] sm:$0xff]
      %v4365 = vld [vmem:[%s4333 + $0xf8] sm:$0xff]
      %v4366 = vld [vmem:[%s4333 + $0x100] sm:$0xff]
      %v4367 = vld [vmem:[%s4333 + $0x108] sm:$0xff]
      %v4368 = vld [vmem:[%s4333 + $0x110] sm:$0xff]
      %v4369 = vld [vmem:[%s4333 + $0x118] sm:$0xff]
      %v4370 = vld [vmem:[%s4333 + $0x120] sm:$0xff]
      %v4371 = vld [vmem:[%s4333 + $0x128] sm:$0xff]
      %v4372 = vld [vmem:[%s4333 + $0x130] sm:$0xff]
      %v4373 = vld [vmem:[%s4333 + $0x138] sm:$0xff]
      %v4374 = vld [vmem:[%s4333 + $0x140] sm:$0xff]
      %v4375 = vld [vmem:[%s4333 + $0x148] sm:$0xff]
      %v4376 = vld [vmem:[%s4333 + $0x150] sm:$0xff]
      %v4377 = vld [vmem:[%s4333 + $0x158] sm:$0xff]
      %v4378 = vld [vmem:[%s4333 + $0x160] sm:$0xff]
      %v4379 = vld [vmem:[%s4333 + $0x168] sm:$0xff]
      %v4380 = vld [vmem:[%s4333 + $0x170] sm:$0xff]
      %v4381 = vld [vmem:[%s4333 + $0x178] sm:$0xff]
      %v4382 = vld [vmem:[%s4333 + $0x180] sm:$0xff]
      %v4383 = vld [vmem:[%s4333 + $0x188] sm:$0xff]
      %v4384 = vld [vmem:[%s4333 + $0x190] sm:$0xff]
      %v4385 = vld [vmem:[%s4333 + $0x198] sm:$0xff]
      %v4386 = vld [vmem:[%s4333 + $0x1a0] sm:$0xff]
      %v4387 = vld [vmem:[%s4333 + $0x1a8] sm:$0xff]
      %v4388 = vld [vmem:[%s4333 + $0x1b0] sm:$0xff]
      %v4389 = vld [vmem:[%s4333 + $0x1b8] sm:$0xff]
      %v4390 = vld [vmem:[%s4333 + $0x1c0] sm:$0xff]
      %v4391 = vld [vmem:[%s4333 + $0x1c8] sm:$0xff]
      %v4392 = vld [vmem:[%s4333 + $0x1d0] sm:$0xff]
      %v4393 = vld [vmem:[%s4333 + $0x1d8] sm:$0xff]
      %v4394 = vld [vmem:[%s4333 + $0x1e0] sm:$0xff]
      %v4395 = vld [vmem:[%s4333 + $0x1e8] sm:$0xff]
      %v4396 = vld [vmem:[%s4333 + $0x1f0] sm:$0xff]
      %v4397 = vld [vmem:[%s4333 + $0x1f8] sm:$0xff]
      %v4398 = vld [vmem:[%s4333 + $0x200] sm:$0xff]
      %v4399 = vld [vmem:[%s4333 + $0x208] sm:$0xff]
      %v4400 = vld [vmem:[%s4333 + $0x210] sm:$0xff]
      %v4401 = vld [vmem:[%s4333 + $0x218] sm:$0xff]
      %v4402 = vld [vmem:[%s4333 + $0x220] sm:$0xff]
      %v4403 = vld [vmem:[%s4333 + $0x228] sm:$0xff]
      %v4404 = vld [vmem:[%s4333 + $0x230] sm:$0xff]
      %v4405 = vld [vmem:[%s4333 + $0x238] sm:$0xff]
      %v4406 = vld [vmem:[%s4333 + $0x240] sm:$0xff]
      %v4407 = vld [vmem:[%s4333 + $0x248] sm:$0xff]
      %v4408 = vld [vmem:[%s4333 + $0x250] sm:$0xff]
      %v4409 = vld [vmem:[%s4333 + $0x258] sm:$0xff]
      %v4410 = vld [vmem:[%s4333 + $0x260] sm:$0xff]
      %v4411 = vld [vmem:[%s4333 + $0x268] sm:$0xff]
      %v4412 = vld [vmem:[%s4333 + $0x270] sm:$0xff]
      %v4413 = vld [vmem:[%s4333 + $0x278] sm:$0xff]
      %v4414 = vrot.slane %v1415, 2
      %v4415 = vrot.slane %v1418, 2
      %v4416 = vrot.slane %v1421, 2
      %v4417 = vrot.slane %v1424, 2
      %v4418 = vrot.slane %v1427, 2
      %v4504 = vunpack.c.l.b16 %v4334
      %v4505 = vunpack.c.h.b16 %v4334
      %v4506 = vunpack.c.l.b16 %v4335
      %v4507 = vunpack.c.h.b16 %v4335
      %v4508 = vunpack.c.l.b16 %v4336
      %v4509 = vunpack.c.h.b16 %v4336
      %v4510 = vunpack.c.l.b16 %v4337
      %v4511 = vunpack.c.h.b16 %v4337
      %v4512 = vunpack.c.l.b16 %v4338
      %v4513 = vunpack.c.h.b16 %v4338
      %v4514 = vunpack.c.l.b16 %v4339
      %v4515 = vunpack.c.h.b16 %v4339
      %v4516 = vunpack.c.l.b16 %v4340
      %v4517 = vunpack.c.h.b16 %v4340
      %v4518 = vunpack.c.l.b16 %v4341
      %v4519 = vunpack.c.h.b16 %v4341
      %v4520 = vunpack.c.l.b16 %v4342
      %v4521 = vunpack.c.h.b16 %v4342
      %v4522 = vunpack.c.l.b16 %v4343
      %v4523 = vunpack.c.h.b16 %v4343
      %v4524 = vunpack.c.l.b16 %v4344
      %v4525 = vunpack.c.h.b16 %v4344
      %v4526 = vunpack.c.l.b16 %v4345
      %v4527 = vunpack.c.h.b16 %v4345
      %v4528 = vunpack.c.l.b16 %v4346
      %v4529 = vunpack.c.h.b16 %v4346
      %v4530 = vunpack.c.l.b16 %v4347
      %v4531 = vunpack.c.h.b16 %v4347
      %v4532 = vunpack.c.l.b16 %v4348
      %v4533 = vunpack.c.h.b16 %v4348
      %v4534 = vunpack.c.l.b16 %v4349
      %v4535 = vunpack.c.h.b16 %v4349
      %v4536 = vunpack.c.l.b16 %v4350
      %v4537 = vunpack.c.h.b16 %v4350
      %v4538 = vunpack.c.l.b16 %v4351
      %v4539 = vunpack.c.h.b16 %v4351
      %v4540 = vunpack.c.l.b16 %v4352
      %v4541 = vunpack.c.h.b16 %v4352
      %v4542 = vunpack.c.l.b16 %v4353
      %v4543 = vunpack.c.h.b16 %v4353
      %v4544 = vunpack.c.l.b16 %v4354
      %v4545 = vunpack.c.h.b16 %v4354
      %v4546 = vunpack.c.l.b16 %v4355
      %v4547 = vunpack.c.h.b16 %v4355
      %v4548 = vunpack.c.l.b16 %v4356
      %v4549 = vunpack.c.h.b16 %v4356
      %v4550 = vunpack.c.l.b16 %v4357
      %v4551 = vunpack.c.h.b16 %v4357
      %v4552 = vunpack.c.l.b16 %v4358
      %v4553 = vunpack.c.h.b16 %v4358
      %v4554 = vunpack.c.l.b16 %v4359
      %v4555 = vunpack.c.h.b16 %v4359
      %v4556 = vunpack.c.l.b16 %v4360
      %v4557 = vunpack.c.h.b16 %v4360
      %v4558 = vunpack.c.l.b16 %v4361
      %v4559 = vunpack.c.h.b16 %v4361
      %v4560 = vunpack.c.l.b16 %v4362
      %v4561 = vunpack.c.h.b16 %v4362
      %v4562 = vunpack.c.l.b16 %v4363
      %v4563 = vunpack.c.h.b16 %v4363
      %v4564 = vunpack.c.l.b16 %v4364
      %v4565 = vunpack.c.h.b16 %v4364
      %v4566 = vunpack.c.l.b16 %v4365
      %v4567 = vunpack.c.h.b16 %v4365
      %v4568 = vunpack.c.l.b16 %v4366
      %v4569 = vunpack.c.h.b16 %v4366
      %v4570 = vunpack.c.l.b16 %v4367
      %v4571 = vunpack.c.h.b16 %v4367
      %v4572 = vunpack.c.l.b16 %v4368
      %v4573 = vunpack.c.h.b16 %v4368
      %v4574 = vunpack.c.l.b16 %v4369
      %v4575 = vunpack.c.h.b16 %v4369
      %v4576 = vunpack.c.l.b16 %v4370
      %v4577 = vunpack.c.h.b16 %v4370
      %v4578 = vunpack.c.l.b16 %v4371
      %v4579 = vunpack.c.h.b16 %v4371
      %v4580 = vunpack.c.l.b16 %v4372
      %v4581 = vunpack.c.h.b16 %v4372
      %v4582 = vunpack.c.l.b16 %v4373
      %v4583 = vunpack.c.h.b16 %v4373
      %v4584 = vunpack.c.l.b16 %v4374
      %v4585 = vunpack.c.h.b16 %v4374
      %v4586 = vunpack.c.l.b16 %v4375
      %v4587 = vunpack.c.h.b16 %v4375
      %v4588 = vunpack.c.l.b16 %v4376
      %v4589 = vunpack.c.h.b16 %v4376
      %v4590 = vunpack.c.l.b16 %v4377
      %v4591 = vunpack.c.h.b16 %v4377
      %v4592 = vunpack.c.l.b16 %v4378
      %v4593 = vunpack.c.h.b16 %v4378
      %v4594 = vunpack.c.l.b16 %v4379
      %v4595 = vunpack.c.h.b16 %v4379
      %v4596 = vunpack.c.l.b16 %v4380
      %v4597 = vunpack.c.h.b16 %v4380
      %v4598 = vunpack.c.l.b16 %v4381
      %v4599 = vunpack.c.h.b16 %v4381
      %v4600 = vunpack.c.l.b16 %v4382
      %v4601 = vunpack.c.h.b16 %v4382
      %v4602 = vunpack.c.l.b16 %v4383
      %v4603 = vunpack.c.h.b16 %v4383
      %v4604 = vunpack.c.l.b16 %v4384
      %v4605 = vunpack.c.h.b16 %v4384
      %v4606 = vunpack.c.l.b16 %v4385
      %v4607 = vunpack.c.h.b16 %v4385
      %v4608 = vunpack.c.l.b16 %v4386
      %v4609 = vunpack.c.h.b16 %v4386
      %v4610 = vunpack.c.l.b16 %v4387
      %v4611 = vunpack.c.h.b16 %v4387
      %v4612 = vunpack.c.l.b16 %v4388
      %v4613 = vunpack.c.h.b16 %v4388
      %v4614 = vunpack.c.l.b16 %v4389
      %v4615 = vunpack.c.h.b16 %v4389
      %v4616 = vunpack.c.l.b16 %v4390
      %v4617 = vunpack.c.h.b16 %v4390
      %v4618 = vunpack.c.l.b16 %v4391
      %v4619 = vunpack.c.h.b16 %v4391
      %v4620 = vunpack.c.l.b16 %v4392
      %v4621 = vunpack.c.h.b16 %v4392
      %v4622 = vunpack.c.l.b16 %v4393
      %v4623 = vunpack.c.h.b16 %v4393
      %v4624 = vunpack.c.l.b16 %v4394
      %v4625 = vunpack.c.h.b16 %v4394
      %v4626 = vunpack.c.l.b16 %v4395
      %v4627 = vunpack.c.h.b16 %v4395
      %v4628 = vunpack.c.l.b16 %v4396
      %v4629 = vunpack.c.h.b16 %v4396
      %v4630 = vunpack.c.l.b16 %v4397
      %v4631 = vunpack.c.h.b16 %v4397
      %v4632 = vunpack.c.l.b16 %v4398
      %v4633 = vunpack.c.h.b16 %v4398
      %v4634 = vunpack.c.l.b16 %v4399
      %v4635 = vunpack.c.h.b16 %v4399
      %v4636 = vunpack.c.l.b16 %v4400
      %v4637 = vunpack.c.h.b16 %v4400
      %v4638 = vunpack.c.l.b16 %v4401
      %v4639 = vunpack.c.h.b16 %v4401
      %v4640 = vunpack.c.l.b16 %v4402
      %v4641 = vunpack.c.h.b16 %v4402
      %v4642 = vunpack.c.l.b16 %v4403
      %v4643 = vunpack.c.h.b16 %v4403
      %v4644 = vunpack.c.l.b16 %v4404
      %v4645 = vunpack.c.h.b16 %v4404
      %v4646 = vunpack.c.l.b16 %v4405
      %v4647 = vunpack.c.h.b16 %v4405
      %v4648 = vunpack.c.l.b16 %v4406
      %v4649 = vunpack.c.h.b16 %v4406
      %v4650 = vunpack.c.l.b16 %v4407
      %v4651 = vunpack.c.h.b16 %v4407
      %v4652 = vunpack.c.l.b16 %v4408
      %v4653 = vunpack.c.h.b16 %v4408
      %v4654 = vunpack.c.l.b16 %v4409
      %v4655 = vunpack.c.h.b16 %v4409
      %v4656 = vunpack.c.l.b16 %v4410
      %v4657 = vunpack.c.h.b16 %v4410
      %v4658 = vunpack.c.l.b16 %v4411
      %v4659 = vunpack.c.h.b16 %v4411
      %v4660 = vunpack.c.l.b16 %v4412
      %v4661 = vunpack.c.h.b16 %v4412
      %v4662 = vunpack.c.l.b16 %v4413
      %v4663 = vunpack.c.h.b16 %v4413
      %v4664 = vpack.c.b16 %v4506, %v4504
      %v4665 = vpack.c.b16 %v4507, %v4505
      %v4666 = vpack.c.b16 %v4510, %v4508
      %v4667 = vpack.c.b16 %v4511, %v4509
      %v4668 = vpack.c.b16 %v4514, %v4512
      %v4669 = vpack.c.b16 %v4515, %v4513
      %v4670 = vpack.c.b16 %v4518, %v4516
      %v4671 = vpack.c.b16 %v4519, %v4517
      %v4672 = vpack.c.b16 %v4522, %v4520
      %v4673 = vpack.c.b16 %v4523, %v4521
      %v4674 = vpack.c.b16 %v4526, %v4524
      %v4675 = vpack.c.b16 %v4527, %v4525
      %v4676 = vpack.c.b16 %v4530, %v4528
      %v4677 = vpack.c.b16 %v4531, %v4529
      %v4678 = vpack.c.b16 %v4534, %v4532
      %v4679 = vpack.c.b16 %v4535, %v4533
      %v4680 = vpack.c.b16 %v4538, %v4536
      %v4681 = vpack.c.b16 %v4539, %v4537
      %v4682 = vpack.c.b16 %v4542, %v4540
      %v4683 = vpack.c.b16 %v4543, %v4541
      %v4684 = vpack.c.b16 %v4546, %v4544
      %v4685 = vpack.c.b16 %v4547, %v4545
      %v4686 = vpack.c.b16 %v4550, %v4548
      %v4687 = vpack.c.b16 %v4551, %v4549
      %v4688 = vpack.c.b16 %v4554, %v4552
      %v4689 = vpack.c.b16 %v4555, %v4553
      %v4690 = vpack.c.b16 %v4558, %v4556
      %v4691 = vpack.c.b16 %v4559, %v4557
      %v4692 = vpack.c.b16 %v4562, %v4560
      %v4693 = vpack.c.b16 %v4563, %v4561
      %v4694 = vpack.c.b16 %v4566, %v4564
      %v4695 = vpack.c.b16 %v4567, %v4565
      %v4696 = vpack.c.b16 %v4570, %v4568
      %v4697 = vpack.c.b16 %v4571, %v4569
      %v4698 = vpack.c.b16 %v4574, %v4572
      %v4699 = vpack.c.b16 %v4575, %v4573
      %v4700 = vpack.c.b16 %v4578, %v4576
      %v4701 = vpack.c.b16 %v4579, %v4577
      %v4702 = vpack.c.b16 %v4582, %v4580
      %v4703 = vpack.c.b16 %v4583, %v4581
      %v4704 = vpack.c.b16 %v4586, %v4584
      %v4705 = vpack.c.b16 %v4587, %v4585
      %v4706 = vpack.c.b16 %v4590, %v4588
      %v4707 = vpack.c.b16 %v4591, %v4589
      %v4708 = vpack.c.b16 %v4594, %v4592
      %v4709 = vpack.c.b16 %v4595, %v4593
      %v4710 = vpack.c.b16 %v4598, %v4596
      %v4711 = vpack.c.b16 %v4599, %v4597
      %v4712 = vpack.c.b16 %v4602, %v4600
      %v4713 = vpack.c.b16 %v4603, %v4601
      %v4714 = vpack.c.b16 %v4606, %v4604
      %v4715 = vpack.c.b16 %v4607, %v4605
      %v4716 = vpack.c.b16 %v4610, %v4608
      %v4717 = vpack.c.b16 %v4611, %v4609
      %v4718 = vpack.c.b16 %v4614, %v4612
      %v4719 = vpack.c.b16 %v4615, %v4613
      %v4720 = vpack.c.b16 %v4618, %v4616
      %v4721 = vpack.c.b16 %v4619, %v4617
      %v4722 = vpack.c.b16 %v4622, %v4620
      %v4723 = vpack.c.b16 %v4623, %v4621
      %v4724 = vpack.c.b16 %v4626, %v4624
      %v4725 = vpack.c.b16 %v4627, %v4625
      %v4726 = vpack.c.b16 %v4630, %v4628
      %v4727 = vpack.c.b16 %v4631, %v4629
      %v4728 = vpack.c.b16 %v4634, %v4632
      %v4729 = vpack.c.b16 %v4635, %v4633
      %v4730 = vpack.c.b16 %v4638, %v4636
      %v4731 = vpack.c.b16 %v4639, %v4637
      %v4732 = vpack.c.b16 %v4642, %v4640
      %v4733 = vpack.c.b16 %v4643, %v4641
      %v4734 = vpack.c.b16 %v4646, %v4644
      %v4735 = vpack.c.b16 %v4647, %v4645
      %v4736 = vpack.c.b16 %v4650, %v4648
      %v4737 = vpack.c.b16 %v4651, %v4649
      %v4738 = vpack.c.b16 %v4654, %v4652
      %v4739 = vpack.c.b16 %v4655, %v4653
      %v4740 = vpack.c.b16 %v4658, %v4656
      %v4741 = vpack.c.b16 %v4659, %v4657
      %v4742 = vpack.c.b16 %v4662, %v4660
      %v4743 = vpack.c.b16 %v4663, %v4661
      %4824 = vmatprep.subr.bf16.mxu0 %v4665
      %4825 = vmatpush1.bf16.msra.mxu0 %v4664
      %4826 = vmatprep.subr.bf16.mxu0 %v4667
      %4827 = vmatpush1.bf16.msra.mxu0 %v4666
      %4828 = vmatprep.subr.bf16.mxu0 %v4669
      %4829 = vmatpush1.bf16.msra.mxu0 %v4668
      %4830 = vmatprep.subr.bf16.mxu0 %v4671
      %4831 = vmatpush1.bf16.msra.mxu0 %v4670
      %4832 = vmatprep.subr.bf16.mxu0 %v4673
      %4833 = vmatpush1.bf16.msra.mxu0 %v4672
      %4834 = vmatprep.subr.bf16.mxu0 %v4675
      %4835 = vmatpush1.bf16.msra.mxu0 %v4674
      %4836 = vmatprep.subr.bf16.mxu0 %v4677
      %4837 = vmatpush1.bf16.msra.mxu0 %v4676
      %4838 = vmatprep.subr.bf16.mxu0 %v4679
      %4839 = vmatpush1.bf16.msra.mxu0 %v4678
      %4840 = vmatprep.subr.bf16.mxu0 %v4681
      %4841 = vmatpush1.bf16.msra.mxu0 %v4680
      %4842 = vmatprep.subr.bf16.mxu0 %v4683
      %4843 = vmatpush1.bf16.msra.mxu0 %v4682
      %4844 = vmatprep.subr.bf16.mxu0 %v4685
      %4845 = vmatpush1.bf16.msra.mxu0 %v4684
      %4846 = vmatprep.subr.bf16.mxu0 %v4687
      %4847 = vmatpush1.bf16.msra.mxu0 %v4686
      %4848 = vmatprep.subr.bf16.mxu0 %v4689
      %4849 = vmatpush1.bf16.msra.mxu0 %v4688
      %4850 = vmatprep.subr.bf16.mxu0 %v4691
      %4851 = vmatpush1.bf16.msra.mxu0 %v4690
      %4852 = vmatprep.subr.bf16.mxu0 %v4693
      %4853 = vmatpush1.bf16.msra.mxu0 %v4692
      %4854 = vmatprep.subr.bf16.mxu0 %v4695
      %4855 = vmatpush1.bf16.msra.mxu0 %v4694
      %4856 = vmatprep.mubr.bf16.mxu0 %v4415
      %4857 = vmatmul.mubr.bf16.gmra.mrb[0].mxu0 %v4414
      %v4858 = vpop.f32.mrb[0].mxu0
      %v4859 = vadd.f32 0.0, %v4858
      %v4860 = vpop.f32.mrb[0].mxu0
      %v4861 = vadd.f32 0.0, %v4860
      %v4862 = vpop.f32.mrb[0].mxu0
      %v4863 = vpop.f32.mrb[0].mxu0
      %4864 = vdwg.mxu0
      %4865 = vmatprep.subr.bf16.mxu0 %v4697
      %4866 = vmatpush1.bf16.msra.mxu0 %v4696
      %4867 = vmatprep.subr.bf16.mxu0 %v4699
      %4868 = vmatpush1.bf16.msra.mxu0 %v4698
      %4869 = vmatprep.subr.bf16.mxu0 %v4701
      %4870 = vmatpush1.bf16.msra.mxu0 %v4700
      %4871 = vmatprep.subr.bf16.mxu0 %v4703
      %4872 = vmatpush1.bf16.msra.mxu0 %v4702
      %4873 = vmatprep.subr.bf16.mxu0 %v4705
      %4874 = vmatpush1.bf16.msra.mxu0 %v4704
      %4875 = vmatprep.subr.bf16.mxu0 %v4707
      %4876 = vmatpush1.bf16.msra.mxu0 %v4706
      %4877 = vmatprep.subr.bf16.mxu0 %v4709
      %4878 = vmatpush1.bf16.msra.mxu0 %v4708
      %4879 = vmatprep.subr.bf16.mxu0 %v4711
      %4880 = vmatpush1.bf16.msra.mxu0 %v4710
      %4881 = vmatprep.subr.bf16.mxu0 %v4713
      %4882 = vmatpush1.bf16.msra.mxu0 %v4712
      %4883 = vmatprep.subr.bf16.mxu0 %v4715
      %4884 = vmatpush1.bf16.msra.mxu0 %v4714
      %4885 = vmatprep.subr.bf16.mxu0 %v4717
      %4886 = vmatpush1.bf16.msra.mxu0 %v4716
      %4887 = vmatprep.subr.bf16.mxu0 %v4719
      %4888 = vmatpush1.bf16.msra.mxu0 %v4718
      %4889 = vmatprep.subr.bf16.mxu0 %v4721
      %4890 = vmatpush1.bf16.msra.mxu0 %v4720
      %4891 = vmatprep.subr.bf16.mxu0 %v4723
      %4892 = vmatpush1.bf16.msra.mxu0 %v4722
      %4893 = vmatprep.subr.bf16.mxu0 %v4725
      %4894 = vmatpush1.bf16.msra.mxu0 %v4724
      %4895 = vmatprep.subr.bf16.mxu0 %v4727
      %4896 = vmatpush1.bf16.msra.mxu0 %v4726
      %4897 = vmatprep.mubr.bf16.mxu0 %v4417
      %4898 = vmatmul.mubr.bf16.gmra.mrb[0].mxu0 %v4416
      %v4899 = vpop.f32.mrb[0].mxu0
      %v4900 = vadd.f32 %v4859, %v4899
      %v4901 = vpop.f32.mrb[0].mxu0
      %v4902 = vadd.f32 %v4861, %v4901
      %v4903 = vpop.f32.mrb[0].mxu0
      %v4904 = vpop.f32.mrb[0].mxu0
      %4905 = vdwg.mxu0
      %4906 = vmatprep.subr.bf16.mxu0 %v4729
      %4907 = vmatpush1.bf16.msra.mxu0 %v4728
      %4908 = vmatprep.subr.bf16.mxu0 %v4731
      %4909 = vmatpush1.bf16.msra.mxu0 %v4730
      %4910 = vmatprep.subr.bf16.mxu0 %v4733
      %4911 = vmatpush1.bf16.msra.mxu0 %v4732
      %4912 = vmatprep.subr.bf16.mxu0 %v4735
      %4913 = vmatpush1.bf16.msra.mxu0 %v4734
      %4914 = vmatprep.subr.bf16.mxu0 %v4737
      %4915 = vmatpush1.bf16.msra.mxu0 %v4736
      %4916 = vmatprep.subr.bf16.mxu0 %v4739
      %4917 = vmatpush1.bf16.msra.mxu0 %v4738
      %4918 = vmatprep.subr.bf16.mxu0 %v4741
      %4919 = vmatpush1.bf16.msra.mxu0 %v4740
      %4920 = vmatprep.subr.bf16.mxu0 %v4743
      %4921 = vmatpush1.bf16.msra.mxu0 %v4742
      %4922 = vmatprep.subr.bf16.mxu0 0
      %4923 = vmatpush1.bf16.msra.mxu0 0
      %4924 = vmatprep.subr.bf16.mxu0 0
      %4925 = vmatpush1.bf16.msra.mxu0 0
      %4926 = vmatprep.subr.bf16.mxu0 0
      %4927 = vmatpush1.bf16.msra.mxu0 0
      %4928 = vmatprep.subr.bf16.mxu0 0
      %4929 = vmatpush1.bf16.msra.mxu0 0
      %4930 = vmatprep.subr.bf16.mxu0 0
      %4931 = vmatpush1.bf16.msra.mxu0 0
      %4932 = vmatprep.subr.bf16.mxu0 0
      %4933 = vmatpush1.bf16.msra.mxu0 0
      %4934 = vmatprep.subr.bf16.mxu0 0
      %4935 = vmatpush1.bf16.msra.mxu0 0
      %4936 = vmatprep.subr.bf16.mxu0 0
      %4937 = vmatpush1.bf16.msra.mxu0 0
      %4938 = vmatprep.mubr.bf16.mxu0 0
      %4939 = vmatmul.mubr.bf16.gmra.mrb[0].mxu0 %v4418
      %v4940 = vpop.f32.mrb[0].mxu0
      %v4941 = vadd.f32 %v4900, %v4940
      %v4942 = vpop.f32.mrb[0].mxu0
      %v4943 = vadd.f32 %v4902, %v4942
      %v4944 = vpop.f32.mrb[0].mxu0
      %v4945 = vpop.f32.mrb[0].mxu0
      %4946 = vdwg.mxu0
      %v4947 = vadd.f32 %v4331, %v4941
      %v4948 = vadd.f32 %v4332, %v4943
      %s4949 = scalar_lea.vmem %s6, 3840
      %v4950 = vld [vmem:[%s4949] sm:$0xff]
      %v4951 = vld [vmem:[%s4949 + $0x8] sm:$0xff]
      %v4952 = vld [vmem:[%s4949 + $0x10] sm:$0xff]
      %v4953 = vld [vmem:[%s4949 + $0x18] sm:$0xff]
      %v4954 = vld [vmem:[%s4949 + $0x20] sm:$0xff]
      %v4955 = vld [vmem:[%s4949 + $0x28] sm:$0xff]
      %v4956 = vld [vmem:[%s4949 + $0x30] sm:$0xff]
      %v4957 = vld [vmem:[%s4949 + $0x38] sm:$0xff]
      %v4958 = vld [vmem:[%s4949 + $0x40] sm:$0xff]
      %v4959 = vld [vmem:[%s4949 + $0x48] sm:$0xff]
      %v4960 = vld [vmem:[%s4949 + $0x50] sm:$0xff]
      %v4961 = vld [vmem:[%s4949 + $0x58] sm:$0xff]
      %v4962 = vld [vmem:[%s4949 + $0x60] sm:$0xff]
      %v4963 = vld [vmem:[%s4949 + $0x68] sm:$0xff]
      %v4964 = vld [vmem:[%s4949 + $0x70] sm:$0xff]
      %v4965 = vld [vmem:[%s4949 + $0x78] sm:$0xff]
      %v4966 = vld [vmem:[%s4949 + $0x80] sm:$0xff]
      %v4967 = vld [vmem:[%s4949 + $0x88] sm:$0xff]
      %v4968 = vld [vmem:[%s4949 + $0x90] sm:$0xff]
      %v4969 = vld [vmem:[%s4949 + $0x98] sm:$0xff]
      %v4970 = vld [vmem:[%s4949 + $0xa0] sm:$0xff]
      %v4971 = vld [vmem:[%s4949 + $0xa8] sm:$0xff]
      %v4972 = vld [vmem:[%s4949 + $0xb0] sm:$0xff]
      %v4973 = vld [vmem:[%s4949 + $0xb8] sm:$0xff]
      %v4974 = vld [vmem:[%s4949 + $0xc0] sm:$0xff]
      %v4975 = vld [vmem:[%s4949 + $0xc8] sm:$0xff]
      %v4976 = vld [vmem:[%s4949 + $0xd0] sm:$0xff]
      %v4977 = vld [vmem:[%s4949 + $0xd8] sm:$0xff]
      %v4978 = vld [vmem:[%s4949 + $0xe0] sm:$0xff]
      %v4979 = vld [vmem:[%s4949 + $0xe8] sm:$0xff]
      %v4980 = vld [vmem:[%s4949 + $0xf0] sm:$0xff]
      %v4981 = vld [vmem:[%s4949 + $0xf8] sm:$0xff]
      %v4982 = vld [vmem:[%s4949 + $0x100] sm:$0xff]
      %v4983 = vld [vmem:[%s4949 + $0x108] sm:$0xff]
      %v4984 = vld [vmem:[%s4949 + $0x110] sm:$0xff]
      %v4985 = vld [vmem:[%s4949 + $0x118] sm:$0xff]
      %v4986 = vld [vmem:[%s4949 + $0x120] sm:$0xff]
      %v4987 = vld [vmem:[%s4949 + $0x128] sm:$0xff]
      %v4988 = vld [vmem:[%s4949 + $0x130] sm:$0xff]
      %v4989 = vld [vmem:[%s4949 + $0x138] sm:$0xff]
      %v4990 = vld [vmem:[%s4949 + $0x140] sm:$0xff]
      %v4991 = vld [vmem:[%s4949 + $0x148] sm:$0xff]
      %v4992 = vld [vmem:[%s4949 + $0x150] sm:$0xff]
      %v4993 = vld [vmem:[%s4949 + $0x158] sm:$0xff]
      %v4994 = vld [vmem:[%s4949 + $0x160] sm:$0xff]
      %v4995 = vld [vmem:[%s4949 + $0x168] sm:$0xff]
      %v4996 = vld [vmem:[%s4949 + $0x170] sm:$0xff]
      %v4997 = vld [vmem:[%s4949 + $0x178] sm:$0xff]
      %v4998 = vld [vmem:[%s4949 + $0x180] sm:$0xff]
      %v4999 = vld [vmem:[%s4949 + $0x188] sm:$0xff]
      %v5000 = vld [vmem:[%s4949 + $0x190] sm:$0xff]
      %v5001 = vld [vmem:[%s4949 + $0x198] sm:$0xff]
      %v5002 = vld [vmem:[%s4949 + $0x1a0] sm:$0xff]
      %v5003 = vld [vmem:[%s4949 + $0x1a8] sm:$0xff]
      %v5004 = vld [vmem:[%s4949 + $0x1b0] sm:$0xff]
      %v5005 = vld [vmem:[%s4949 + $0x1b8] sm:$0xff]
      %v5006 = vld [vmem:[%s4949 + $0x1c0] sm:$0xff]
      %v5007 = vld [vmem:[%s4949 + $0x1c8] sm:$0xff]
      %v5008 = vld [vmem:[%s4949 + $0x1d0] sm:$0xff]
      %v5009 = vld [vmem:[%s4949 + $0x1d8] sm:$0xff]
      %v5010 = vld [vmem:[%s4949 + $0x1e0] sm:$0xff]
      %v5011 = vld [vmem:[%s4949 + $0x1e8] sm:$0xff]
      %v5012 = vld [vmem:[%s4949 + $0x1f0] sm:$0xff]
      %v5013 = vld [vmem:[%s4949 + $0x1f8] sm:$0xff]
      %v5014 = vld [vmem:[%s4949 + $0x200] sm:$0xff]
      %v5015 = vld [vmem:[%s4949 + $0x208] sm:$0xff]
      %v5016 = vld [vmem:[%s4949 + $0x210] sm:$0xff]
      %v5017 = vld [vmem:[%s4949 + $0x218] sm:$0xff]
      %v5018 = vld [vmem:[%s4949 + $0x220] sm:$0xff]
      %v5019 = vld [vmem:[%s4949 + $0x228] sm:$0xff]
      %v5020 = vld [vmem:[%s4949 + $0x230] sm:$0xff]
      %v5021 = vld [vmem:[%s4949 + $0x238] sm:$0xff]
      %v5022 = vld [vmem:[%s4949 + $0x240] sm:$0xff]
      %v5023 = vld [vmem:[%s4949 + $0x248] sm:$0xff]
      %v5024 = vld [vmem:[%s4949 + $0x250] sm:$0xff]
      %v5025 = vld [vmem:[%s4949 + $0x258] sm:$0xff]
      %v5026 = vld [vmem:[%s4949 + $0x260] sm:$0xff]
      %v5027 = vld [vmem:[%s4949 + $0x268] sm:$0xff]
      %v5028 = vld [vmem:[%s4949 + $0x270] sm:$0xff]
      %v5029 = vld [vmem:[%s4949 + $0x278] sm:$0xff]
      %v5030 = vrot.slane %v1243, 3
      %v5031 = vrot.slane %v1244, 3
      %v5032 = vrot.slane %v1245, 3
      %v5033 = vrot.slane %v1246, 3
      %v5034 = vrot.slane %v1247, 3
      %v5120 = vunpack.c.l.b16 %v4950
      %v5121 = vunpack.c.h.b16 %v4950
      %v5122 = vunpack.c.l.b16 %v4951
      %v5123 = vunpack.c.h.b16 %v4951
      %v5124 = vunpack.c.l.b16 %v4952
      %v5125 = vunpack.c.h.b16 %v4952
      %v5126 = vunpack.c.l.b16 %v4953
      %v5127 = vunpack.c.h.b16 %v4953
      %v5128 = vunpack.c.l.b16 %v4954
      %v5129 = vunpack.c.h.b16 %v4954
      %v5130 = vunpack.c.l.b16 %v4955
      %v5131 = vunpack.c.h.b16 %v4955
      %v5132 = vunpack.c.l.b16 %v4956
      %v5133 = vunpack.c.h.b16 %v4956
      %v5134 = vunpack.c.l.b16 %v4957
      %v5135 = vunpack.c.h.b16 %v4957
      %v5136 = vunpack.c.l.b16 %v4958
      %v5137 = vunpack.c.h.b16 %v4958
      %v5138 = vunpack.c.l.b16 %v4959
      %v5139 = vunpack.c.h.b16 %v4959
      %v5140 = vunpack.c.l.b16 %v4960
      %v5141 = vunpack.c.h.b16 %v4960
      %v5142 = vunpack.c.l.b16 %v4961
      %v5143 = vunpack.c.h.b16 %v4961
      %v5144 = vunpack.c.l.b16 %v4962
      %v5145 = vunpack.c.h.b16 %v4962
      %v5146 = vunpack.c.l.b16 %v4963
      %v5147 = vunpack.c.h.b16 %v4963
      %v5148 = vunpack.c.l.b16 %v4964
      %v5149 = vunpack.c.h.b16 %v4964
      %v5150 = vunpack.c.l.b16 %v4965
      %v5151 = vunpack.c.h.b16 %v4965
      %v5152 = vunpack.c.l.b16 %v4966
      %v5153 = vunpack.c.h.b16 %v4966
      %v5154 = vunpack.c.l.b16 %v4967
      %v5155 = vunpack.c.h.b16 %v4967
      %v5156 = vunpack.c.l.b16 %v4968
      %v5157 = vunpack.c.h.b16 %v4968
      %v5158 = vunpack.c.l.b16 %v4969
      %v5159 = vunpack.c.h.b16 %v4969
      %v5160 = vunpack.c.l.b16 %v4970
      %v5161 = vunpack.c.h.b16 %v4970
      %v5162 = vunpack.c.l.b16 %v4971
      %v5163 = vunpack.c.h.b16 %v4971
      %v5164 = vunpack.c.l.b16 %v4972
      %v5165 = vunpack.c.h.b16 %v4972
      %v5166 = vunpack.c.l.b16 %v4973
      %v5167 = vunpack.c.h.b16 %v4973
      %v5168 = vunpack.c.l.b16 %v4974
      %v5169 = vunpack.c.h.b16 %v4974
      %v5170 = vunpack.c.l.b16 %v4975
      %v5171 = vunpack.c.h.b16 %v4975
      %v5172 = vunpack.c.l.b16 %v4976
      %v5173 = vunpack.c.h.b16 %v4976
      %v5174 = vunpack.c.l.b16 %v4977
      %v5175 = vunpack.c.h.b16 %v4977
      %v5176 = vunpack.c.l.b16 %v4978
      %v5177 = vunpack.c.h.b16 %v4978
      %v5178 = vunpack.c.l.b16 %v4979
      %v5179 = vunpack.c.h.b16 %v4979
      %v5180 = vunpack.c.l.b16 %v4980
      %v5181 = vunpack.c.h.b16 %v4980
      %v5182 = vunpack.c.l.b16 %v4981
      %v5183 = vunpack.c.h.b16 %v4981
      %v5184 = vunpack.c.l.b16 %v4982
      %v5185 = vunpack.c.h.b16 %v4982
      %v5186 = vunpack.c.l.b16 %v4983
      %v5187 = vunpack.c.h.b16 %v4983
      %v5188 = vunpack.c.l.b16 %v4984
      %v5189 = vunpack.c.h.b16 %v4984
      %v5190 = vunpack.c.l.b16 %v4985
      %v5191 = vunpack.c.h.b16 %v4985
      %v5192 = vunpack.c.l.b16 %v4986
      %v5193 = vunpack.c.h.b16 %v4986
      %v5194 = vunpack.c.l.b16 %v4987
      %v5195 = vunpack.c.h.b16 %v4987
      %v5196 = vunpack.c.l.b16 %v4988
      %v5197 = vunpack.c.h.b16 %v4988
      %v5198 = vunpack.c.l.b16 %v4989
      %v5199 = vunpack.c.h.b16 %v4989
      %v5200 = vunpack.c.l.b16 %v4990
      %v5201 = vunpack.c.h.b16 %v4990
      %v5202 = vunpack.c.l.b16 %v4991
      %v5203 = vunpack.c.h.b16 %v4991
      %v5204 = vunpack.c.l.b16 %v4992
      %v5205 = vunpack.c.h.b16 %v4992
      %v5206 = vunpack.c.l.b16 %v4993
      %v5207 = vunpack.c.h.b16 %v4993
      %v5208 = vunpack.c.l.b16 %v4994
      %v5209 = vunpack.c.h.b16 %v4994
      %v5210 = vunpack.c.l.b16 %v4995
      %v5211 = vunpack.c.h.b16 %v4995
      %v5212 = vunpack.c.l.b16 %v4996
      %v5213 = vunpack.c.h.b16 %v4996
      %v5214 = vunpack.c.l.b16 %v4997
      %v5215 = vunpack.c.h.b16 %v4997
      %v5216 = vunpack.c.l.b16 %v4998
      %v5217 = vunpack.c.h.b16 %v4998
      %v5218 = vunpack.c.l.b16 %v4999
      %v5219 = vunpack.c.h.b16 %v4999
      %v5220 = vunpack.c.l.b16 %v5000
      %v5221 = vunpack.c.h.b16 %v5000
      %v5222 = vunpack.c.l.b16 %v5001
      %v5223 = vunpack.c.h.b16 %v5001
      %v5224 = vunpack.c.l.b16 %v5002
      %v5225 = vunpack.c.h.b16 %v5002
      %v5226 = vunpack.c.l.b16 %v5003
      %v5227 = vunpack.c.h.b16 %v5003
      %v5228 = vunpack.c.l.b16 %v5004
      %v5229 = vunpack.c.h.b16 %v5004
      %v5230 = vunpack.c.l.b16 %v5005
      %v5231 = vunpack.c.h.b16 %v5005
      %v5232 = vunpack.c.l.b16 %v5006
      %v5233 = vunpack.c.h.b16 %v5006
      %v5234 = vunpack.c.l.b16 %v5007
      %v5235 = vunpack.c.h.b16 %v5007
      %v5236 = vunpack.c.l.b16 %v5008
      %v5237 = vunpack.c.h.b16 %v5008
      %v5238 = vunpack.c.l.b16 %v5009
      %v5239 = vunpack.c.h.b16 %v5009
      %v5240 = vunpack.c.l.b16 %v5010
      %v5241 = vunpack.c.h.b16 %v5010
      %v5242 = vunpack.c.l.b16 %v5011
      %v5243 = vunpack.c.h.b16 %v5011
      %v5244 = vunpack.c.l.b16 %v5012
      %v5245 = vunpack.c.h.b16 %v5012
      %v5246 = vunpack.c.l.b16 %v5013
      %v5247 = vunpack.c.h.b16 %v5013
      %v5248 = vunpack.c.l.b16 %v5014
      %v5249 = vunpack.c.h.b16 %v5014
      %v5250 = vunpack.c.l.b16 %v5015
      %v5251 = vunpack.c.h.b16 %v5015
      %v5252 = vunpack.c.l.b16 %v5016
      %v5253 = vunpack.c.h.b16 %v5016
      %v5254 = vunpack.c.l.b16 %v5017
      %v5255 = vunpack.c.h.b16 %v5017
      %v5256 = vunpack.c.l.b16 %v5018
      %v5257 = vunpack.c.h.b16 %v5018
      %v5258 = vunpack.c.l.b16 %v5019
      %v5259 = vunpack.c.h.b16 %v5019
      %v5260 = vunpack.c.l.b16 %v5020
      %v5261 = vunpack.c.h.b16 %v5020
      %v5262 = vunpack.c.l.b16 %v5021
      %v5263 = vunpack.c.h.b16 %v5021
      %v5264 = vunpack.c.l.b16 %v5022
      %v5265 = vunpack.c.h.b16 %v5022
      %v5266 = vunpack.c.l.b16 %v5023
      %v5267 = vunpack.c.h.b16 %v5023
      %v5268 = vunpack.c.l.b16 %v5024
      %v5269 = vunpack.c.h.b16 %v5024
      %v5270 = vunpack.c.l.b16 %v5025
      %v5271 = vunpack.c.h.b16 %v5025
      %v5272 = vunpack.c.l.b16 %v5026
      %v5273 = vunpack.c.h.b16 %v5026
      %v5274 = vunpack.c.l.b16 %v5027
      %v5275 = vunpack.c.h.b16 %v5027
      %v5276 = vunpack.c.l.b16 %v5028
      %v5277 = vunpack.c.h.b16 %v5028
      %v5278 = vunpack.c.l.b16 %v5029
      %v5279 = vunpack.c.h.b16 %v5029
      %v5280 = vpack.c.b16 %v5122, %v5120
      %v5281 = vpack.c.b16 %v5123, %v5121
      %v5282 = vpack.c.b16 %v5126, %v5124
      %v5283 = vpack.c.b16 %v5127, %v5125
      %v5284 = vpack.c.b16 %v5130, %v5128
      %v5285 = vpack.c.b16 %v5131, %v5129
      %v5286 = vpack.c.b16 %v5134, %v5132
      %v5287 = vpack.c.b16 %v5135, %v5133
      %v5288 = vpack.c.b16 %v5138, %v5136
      %v5289 = vpack.c.b16 %v5139, %v5137
      %v5290 = vpack.c.b16 %v5142, %v5140
      %v5291 = vpack.c.b16 %v5143, %v5141
      %v5292 = vpack.c.b16 %v5146, %v5144
      %v5293 = vpack.c.b16 %v5147, %v5145
      %v5294 = vpack.c.b16 %v5150, %v5148
      %v5295 = vpack.c.b16 %v5151, %v5149
      %v5296 = vpack.c.b16 %v5154, %v5152
      %v5297 = vpack.c.b16 %v5155, %v5153
      %v5298 = vpack.c.b16 %v5158, %v5156
      %v5299 = vpack.c.b16 %v5159, %v5157
      %v5300 = vpack.c.b16 %v5162, %v5160
      %v5301 = vpack.c.b16 %v5163, %v5161
      %v5302 = vpack.c.b16 %v5166, %v5164
      %v5303 = vpack.c.b16 %v5167, %v5165
      %v5304 = vpack.c.b16 %v5170, %v5168
      %v5305 = vpack.c.b16 %v5171, %v5169
      %v5306 = vpack.c.b16 %v5174, %v5172
      %v5307 = vpack.c.b16 %v5175, %v5173
      %v5308 = vpack.c.b16 %v5178, %v5176
      %v5309 = vpack.c.b16 %v5179, %v5177
      %v5310 = vpack.c.b16 %v5182, %v5180
      %v5311 = vpack.c.b16 %v5183, %v5181
      %v5312 = vpack.c.b16 %v5186, %v5184
      %v5313 = vpack.c.b16 %v5187, %v5185
      %v5314 = vpack.c.b16 %v5190, %v5188
      %v5315 = vpack.c.b16 %v5191, %v5189
      %v5316 = vpack.c.b16 %v5194, %v5192
      %v5317 = vpack.c.b16 %v5195, %v5193
      %v5318 = vpack.c.b16 %v5198, %v5196
      %v5319 = vpack.c.b16 %v5199, %v5197
      %v5320 = vpack.c.b16 %v5202, %v5200
      %v5321 = vpack.c.b16 %v5203, %v5201
      %v5322 = vpack.c.b16 %v5206, %v5204
      %v5323 = vpack.c.b16 %v5207, %v5205
      %v5324 = vpack.c.b16 %v5210, %v5208
      %v5325 = vpack.c.b16 %v5211, %v5209
      %v5326 = vpack.c.b16 %v5214, %v5212
      %v5327 = vpack.c.b16 %v5215, %v5213
      %v5328 = vpack.c.b16 %v5218, %v5216
      %v5329 = vpack.c.b16 %v5219, %v5217
      %v5330 = vpack.c.b16 %v5222, %v5220
      %v5331 = vpack.c.b16 %v5223, %v5221
      %v5332 = vpack.c.b16 %v5226, %v5224
      %v5333 = vpack.c.b16 %v5227, %v5225
      %v5334 = vpack.c.b16 %v5230, %v5228
      %v5335 = vpack.c.b16 %v5231, %v5229
      %v5336 = vpack.c.b16 %v5234, %v5232
      %v5337 = vpack.c.b16 %v5235, %v5233
      %v5338 = vpack.c.b16 %v5238, %v5236
      %v5339 = vpack.c.b16 %v5239, %v5237
      %v5340 = vpack.c.b16 %v5242, %v5240
      %v5341 = vpack.c.b16 %v5243, %v5241
      %v5342 = vpack.c.b16 %v5246, %v5244
      %v5343 = vpack.c.b16 %v5247, %v5245
      %v5344 = vpack.c.b16 %v5250, %v5248
      %v5345 = vpack.c.b16 %v5251, %v5249
      %v5346 = vpack.c.b16 %v5254, %v5252
      %v5347 = vpack.c.b16 %v5255, %v5253
      %v5348 = vpack.c.b16 %v5258, %v5256
      %v5349 = vpack.c.b16 %v5259, %v5257
      %v5350 = vpack.c.b16 %v5262, %v5260
      %v5351 = vpack.c.b16 %v5263, %v5261
      %v5352 = vpack.c.b16 %v5266, %v5264
      %v5353 = vpack.c.b16 %v5267, %v5265
      %v5354 = vpack.c.b16 %v5270, %v5268
      %v5355 = vpack.c.b16 %v5271, %v5269
      %v5356 = vpack.c.b16 %v5274, %v5272
      %v5357 = vpack.c.b16 %v5275, %v5273
      %v5358 = vpack.c.b16 %v5278, %v5276
      %v5359 = vpack.c.b16 %v5279, %v5277
      %5440 = vmatprep.subr.bf16.mxu0 %v5281
      %5441 = vmatpush1.bf16.msra.mxu0 %v5280
      %5442 = vmatprep.subr.bf16.mxu0 %v5283
      %5443 = vmatpush1.bf16.msra.mxu0 %v5282
      %5444 = vmatprep.subr.bf16.mxu0 %v5285
      %5445 = vmatpush1.bf16.msra.mxu0 %v5284
      %5446 = vmatprep.subr.bf16.mxu0 %v5287
      %5447 = vmatpush1.bf16.msra.mxu0 %v5286
      %5448 = vmatprep.subr.bf16.mxu0 %v5289
      %5449 = vmatpush1.bf16.msra.mxu0 %v5288
      %5450 = vmatprep.subr.bf16.mxu0 %v5291
      %5451 = vmatpush1.bf16.msra.mxu0 %v5290
      %5452 = vmatprep.subr.bf16.mxu0 %v5293
      %5453 = vmatpush1.bf16.msra.mxu0 %v5292
      %5454 = vmatprep.subr.bf16.mxu0 %v5295
      %5455 = vmatpush1.bf16.msra.mxu0 %v5294
      %5456 = vmatprep.subr.bf16.mxu0 %v5297
      %5457 = vmatpush1.bf16.msra.mxu0 %v5296
      %5458 = vmatprep.subr.bf16.mxu0 %v5299
      %5459 = vmatpush1.bf16.msra.mxu0 %v5298
      %5460 = vmatprep.subr.bf16.mxu0 %v5301
      %5461 = vmatpush1.bf16.msra.mxu0 %v5300
      %5462 = vmatprep.subr.bf16.mxu0 %v5303
      %5463 = vmatpush1.bf16.msra.mxu0 %v5302
      %5464 = vmatprep.subr.bf16.mxu0 %v5305
      %5465 = vmatpush1.bf16.msra.mxu0 %v5304
      %5466 = vmatprep.subr.bf16.mxu0 %v5307
      %5467 = vmatpush1.bf16.msra.mxu0 %v5306
      %5468 = vmatprep.subr.bf16.mxu0 %v5309
      %5469 = vmatpush1.bf16.msra.mxu0 %v5308
      %5470 = vmatprep.subr.bf16.mxu0 %v5311
      %5471 = vmatpush1.bf16.msra.mxu0 %v5310
      %5472 = vmatprep.mubr.bf16.mxu0 %v5031
      %5473 = vmatmul.mubr.bf16.gmra.mrb[0].mxu0 %v5030
      %v5474 = vpop.f32.mrb[0].mxu0
      %v5475 = vadd.f32 0.0, %v5474
      %v5476 = vpop.f32.mrb[0].mxu0
      %v5477 = vadd.f32 0.0, %v5476
      %v5478 = vpop.f32.mrb[0].mxu0
      %v5479 = vpop.f32.mrb[0].mxu0
      %5480 = vdwg.mxu0
      %5481 = vmatprep.subr.bf16.mxu0 %v5313
      %5482 = vmatpush1.bf16.msra.mxu0 %v5312
      %5483 = vmatprep.subr.bf16.mxu0 %v5315
      %5484 = vmatpush1.bf16.msra.mxu0 %v5314
      %5485 = vmatprep.subr.bf16.mxu0 %v5317
      %5486 = vmatpush1.bf16.msra.mxu0 %v5316
      %5487 = vmatprep.subr.bf16.mxu0 %v5319
      %5488 = vmatpush1.bf16.msra.mxu0 %v5318
      %5489 = vmatprep.subr.bf16.mxu0 %v5321
      %5490 = vmatpush1.bf16.msra.mxu0 %v5320
      %5491 = vmatprep.subr.bf16.mxu0 %v5323
      %5492 = vmatpush1.bf16.msra.mxu0 %v5322
      %5493 = vmatprep.subr.bf16.mxu0 %v5325
      %5494 = vmatpush1.bf16.msra.mxu0 %v5324
      %5495 = vmatprep.subr.bf16.mxu0 %v5327
      %5496 = vmatpush1.bf16.msra.mxu0 %v5326
      %5497 = vmatprep.subr.bf16.mxu0 %v5329
      %5498 = vmatpush1.bf16.msra.mxu0 %v5328
      %5499 = vmatprep.subr.bf16.mxu0 %v5331
      %5500 = vmatpush1.bf16.msra.mxu0 %v5330
      %5501 = vmatprep.subr.bf16.mxu0 %v5333
      %5502 = vmatpush1.bf16.msra.mxu0 %v5332
      %5503 = vmatprep.subr.bf16.mxu0 %v5335
      %5504 = vmatpush1.bf16.msra.mxu0 %v5334
      %5505 = vmatprep.subr.bf16.mxu0 %v5337
      %5506 = vmatpush1.bf16.msra.mxu0 %v5336
      %5507 = vmatprep.subr.bf16.mxu0 %v5339
      %5508 = vmatpush1.bf16.msra.mxu0 %v5338
      %5509 = vmatprep.subr.bf16.mxu0 %v5341
      %5510 = vmatpush1.bf16.msra.mxu0 %v5340
      %5511 = vmatprep.subr.bf16.mxu0 %v5343
      %5512 = vmatpush1.bf16.msra.mxu0 %v5342
      %5513 = vmatprep.mubr.bf16.mxu0 %v5033
      %5514 = vmatmul.mubr.bf16.gmra.mrb[0].mxu0 %v5032
      %v5515 = vpop.f32.mrb[0].mxu0
      %v5516 = vadd.f32 %v5475, %v5515
      %v5517 = vpop.f32.mrb[0].mxu0
      %v5518 = vadd.f32 %v5477, %v5517
      %v5519 = vpop.f32.mrb[0].mxu0
      %v5520 = vpop.f32.mrb[0].mxu0
      %5521 = vdwg.mxu0
      %5522 = vmatprep.subr.bf16.mxu0 %v5345
      %5523 = vmatpush1.bf16.msra.mxu0 %v5344
      %5524 = vmatprep.subr.bf16.mxu0 %v5347
      %5525 = vmatpush1.bf16.msra.mxu0 %v5346
      %5526 = vmatprep.subr.bf16.mxu0 %v5349
      %5527 = vmatpush1.bf16.msra.mxu0 %v5348
      %5528 = vmatprep.subr.bf16.mxu0 %v5351
      %5529 = vmatpush1.bf16.msra.mxu0 %v5350
      %5530 = vmatprep.subr.bf16.mxu0 %v5353
      %5531 = vmatpush1.bf16.msra.mxu0 %v5352
      %5532 = vmatprep.subr.bf16.mxu0 %v5355
      %5533 = vmatpush1.bf16.msra.mxu0 %v5354
      %5534 = vmatprep.subr.bf16.mxu0 %v5357
      %5535 = vmatpush1.bf16.msra.mxu0 %v5356
      %5536 = vmatprep.subr.bf16.mxu0 %v5359
      %5537 = vmatpush1.bf16.msra.mxu0 %v5358
      %5538 = vmatprep.subr.bf16.mxu0 0
      %5539 = vmatpush1.bf16.msra.mxu0 0
      %5540 = vmatprep.subr.bf16.mxu0 0
      %5541 = vmatpush1.bf16.msra.mxu0 0
      %5542 = vmatprep.subr.bf16.mxu0 0
      %5543 = vmatpush1.bf16.msra.mxu0 0
      %5544 = vmatprep.subr.bf16.mxu0 0
      %5545 = vmatpush1.bf16.msra.mxu0 0
      %5546 = vmatprep.subr.bf16.mxu0 0
      %5547 = vmatpush1.bf16.msra.mxu0 0
      %5548 = vmatprep.subr.bf16.mxu0 0
      %5549 = vmatpush1.bf16.msra.mxu0 0
      %5550 = vmatprep.subr.bf16.mxu0 0
      %5551 = vmatpush1.bf16.msra.mxu0 0
      %5552 = vmatprep.subr.bf16.mxu0 0
      %5553 = vmatpush1.bf16.msra.mxu0 0
      %5554 = vmatprep.mubr.bf16.mxu0 0
      %5555 = vmatmul.mubr.bf16.gmra.mrb[0].mxu0 %v5034
      %v5556 = vpop.f32.mrb[0].mxu0
      %v5557 = vadd.f32 %v5516, %v5556
      %v5558 = vpop.f32.mrb[0].mxu0
      %v5559 = vadd.f32 %v5518, %v5558
      %v5560 = vpop.f32.mrb[0].mxu0
      %v5561 = vpop.f32.mrb[0].mxu0
      %5562 = vdwg.mxu0
      %v5563 = vadd.f32 %v4947, %v5557
      %v5564 = vadd.f32 %v4948, %v5559
      %s5565 = scalar_lea.vmem %s6, 4480
      %v5566 = vld [vmem:[%s5565] sm:$0xff]
      %v5567 = vld [vmem:[%s5565 + $0x8] sm:$0xff]
      %v5568 = vld [vmem:[%s5565 + $0x10] sm:$0xff]
      %v5569 = vld [vmem:[%s5565 + $0x18] sm:$0xff]
      %v5570 = vld [vmem:[%s5565 + $0x20] sm:$0xff]
      %v5571 = vld [vmem:[%s5565 + $0x28] sm:$0xff]
      %v5572 = vld [vmem:[%s5565 + $0x30] sm:$0xff]
      %v5573 = vld [vmem:[%s5565 + $0x38] sm:$0xff]
      %v5574 = vld [vmem:[%s5565 + $0x40] sm:$0xff]
      %v5575 = vld [vmem:[%s5565 + $0x48] sm:$0xff]
      %v5576 = vld [vmem:[%s5565 + $0x50] sm:$0xff]
      %v5577 = vld [vmem:[%s5565 + $0x58] sm:$0xff]
      %v5578 = vld [vmem:[%s5565 + $0x60] sm:$0xff]
      %v5579 = vld [vmem:[%s5565 + $0x68] sm:$0xff]
      %v5580 = vld [vmem:[%s5565 + $0x70] sm:$0xff]
      %v5581 = vld [vmem:[%s5565 + $0x78] sm:$0xff]
      %v5582 = vld [vmem:[%s5565 + $0x80] sm:$0xff]
      %v5583 = vld [vmem:[%s5565 + $0x88] sm:$0xff]
      %v5584 = vld [vmem:[%s5565 + $0x90] sm:$0xff]
      %v5585 = vld [vmem:[%s5565 + $0x98] sm:$0xff]
      %v5586 = vld [vmem:[%s5565 + $0xa0] sm:$0xff]
      %v5587 = vld [vmem:[%s5565 + $0xa8] sm:$0xff]
      %v5588 = vld [vmem:[%s5565 + $0xb0] sm:$0xff]
      %v5589 = vld [vmem:[%s5565 + $0xb8] sm:$0xff]
      %v5590 = vld [vmem:[%s5565 + $0xc0] sm:$0xff]
      %v5591 = vld [vmem:[%s5565 + $0xc8] sm:$0xff]
      %v5592 = vld [vmem:[%s5565 + $0xd0] sm:$0xff]
      %v5593 = vld [vmem:[%s5565 + $0xd8] sm:$0xff]
      %v5594 = vld [vmem:[%s5565 + $0xe0] sm:$0xff]
      %v5595 = vld [vmem:[%s5565 + $0xe8] sm:$0xff]
      %v5596 = vld [vmem:[%s5565 + $0xf0] sm:$0xff]
      %v5597 = vld [vmem:[%s5565 + $0xf8] sm:$0xff]
      %v5598 = vld [vmem:[%s5565 + $0x100] sm:$0xff]
      %v5599 = vld [vmem:[%s5565 + $0x108] sm:$0xff]
      %v5600 = vld [vmem:[%s5565 + $0x110] sm:$0xff]
      %v5601 = vld [vmem:[%s5565 + $0x118] sm:$0xff]
      %v5602 = vld [vmem:[%s5565 + $0x120] sm:$0xff]
      %v5603 = vld [vmem:[%s5565 + $0x128] sm:$0xff]
      %v5604 = vld [vmem:[%s5565 + $0x130] sm:$0xff]
      %v5605 = vld [vmem:[%s5565 + $0x138] sm:$0xff]
      %v5606 = vld [vmem:[%s5565 + $0x140] sm:$0xff]
      %v5607 = vld [vmem:[%s5565 + $0x148] sm:$0xff]
      %v5608 = vld [vmem:[%s5565 + $0x150] sm:$0xff]
      %v5609 = vld [vmem:[%s5565 + $0x158] sm:$0xff]
      %v5610 = vld [vmem:[%s5565 + $0x160] sm:$0xff]
      %v5611 = vld [vmem:[%s5565 + $0x168] sm:$0xff]
      %v5612 = vld [vmem:[%s5565 + $0x170] sm:$0xff]
      %v5613 = vld [vmem:[%s5565 + $0x178] sm:$0xff]
      %v5614 = vld [vmem:[%s5565 + $0x180] sm:$0xff]
      %v5615 = vld [vmem:[%s5565 + $0x188] sm:$0xff]
      %v5616 = vld [vmem:[%s5565 + $0x190] sm:$0xff]
      %v5617 = vld [vmem:[%s5565 + $0x198] sm:$0xff]
      %v5618 = vld [vmem:[%s5565 + $0x1a0] sm:$0xff]
      %v5619 = vld [vmem:[%s5565 + $0x1a8] sm:$0xff]
      %v5620 = vld [vmem:[%s5565 + $0x1b0] sm:$0xff]
      %v5621 = vld [vmem:[%s5565 + $0x1b8] sm:$0xff]
      %v5622 = vld [vmem:[%s5565 + $0x1c0] sm:$0xff]
      %v5623 = vld [vmem:[%s5565 + $0x1c8] sm:$0xff]
      %v5624 = vld [vmem:[%s5565 + $0x1d0] sm:$0xff]
      %v5625 = vld [vmem:[%s5565 + $0x1d8] sm:$0xff]
      %v5626 = vld [vmem:[%s5565 + $0x1e0] sm:$0xff]
      %v5627 = vld [vmem:[%s5565 + $0x1e8] sm:$0xff]
      %v5628 = vld [vmem:[%s5565 + $0x1f0] sm:$0xff]
      %v5629 = vld [vmem:[%s5565 + $0x1f8] sm:$0xff]
      %v5630 = vld [vmem:[%s5565 + $0x200] sm:$0xff]
      %v5631 = vld [vmem:[%s5565 + $0x208] sm:$0xff]
      %v5632 = vld [vmem:[%s5565 + $0x210] sm:$0xff]
      %v5633 = vld [vmem:[%s5565 + $0x218] sm:$0xff]
      %v5634 = vld [vmem:[%s5565 + $0x220] sm:$0xff]
      %v5635 = vld [vmem:[%s5565 + $0x228] sm:$0xff]
      %v5636 = vld [vmem:[%s5565 + $0x230] sm:$0xff]
      %v5637 = vld [vmem:[%s5565 + $0x238] sm:$0xff]
      %v5638 = vld [vmem:[%s5565 + $0x240] sm:$0xff]
      %v5639 = vld [vmem:[%s5565 + $0x248] sm:$0xff]
      %v5640 = vld [vmem:[%s5565 + $0x250] sm:$0xff]
      %v5641 = vld [vmem:[%s5565 + $0x258] sm:$0xff]
      %v5642 = vld [vmem:[%s5565 + $0x260] sm:$0xff]
      %v5643 = vld [vmem:[%s5565 + $0x268] sm:$0xff]
      %v5644 = vld [vmem:[%s5565 + $0x270] sm:$0xff]
      %v5645 = vld [vmem:[%s5565 + $0x278] sm:$0xff]
      %v5646 = vrot.slane %v1415, 3
      %v5647 = vrot.slane %v1418, 3
      %v5648 = vrot.slane %v1421, 3
      %v5649 = vrot.slane %v1424, 3
      %v5650 = vrot.slane %v1427, 3
      %v5736 = vunpack.c.l.b16 %v5566
      %v5737 = vunpack.c.h.b16 %v5566
      %v5738 = vunpack.c.l.b16 %v5567
      %v5739 = vunpack.c.h.b16 %v5567
      %v5740 = vunpack.c.l.b16 %v5568
      %v5741 = vunpack.c.h.b16 %v5568
      %v5742 = vunpack.c.l.b16 %v5569
      %v5743 = vunpack.c.h.b16 %v5569
      %v5744 = vunpack.c.l.b16 %v5570
      %v5745 = vunpack.c.h.b16 %v5570
      %v5746 = vunpack.c.l.b16 %v5571
      %v5747 = vunpack.c.h.b16 %v5571
      %v5748 = vunpack.c.l.b16 %v5572
      %v5749 = vunpack.c.h.b16 %v5572
      %v5750 = vunpack.c.l.b16 %v5573
      %v5751 = vunpack.c.h.b16 %v5573
      %v5752 = vunpack.c.l.b16 %v5574
      %v5753 = vunpack.c.h.b16 %v5574
      %v5754 = vunpack.c.l.b16 %v5575
      %v5755 = vunpack.c.h.b16 %v5575
      %v5756 = vunpack.c.l.b16 %v5576
      %v5757 = vunpack.c.h.b16 %v5576
      %v5758 = vunpack.c.l.b16 %v5577
      %v5759 = vunpack.c.h.b16 %v5577
      %v5760 = vunpack.c.l.b16 %v5578
      %v5761 = vunpack.c.h.b16 %v5578
      %v5762 = vunpack.c.l.b16 %v5579
      %v5763 = vunpack.c.h.b16 %v5579
      %v5764 = vunpack.c.l.b16 %v5580
      %v5765 = vunpack.c.h.b16 %v5580
      %v5766 = vunpack.c.l.b16 %v5581
      %v5767 = vunpack.c.h.b16 %v5581
      %v5768 = vunpack.c.l.b16 %v5582
      %v5769 = vunpack.c.h.b16 %v5582
      %v5770 = vunpack.c.l.b16 %v5583
      %v5771 = vunpack.c.h.b16 %v5583
      %v5772 = vunpack.c.l.b16 %v5584
      %v5773 = vunpack.c.h.b16 %v5584
      %v5774 = vunpack.c.l.b16 %v5585
      %v5775 = vunpack.c.h.b16 %v5585
      %v5776 = vunpack.c.l.b16 %v5586
      %v5777 = vunpack.c.h.b16 %v5586
      %v5778 = vunpack.c.l.b16 %v5587
      %v5779 = vunpack.c.h.b16 %v5587
      %v5780 = vunpack.c.l.b16 %v5588
      %v5781 = vunpack.c.h.b16 %v5588
      %v5782 = vunpack.c.l.b16 %v5589
      %v5783 = vunpack.c.h.b16 %v5589
      %v5784 = vunpack.c.l.b16 %v5590
      %v5785 = vunpack.c.h.b16 %v5590
      %v5786 = vunpack.c.l.b16 %v5591
      %v5787 = vunpack.c.h.b16 %v5591
      %v5788 = vunpack.c.l.b16 %v5592
      %v5789 = vunpack.c.h.b16 %v5592
      %v5790 = vunpack.c.l.b16 %v5593
      %v5791 = vunpack.c.h.b16 %v5593
      %v5792 = vunpack.c.l.b16 %v5594
      %v5793 = vunpack.c.h.b16 %v5594
      %v5794 = vunpack.c.l.b16 %v5595
      %v5795 = vunpack.c.h.b16 %v5595
      %v5796 = vunpack.c.l.b16 %v5596
      %v5797 = vunpack.c.h.b16 %v5596
      %v5798 = vunpack.c.l.b16 %v5597
      %v5799 = vunpack.c.h.b16 %v5597
      %v5800 = vunpack.c.l.b16 %v5598
      %v5801 = vunpack.c.h.b16 %v5598
      %v5802 = vunpack.c.l.b16 %v5599
      %v5803 = vunpack.c.h.b16 %v5599
      %v5804 = vunpack.c.l.b16 %v5600
      %v5805 = vunpack.c.h.b16 %v5600
      %v5806 = vunpack.c.l.b16 %v5601
      %v5807 = vunpack.c.h.b16 %v5601
      %v5808 = vunpack.c.l.b16 %v5602
      %v5809 = vunpack.c.h.b16 %v5602
      %v5810 = vunpack.c.l.b16 %v5603
      %v5811 = vunpack.c.h.b16 %v5603
      %v5812 = vunpack.c.l.b16 %v5604
      %v5813 = vunpack.c.h.b16 %v5604
      %v5814 = vunpack.c.l.b16 %v5605
      %v5815 = vunpack.c.h.b16 %v5605
      %v5816 = vunpack.c.l.b16 %v5606
      %v5817 = vunpack.c.h.b16 %v5606
      %v5818 = vunpack.c.l.b16 %v5607
      %v5819 = vunpack.c.h.b16 %v5607
      %v5820 = vunpack.c.l.b16 %v5608
      %v5821 = vunpack.c.h.b16 %v5608
      %v5822 = vunpack.c.l.b16 %v5609
      %v5823 = vunpack.c.h.b16 %v5609
      %v5824 = vunpack.c.l.b16 %v5610
      %v5825 = vunpack.c.h.b16 %v5610
      %v5826 = vunpack.c.l.b16 %v5611
      %v5827 = vunpack.c.h.b16 %v5611
      %v5828 = vunpack.c.l.b16 %v5612
      %v5829 = vunpack.c.h.b16 %v5612
      %v5830 = vunpack.c.l.b16 %v5613
      %v5831 = vunpack.c.h.b16 %v5613
      %v5832 = vunpack.c.l.b16 %v5614
      %v5833 = vunpack.c.h.b16 %v5614
      %v5834 = vunpack.c.l.b16 %v5615
      %v5835 = vunpack.c.h.b16 %v5615
      %v5836 = vunpack.c.l.b16 %v5616
      %v5837 = vunpack.c.h.b16 %v5616
      %v5838 = vunpack.c.l.b16 %v5617
      %v5839 = vunpack.c.h.b16 %v5617
      %v5840 = vunpack.c.l.b16 %v5618
      %v5841 = vunpack.c.h.b16 %v5618
      %v5842 = vunpack.c.l.b16 %v5619
      %v5843 = vunpack.c.h.b16 %v5619
      %v5844 = vunpack.c.l.b16 %v5620
      %v5845 = vunpack.c.h.b16 %v5620
      %v5846 = vunpack.c.l.b16 %v5621
      %v5847 = vunpack.c.h.b16 %v5621
      %v5848 = vunpack.c.l.b16 %v5622
      %v5849 = vunpack.c.h.b16 %v5622
      %v5850 = vunpack.c.l.b16 %v5623
      %v5851 = vunpack.c.h.b16 %v5623
      %v5852 = vunpack.c.l.b16 %v5624
      %v5853 = vunpack.c.h.b16 %v5624
      %v5854 = vunpack.c.l.b16 %v5625
      %v5855 = vunpack.c.h.b16 %v5625
      %v5856 = vunpack.c.l.b16 %v5626
      %v5857 = vunpack.c.h.b16 %v5626
      %v5858 = vunpack.c.l.b16 %v5627
      %v5859 = vunpack.c.h.b16 %v5627
      %v5860 = vunpack.c.l.b16 %v5628
      %v5861 = vunpack.c.h.b16 %v5628
      %v5862 = vunpack.c.l.b16 %v5629
      %v5863 = vunpack.c.h.b16 %v5629
      %v5864 = vunpack.c.l.b16 %v5630
      %v5865 = vunpack.c.h.b16 %v5630
      %v5866 = vunpack.c.l.b16 %v5631
      %v5867 = vunpack.c.h.b16 %v5631
      %v5868 = vunpack.c.l.b16 %v5632
      %v5869 = vunpack.c.h.b16 %v5632
      %v5870 = vunpack.c.l.b16 %v5633
      %v5871 = vunpack.c.h.b16 %v5633
      %v5872 = vunpack.c.l.b16 %v5634
      %v5873 = vunpack.c.h.b16 %v5634
      %v5874 = vunpack.c.l.b16 %v5635
      %v5875 = vunpack.c.h.b16 %v5635
      %v5876 = vunpack.c.l.b16 %v5636
      %v5877 = vunpack.c.h.b16 %v5636
      %v5878 = vunpack.c.l.b16 %v5637
      %v5879 = vunpack.c.h.b16 %v5637
      %v5880 = vunpack.c.l.b16 %v5638
      %v5881 = vunpack.c.h.b16 %v5638
      %v5882 = vunpack.c.l.b16 %v5639
      %v5883 = vunpack.c.h.b16 %v5639
      %v5884 = vunpack.c.l.b16 %v5640
      %v5885 = vunpack.c.h.b16 %v5640
      %v5886 = vunpack.c.l.b16 %v5641
      %v5887 = vunpack.c.h.b16 %v5641
      %v5888 = vunpack.c.l.b16 %v5642
      %v5889 = vunpack.c.h.b16 %v5642
      %v5890 = vunpack.c.l.b16 %v5643
      %v5891 = vunpack.c.h.b16 %v5643
      %v5892 = vunpack.c.l.b16 %v5644
      %v5893 = vunpack.c.h.b16 %v5644
      %v5894 = vunpack.c.l.b16 %v5645
      %v5895 = vunpack.c.h.b16 %v5645
      %v5896 = vpack.c.b16 %v5738, %v5736
      %v5897 = vpack.c.b16 %v5739, %v5737
      %v5898 = vpack.c.b16 %v5742, %v5740
      %v5899 = vpack.c.b16 %v5743, %v5741
      %v5900 = vpack.c.b16 %v5746, %v5744
      %v5901 = vpack.c.b16 %v5747, %v5745
      %v5902 = vpack.c.b16 %v5750, %v5748
      %v5903 = vpack.c.b16 %v5751, %v5749
      %v5904 = vpack.c.b16 %v5754, %v5752
      %v5905 = vpack.c.b16 %v5755, %v5753
      %v5906 = vpack.c.b16 %v5758, %v5756
      %v5907 = vpack.c.b16 %v5759, %v5757
      %v5908 = vpack.c.b16 %v5762, %v5760
      %v5909 = vpack.c.b16 %v5763, %v5761
      %v5910 = vpack.c.b16 %v5766, %v5764
      %v5911 = vpack.c.b16 %v5767, %v5765
      %v5912 = vpack.c.b16 %v5770, %v5768
      %v5913 = vpack.c.b16 %v5771, %v5769
      %v5914 = vpack.c.b16 %v5774, %v5772
      %v5915 = vpack.c.b16 %v5775, %v5773
      %v5916 = vpack.c.b16 %v5778, %v5776
      %v5917 = vpack.c.b16 %v5779, %v5777
      %v5918 = vpack.c.b16 %v5782, %v5780
      %v5919 = vpack.c.b16 %v5783, %v5781
      %v5920 = vpack.c.b16 %v5786, %v5784
      %v5921 = vpack.c.b16 %v5787, %v5785
      %v5922 = vpack.c.b16 %v5790, %v5788
      %v5923 = vpack.c.b16 %v5791, %v5789
      %v5924 = vpack.c.b16 %v5794, %v5792
      %v5925 = vpack.c.b16 %v5795, %v5793
      %v5926 = vpack.c.b16 %v5798, %v5796
      %v5927 = vpack.c.b16 %v5799, %v5797
      %v5928 = vpack.c.b16 %v5802, %v5800
      %v5929 = vpack.c.b16 %v5803, %v5801
      %v5930 = vpack.c.b16 %v5806, %v5804
      %v5931 = vpack.c.b16 %v5807, %v5805
      %v5932 = vpack.c.b16 %v5810, %v5808
      %v5933 = vpack.c.b16 %v5811, %v5809
      %v5934 = vpack.c.b16 %v5814, %v5812
      %v5935 = vpack.c.b16 %v5815, %v5813
      %v5936 = vpack.c.b16 %v5818, %v5816
      %v5937 = vpack.c.b16 %v5819, %v5817
      %v5938 = vpack.c.b16 %v5822, %v5820
      %v5939 = vpack.c.b16 %v5823, %v5821
      %v5940 = vpack.c.b16 %v5826, %v5824
      %v5941 = vpack.c.b16 %v5827, %v5825
      %v5942 = vpack.c.b16 %v5830, %v5828
      %v5943 = vpack.c.b16 %v5831, %v5829
      %v5944 = vpack.c.b16 %v5834, %v5832
      %v5945 = vpack.c.b16 %v5835, %v5833
      %v5946 = vpack.c.b16 %v5838, %v5836
      %v5947 = vpack.c.b16 %v5839, %v5837
      %v5948 = vpack.c.b16 %v5842, %v5840
      %v5949 = vpack.c.b16 %v5843, %v5841
      %v5950 = vpack.c.b16 %v5846, %v5844
      %v5951 = vpack.c.b16 %v5847, %v5845
      %v5952 = vpack.c.b16 %v5850, %v5848
      %v5953 = vpack.c.b16 %v5851, %v5849
      %v5954 = vpack.c.b16 %v5854, %v5852
      %v5955 = vpack.c.b16 %v5855, %v5853
      %v5956 = vpack.c.b16 %v5858, %v5856
      %v5957 = vpack.c.b16 %v5859, %v5857
      %v5958 = vpack.c.b16 %v5862, %v5860
      %v5959 = vpack.c.b16 %v5863, %v5861
      %v5960 = vpack.c.b16 %v5866, %v5864
      %v5961 = vpack.c.b16 %v5867, %v5865
      %v5962 = vpack.c.b16 %v5870, %v5868
      %v5963 = vpack.c.b16 %v5871, %v5869
      %v5964 = vpack.c.b16 %v5874, %v5872
      %v5965 = vpack.c.b16 %v5875, %v5873
      %v5966 = vpack.c.b16 %v5878, %v5876
      %v5967 = vpack.c.b16 %v5879, %v5877
      %v5968 = vpack.c.b16 %v5882, %v5880
      %v5969 = vpack.c.b16 %v5883, %v5881
      %v5970 = vpack.c.b16 %v5886, %v5884
      %v5971 = vpack.c.b16 %v5887, %v5885
      %v5972 = vpack.c.b16 %v5890, %v5888
      %v5973 = vpack.c.b16 %v5891, %v5889
      %v5974 = vpack.c.b16 %v5894, %v5892
      %v5975 = vpack.c.b16 %v5895, %v5893
      %6056 = vmatprep.subr.bf16.mxu0 %v5897
      %6057 = vmatpush1.bf16.msra.mxu0 %v5896
      %6058 = vmatprep.subr.bf16.mxu0 %v5899
      %6059 = vmatpush1.bf16.msra.mxu0 %v5898
      %6060 = vmatprep.subr.bf16.mxu0 %v5901
      %6061 = vmatpush1.bf16.msra.mxu0 %v5900
      %6062 = vmatprep.subr.bf16.mxu0 %v5903
      %6063 = vmatpush1.bf16.msra.mxu0 %v5902
      %6064 = vmatprep.subr.bf16.mxu0 %v5905
      %6065 = vmatpush1.bf16.msra.mxu0 %v5904
      %6066 = vmatprep.subr.bf16.mxu0 %v5907
      %6067 = vmatpush1.bf16.msra.mxu0 %v5906
      %6068 = vmatprep.subr.bf16.mxu0 %v5909
      %6069 = vmatpush1.bf16.msra.mxu0 %v5908
      %6070 = vmatprep.subr.bf16.mxu0 %v5911
      %6071 = vmatpush1.bf16.msra.mxu0 %v5910
      %6072 = vmatprep.subr.bf16.mxu0 %v5913
      %6073 = vmatpush1.bf16.msra.mxu0 %v5912
      %6074 = vmatprep.subr.bf16.mxu0 %v5915
      %6075 = vmatpush1.bf16.msra.mxu0 %v5914
      %6076 = vmatprep.subr.bf16.mxu0 %v5917
      %6077 = vmatpush1.bf16.msra.mxu0 %v5916
      %6078 = vmatprep.subr.bf16.mxu0 %v5919
      %6079 = vmatpush1.bf16.msra.mxu0 %v5918
      %6080 = vmatprep.subr.bf16.mxu0 %v5921
      %6081 = vmatpush1.bf16.msra.mxu0 %v5920
      %6082 = vmatprep.subr.bf16.mxu0 %v5923
      %6083 = vmatpush1.bf16.msra.mxu0 %v5922
      %6084 = vmatprep.subr.bf16.mxu0 %v5925
      %6085 = vmatpush1.bf16.msra.mxu0 %v5924
      %6086 = vmatprep.subr.bf16.mxu0 %v5927
      %6087 = vmatpush1.bf16.msra.mxu0 %v5926
      %6088 = vmatprep.mubr.bf16.mxu0 %v5647
      %6089 = vmatmul.mubr.bf16.gmra.mrb[0].mxu0 %v5646
      %v6090 = vpop.f32.mrb[0].mxu0
      %v6091 = vadd.f32 0.0, %v6090
      %v6092 = vpop.f32.mrb[0].mxu0
      %v6093 = vadd.f32 0.0, %v6092
      %v6094 = vpop.f32.mrb[0].mxu0
      %v6095 = vpop.f32.mrb[0].mxu0
      %6096 = vdwg.mxu0
      %6097 = vmatprep.subr.bf16.mxu0 %v5929
      %6098 = vmatpush1.bf16.msra.mxu0 %v5928
      %6099 = vmatprep.subr.bf16.mxu0 %v5931
      %6100 = vmatpush1.bf16.msra.mxu0 %v5930
      %6101 = vmatprep.subr.bf16.mxu0 %v5933
      %6102 = vmatpush1.bf16.msra.mxu0 %v5932
      %6103 = vmatprep.subr.bf16.mxu0 %v5935
      %6104 = vmatpush1.bf16.msra.mxu0 %v5934
      %6105 = vmatprep.subr.bf16.mxu0 %v5937
      %6106 = vmatpush1.bf16.msra.mxu0 %v5936
      %6107 = vmatprep.subr.bf16.mxu0 %v5939
      %6108 = vmatpush1.bf16.msra.mxu0 %v5938
      %6109 = vmatprep.subr.bf16.mxu0 %v5941
      %6110 = vmatpush1.bf16.msra.mxu0 %v5940
      %6111 = vmatprep.subr.bf16.mxu0 %v5943
      %6112 = vmatpush1.bf16.msra.mxu0 %v5942
      %6113 = vmatprep.subr.bf16.mxu0 %v5945
      %6114 = vmatpush1.bf16.msra.mxu0 %v5944
      %6115 = vmatprep.subr.bf16.mxu0 %v5947
      %6116 = vmatpush1.bf16.msra.mxu0 %v5946
      %6117 = vmatprep.subr.bf16.mxu0 %v5949
      %6118 = vmatpush1.bf16.msra.mxu0 %v5948
      %6119 = vmatprep.subr.bf16.mxu0 %v5951
      %6120 = vmatpush1.bf16.msra.mxu0 %v5950
      %6121 = vmatprep.subr.bf16.mxu0 %v5953
      %6122 = vmatpush1.bf16.msra.mxu0 %v5952
      %6123 = vmatprep.subr.bf16.mxu0 %v5955
      %6124 = vmatpush1.bf16.msra.mxu0 %v5954
      %6125 = vmatprep.subr.bf16.mxu0 %v5957
      %6126 = vmatpush1.bf16.msra.mxu0 %v5956
      %6127 = vmatprep.subr.bf16.mxu0 %v5959
      %6128 = vmatpush1.bf16.msra.mxu0 %v5958
      %6129 = vmatprep.mubr.bf16.mxu0 %v5649
      %6130 = vmatmul.mubr.bf16.gmra.mrb[0].mxu0 %v5648
      %v6131 = vpop.f32.mrb[0].mxu0
      %v6132 = vadd.f32 %v6091, %v6131
      %v6133 = vpop.f32.mrb[0].mxu0
      %v6134 = vadd.f32 %v6093, %v6133
      %v6135 = vpop.f32.mrb[0].mxu0
      %v6136 = vpop.f32.mrb[0].mxu0
      %6137 = vdwg.mxu0
      %6138 = vmatprep.subr.bf16.mxu0 %v5961
      %6139 = vmatpush1.bf16.msra.mxu0 %v5960
      %6140 = vmatprep.subr.bf16.mxu0 %v5963
      %6141 = vmatpush1.bf16.msra.mxu0 %v5962
      %6142 = vmatprep.subr.bf16.mxu0 %v5965
      %6143 = vmatpush1.bf16.msra.mxu0 %v5964
      %6144 = vmatprep.subr.bf16.mxu0 %v5967
      %6145 = vmatpush1.bf16.msra.mxu0 %v5966
      %6146 = vmatprep.subr.bf16.mxu0 %v5969
      %6147 = vmatpush1.bf16.msra.mxu0 %v5968
      %6148 = vmatprep.subr.bf16.mxu0 %v5971
      %6149 = vmatpush1.bf16.msra.mxu0 %v5970
      %6150 = vmatprep.subr.bf16.mxu0 %v5973
      %6151 = vmatpush1.bf16.msra.mxu0 %v5972
      %6152 = vmatprep.subr.bf16.mxu0 %v5975
      %6153 = vmatpush1.bf16.msra.mxu0 %v5974
      %6154 = vmatprep.subr.bf16.mxu0 0
      %6155 = vmatpush1.bf16.msra.mxu0 0
      %6156 = vmatprep.subr.bf16.mxu0 0
      %6157 = vmatpush1.bf16.msra.mxu0 0
      %6158 = vmatprep.subr.bf16.mxu0 0
      %6159 = vmatpush1.bf16.msra.mxu0 0
      %6160 = vmatprep.subr.bf16.mxu0 0
      %6161 = vmatpush1.bf16.msra.mxu0 0
      %6162 = vmatprep.subr.bf16.mxu0 0
      %6163 = vmatpush1.bf16.msra.mxu0 0
      %6164 = vmatprep.subr.bf16.mxu0 0
      %6165 = vmatpush1.bf16.msra.mxu0 0
      %6166 = vmatprep.subr.bf16.mxu0 0
      %6167 = vmatpush1.bf16.msra.mxu0 0
      %6168 = vmatprep.subr.bf16.mxu0 0
      %6169 = vmatpush1.bf16.msra.mxu0 0
      %6170 = vmatprep.mubr.bf16.mxu0 0
      %6171 = vmatmul.mubr.bf16.gmra.mrb[0].mxu0 %v5650
      %v6172 = vpop.f32.mrb[0].mxu0
      %v6173 = vadd.f32 %v6132, %v6172
      %v6174 = vpop.f32.mrb[0].mxu0
      %v6175 = vadd.f32 %v6134, %v6174
      %v6176 = vpop.f32.mrb[0].mxu0
      %v6177 = vpop.f32.mrb[0].mxu0
      %6178 = vdwg.mxu0
      %v6179 = vadd.f32 %v5563, %v6173
      %v6180 = vadd.f32 %v5564, %v6175
      %s6181 = scalar_lea.vmem %s6, 5120
      %v6182 = vld [vmem:[%s6181] sm:$0xff]
      %v6183 = vld [vmem:[%s6181 + $0x8] sm:$0xff]
      %v6184 = vld [vmem:[%s6181 + $0x10] sm:$0xff]
      %v6185 = vld [vmem:[%s6181 + $0x18] sm:$0xff]
      %v6186 = vld [vmem:[%s6181 + $0x20] sm:$0xff]
      %v6187 = vld [vmem:[%s6181 + $0x28] sm:$0xff]
      %v6188 = vld [vmem:[%s6181 + $0x30] sm:$0xff]
      %v6189 = vld [vmem:[%s6181 + $0x38] sm:$0xff]
      %v6190 = vld [vmem:[%s6181 + $0x40] sm:$0xff]
      %v6191 = vld [vmem:[%s6181 + $0x48] sm:$0xff]
      %v6192 = vld [vmem:[%s6181 + $0x50] sm:$0xff]
      %v6193 = vld [vmem:[%s6181 + $0x58] sm:$0xff]
      %v6194 = vld [vmem:[%s6181 + $0x60] sm:$0xff]
      %v6195 = vld [vmem:[%s6181 + $0x68] sm:$0xff]
      %v6196 = vld [vmem:[%s6181 + $0x70] sm:$0xff]
      %v6197 = vld [vmem:[%s6181 + $0x78] sm:$0xff]
      %v6198 = vld [vmem:[%s6181 + $0x80] sm:$0xff]
      %v6199 = vld [vmem:[%s6181 + $0x88] sm:$0xff]
      %v6200 = vld [vmem:[%s6181 + $0x90] sm:$0xff]
      %v6201 = vld [vmem:[%s6181 + $0x98] sm:$0xff]
      %v6202 = vld [vmem:[%s6181 + $0xa0] sm:$0xff]
      %v6203 = vld [vmem:[%s6181 + $0xa8] sm:$0xff]
      %v6204 = vld [vmem:[%s6181 + $0xb0] sm:$0xff]
      %v6205 = vld [vmem:[%s6181 + $0xb8] sm:$0xff]
      %v6206 = vld [vmem:[%s6181 + $0xc0] sm:$0xff]
      %v6207 = vld [vmem:[%s6181 + $0xc8] sm:$0xff]
      %v6208 = vld [vmem:[%s6181 + $0xd0] sm:$0xff]
      %v6209 = vld [vmem:[%s6181 + $0xd8] sm:$0xff]
      %v6210 = vld [vmem:[%s6181 + $0xe0] sm:$0xff]
      %v6211 = vld [vmem:[%s6181 + $0xe8] sm:$0xff]
      %v6212 = vld [vmem:[%s6181 + $0xf0] sm:$0xff]
      %v6213 = vld [vmem:[%s6181 + $0xf8] sm:$0xff]
      %v6214 = vld [vmem:[%s6181 + $0x100] sm:$0xff]
      %v6215 = vld [vmem:[%s6181 + $0x108] sm:$0xff]
      %v6216 = vld [vmem:[%s6181 + $0x110] sm:$0xff]
      %v6217 = vld [vmem:[%s6181 + $0x118] sm:$0xff]
      %v6218 = vld [vmem:[%s6181 + $0x120] sm:$0xff]
      %v6219 = vld [vmem:[%s6181 + $0x128] sm:$0xff]
      %v6220 = vld [vmem:[%s6181 + $0x130] sm:$0xff]
      %v6221 = vld [vmem:[%s6181 + $0x138] sm:$0xff]
      %v6222 = vld [vmem:[%s6181 + $0x140] sm:$0xff]
      %v6223 = vld [vmem:[%s6181 + $0x148] sm:$0xff]
      %v6224 = vld [vmem:[%s6181 + $0x150] sm:$0xff]
      %v6225 = vld [vmem:[%s6181 + $0x158] sm:$0xff]
      %v6226 = vld [vmem:[%s6181 + $0x160] sm:$0xff]
      %v6227 = vld [vmem:[%s6181 + $0x168] sm:$0xff]
      %v6228 = vld [vmem:[%s6181 + $0x170] sm:$0xff]
      %v6229 = vld [vmem:[%s6181 + $0x178] sm:$0xff]
      %v6230 = vld [vmem:[%s6181 + $0x180] sm:$0xff]
      %v6231 = vld [vmem:[%s6181 + $0x188] sm:$0xff]
      %v6232 = vld [vmem:[%s6181 + $0x190] sm:$0xff]
      %v6233 = vld [vmem:[%s6181 + $0x198] sm:$0xff]
      %v6234 = vld [vmem:[%s6181 + $0x1a0] sm:$0xff]
      %v6235 = vld [vmem:[%s6181 + $0x1a8] sm:$0xff]
      %v6236 = vld [vmem:[%s6181 + $0x1b0] sm:$0xff]
      %v6237 = vld [vmem:[%s6181 + $0x1b8] sm:$0xff]
      %v6238 = vld [vmem:[%s6181 + $0x1c0] sm:$0xff]
      %v6239 = vld [vmem:[%s6181 + $0x1c8] sm:$0xff]
      %v6240 = vld [vmem:[%s6181 + $0x1d0] sm:$0xff]
      %v6241 = vld [vmem:[%s6181 + $0x1d8] sm:$0xff]
      %v6242 = vld [vmem:[%s6181 + $0x1e0] sm:$0xff]
      %v6243 = vld [vmem:[%s6181 + $0x1e8] sm:$0xff]
      %v6244 = vld [vmem:[%s6181 + $0x1f0] sm:$0xff]
      %v6245 = vld [vmem:[%s6181 + $0x1f8] sm:$0xff]
      %v6246 = vld [vmem:[%s6181 + $0x200] sm:$0xff]
      %v6247 = vld [vmem:[%s6181 + $0x208] sm:$0xff]
      %v6248 = vld [vmem:[%s6181 + $0x210] sm:$0xff]
      %v6249 = vld [vmem:[%s6181 + $0x218] sm:$0xff]
      %v6250 = vld [vmem:[%s6181 + $0x220] sm:$0xff]
      %v6251 = vld [vmem:[%s6181 + $0x228] sm:$0xff]
      %v6252 = vld [vmem:[%s6181 + $0x230] sm:$0xff]
      %v6253 = vld [vmem:[%s6181 + $0x238] sm:$0xff]
      %v6254 = vld [vmem:[%s6181 + $0x240] sm:$0xff]
      %v6255 = vld [vmem:[%s6181 + $0x248] sm:$0xff]
      %v6256 = vld [vmem:[%s6181 + $0x250] sm:$0xff]
      %v6257 = vld [vmem:[%s6181 + $0x258] sm:$0xff]
      %v6258 = vld [vmem:[%s6181 + $0x260] sm:$0xff]
      %v6259 = vld [vmem:[%s6181 + $0x268] sm:$0xff]
      %v6260 = vld [vmem:[%s6181 + $0x270] sm:$0xff]
      %v6261 = vld [vmem:[%s6181 + $0x278] sm:$0xff]
      %v6262 = vrot.slane %v1243, 4
      %v6263 = vrot.slane %v1244, 4
      %v6264 = vrot.slane %v1245, 4
      %v6265 = vrot.slane %v1246, 4
      %v6266 = vrot.slane %v1247, 4
      %v6352 = vunpack.c.l.b16 %v6182
      %v6353 = vunpack.c.h.b16 %v6182
      %v6354 = vunpack.c.l.b16 %v6183
      %v6355 = vunpack.c.h.b16 %v6183
      %v6356 = vunpack.c.l.b16 %v6184
      %v6357 = vunpack.c.h.b16 %v6184
      %v6358 = vunpack.c.l.b16 %v6185
      %v6359 = vunpack.c.h.b16 %v6185
      %v6360 = vunpack.c.l.b16 %v6186
      %v6361 = vunpack.c.h.b16 %v6186
      %v6362 = vunpack.c.l.b16 %v6187
      %v6363 = vunpack.c.h.b16 %v6187
      %v6364 = vunpack.c.l.b16 %v6188
      %v6365 = vunpack.c.h.b16 %v6188
      %v6366 = vunpack.c.l.b16 %v6189
      %v6367 = vunpack.c.h.b16 %v6189
      %v6368 = vunpack.c.l.b16 %v6190
      %v6369 = vunpack.c.h.b16 %v6190
      %v6370 = vunpack.c.l.b16 %v6191
      %v6371 = vunpack.c.h.b16 %v6191
      %v6372 = vunpack.c.l.b16 %v6192
      %v6373 = vunpack.c.h.b16 %v6192
      %v6374 = vunpack.c.l.b16 %v6193
      %v6375 = vunpack.c.h.b16 %v6193
      %v6376 = vunpack.c.l.b16 %v6194
      %v6377 = vunpack.c.h.b16 %v6194
      %v6378 = vunpack.c.l.b16 %v6195
      %v6379 = vunpack.c.h.b16 %v6195
      %v6380 = vunpack.c.l.b16 %v6196
      %v6381 = vunpack.c.h.b16 %v6196
      %v6382 = vunpack.c.l.b16 %v6197
      %v6383 = vunpack.c.h.b16 %v6197
      %v6384 = vunpack.c.l.b16 %v6198
      %v6385 = vunpack.c.h.b16 %v6198
      %v6386 = vunpack.c.l.b16 %v6199
      %v6387 = vunpack.c.h.b16 %v6199
      %v6388 = vunpack.c.l.b16 %v6200
      %v6389 = vunpack.c.h.b16 %v6200
      %v6390 = vunpack.c.l.b16 %v6201
      %v6391 = vunpack.c.h.b16 %v6201
      %v6392 = vunpack.c.l.b16 %v6202
      %v6393 = vunpack.c.h.b16 %v6202
      %v6394 = vunpack.c.l.b16 %v6203
      %v6395 = vunpack.c.h.b16 %v6203
      %v6396 = vunpack.c.l.b16 %v6204
      %v6397 = vunpack.c.h.b16 %v6204
      %v6398 = vunpack.c.l.b16 %v6205
      %v6399 = vunpack.c.h.b16 %v6205
      %v6400 = vunpack.c.l.b16 %v6206
      %v6401 = vunpack.c.h.b16 %v6206
      %v6402 = vunpack.c.l.b16 %v6207
      %v6403 = vunpack.c.h.b16 %v6207
      %v6404 = vunpack.c.l.b16 %v6208
      %v6405 = vunpack.c.h.b16 %v6208
      %v6406 = vunpack.c.l.b16 %v6209
      %v6407 = vunpack.c.h.b16 %v6209
      %v6408 = vunpack.c.l.b16 %v6210
      %v6409 = vunpack.c.h.b16 %v6210
      %v6410 = vunpack.c.l.b16 %v6211
      %v6411 = vunpack.c.h.b16 %v6211
      %v6412 = vunpack.c.l.b16 %v6212
      %v6413 = vunpack.c.h.b16 %v6212
      %v6414 = vunpack.c.l.b16 %v6213
      %v6415 = vunpack.c.h.b16 %v6213
      %v6416 = vunpack.c.l.b16 %v6214
      %v6417 = vunpack.c.h.b16 %v6214
      %v6418 = vunpack.c.l.b16 %v6215
      %v6419 = vunpack.c.h.b16 %v6215
      %v6420 = vunpack.c.l.b16 %v6216
      %v6421 = vunpack.c.h.b16 %v6216
      %v6422 = vunpack.c.l.b16 %v6217
      %v6423 = vunpack.c.h.b16 %v6217
      %v6424 = vunpack.c.l.b16 %v6218
      %v6425 = vunpack.c.h.b16 %v6218
      %v6426 = vunpack.c.l.b16 %v6219
      %v6427 = vunpack.c.h.b16 %v6219
      %v6428 = vunpack.c.l.b16 %v6220
      %v6429 = vunpack.c.h.b16 %v6220
      %v6430 = vunpack.c.l.b16 %v6221
      %v6431 = vunpack.c.h.b16 %v6221
      %v6432 = vunpack.c.l.b16 %v6222
      %v6433 = vunpack.c.h.b16 %v6222
      %v6434 = vunpack.c.l.b16 %v6223
      %v6435 = vunpack.c.h.b16 %v6223
      %v6436 = vunpack.c.l.b16 %v6224
      %v6437 = vunpack.c.h.b16 %v6224
      %v6438 = vunpack.c.l.b16 %v6225
      %v6439 = vunpack.c.h.b16 %v6225
      %v6440 = vunpack.c.l.b16 %v6226
      %v6441 = vunpack.c.h.b16 %v6226
      %v6442 = vunpack.c.l.b16 %v6227
      %v6443 = vunpack.c.h.b16 %v6227
      %v6444 = vunpack.c.l.b16 %v6228
      %v6445 = vunpack.c.h.b16 %v6228
      %v6446 = vunpack.c.l.b16 %v6229
      %v6447 = vunpack.c.h.b16 %v6229
      %v6448 = vunpack.c.l.b16 %v6230
      %v6449 = vunpack.c.h.b16 %v6230
      %v6450 = vunpack.c.l.b16 %v6231
      %v6451 = vunpack.c.h.b16 %v6231
      %v6452 = vunpack.c.l.b16 %v6232
      %v6453 = vunpack.c.h.b16 %v6232
      %v6454 = vunpack.c.l.b16 %v6233
      %v6455 = vunpack.c.h.b16 %v6233
      %v6456 = vunpack.c.l.b16 %v6234
      %v6457 = vunpack.c.h.b16 %v6234
      %v6458 = vunpack.c.l.b16 %v6235
      %v6459 = vunpack.c.h.b16 %v6235
      %v6460 = vunpack.c.l.b16 %v6236
      %v6461 = vunpack.c.h.b16 %v6236
      %v6462 = vunpack.c.l.b16 %v6237
      %v6463 = vunpack.c.h.b16 %v6237
      %v6464 = vunpack.c.l.b16 %v6238
      %v6465 = vunpack.c.h.b16 %v6238
      %v6466 = vunpack.c.l.b16 %v6239
      %v6467 = vunpack.c.h.b16 %v6239
      %v6468 = vunpack.c.l.b16 %v6240
      %v6469 = vunpack.c.h.b16 %v6240
      %v6470 = vunpack.c.l.b16 %v6241
      %v6471 = vunpack.c.h.b16 %v6241
      %v6472 = vunpack.c.l.b16 %v6242
      %v6473 = vunpack.c.h.b16 %v6242
      %v6474 = vunpack.c.l.b16 %v6243
      %v6475 = vunpack.c.h.b16 %v6243
      %v6476 = vunpack.c.l.b16 %v6244
      %v6477 = vunpack.c.h.b16 %v6244
      %v6478 = vunpack.c.l.b16 %v6245
      %v6479 = vunpack.c.h.b16 %v6245
      %v6480 = vunpack.c.l.b16 %v6246
      %v6481 = vunpack.c.h.b16 %v6246
      %v6482 = vunpack.c.l.b16 %v6247
      %v6483 = vunpack.c.h.b16 %v6247
      %v6484 = vunpack.c.l.b16 %v6248
      %v6485 = vunpack.c.h.b16 %v6248
      %v6486 = vunpack.c.l.b16 %v6249
      %v6487 = vunpack.c.h.b16 %v6249
      %v6488 = vunpack.c.l.b16 %v6250
      %v6489 = vunpack.c.h.b16 %v6250
      %v6490 = vunpack.c.l.b16 %v6251
      %v6491 = vunpack.c.h.b16 %v6251
      %v6492 = vunpack.c.l.b16 %v6252
      %v6493 = vunpack.c.h.b16 %v6252
      %v6494 = vunpack.c.l.b16 %v6253
      %v6495 = vunpack.c.h.b16 %v6253
      %v6496 = vunpack.c.l.b16 %v6254
      %v6497 = vunpack.c.h.b16 %v6254
      %v6498 = vunpack.c.l.b16 %v6255
      %v6499 = vunpack.c.h.b16 %v6255
      %v6500 = vunpack.c.l.b16 %v6256
      %v6501 = vunpack.c.h.b16 %v6256
      %v6502 = vunpack.c.l.b16 %v6257
      %v6503 = vunpack.c.h.b16 %v6257
      %v6504 = vunpack.c.l.b16 %v6258
      %v6505 = vunpack.c.h.b16 %v6258
      %v6506 = vunpack.c.l.b16 %v6259
      %v6507 = vunpack.c.h.b16 %v6259
      %v6508 = vunpack.c.l.b16 %v6260
      %v6509 = vunpack.c.h.b16 %v6260
      %v6510 = vunpack.c.l.b16 %v6261
      %v6511 = vunpack.c.h.b16 %v6261
      %v6512 = vpack.c.b16 %v6354, %v6352
      %v6513 = vpack.c.b16 %v6355, %v6353
      %v6514 = vpack.c.b16 %v6358, %v6356
      %v6515 = vpack.c.b16 %v6359, %v6357
      %v6516 = vpack.c.b16 %v6362, %v6360
      %v6517 = vpack.c.b16 %v6363, %v6361
      %v6518 = vpack.c.b16 %v6366, %v6364
      %v6519 = vpack.c.b16 %v6367, %v6365
      %v6520 = vpack.c.b16 %v6370, %v6368
      %v6521 = vpack.c.b16 %v6371, %v6369
      %v6522 = vpack.c.b16 %v6374, %v6372
      %v6523 = vpack.c.b16 %v6375, %v6373
      %v6524 = vpack.c.b16 %v6378, %v6376
      %v6525 = vpack.c.b16 %v6379, %v6377
      %v6526 = vpack.c.b16 %v6382, %v6380
      %v6527 = vpack.c.b16 %v6383, %v6381
      %v6528 = vpack.c.b16 %v6386, %v6384
      %v6529 = vpack.c.b16 %v6387, %v6385
      %v6530 = vpack.c.b16 %v6390, %v6388
      %v6531 = vpack.c.b16 %v6391, %v6389
      %v6532 = vpack.c.b16 %v6394, %v6392
      %v6533 = vpack.c.b16 %v6395, %v6393
      %v6534 = vpack.c.b16 %v6398, %v6396
      %v6535 = vpack.c.b16 %v6399, %v6397
      %v6536 = vpack.c.b16 %v6402, %v6400
      %v6537 = vpack.c.b16 %v6403, %v6401
      %v6538 = vpack.c.b16 %v6406, %v6404
      %v6539 = vpack.c.b16 %v6407, %v6405
      %v6540 = vpack.c.b16 %v6410, %v6408
      %v6541 = vpack.c.b16 %v6411, %v6409
      %v6542 = vpack.c.b16 %v6414, %v6412
      %v6543 = vpack.c.b16 %v6415, %v6413
      %v6544 = vpack.c.b16 %v6418, %v6416
      %v6545 = vpack.c.b16 %v6419, %v6417
      %v6546 = vpack.c.b16 %v6422, %v6420
      %v6547 = vpack.c.b16 %v6423, %v6421
      %v6548 = vpack.c.b16 %v6426, %v6424
      %v6549 = vpack.c.b16 %v6427, %v6425
      %v6550 = vpack.c.b16 %v6430, %v6428
      %v6551 = vpack.c.b16 %v6431, %v6429
      %v6552 = vpack.c.b16 %v6434, %v6432
      %v6553 = vpack.c.b16 %v6435, %v6433
      %v6554 = vpack.c.b16 %v6438, %v6436
      %v6555 = vpack.c.b16 %v6439, %v6437
      %v6556 = vpack.c.b16 %v6442, %v6440
      %v6557 = vpack.c.b16 %v6443, %v6441
      %v6558 = vpack.c.b16 %v6446, %v6444
      %v6559 = vpack.c.b16 %v6447, %v6445
      %v6560 = vpack.c.b16 %v6450, %v6448
      %v6561 = vpack.c.b16 %v6451, %v6449
      %v6562 = vpack.c.b16 %v6454, %v6452
      %v6563 = vpack.c.b16 %v6455, %v6453
      %v6564 = vpack.c.b16 %v6458, %v6456
      %v6565 = vpack.c.b16 %v6459, %v6457
      %v6566 = vpack.c.b16 %v6462, %v6460
      %v6567 = vpack.c.b16 %v6463, %v6461
      %v6568 = vpack.c.b16 %v6466, %v6464
      %v6569 = vpack.c.b16 %v6467, %v6465
      %v6570 = vpack.c.b16 %v6470, %v6468
      %v6571 = vpack.c.b16 %v6471, %v6469
      %v6572 = vpack.c.b16 %v6474, %v6472
      %v6573 = vpack.c.b16 %v6475, %v6473
      %v6574 = vpack.c.b16 %v6478, %v6476
      %v6575 = vpack.c.b16 %v6479, %v6477
      %v6576 = vpack.c.b16 %v6482, %v6480
      %v6577 = vpack.c.b16 %v6483, %v6481
      %v6578 = vpack.c.b16 %v6486, %v6484
      %v6579 = vpack.c.b16 %v6487, %v6485
      %v6580 = vpack.c.b16 %v6490, %v6488
      %v6581 = vpack.c.b16 %v6491, %v6489
      %v6582 = vpack.c.b16 %v6494, %v6492
      %v6583 = vpack.c.b16 %v6495, %v6493
      %v6584 = vpack.c.b16 %v6498, %v6496
      %v6585 = vpack.c.b16 %v6499, %v6497
      %v6586 = vpack.c.b16 %v6502, %v6500
      %v6587 = vpack.c.b16 %v6503, %v6501
      %v6588 = vpack.c.b16 %v6506, %v6504
      %v6589 = vpack.c.b16 %v6507, %v6505
      %v6590 = vpack.c.b16 %v6510, %v6508
      %v6591 = vpack.c.b16 %v6511, %v6509
      %6672 = vmatprep.subr.bf16.mxu0 %v6513
      %6673 = vmatpush1.bf16.msra.mxu0 %v6512
      %6674 = vmatprep.subr.bf16.mxu0 %v6515
      %6675 = vmatpush1.bf16.msra.mxu0 %v6514
      %6676 = vmatprep.subr.bf16.mxu0 %v6517
      %6677 = vmatpush1.bf16.msra.mxu0 %v6516
      %6678 = vmatprep.subr.bf16.mxu0 %v6519
      %6679 = vmatpush1.bf16.msra.mxu0 %v6518
      %6680 = vmatprep.subr.bf16.mxu0 %v6521
      %6681 = vmatpush1.bf16.msra.mxu0 %v6520
      %6682 = vmatprep.subr.bf16.mxu0 %v6523
      %6683 = vmatpush1.bf16.msra.mxu0 %v6522
      %6684 = vmatprep.subr.bf16.mxu0 %v6525
      %6685 = vmatpush1.bf16.msra.mxu0 %v6524
      %6686 = vmatprep.subr.bf16.mxu0 %v6527
      %6687 = vmatpush1.bf16.msra.mxu0 %v6526
      %6688 = vmatprep.subr.bf16.mxu0 %v6529
      %6689 = vmatpush1.bf16.msra.mxu0 %v6528
      %6690 = vmatprep.subr.bf16.mxu0 %v6531
      %6691 = vmatpush1.bf16.msra.mxu0 %v6530
      %6692 = vmatprep.subr.bf16.mxu0 %v6533
      %6693 = vmatpush1.bf16.msra.mxu0 %v6532
      %6694 = vmatprep.subr.bf16.mxu0 %v6535
      %6695 = vmatpush1.bf16.msra.mxu0 %v6534
      %6696 = vmatprep.subr.bf16.mxu0 %v6537
      %6697 = vmatpush1.bf16.msra.mxu0 %v6536
      %6698 = vmatprep.subr.bf16.mxu0 %v6539
      %6699 = vmatpush1.bf16.msra.mxu0 %v6538
      %6700 = vmatprep.subr.bf16.mxu0 %v6541
      %6701 = vmatpush1.bf16.msra.mxu0 %v6540
      %6702 = vmatprep.subr.bf16.mxu0 %v6543
      %6703 = vmatpush1.bf16.msra.mxu0 %v6542
      %6704 = vmatprep.mubr.bf16.mxu0 %v6263
      %6705 = vmatmul.mubr.bf16.gmra.mrb[0].mxu0 %v6262
      %v6706 = vpop.f32.mrb[0].mxu0
      %v6707 = vadd.f32 0.0, %v6706
      %v6708 = vpop.f32.mrb[0].mxu0
      %v6709 = vadd.f32 0.0, %v6708
      %v6710 = vpop.f32.mrb[0].mxu0
      %v6711 = vpop.f32.mrb[0].mxu0
      %6712 = vdwg.mxu0
      %6713 = vmatprep.subr.bf16.mxu0 %v6545
      %6714 = vmatpush1.bf16.msra.mxu0 %v6544
      %6715 = vmatprep.subr.bf16.mxu0 %v6547
      %6716 = vmatpush1.bf16.msra.mxu0 %v6546
      %6717 = vmatprep.subr.bf16.mxu0 %v6549
      %6718 = vmatpush1.bf16.msra.mxu0 %v6548
      %6719 = vmatprep.subr.bf16.mxu0 %v6551
      %6720 = vmatpush1.bf16.msra.mxu0 %v6550
      %6721 = vmatprep.subr.bf16.mxu0 %v6553
      %6722 = vmatpush1.bf16.msra.mxu0 %v6552
      %6723 = vmatprep.subr.bf16.mxu0 %v6555
      %6724 = vmatpush1.bf16.msra.mxu0 %v6554
      %6725 = vmatprep.subr.bf16.mxu0 %v6557
      %6726 = vmatpush1.bf16.msra.mxu0 %v6556
      %6727 = vmatprep.subr.bf16.mxu0 %v6559
      %6728 = vmatpush1.bf16.msra.mxu0 %v6558
      %6729 = vmatprep.subr.bf16.mxu0 %v6561
      %6730 = vmatpush1.bf16.msra.mxu0 %v6560
      %6731 = vmatprep.subr.bf16.mxu0 %v6563
      %6732 = vmatpush1.bf16.msra.mxu0 %v6562
      %6733 = vmatprep.subr.bf16.mxu0 %v6565
      %6734 = vmatpush1.bf16.msra.mxu0 %v6564
      %6735 = vmatprep.subr.bf16.mxu0 %v6567
      %6736 = vmatpush1.bf16.msra.mxu0 %v6566
      %6737 = vmatprep.subr.bf16.mxu0 %v6569
      %6738 = vmatpush1.bf16.msra.mxu0 %v6568
      %6739 = vmatprep.subr.bf16.mxu0 %v6571
      %6740 = vmatpush1.bf16.msra.mxu0 %v6570
      %6741 = vmatprep.subr.bf16.mxu0 %v6573
      %6742 = vmatpush1.bf16.msra.mxu0 %v6572
      %6743 = vmatprep.subr.bf16.mxu0 %v6575
      %6744 = vmatpush1.bf16.msra.mxu0 %v6574
      %6745 = vmatprep.mubr.bf16.mxu0 %v6265
      %6746 = vmatmul.mubr.bf16.gmra.mrb[0].mxu0 %v6264
      %v6747 = vpop.f32.mrb[0].mxu0
      %v6748 = vadd.f32 %v6707, %v6747
      %v6749 = vpop.f32.mrb[0].mxu0
      %v6750 = vadd.f32 %v6709, %v6749
      %v6751 = vpop.f32.mrb[0].mxu0
      %v6752 = vpop.f32.mrb[0].mxu0
      %6753 = vdwg.mxu0
      %6754 = vmatprep.subr.bf16.mxu0 %v6577
      %6755 = vmatpush1.bf16.msra.mxu0 %v6576
      %6756 = vmatprep.subr.bf16.mxu0 %v6579
      %6757 = vmatpush1.bf16.msra.mxu0 %v6578
      %6758 = vmatprep.subr.bf16.mxu0 %v6581
      %6759 = vmatpush1.bf16.msra.mxu0 %v6580
      %6760 = vmatprep.subr.bf16.mxu0 %v6583
      %6761 = vmatpush1.bf16.msra.mxu0 %v6582
      %6762 = vmatprep.subr.bf16.mxu0 %v6585
      %6763 = vmatpush1.bf16.msra.mxu0 %v6584
      %6764 = vmatprep.subr.bf16.mxu0 %v6587
      %6765 = vmatpush1.bf16.msra.mxu0 %v6586
      %6766 = vmatprep.subr.bf16.mxu0 %v6589
      %6767 = vmatpush1.bf16.msra.mxu0 %v6588
      %6768 = vmatprep.subr.bf16.mxu0 %v6591
      %6769 = vmatpush1.bf16.msra.mxu0 %v6590
      %6770 = vmatprep.subr.bf16.mxu0 0
      %6771 = vmatpush1.bf16.msra.mxu0 0
      %6772 = vmatprep.subr.bf16.mxu0 0
      %6773 = vmatpush1.bf16.msra.mxu0 0
      %6774 = vmatprep.subr.bf16.mxu0 0
      %6775 = vmatpush1.bf16.msra.mxu0 0
      %6776 = vmatprep.subr.bf16.mxu0 0
      %6777 = vmatpush1.bf16.msra.mxu0 0
      %6778 = vmatprep.subr.bf16.mxu0 0
      %6779 = vmatpush1.bf16.msra.mxu0 0
      %6780 = vmatprep.subr.bf16.mxu0 0
      %6781 = vmatpush1.bf16.msra.mxu0 0
      %6782 = vmatprep.subr.bf16.mxu0 0
      %6783 = vmatpush1.bf16.msra.mxu0 0
      %6784 = vmatprep.subr.bf16.mxu0 0
      %6785 = vmatpush1.bf16.msra.mxu0 0
      %6786 = vmatprep.mubr.bf16.mxu0 0
      %6787 = vmatmul.mubr.bf16.gmra.mrb[0].mxu0 %v6266
      %v6788 = vpop.f32.mrb[0].mxu0
      %v6789 = vadd.f32 %v6748, %v6788
      %v6790 = vpop.f32.mrb[0].mxu0
      %v6791 = vadd.f32 %v6750, %v6790
      %v6792 = vpop.f32.mrb[0].mxu0
      %v6793 = vpop.f32.mrb[0].mxu0
      %6794 = vdwg.mxu0
      %v6795 = vadd.f32 %v6179, %v6789
      %v6796 = vadd.f32 %v6180, %v6791
      %s6797 = scalar_lea.vmem %s6, 5760
      %v6798 = vld [vmem:[%s6797] sm:$0xff]
      %v6799 = vld [vmem:[%s6797 + $0x8] sm:$0xff]
      %v6800 = vld [vmem:[%s6797 + $0x10] sm:$0xff]
      %v6801 = vld [vmem:[%s6797 + $0x18] sm:$0xff]
      %v6802 = vld [vmem:[%s6797 + $0x20] sm:$0xff]
      %v6803 = vld [vmem:[%s6797 + $0x28] sm:$0xff]
      %v6804 = vld [vmem:[%s6797 + $0x30] sm:$0xff]
      %v6805 = vld [vmem:[%s6797 + $0x38] sm:$0xff]
      %v6806 = vld [vmem:[%s6797 + $0x40] sm:$0xff]
      %v6807 = vld [vmem:[%s6797 + $0x48] sm:$0xff]
      %v6808 = vld [vmem:[%s6797 + $0x50] sm:$0xff]
      %v6809 = vld [vmem:[%s6797 + $0x58] sm:$0xff]
      %v6810 = vld [vmem:[%s6797 + $0x60] sm:$0xff]
      %v6811 = vld [vmem:[%s6797 + $0x68] sm:$0xff]
      %v6812 = vld [vmem:[%s6797 + $0x70] sm:$0xff]
      %v6813 = vld [vmem:[%s6797 + $0x78] sm:$0xff]
      %v6814 = vld [vmem:[%s6797 + $0x80] sm:$0xff]
      %v6815 = vld [vmem:[%s6797 + $0x88] sm:$0xff]
      %v6816 = vld [vmem:[%s6797 + $0x90] sm:$0xff]
      %v6817 = vld [vmem:[%s6797 + $0x98] sm:$0xff]
      %v6818 = vld [vmem:[%s6797 + $0xa0] sm:$0xff]
      %v6819 = vld [vmem:[%s6797 + $0xa8] sm:$0xff]
      %v6820 = vld [vmem:[%s6797 + $0xb0] sm:$0xff]
      %v6821 = vld [vmem:[%s6797 + $0xb8] sm:$0xff]
      %v6822 = vld [vmem:[%s6797 + $0xc0] sm:$0xff]
      %v6823 = vld [vmem:[%s6797 + $0xc8] sm:$0xff]
      %v6824 = vld [vmem:[%s6797 + $0xd0] sm:$0xff]
      %v6825 = vld [vmem:[%s6797 + $0xd8] sm:$0xff]
      %v6826 = vld [vmem:[%s6797 + $0xe0] sm:$0xff]
      %v6827 = vld [vmem:[%s6797 + $0xe8] sm:$0xff]
      %v6828 = vld [vmem:[%s6797 + $0xf0] sm:$0xff]
      %v6829 = vld [vmem:[%s6797 + $0xf8] sm:$0xff]
      %v6830 = vld [vmem:[%s6797 + $0x100] sm:$0xff]
      %v6831 = vld [vmem:[%s6797 + $0x108] sm:$0xff]
      %v6832 = vld [vmem:[%s6797 + $0x110] sm:$0xff]
      %v6833 = vld [vmem:[%s6797 + $0x118] sm:$0xff]
      %v6834 = vld [vmem:[%s6797 + $0x120] sm:$0xff]
      %v6835 = vld [vmem:[%s6797 + $0x128] sm:$0xff]
      %v6836 = vld [vmem:[%s6797 + $0x130] sm:$0xff]
      %v6837 = vld [vmem:[%s6797 + $0x138] sm:$0xff]
      %v6838 = vld [vmem:[%s6797 + $0x140] sm:$0xff]
      %v6839 = vld [vmem:[%s6797 + $0x148] sm:$0xff]
      %v6840 = vld [vmem:[%s6797 + $0x150] sm:$0xff]
      %v6841 = vld [vmem:[%s6797 + $0x158] sm:$0xff]
      %v6842 = vld [vmem:[%s6797 + $0x160] sm:$0xff]
      %v6843 = vld [vmem:[%s6797 + $0x168] sm:$0xff]
      %v6844 = vld [vmem:[%s6797 + $0x170] sm:$0xff]
      %v6845 = vld [vmem:[%s6797 + $0x178] sm:$0xff]
      %v6846 = vld [vmem:[%s6797 + $0x180] sm:$0xff]
      %v6847 = vld [vmem:[%s6797 + $0x188] sm:$0xff]
      %v6848 = vld [vmem:[%s6797 + $0x190] sm:$0xff]
      %v6849 = vld [vmem:[%s6797 + $0x198] sm:$0xff]
      %v6850 = vld [vmem:[%s6797 + $0x1a0] sm:$0xff]
      %v6851 = vld [vmem:[%s6797 + $0x1a8] sm:$0xff]
      %v6852 = vld [vmem:[%s6797 + $0x1b0] sm:$0xff]
      %v6853 = vld [vmem:[%s6797 + $0x1b8] sm:$0xff]
      %v6854 = vld [vmem:[%s6797 + $0x1c0] sm:$0xff]
      %v6855 = vld [vmem:[%s6797 + $0x1c8] sm:$0xff]
      %v6856 = vld [vmem:[%s6797 + $0x1d0] sm:$0xff]
      %v6857 = vld [vmem:[%s6797 + $0x1d8] sm:$0xff]
      %v6858 = vld [vmem:[%s6797 + $0x1e0] sm:$0xff]
      %v6859 = vld [vmem:[%s6797 + $0x1e8] sm:$0xff]
      %v6860 = vld [vmem:[%s6797 + $0x1f0] sm:$0xff]
      %v6861 = vld [vmem:[%s6797 + $0x1f8] sm:$0xff]
      %v6862 = vld [vmem:[%s6797 + $0x200] sm:$0xff]
      %v6863 = vld [vmem:[%s6797 + $0x208] sm:$0xff]
      %v6864 = vld [vmem:[%s6797 + $0x210] sm:$0xff]
      %v6865 = vld [vmem:[%s6797 + $0x218] sm:$0xff]
      %v6866 = vld [vmem:[%s6797 + $0x220] sm:$0xff]
      %v6867 = vld [vmem:[%s6797 + $0x228] sm:$0xff]
      %v6868 = vld [vmem:[%s6797 + $0x230] sm:$0xff]
      %v6869 = vld [vmem:[%s6797 + $0x238] sm:$0xff]
      %v6870 = vld [vmem:[%s6797 + $0x240] sm:$0xff]
      %v6871 = vld [vmem:[%s6797 + $0x248] sm:$0xff]
      %v6872 = vld [vmem:[%s6797 + $0x250] sm:$0xff]
      %v6873 = vld [vmem:[%s6797 + $0x258] sm:$0xff]
      %v6874 = vld [vmem:[%s6797 + $0x260] sm:$0xff]
      %v6875 = vld [vmem:[%s6797 + $0x268] sm:$0xff]
      %v6876 = vld [vmem:[%s6797 + $0x270] sm:$0xff]
      %v6877 = vld [vmem:[%s6797 + $0x278] sm:$0xff]
      %v6878 = vrot.slane %v1415, 4
      %v6879 = vrot.slane %v1418, 4
      %v6880 = vrot.slane %v1421, 4
      %v6881 = vrot.slane %v1424, 4
      %v6882 = vrot.slane %v1427, 4
      %v6968 = vunpack.c.l.b16 %v6798
      %v6969 = vunpack.c.h.b16 %v6798
      %v6970 = vunpack.c.l.b16 %v6799
      %v6971 = vunpack.c.h.b16 %v6799
      %v6972 = vunpack.c.l.b16 %v6800
      %v6973 = vunpack.c.h.b16 %v6800
      %v6974 = vunpack.c.l.b16 %v6801
      %v6975 = vunpack.c.h.b16 %v6801
      %v6976 = vunpack.c.l.b16 %v6802
      %v6977 = vunpack.c.h.b16 %v6802
      %v6978 = vunpack.c.l.b16 %v6803
      %v6979 = vunpack.c.h.b16 %v6803
      %v6980 = vunpack.c.l.b16 %v6804
      %v6981 = vunpack.c.h.b16 %v6804
      %v6982 = vunpack.c.l.b16 %v6805
      %v6983 = vunpack.c.h.b16 %v6805
      %v6984 = vunpack.c.l.b16 %v6806
      %v6985 = vunpack.c.h.b16 %v6806
      %v6986 = vunpack.c.l.b16 %v6807
      %v6987 = vunpack.c.h.b16 %v6807
      %v6988 = vunpack.c.l.b16 %v6808
      %v6989 = vunpack.c.h.b16 %v6808
      %v6990 = vunpack.c.l.b16 %v6809
      %v6991 = vunpack.c.h.b16 %v6809
      %v6992 = vunpack.c.l.b16 %v6810
      %v6993 = vunpack.c.h.b16 %v6810
      %v6994 = vunpack.c.l.b16 %v6811
      %v6995 = vunpack.c.h.b16 %v6811
      %v6996 = vunpack.c.l.b16 %v6812
      %v6997 = vunpack.c.h.b16 %v6812
      %v6998 = vunpack.c.l.b16 %v6813
      %v6999 = vunpack.c.h.b16 %v6813
      %v7000 = vunpack.c.l.b16 %v6814
      %v7001 = vunpack.c.h.b16 %v6814
      %v7002 = vunpack.c.l.b16 %v6815
      %v7003 = vunpack.c.h.b16 %v6815
      %v7004 = vunpack.c.l.b16 %v6816
      %v7005 = vunpack.c.h.b16 %v6816
      %v7006 = vunpack.c.l.b16 %v6817
      %v7007 = vunpack.c.h.b16 %v6817
      %v7008 = vunpack.c.l.b16 %v6818
      %v7009 = vunpack.c.h.b16 %v6818
      %v7010 = vunpack.c.l.b16 %v6819
      %v7011 = vunpack.c.h.b16 %v6819
      %v7012 = vunpack.c.l.b16 %v6820
      %v7013 = vunpack.c.h.b16 %v6820
      %v7014 = vunpack.c.l.b16 %v6821
      %v7015 = vunpack.c.h.b16 %v6821
      %v7016 = vunpack.c.l.b16 %v6822
      %v7017 = vunpack.c.h.b16 %v6822
      %v7018 = vunpack.c.l.b16 %v6823
      %v7019 = vunpack.c.h.b16 %v6823
      %v7020 = vunpack.c.l.b16 %v6824
      %v7021 = vunpack.c.h.b16 %v6824
      %v7022 = vunpack.c.l.b16 %v6825
      %v7023 = vunpack.c.h.b16 %v6825
      %v7024 = vunpack.c.l.b16 %v6826
      %v7025 = vunpack.c.h.b16 %v6826
      %v7026 = vunpack.c.l.b16 %v6827
      %v7027 = vunpack.c.h.b16 %v6827
      %v7028 = vunpack.c.l.b16 %v6828
      %v7029 = vunpack.c.h.b16 %v6828
      %v7030 = vunpack.c.l.b16 %v6829
      %v7031 = vunpack.c.h.b16 %v6829
      %v7032 = vunpack.c.l.b16 %v6830
      %v7033 = vunpack.c.h.b16 %v6830
      %v7034 = vunpack.c.l.b16 %v6831
      %v7035 = vunpack.c.h.b16 %v6831
      %v7036 = vunpack.c.l.b16 %v6832
      %v7037 = vunpack.c.h.b16 %v6832
      %v7038 = vunpack.c.l.b16 %v6833
      %v7039 = vunpack.c.h.b16 %v6833
      %v7040 = vunpack.c.l.b16 %v6834
      %v7041 = vunpack.c.h.b16 %v6834
      %v7042 = vunpack.c.l.b16 %v6835
      %v7043 = vunpack.c.h.b16 %v6835
      %v7044 = vunpack.c.l.b16 %v6836
      %v7045 = vunpack.c.h.b16 %v6836
      %v7046 = vunpack.c.l.b16 %v6837
      %v7047 = vunpack.c.h.b16 %v6837
      %v7048 = vunpack.c.l.b16 %v6838
      %v7049 = vunpack.c.h.b16 %v6838
      %v7050 = vunpack.c.l.b16 %v6839
      %v7051 = vunpack.c.h.b16 %v6839
      %v7052 = vunpack.c.l.b16 %v6840
      %v7053 = vunpack.c.h.b16 %v6840
      %v7054 = vunpack.c.l.b16 %v6841
      %v7055 = vunpack.c.h.b16 %v6841
      %v7056 = vunpack.c.l.b16 %v6842
      %v7057 = vunpack.c.h.b16 %v6842
      %v7058 = vunpack.c.l.b16 %v6843
      %v7059 = vunpack.c.h.b16 %v6843
      %v7060 = vunpack.c.l.b16 %v6844
      %v7061 = vunpack.c.h.b16 %v6844
      %v7062 = vunpack.c.l.b16 %v6845
      %v7063 = vunpack.c.h.b16 %v6845
      %v7064 = vunpack.c.l.b16 %v6846
      %v7065 = vunpack.c.h.b16 %v6846
      %v7066 = vunpack.c.l.b16 %v6847
      %v7067 = vunpack.c.h.b16 %v6847
      %v7068 = vunpack.c.l.b16 %v6848
      %v7069 = vunpack.c.h.b16 %v6848
      %v7070 = vunpack.c.l.b16 %v6849
      %v7071 = vunpack.c.h.b16 %v6849
      %v7072 = vunpack.c.l.b16 %v6850
      %v7073 = vunpack.c.h.b16 %v6850
      %v7074 = vunpack.c.l.b16 %v6851
      %v7075 = vunpack.c.h.b16 %v6851
      %v7076 = vunpack.c.l.b16 %v6852
      %v7077 = vunpack.c.h.b16 %v6852
      %v7078 = vunpack.c.l.b16 %v6853
      %v7079 = vunpack.c.h.b16 %v6853
      %v7080 = vunpack.c.l.b16 %v6854
      %v7081 = vunpack.c.h.b16 %v6854
      %v7082 = vunpack.c.l.b16 %v6855
      %v7083 = vunpack.c.h.b16 %v6855
      %v7084 = vunpack.c.l.b16 %v6856
      %v7085 = vunpack.c.h.b16 %v6856
      %v7086 = vunpack.c.l.b16 %v6857
      %v7087 = vunpack.c.h.b16 %v6857
      %v7088 = vunpack.c.l.b16 %v6858
      %v7089 = vunpack.c.h.b16 %v6858
      %v7090 = vunpack.c.l.b16 %v6859
      %v7091 = vunpack.c.h.b16 %v6859
      %v7092 = vunpack.c.l.b16 %v6860
      %v7093 = vunpack.c.h.b16 %v6860
      %v7094 = vunpack.c.l.b16 %v6861
      %v7095 = vunpack.c.h.b16 %v6861
      %v7096 = vunpack.c.l.b16 %v6862
      %v7097 = vunpack.c.h.b16 %v6862
      %v7098 = vunpack.c.l.b16 %v6863
      %v7099 = vunpack.c.h.b16 %v6863
      %v7100 = vunpack.c.l.b16 %v6864
      %v7101 = vunpack.c.h.b16 %v6864
      %v7102 = vunpack.c.l.b16 %v6865
      %v7103 = vunpack.c.h.b16 %v6865
      %v7104 = vunpack.c.l.b16 %v6866
      %v7105 = vunpack.c.h.b16 %v6866
      %v7106 = vunpack.c.l.b16 %v6867
      %v7107 = vunpack.c.h.b16 %v6867
      %v7108 = vunpack.c.l.b16 %v6868
      %v7109 = vunpack.c.h.b16 %v6868
      %v7110 = vunpack.c.l.b16 %v6869
      %v7111 = vunpack.c.h.b16 %v6869
      %v7112 = vunpack.c.l.b16 %v6870
      %v7113 = vunpack.c.h.b16 %v6870
      %v7114 = vunpack.c.l.b16 %v6871
      %v7115 = vunpack.c.h.b16 %v6871
      %v7116 = vunpack.c.l.b16 %v6872
      %v7117 = vunpack.c.h.b16 %v6872
      %v7118 = vunpack.c.l.b16 %v6873
      %v7119 = vunpack.c.h.b16 %v6873
      %v7120 = vunpack.c.l.b16 %v6874
      %v7121 = vunpack.c.h.b16 %v6874
      %v7122 = vunpack.c.l.b16 %v6875
      %v7123 = vunpack.c.h.b16 %v6875
      %v7124 = vunpack.c.l.b16 %v6876
      %v7125 = vunpack.c.h.b16 %v6876
      %v7126 = vunpack.c.l.b16 %v6877
      %v7127 = vunpack.c.h.b16 %v6877
      %v7128 = vpack.c.b16 %v6970, %v6968
      %v7129 = vpack.c.b16 %v6971, %v6969
      %v7130 = vpack.c.b16 %v6974, %v6972
      %v7131 = vpack.c.b16 %v6975, %v6973
      %v7132 = vpack.c.b16 %v6978, %v6976
      %v7133 = vpack.c.b16 %v6979, %v6977
      %v7134 = vpack.c.b16 %v6982, %v6980
      %v7135 = vpack.c.b16 %v6983, %v6981
      %v7136 = vpack.c.b16 %v6986, %v6984
      %v7137 = vpack.c.b16 %v6987, %v6985
      %v7138 = vpack.c.b16 %v6990, %v6988
      %v7139 = vpack.c.b16 %v6991, %v6989
      %v7140 = vpack.c.b16 %v6994, %v6992
      %v7141 = vpack.c.b16 %v6995, %v6993
      %v7142 = vpack.c.b16 %v6998, %v6996
      %v7143 = vpack.c.b16 %v6999, %v6997
      %v7144 = vpack.c.b16 %v7002, %v7000
      %v7145 = vpack.c.b16 %v7003, %v7001
      %v7146 = vpack.c.b16 %v7006, %v7004
      %v7147 = vpack.c.b16 %v7007, %v7005
      %v7148 = vpack.c.b16 %v7010, %v7008
      %v7149 = vpack.c.b16 %v7011, %v7009
      %v7150 = vpack.c.b16 %v7014, %v7012
      %v7151 = vpack.c.b16 %v7015, %v7013
      %v7152 = vpack.c.b16 %v7018, %v7016
      %v7153 = vpack.c.b16 %v7019, %v7017
      %v7154 = vpack.c.b16 %v7022, %v7020
      %v7155 = vpack.c.b16 %v7023, %v7021
      %v7156 = vpack.c.b16 %v7026, %v7024
      %v7157 = vpack.c.b16 %v7027, %v7025
      %v7158 = vpack.c.b16 %v7030, %v7028
      %v7159 = vpack.c.b16 %v7031, %v7029
      %v7160 = vpack.c.b16 %v7034, %v7032
      %v7161 = vpack.c.b16 %v7035, %v7033
      %v7162 = vpack.c.b16 %v7038, %v7036
      %v7163 = vpack.c.b16 %v7039, %v7037
      %v7164 = vpack.c.b16 %v7042, %v7040
      %v7165 = vpack.c.b16 %v7043, %v7041
      %v7166 = vpack.c.b16 %v7046, %v7044
      %v7167 = vpack.c.b16 %v7047, %v7045
      %v7168 = vpack.c.b16 %v7050, %v7048
      %v7169 = vpack.c.b16 %v7051, %v7049
      %v7170 = vpack.c.b16 %v7054, %v7052
      %v7171 = vpack.c.b16 %v7055, %v7053
      %v7172 = vpack.c.b16 %v7058, %v7056
      %v7173 = vpack.c.b16 %v7059, %v7057
      %v7174 = vpack.c.b16 %v7062, %v7060
      %v7175 = vpack.c.b16 %v7063, %v7061
      %v7176 = vpack.c.b16 %v7066, %v7064
      %v7177 = vpack.c.b16 %v7067, %v7065
      %v7178 = vpack.c.b16 %v7070, %v7068
      %v7179 = vpack.c.b16 %v7071, %v7069
      %v7180 = vpack.c.b16 %v7074, %v7072
      %v7181 = vpack.c.b16 %v7075, %v7073
      %v7182 = vpack.c.b16 %v7078, %v7076
      %v7183 = vpack.c.b16 %v7079, %v7077
      %v7184 = vpack.c.b16 %v7082, %v7080
      %v7185 = vpack.c.b16 %v7083, %v7081
      %v7186 = vpack.c.b16 %v7086, %v7084
      %v7187 = vpack.c.b16 %v7087, %v7085
      %v7188 = vpack.c.b16 %v7090, %v7088
      %v7189 = vpack.c.b16 %v7091, %v7089
      %v7190 = vpack.c.b16 %v7094, %v7092
      %v7191 = vpack.c.b16 %v7095, %v7093
      %v7192 = vpack.c.b16 %v7098, %v7096
      %v7193 = vpack.c.b16 %v7099, %v7097
      %v7194 = vpack.c.b16 %v7102, %v7100
      %v7195 = vpack.c.b16 %v7103, %v7101
      %v7196 = vpack.c.b16 %v7106, %v7104
      %v7197 = vpack.c.b16 %v7107, %v7105
      %v7198 = vpack.c.b16 %v7110, %v7108
      %v7199 = vpack.c.b16 %v7111, %v7109
      %v7200 = vpack.c.b16 %v7114, %v7112
      %v7201 = vpack.c.b16 %v7115, %v7113
      %v7202 = vpack.c.b16 %v7118, %v7116
      %v7203 = vpack.c.b16 %v7119, %v7117
      %v7204 = vpack.c.b16 %v7122, %v7120
      %v7205 = vpack.c.b16 %v7123, %v7121
      %v7206 = vpack.c.b16 %v7126, %v7124
      %v7207 = vpack.c.b16 %v7127, %v7125
      %7288 = vmatprep.subr.bf16.mxu0 %v7129
      %7289 = vmatpush1.bf16.msra.mxu0 %v7128
      %7290 = vmatprep.subr.bf16.mxu0 %v7131
      %7291 = vmatpush1.bf16.msra.mxu0 %v7130
      %7292 = vmatprep.subr.bf16.mxu0 %v7133
      %7293 = vmatpush1.bf16.msra.mxu0 %v7132
      %7294 = vmatprep.subr.bf16.mxu0 %v7135
      %7295 = vmatpush1.bf16.msra.mxu0 %v7134
      %7296 = vmatprep.subr.bf16.mxu0 %v7137
      %7297 = vmatpush1.bf16.msra.mxu0 %v7136
      %7298 = vmatprep.subr.bf16.mxu0 %v7139
      %7299 = vmatpush1.bf16.msra.mxu0 %v7138
      %7300 = vmatprep.subr.bf16.mxu0 %v7141
      %7301 = vmatpush1.bf16.msra.mxu0 %v7140
      %7302 = vmatprep.subr.bf16.mxu0 %v7143
      %7303 = vmatpush1.bf16.msra.mxu0 %v7142
      %7304 = vmatprep.subr.bf16.mxu0 %v7145
      %7305 = vmatpush1.bf16.msra.mxu0 %v7144
      %7306 = vmatprep.subr.bf16.mxu0 %v7147
      %7307 = vmatpush1.bf16.msra.mxu0 %v7146
      %7308 = vmatprep.subr.bf16.mxu0 %v7149
      %7309 = vmatpush1.bf16.msra.mxu0 %v7148
      %7310 = vmatprep.subr.bf16.mxu0 %v7151
      %7311 = vmatpush1.bf16.msra.mxu0 %v7150
      %7312 = vmatprep.subr.bf16.mxu0 %v7153
      %7313 = vmatpush1.bf16.msra.mxu0 %v7152
      %7314 = vmatprep.subr.bf16.mxu0 %v7155
      %7315 = vmatpush1.bf16.msra.mxu0 %v7154
      %7316 = vmatprep.subr.bf16.mxu0 %v7157
      %7317 = vmatpush1.bf16.msra.mxu0 %v7156
      %7318 = vmatprep.subr.bf16.mxu0 %v7159
      %7319 = vmatpush1.bf16.msra.mxu0 %v7158
      %7320 = vmatprep.mubr.bf16.mxu0 %v6879
      %7321 = vmatmul.mubr.bf16.gmra.mrb[0].mxu0 %v6878
      %v7322 = vpop.f32.mrb[0].mxu0
      %v7323 = vadd.f32 0.0, %v7322
      %v7324 = vpop.f32.mrb[0].mxu0
      %v7325 = vadd.f32 0.0, %v7324
      %v7326 = vpop.f32.mrb[0].mxu0
      %v7327 = vpop.f32.mrb[0].mxu0
      %7328 = vdwg.mxu0
      %7329 = vmatprep.subr.bf16.mxu0 %v7161
      %7330 = vmatpush1.bf16.msra.mxu0 %v7160
      %7331 = vmatprep.subr.bf16.mxu0 %v7163
      %7332 = vmatpush1.bf16.msra.mxu0 %v7162
      %7333 = vmatprep.subr.bf16.mxu0 %v7165
      %7334 = vmatpush1.bf16.msra.mxu0 %v7164
      %7335 = vmatprep.subr.bf16.mxu0 %v7167
      %7336 = vmatpush1.bf16.msra.mxu0 %v7166
      %7337 = vmatprep.subr.bf16.mxu0 %v7169
      %7338 = vmatpush1.bf16.msra.mxu0 %v7168
      %7339 = vmatprep.subr.bf16.mxu0 %v7171
      %7340 = vmatpush1.bf16.msra.mxu0 %v7170
      %7341 = vmatprep.subr.bf16.mxu0 %v7173
      %7342 = vmatpush1.bf16.msra.mxu0 %v7172
      %7343 = vmatprep.subr.bf16.mxu0 %v7175
      %7344 = vmatpush1.bf16.msra.mxu0 %v7174
      %7345 = vmatprep.subr.bf16.mxu0 %v7177
      %7346 = vmatpush1.bf16.msra.mxu0 %v7176
      %7347 = vmatprep.subr.bf16.mxu0 %v7179
      %7348 = vmatpush1.bf16.msra.mxu0 %v7178
      %7349 = vmatprep.subr.bf16.mxu0 %v7181
      %7350 = vmatpush1.bf16.msra.mxu0 %v7180
      %7351 = vmatprep.subr.bf16.mxu0 %v7183
      %7352 = vmatpush1.bf16.msra.mxu0 %v7182
      %7353 = vmatprep.subr.bf16.mxu0 %v7185
      %7354 = vmatpush1.bf16.msra.mxu0 %v7184
      %7355 = vmatprep.subr.bf16.mxu0 %v7187
      %7356 = vmatpush1.bf16.msra.mxu0 %v7186
      %7357 = vmatprep.subr.bf16.mxu0 %v7189
      %7358 = vmatpush1.bf16.msra.mxu0 %v7188
      %7359 = vmatprep.subr.bf16.mxu0 %v7191
      %7360 = vmatpush1.bf16.msra.mxu0 %v7190
      %7361 = vmatprep.mubr.bf16.mxu0 %v6881
      %7362 = vmatmul.mubr.bf16.gmra.mrb[0].mxu0 %v6880
      %v7363 = vpop.f32.mrb[0].mxu0
      %v7364 = vadd.f32 %v7323, %v7363
      %v7365 = vpop.f32.mrb[0].mxu0
      %v7366 = vadd.f32 %v7325, %v7365
      %v7367 = vpop.f32.mrb[0].mxu0
      %v7368 = vpop.f32.mrb[0].mxu0
      %7369 = vdwg.mxu0
      %7370 = vmatprep.subr.bf16.mxu0 %v7193
      %7371 = vmatpush1.bf16.msra.mxu0 %v7192
      %7372 = vmatprep.subr.bf16.mxu0 %v7195
      %7373 = vmatpush1.bf16.msra.mxu0 %v7194
      %7374 = vmatprep.subr.bf16.mxu0 %v7197
      %7375 = vmatpush1.bf16.msra.mxu0 %v7196
      %7376 = vmatprep.subr.bf16.mxu0 %v7199
      %7377 = vmatpush1.bf16.msra.mxu0 %v7198
      %7378 = vmatprep.subr.bf16.mxu0 %v7201
      %7379 = vmatpush1.bf16.msra.mxu0 %v7200
      %7380 = vmatprep.subr.bf16.mxu0 %v7203
      %7381 = vmatpush1.bf16.msra.mxu0 %v7202
      %7382 = vmatprep.subr.bf16.mxu0 %v7205
      %7383 = vmatpush1.bf16.msra.mxu0 %v7204
      %7384 = vmatprep.subr.bf16.mxu0 %v7207
      %7385 = vmatpush1.bf16.msra.mxu0 %v7206
      %7386 = vmatprep.subr.bf16.mxu0 0
      %7387 = vmatpush1.bf16.msra.mxu0 0
      %7388 = vmatprep.subr.bf16.mxu0 0
      %7389 = vmatpush1.bf16.msra.mxu0 0
      %7390 = vmatprep.subr.bf16.mxu0 0
      %7391 = vmatpush1.bf16.msra.mxu0 0
      %7392 = vmatprep.subr.bf16.mxu0 0
      %7393 = vmatpush1.bf16.msra.mxu0 0
      %7394 = vmatprep.subr.bf16.mxu0 0
      %7395 = vmatpush1.bf16.msra.mxu0 0
      %7396 = vmatprep.subr.bf16.mxu0 0
      %7397 = vmatpush1.bf16.msra.mxu0 0
      %7398 = vmatprep.subr.bf16.mxu0 0
      %7399 = vmatpush1.bf16.msra.mxu0 0
      %7400 = vmatprep.subr.bf16.mxu0 0
      %7401 = vmatpush1.bf16.msra.mxu0 0
      %7402 = vmatprep.mubr.bf16.mxu0 0
      %7403 = vmatmul.mubr.bf16.gmra.mrb[0].mxu0 %v6882
      %v7404 = vpop.f32.mrb[0].mxu0
      %v7405 = vadd.f32 %v7364, %v7404
      %v7406 = vpop.f32.mrb[0].mxu0
      %v7407 = vadd.f32 %v7366, %v7406
      %v7408 = vpop.f32.mrb[0].mxu0
      %v7409 = vpop.f32.mrb[0].mxu0
      %7410 = vdwg.mxu0
      %v7411 = vadd.f32 %v6795, %v7405
      %v7412 = vadd.f32 %v6796, %v7407
      %s7413 = scalar_lea.vmem %s6, 6400
      %v7414 = vld [vmem:[%s7413] sm:$0xff]
      %v7415 = vld [vmem:[%s7413 + $0x8] sm:$0xff]
      %v7416 = vld [vmem:[%s7413 + $0x10] sm:$0xff]
      %v7417 = vld [vmem:[%s7413 + $0x18] sm:$0xff]
      %v7418 = vld [vmem:[%s7413 + $0x20] sm:$0xff]
      %v7419 = vld [vmem:[%s7413 + $0x28] sm:$0xff]
      %v7420 = vld [vmem:[%s7413 + $0x30] sm:$0xff]
      %v7421 = vld [vmem:[%s7413 + $0x38] sm:$0xff]
      %v7422 = vld [vmem:[%s7413 + $0x40] sm:$0xff]
      %v7423 = vld [vmem:[%s7413 + $0x48] sm:$0xff]
      %v7424 = vld [vmem:[%s7413 + $0x50] sm:$0xff]
      %v7425 = vld [vmem:[%s7413 + $0x58] sm:$0xff]
      %v7426 = vld [vmem:[%s7413 + $0x60] sm:$0xff]
      %v7427 = vld [vmem:[%s7413 + $0x68] sm:$0xff]
      %v7428 = vld [vmem:[%s7413 + $0x70] sm:$0xff]
      %v7429 = vld [vmem:[%s7413 + $0x78] sm:$0xff]
      %v7430 = vld [vmem:[%s7413 + $0x80] sm:$0xff]
      %v7431 = vld [vmem:[%s7413 + $0x88] sm:$0xff]
      %v7432 = vld [vmem:[%s7413 + $0x90] sm:$0xff]
      %v7433 = vld [vmem:[%s7413 + $0x98] sm:$0xff]
      %v7434 = vld [vmem:[%s7413 + $0xa0] sm:$0xff]
      %v7435 = vld [vmem:[%s7413 + $0xa8] sm:$0xff]
      %v7436 = vld [vmem:[%s7413 + $0xb0] sm:$0xff]
      %v7437 = vld [vmem:[%s7413 + $0xb8] sm:$0xff]
      %v7438 = vld [vmem:[%s7413 + $0xc0] sm:$0xff]
      %v7439 = vld [vmem:[%s7413 + $0xc8] sm:$0xff]
      %v7440 = vld [vmem:[%s7413 + $0xd0] sm:$0xff]
      %v7441 = vld [vmem:[%s7413 + $0xd8] sm:$0xff]
      %v7442 = vld [vmem:[%s7413 + $0xe0] sm:$0xff]
      %v7443 = vld [vmem:[%s7413 + $0xe8] sm:$0xff]
      %v7444 = vld [vmem:[%s7413 + $0xf0] sm:$0xff]
      %v7445 = vld [vmem:[%s7413 + $0xf8] sm:$0xff]
      %v7446 = vld [vmem:[%s7413 + $0x100] sm:$0xff]
      %v7447 = vld [vmem:[%s7413 + $0x108] sm:$0xff]
      %v7448 = vld [vmem:[%s7413 + $0x110] sm:$0xff]
      %v7449 = vld [vmem:[%s7413 + $0x118] sm:$0xff]
      %v7450 = vld [vmem:[%s7413 + $0x120] sm:$0xff]
      %v7451 = vld [vmem:[%s7413 + $0x128] sm:$0xff]
      %v7452 = vld [vmem:[%s7413 + $0x130] sm:$0xff]
      %v7453 = vld [vmem:[%s7413 + $0x138] sm:$0xff]
      %v7454 = vld [vmem:[%s7413 + $0x140] sm:$0xff]
      %v7455 = vld [vmem:[%s7413 + $0x148] sm:$0xff]
      %v7456 = vld [vmem:[%s7413 + $0x150] sm:$0xff]
      %v7457 = vld [vmem:[%s7413 + $0x158] sm:$0xff]
      %v7458 = vld [vmem:[%s7413 + $0x160] sm:$0xff]
      %v7459 = vld [vmem:[%s7413 + $0x168] sm:$0xff]
      %v7460 = vld [vmem:[%s7413 + $0x170] sm:$0xff]
      %v7461 = vld [vmem:[%s7413 + $0x178] sm:$0xff]
      %v7462 = vld [vmem:[%s7413 + $0x180] sm:$0xff]
      %v7463 = vld [vmem:[%s7413 + $0x188] sm:$0xff]
      %v7464 = vld [vmem:[%s7413 + $0x190] sm:$0xff]
      %v7465 = vld [vmem:[%s7413 + $0x198] sm:$0xff]
      %v7466 = vld [vmem:[%s7413 + $0x1a0] sm:$0xff]
      %v7467 = vld [vmem:[%s7413 + $0x1a8] sm:$0xff]
      %v7468 = vld [vmem:[%s7413 + $0x1b0] sm:$0xff]
      %v7469 = vld [vmem:[%s7413 + $0x1b8] sm:$0xff]
      %v7470 = vld [vmem:[%s7413 + $0x1c0] sm:$0xff]
      %v7471 = vld [vmem:[%s7413 + $0x1c8] sm:$0xff]
      %v7472 = vld [vmem:[%s7413 + $0x1d0] sm:$0xff]
      %v7473 = vld [vmem:[%s7413 + $0x1d8] sm:$0xff]
      %v7474 = vld [vmem:[%s7413 + $0x1e0] sm:$0xff]
      %v7475 = vld [vmem:[%s7413 + $0x1e8] sm:$0xff]
      %v7476 = vld [vmem:[%s7413 + $0x1f0] sm:$0xff]
      %v7477 = vld [vmem:[%s7413 + $0x1f8] sm:$0xff]
      %v7478 = vld [vmem:[%s7413 + $0x200] sm:$0xff]
      %v7479 = vld [vmem:[%s7413 + $0x208] sm:$0xff]
      %v7480 = vld [vmem:[%s7413 + $0x210] sm:$0xff]
      %v7481 = vld [vmem:[%s7413 + $0x218] sm:$0xff]
      %v7482 = vld [vmem:[%s7413 + $0x220] sm:$0xff]
      %v7483 = vld [vmem:[%s7413 + $0x228] sm:$0xff]
      %v7484 = vld [vmem:[%s7413 + $0x230] sm:$0xff]
      %v7485 = vld [vmem:[%s7413 + $0x238] sm:$0xff]
      %v7486 = vld [vmem:[%s7413 + $0x240] sm:$0xff]
      %v7487 = vld [vmem:[%s7413 + $0x248] sm:$0xff]
      %v7488 = vld [vmem:[%s7413 + $0x250] sm:$0xff]
      %v7489 = vld [vmem:[%s7413 + $0x258] sm:$0xff]
      %v7490 = vld [vmem:[%s7413 + $0x260] sm:$0xff]
      %v7491 = vld [vmem:[%s7413 + $0x268] sm:$0xff]
      %v7492 = vld [vmem:[%s7413 + $0x270] sm:$0xff]
      %v7493 = vld [vmem:[%s7413 + $0x278] sm:$0xff]
      %v7494 = vrot.slane %v1243, 5
      %v7495 = vrot.slane %v1244, 5
      %v7496 = vrot.slane %v1245, 5
      %v7497 = vrot.slane %v1246, 5
      %v7498 = vrot.slane %v1247, 5
      %v7584 = vunpack.c.l.b16 %v7414
      %v7585 = vunpack.c.h.b16 %v7414
      %v7586 = vunpack.c.l.b16 %v7415
      %v7587 = vunpack.c.h.b16 %v7415
      %v7588 = vunpack.c.l.b16 %v7416
      %v7589 = vunpack.c.h.b16 %v7416
      %v7590 = vunpack.c.l.b16 %v7417
      %v7591 = vunpack.c.h.b16 %v7417
      %v7592 = vunpack.c.l.b16 %v7418
      %v7593 = vunpack.c.h.b16 %v7418
      %v7594 = vunpack.c.l.b16 %v7419
      %v7595 = vunpack.c.h.b16 %v7419
      %v7596 = vunpack.c.l.b16 %v7420
      %v7597 = vunpack.c.h.b16 %v7420
      %v7598 = vunpack.c.l.b16 %v7421
      %v7599 = vunpack.c.h.b16 %v7421
      %v7600 = vunpack.c.l.b16 %v7422
      %v7601 = vunpack.c.h.b16 %v7422
      %v7602 = vunpack.c.l.b16 %v7423
      %v7603 = vunpack.c.h.b16 %v7423
      %v7604 = vunpack.c.l.b16 %v7424
      %v7605 = vunpack.c.h.b16 %v7424
      %v7606 = vunpack.c.l.b16 %v7425
      %v7607 = vunpack.c.h.b16 %v7425
      %v7608 = vunpack.c.l.b16 %v7426
      %v7609 = vunpack.c.h.b16 %v7426
      %v7610 = vunpack.c.l.b16 %v7427
      %v7611 = vunpack.c.h.b16 %v7427
      %v7612 = vunpack.c.l.b16 %v7428
      %v7613 = vunpack.c.h.b16 %v7428
      %v7614 = vunpack.c.l.b16 %v7429
      %v7615 = vunpack.c.h.b16 %v7429
      %v7616 = vunpack.c.l.b16 %v7430
      %v7617 = vunpack.c.h.b16 %v7430
      %v7618 = vunpack.c.l.b16 %v7431
      %v7619 = vunpack.c.h.b16 %v7431
      %v7620 = vunpack.c.l.b16 %v7432
      %v7621 = vunpack.c.h.b16 %v7432
      %v7622 = vunpack.c.l.b16 %v7433
      %v7623 = vunpack.c.h.b16 %v7433
      %v7624 = vunpack.c.l.b16 %v7434
      %v7625 = vunpack.c.h.b16 %v7434
      %v7626 = vunpack.c.l.b16 %v7435
      %v7627 = vunpack.c.h.b16 %v7435
      %v7628 = vunpack.c.l.b16 %v7436
      %v7629 = vunpack.c.h.b16 %v7436
      %v7630 = vunpack.c.l.b16 %v7437
      %v7631 = vunpack.c.h.b16 %v7437
      %v7632 = vunpack.c.l.b16 %v7438
      %v7633 = vunpack.c.h.b16 %v7438
      %v7634 = vunpack.c.l.b16 %v7439
      %v7635 = vunpack.c.h.b16 %v7439
      %v7636 = vunpack.c.l.b16 %v7440
      %v7637 = vunpack.c.h.b16 %v7440
      %v7638 = vunpack.c.l.b16 %v7441
      %v7639 = vunpack.c.h.b16 %v7441
      %v7640 = vunpack.c.l.b16 %v7442
      %v7641 = vunpack.c.h.b16 %v7442
      %v7642 = vunpack.c.l.b16 %v7443
      %v7643 = vunpack.c.h.b16 %v7443
      %v7644 = vunpack.c.l.b16 %v7444
      %v7645 = vunpack.c.h.b16 %v7444
      %v7646 = vunpack.c.l.b16 %v7445
      %v7647 = vunpack.c.h.b16 %v7445
      %v7648 = vunpack.c.l.b16 %v7446
      %v7649 = vunpack.c.h.b16 %v7446
      %v7650 = vunpack.c.l.b16 %v7447
      %v7651 = vunpack.c.h.b16 %v7447
      %v7652 = vunpack.c.l.b16 %v7448
      %v7653 = vunpack.c.h.b16 %v7448
      %v7654 = vunpack.c.l.b16 %v7449
      %v7655 = vunpack.c.h.b16 %v7449
      %v7656 = vunpack.c.l.b16 %v7450
      %v7657 = vunpack.c.h.b16 %v7450
      %v7658 = vunpack.c.l.b16 %v7451
      %v7659 = vunpack.c.h.b16 %v7451
      %v7660 = vunpack.c.l.b16 %v7452
      %v7661 = vunpack.c.h.b16 %v7452
      %v7662 = vunpack.c.l.b16 %v7453
      %v7663 = vunpack.c.h.b16 %v7453
      %v7664 = vunpack.c.l.b16 %v7454
      %v7665 = vunpack.c.h.b16 %v7454
      %v7666 = vunpack.c.l.b16 %v7455
      %v7667 = vunpack.c.h.b16 %v7455
      %v7668 = vunpack.c.l.b16 %v7456
      %v7669 = vunpack.c.h.b16 %v7456
      %v7670 = vunpack.c.l.b16 %v7457
      %v7671 = vunpack.c.h.b16 %v7457
      %v7672 = vunpack.c.l.b16 %v7458
      %v7673 = vunpack.c.h.b16 %v7458
      %v7674 = vunpack.c.l.b16 %v7459
      %v7675 = vunpack.c.h.b16 %v7459
      %v7676 = vunpack.c.l.b16 %v7460
      %v7677 = vunpack.c.h.b16 %v7460
      %v7678 = vunpack.c.l.b16 %v7461
      %v7679 = vunpack.c.h.b16 %v7461
      %v7680 = vunpack.c.l.b16 %v7462
      %v7681 = vunpack.c.h.b16 %v7462
      %v7682 = vunpack.c.l.b16 %v7463
      %v7683 = vunpack.c.h.b16 %v7463
      %v7684 = vunpack.c.l.b16 %v7464
      %v7685 = vunpack.c.h.b16 %v7464
      %v7686 = vunpack.c.l.b16 %v7465
      %v7687 = vunpack.c.h.b16 %v7465
      %v7688 = vunpack.c.l.b16 %v7466
      %v7689 = vunpack.c.h.b16 %v7466
      %v7690 = vunpack.c.l.b16 %v7467
      %v7691 = vunpack.c.h.b16 %v7467
      %v7692 = vunpack.c.l.b16 %v7468
      %v7693 = vunpack.c.h.b16 %v7468
      %v7694 = vunpack.c.l.b16 %v7469
      %v7695 = vunpack.c.h.b16 %v7469
      %v7696 = vunpack.c.l.b16 %v7470
      %v7697 = vunpack.c.h.b16 %v7470
      %v7698 = vunpack.c.l.b16 %v7471
      %v7699 = vunpack.c.h.b16 %v7471
      %v7700 = vunpack.c.l.b16 %v7472
      %v7701 = vunpack.c.h.b16 %v7472
      %v7702 = vunpack.c.l.b16 %v7473
      %v7703 = vunpack.c.h.b16 %v7473
      %v7704 = vunpack.c.l.b16 %v7474
      %v7705 = vunpack.c.h.b16 %v7474
      %v7706 = vunpack.c.l.b16 %v7475
      %v7707 = vunpack.c.h.b16 %v7475
      %v7708 = vunpack.c.l.b16 %v7476
      %v7709 = vunpack.c.h.b16 %v7476
      %v7710 = vunpack.c.l.b16 %v7477
      %v7711 = vunpack.c.h.b16 %v7477
      %v7712 = vunpack.c.l.b16 %v7478
      %v7713 = vunpack.c.h.b16 %v7478
      %v7714 = vunpack.c.l.b16 %v7479
      %v7715 = vunpack.c.h.b16 %v7479
      %v7716 = vunpack.c.l.b16 %v7480
      %v7717 = vunpack.c.h.b16 %v7480
      %v7718 = vunpack.c.l.b16 %v7481
      %v7719 = vunpack.c.h.b16 %v7481
      %v7720 = vunpack.c.l.b16 %v7482
      %v7721 = vunpack.c.h.b16 %v7482
      %v7722 = vunpack.c.l.b16 %v7483
      %v7723 = vunpack.c.h.b16 %v7483
      %v7724 = vunpack.c.l.b16 %v7484
      %v7725 = vunpack.c.h.b16 %v7484
      %v7726 = vunpack.c.l.b16 %v7485
      %v7727 = vunpack.c.h.b16 %v7485
      %v7728 = vunpack.c.l.b16 %v7486
      %v7729 = vunpack.c.h.b16 %v7486
      %v7730 = vunpack.c.l.b16 %v7487
      %v7731 = vunpack.c.h.b16 %v7487
      %v7732 = vunpack.c.l.b16 %v7488
      %v7733 = vunpack.c.h.b16 %v7488
      %v7734 = vunpack.c.l.b16 %v7489
      %v7735 = vunpack.c.h.b16 %v7489
      %v7736 = vunpack.c.l.b16 %v7490
      %v7737 = vunpack.c.h.b16 %v7490
      %v7738 = vunpack.c.l.b16 %v7491
      %v7739 = vunpack.c.h.b16 %v7491
      %v7740 = vunpack.c.l.b16 %v7492
      %v7741 = vunpack.c.h.b16 %v7492
      %v7742 = vunpack.c.l.b16 %v7493
      %v7743 = vunpack.c.h.b16 %v7493
      %v7744 = vpack.c.b16 %v7586, %v7584
      %v7745 = vpack.c.b16 %v7587, %v7585
      %v7746 = vpack.c.b16 %v7590, %v7588
      %v7747 = vpack.c.b16 %v7591, %v7589
      %v7748 = vpack.c.b16 %v7594, %v7592
      %v7749 = vpack.c.b16 %v7595, %v7593
      %v7750 = vpack.c.b16 %v7598, %v7596
      %v7751 = vpack.c.b16 %v7599, %v7597
      %v7752 = vpack.c.b16 %v7602, %v7600
      %v7753 = vpack.c.b16 %v7603, %v7601
      %v7754 = vpack.c.b16 %v7606, %v7604
      %v7755 = vpack.c.b16 %v7607, %v7605
      %v7756 = vpack.c.b16 %v7610, %v7608
      %v7757 = vpack.c.b16 %v7611, %v7609
      %v7758 = vpack.c.b16 %v7614, %v7612
      %v7759 = vpack.c.b16 %v7615, %v7613
      %v7760 = vpack.c.b16 %v7618, %v7616
      %v7761 = vpack.c.b16 %v7619, %v7617
      %v7762 = vpack.c.b16 %v7622, %v7620
      %v7763 = vpack.c.b16 %v7623, %v7621
      %v7764 = vpack.c.b16 %v7626, %v7624
      %v7765 = vpack.c.b16 %v7627, %v7625
      %v7766 = vpack.c.b16 %v7630, %v7628
      %v7767 = vpack.c.b16 %v7631, %v7629
      %v7768 = vpack.c.b16 %v7634, %v7632
      %v7769 = vpack.c.b16 %v7635, %v7633
      %v7770 = vpack.c.b16 %v7638, %v7636
      %v7771 = vpack.c.b16 %v7639, %v7637
      %v7772 = vpack.c.b16 %v7642, %v7640
      %v7773 = vpack.c.b16 %v7643, %v7641
      %v7774 = vpack.c.b16 %v7646, %v7644
      %v7775 = vpack.c.b16 %v7647, %v7645
      %v7776 = vpack.c.b16 %v7650, %v7648
      %v7777 = vpack.c.b16 %v7651, %v7649
      %v7778 = vpack.c.b16 %v7654, %v7652
      %v7779 = vpack.c.b16 %v7655, %v7653
      %v7780 = vpack.c.b16 %v7658, %v7656
      %v7781 = vpack.c.b16 %v7659, %v7657
      %v7782 = vpack.c.b16 %v7662, %v7660
      %v7783 = vpack.c.b16 %v7663, %v7661
      %v7784 = vpack.c.b16 %v7666, %v7664
      %v7785 = vpack.c.b16 %v7667, %v7665
      %v7786 = vpack.c.b16 %v7670, %v7668
      %v7787 = vpack.c.b16 %v7671, %v7669
      %v7788 = vpack.c.b16 %v7674, %v7672
      %v7789 = vpack.c.b16 %v7675, %v7673
      %v7790 = vpack.c.b16 %v7678, %v7676
      %v7791 = vpack.c.b16 %v7679, %v7677
      %v7792 = vpack.c.b16 %v7682, %v7680
      %v7793 = vpack.c.b16 %v7683, %v7681
      %v7794 = vpack.c.b16 %v7686, %v7684
      %v7795 = vpack.c.b16 %v7687, %v7685
      %v7796 = vpack.c.b16 %v7690, %v7688
      %v7797 = vpack.c.b16 %v7691, %v7689
      %v7798 = vpack.c.b16 %v7694, %v7692
      %v7799 = vpack.c.b16 %v7695, %v7693
      %v7800 = vpack.c.b16 %v7698, %v7696
      %v7801 = vpack.c.b16 %v7699, %v7697
      %v7802 = vpack.c.b16 %v7702, %v7700
      %v7803 = vpack.c.b16 %v7703, %v7701
      %v7804 = vpack.c.b16 %v7706, %v7704
      %v7805 = vpack.c.b16 %v7707, %v7705
      %v7806 = vpack.c.b16 %v7710, %v7708
      %v7807 = vpack.c.b16 %v7711, %v7709
      %v7808 = vpack.c.b16 %v7714, %v7712
      %v7809 = vpack.c.b16 %v7715, %v7713
      %v7810 = vpack.c.b16 %v7718, %v7716
      %v7811 = vpack.c.b16 %v7719, %v7717
      %v7812 = vpack.c.b16 %v7722, %v7720
      %v7813 = vpack.c.b16 %v7723, %v7721
      %v7814 = vpack.c.b16 %v7726, %v7724
      %v7815 = vpack.c.b16 %v7727, %v7725
      %v7816 = vpack.c.b16 %v7730, %v7728
      %v7817 = vpack.c.b16 %v7731, %v7729
      %v7818 = vpack.c.b16 %v7734, %v7732
      %v7819 = vpack.c.b16 %v7735, %v7733
      %v7820 = vpack.c.b16 %v7738, %v7736
      %v7821 = vpack.c.b16 %v7739, %v7737
      %v7822 = vpack.c.b16 %v7742, %v7740
      %v7823 = vpack.c.b16 %v7743, %v7741
      %7904 = vmatprep.subr.bf16.mxu0 %v7745
      %7905 = vmatpush1.bf16.msra.mxu0 %v7744
      %7906 = vmatprep.subr.bf16.mxu0 %v7747
      %7907 = vmatpush1.bf16.msra.mxu0 %v7746
      %7908 = vmatprep.subr.bf16.mxu0 %v7749
      %7909 = vmatpush1.bf16.msra.mxu0 %v7748
      %7910 = vmatprep.subr.bf16.mxu0 %v7751
      %7911 = vmatpush1.bf16.msra.mxu0 %v7750
      %7912 = vmatprep.subr.bf16.mxu0 %v7753
      %7913 = vmatpush1.bf16.msra.mxu0 %v7752
      %7914 = vmatprep.subr.bf16.mxu0 %v7755
      %7915 = vmatpush1.bf16.msra.mxu0 %v7754
      %7916 = vmatprep.subr.bf16.mxu0 %v7757
      %7917 = vmatpush1.bf16.msra.mxu0 %v7756
      %7918 = vmatprep.subr.bf16.mxu0 %v7759
      %7919 = vmatpush1.bf16.msra.mxu0 %v7758
      %7920 = vmatprep.subr.bf16.mxu0 %v7761
      %7921 = vmatpush1.bf16.msra.mxu0 %v7760
      %7922 = vmatprep.subr.bf16.mxu0 %v7763
      %7923 = vmatpush1.bf16.msra.mxu0 %v7762
      %7924 = vmatprep.subr.bf16.mxu0 %v7765
      %7925 = vmatpush1.bf16.msra.mxu0 %v7764
      %7926 = vmatprep.subr.bf16.mxu0 %v7767
      %7927 = vmatpush1.bf16.msra.mxu0 %v7766
      %7928 = vmatprep.subr.bf16.mxu0 %v7769
      %7929 = vmatpush1.bf16.msra.mxu0 %v7768
      %7930 = vmatprep.subr.bf16.mxu0 %v7771
      %7931 = vmatpush1.bf16.msra.mxu0 %v7770
      %7932 = vmatprep.subr.bf16.mxu0 %v7773
      %7933 = vmatpush1.bf16.msra.mxu0 %v7772
      %7934 = vmatprep.subr.bf16.mxu0 %v7775
      %7935 = vmatpush1.bf16.msra.mxu0 %v7774
      %7936 = vmatprep.mubr.bf16.mxu0 %v7495
      %7937 = vmatmul.mubr.bf16.gmra.mrb[0].mxu0 %v7494
      %v7938 = vpop.f32.mrb[0].mxu0
      %v7939 = vadd.f32 0.0, %v7938
      %v7940 = vpop.f32.mrb[0].mxu0
      %v7941 = vadd.f32 0.0, %v7940
      %v7942 = vpop.f32.mrb[0].mxu0
      %v7943 = vpop.f32.mrb[0].mxu0
      %7944 = vdwg.mxu0
      %7945 = vmatprep.subr.bf16.mxu0 %v7777
      %7946 = vmatpush1.bf16.msra.mxu0 %v7776
      %7947 = vmatprep.subr.bf16.mxu0 %v7779
      %7948 = vmatpush1.bf16.msra.mxu0 %v7778
      %7949 = vmatprep.subr.bf16.mxu0 %v7781
      %7950 = vmatpush1.bf16.msra.mxu0 %v7780
      %7951 = vmatprep.subr.bf16.mxu0 %v7783
      %7952 = vmatpush1.bf16.msra.mxu0 %v7782
      %7953 = vmatprep.subr.bf16.mxu0 %v7785
      %7954 = vmatpush1.bf16.msra.mxu0 %v7784
      %7955 = vmatprep.subr.bf16.mxu0 %v7787
      %7956 = vmatpush1.bf16.msra.mxu0 %v7786
      %7957 = vmatprep.subr.bf16.mxu0 %v7789
      %7958 = vmatpush1.bf16.msra.mxu0 %v7788
      %7959 = vmatprep.subr.bf16.mxu0 %v7791
      %7960 = vmatpush1.bf16.msra.mxu0 %v7790
      %7961 = vmatprep.subr.bf16.mxu0 %v7793
      %7962 = vmatpush1.bf16.msra.mxu0 %v7792
      %7963 = vmatprep.subr.bf16.mxu0 %v7795
      %7964 = vmatpush1.bf16.msra.mxu0 %v7794
      %7965 = vmatprep.subr.bf16.mxu0 %v7797
      %7966 = vmatpush1.bf16.msra.mxu0 %v7796
      %7967 = vmatprep.subr.bf16.mxu0 %v7799
      %7968 = vmatpush1.bf16.msra.mxu0 %v7798
      %7969 = vmatprep.subr.bf16.mxu0 %v7801
      %7970 = vmatpush1.bf16.msra.mxu0 %v7800
      %7971 = vmatprep.subr.bf16.mxu0 %v7803
      %7972 = vmatpush1.bf16.msra.mxu0 %v7802
      %7973 = vmatprep.subr.bf16.mxu0 %v7805
      %7974 = vmatpush1.bf16.msra.mxu0 %v7804
      %7975 = vmatprep.subr.bf16.mxu0 %v7807
      %7976 = vmatpush1.bf16.msra.mxu0 %v7806
      %7977 = vmatprep.mubr.bf16.mxu0 %v7497
      %7978 = vmatmul.mubr.bf16.gmra.mrb[0].mxu0 %v7496
      %v7979 = vpop.f32.mrb[0].mxu0
      %v7980 = vadd.f32 %v7939, %v7979
      %v7981 = vpop.f32.mrb[0].mxu0
      %v7982 = vadd.f32 %v7941, %v7981
      %v7983 = vpop.f32.mrb[0].mxu0
      %v7984 = vpop.f32.mrb[0].mxu0
      %7985 = vdwg.mxu0
      %7986 = vmatprep.subr.bf16.mxu0 %v7809
      %7987 = vmatpush1.bf16.msra.mxu0 %v7808
      %7988 = vmatprep.subr.bf16.mxu0 %v7811
      %7989 = vmatpush1.bf16.msra.mxu0 %v7810
      %7990 = vmatprep.subr.bf16.mxu0 %v7813
      %7991 = vmatpush1.bf16.msra.mxu0 %v7812
      %7992 = vmatprep.subr.bf16.mxu0 %v7815
      %7993 = vmatpush1.bf16.msra.mxu0 %v7814
      %7994 = vmatprep.subr.bf16.mxu0 %v7817
      %7995 = vmatpush1.bf16.msra.mxu0 %v7816
      %7996 = vmatprep.subr.bf16.mxu0 %v7819
      %7997 = vmatpush1.bf16.msra.mxu0 %v7818
      %7998 = vmatprep.subr.bf16.mxu0 %v7821
      %7999 = vmatpush1.bf16.msra.mxu0 %v7820
      %8000 = vmatprep.subr.bf16.mxu0 %v7823
      %8001 = vmatpush1.bf16.msra.mxu0 %v7822
      %8002 = vmatprep.subr.bf16.mxu0 0
      %8003 = vmatpush1.bf16.msra.mxu0 0
      %8004 = vmatprep.subr.bf16.mxu0 0
      %8005 = vmatpush1.bf16.msra.mxu0 0
      %8006 = vmatprep.subr.bf16.mxu0 0
      %8007 = vmatpush1.bf16.msra.mxu0 0
      %8008 = vmatprep.subr.bf16.mxu0 0
      %8009 = vmatpush1.bf16.msra.mxu0 0
      %8010 = vmatprep.subr.bf16.mxu0 0
      %8011 = vmatpush1.bf16.msra.mxu0 0
      %8012 = vmatprep.subr.bf16.mxu0 0
      %8013 = vmatpush1.bf16.msra.mxu0 0
      %8014 = vmatprep.subr.bf16.mxu0 0
      %8015 = vmatpush1.bf16.msra.mxu0 0
      %8016 = vmatprep.subr.bf16.mxu0 0
      %8017 = vmatpush1.bf16.msra.mxu0 0
      %8018 = vmatprep.mubr.bf16.mxu0 0
      %8019 = vmatmul.mubr.bf16.gmra.mrb[0].mxu0 %v7498
      %v8020 = vpop.f32.mrb[0].mxu0
      %v8021 = vadd.f32 %v7980, %v8020
      %v8022 = vpop.f32.mrb[0].mxu0
      %v8023 = vadd.f32 %v7982, %v8022
      %v8024 = vpop.f32.mrb[0].mxu0
      %v8025 = vpop.f32.mrb[0].mxu0
      %8026 = vdwg.mxu0
      %v8027 = vadd.f32 %v7411, %v8021
      %v8028 = vadd.f32 %v7412, %v8023
      %s8029 = scalar_lea.vmem %s6, 7040
      %v8030 = vld [vmem:[%s8029] sm:$0xff]
      %v8031 = vld [vmem:[%s8029 + $0x8] sm:$0xff]
      %v8032 = vld [vmem:[%s8029 + $0x10] sm:$0xff]
      %v8033 = vld [vmem:[%s8029 + $0x18] sm:$0xff]
      %v8034 = vld [vmem:[%s8029 + $0x20] sm:$0xff]
      %v8035 = vld [vmem:[%s8029 + $0x28] sm:$0xff]
      %v8036 = vld [vmem:[%s8029 + $0x30] sm:$0xff]
      %v8037 = vld [vmem:[%s8029 + $0x38] sm:$0xff]
      %v8038 = vld [vmem:[%s8029 + $0x40] sm:$0xff]
      %v8039 = vld [vmem:[%s8029 + $0x48] sm:$0xff]
      %v8040 = vld [vmem:[%s8029 + $0x50] sm:$0xff]
      %v8041 = vld [vmem:[%s8029 + $0x58] sm:$0xff]
      %v8042 = vld [vmem:[%s8029 + $0x60] sm:$0xff]
      %v8043 = vld [vmem:[%s8029 + $0x68] sm:$0xff]
      %v8044 = vld [vmem:[%s8029 + $0x70] sm:$0xff]
      %v8045 = vld [vmem:[%s8029 + $0x78] sm:$0xff]
      %v8046 = vld [vmem:[%s8029 + $0x80] sm:$0xff]
      %v8047 = vld [vmem:[%s8029 + $0x88] sm:$0xff]
      %v8048 = vld [vmem:[%s8029 + $0x90] sm:$0xff]
      %v8049 = vld [vmem:[%s8029 + $0x98] sm:$0xff]
      %v8050 = vld [vmem:[%s8029 + $0xa0] sm:$0xff]
      %v8051 = vld [vmem:[%s8029 + $0xa8] sm:$0xff]
      %v8052 = vld [vmem:[%s8029 + $0xb0] sm:$0xff]
      %v8053 = vld [vmem:[%s8029 + $0xb8] sm:$0xff]
      %v8054 = vld [vmem:[%s8029 + $0xc0] sm:$0xff]
      %v8055 = vld [vmem:[%s8029 + $0xc8] sm:$0xff]
      %v8056 = vld [vmem:[%s8029 + $0xd0] sm:$0xff]
      %v8057 = vld [vmem:[%s8029 + $0xd8] sm:$0xff]
      %v8058 = vld [vmem:[%s8029 + $0xe0] sm:$0xff]
      %v8059 = vld [vmem:[%s8029 + $0xe8] sm:$0xff]
      %v8060 = vld [vmem:[%s8029 + $0xf0] sm:$0xff]
      %v8061 = vld [vmem:[%s8029 + $0xf8] sm:$0xff]
      %v8062 = vld [vmem:[%s8029 + $0x100] sm:$0xff]
      %v8063 = vld [vmem:[%s8029 + $0x108] sm:$0xff]
      %v8064 = vld [vmem:[%s8029 + $0x110] sm:$0xff]
      %v8065 = vld [vmem:[%s8029 + $0x118] sm:$0xff]
      %v8066 = vld [vmem:[%s8029 + $0x120] sm:$0xff]
      %v8067 = vld [vmem:[%s8029 + $0x128] sm:$0xff]
      %v8068 = vld [vmem:[%s8029 + $0x130] sm:$0xff]
      %v8069 = vld [vmem:[%s8029 + $0x138] sm:$0xff]
      %v8070 = vld [vmem:[%s8029 + $0x140] sm:$0xff]
      %v8071 = vld [vmem:[%s8029 + $0x148] sm:$0xff]
      %v8072 = vld [vmem:[%s8029 + $0x150] sm:$0xff]
      %v8073 = vld [vmem:[%s8029 + $0x158] sm:$0xff]
      %v8074 = vld [vmem:[%s8029 + $0x160] sm:$0xff]
      %v8075 = vld [vmem:[%s8029 + $0x168] sm:$0xff]
      %v8076 = vld [vmem:[%s8029 + $0x170] sm:$0xff]
      %v8077 = vld [vmem:[%s8029 + $0x178] sm:$0xff]
      %v8078 = vld [vmem:[%s8029 + $0x180] sm:$0xff]
      %v8079 = vld [vmem:[%s8029 + $0x188] sm:$0xff]
      %v8080 = vld [vmem:[%s8029 + $0x190] sm:$0xff]
      %v8081 = vld [vmem:[%s8029 + $0x198] sm:$0xff]
      %v8082 = vld [vmem:[%s8029 + $0x1a0] sm:$0xff]
      %v8083 = vld [vmem:[%s8029 + $0x1a8] sm:$0xff]
      %v8084 = vld [vmem:[%s8029 + $0x1b0] sm:$0xff]
      %v8085 = vld [vmem:[%s8029 + $0x1b8] sm:$0xff]
      %v8086 = vld [vmem:[%s8029 + $0x1c0] sm:$0xff]
      %v8087 = vld [vmem:[%s8029 + $0x1c8] sm:$0xff]
      %v8088 = vld [vmem:[%s8029 + $0x1d0] sm:$0xff]
      %v8089 = vld [vmem:[%s8029 + $0x1d8] sm:$0xff]
      %v8090 = vld [vmem:[%s8029 + $0x1e0] sm:$0xff]
      %v8091 = vld [vmem:[%s8029 + $0x1e8] sm:$0xff]
      %v8092 = vld [vmem:[%s8029 + $0x1f0] sm:$0xff]
      %v8093 = vld [vmem:[%s8029 + $0x1f8] sm:$0xff]
      %v8094 = vld [vmem:[%s8029 + $0x200] sm:$0xff]
      %v8095 = vld [vmem:[%s8029 + $0x208] sm:$0xff]
      %v8096 = vld [vmem:[%s8029 + $0x210] sm:$0xff]
      %v8097 = vld [vmem:[%s8029 + $0x218] sm:$0xff]
      %v8098 = vld [vmem:[%s8029 + $0x220] sm:$0xff]
      %v8099 = vld [vmem:[%s8029 + $0x228] sm:$0xff]
      %v8100 = vld [vmem:[%s8029 + $0x230] sm:$0xff]
      %v8101 = vld [vmem:[%s8029 + $0x238] sm:$0xff]
      %v8102 = vld [vmem:[%s8029 + $0x240] sm:$0xff]
      %v8103 = vld [vmem:[%s8029 + $0x248] sm:$0xff]
      %v8104 = vld [vmem:[%s8029 + $0x250] sm:$0xff]
      %v8105 = vld [vmem:[%s8029 + $0x258] sm:$0xff]
      %v8106 = vld [vmem:[%s8029 + $0x260] sm:$0xff]
      %v8107 = vld [vmem:[%s8029 + $0x268] sm:$0xff]
      %v8108 = vld [vmem:[%s8029 + $0x270] sm:$0xff]
      %v8109 = vld [vmem:[%s8029 + $0x278] sm:$0xff]
      %v8110 = vrot.slane %v1415, 5
      %v8111 = vrot.slane %v1418, 5
      %v8112 = vrot.slane %v1421, 5
      %v8113 = vrot.slane %v1424, 5
      %v8114 = vrot.slane %v1427, 5
      %v8200 = vunpack.c.l.b16 %v8030
      %v8201 = vunpack.c.h.b16 %v8030
      %v8202 = vunpack.c.l.b16 %v8031
      %v8203 = vunpack.c.h.b16 %v8031
      %v8204 = vunpack.c.l.b16 %v8032
      %v8205 = vunpack.c.h.b16 %v8032
      %v8206 = vunpack.c.l.b16 %v8033
      %v8207 = vunpack.c.h.b16 %v8033
      %v8208 = vunpack.c.l.b16 %v8034
      %v8209 = vunpack.c.h.b16 %v8034
      %v8210 = vunpack.c.l.b16 %v8035
      %v8211 = vunpack.c.h.b16 %v8035
      %v8212 = vunpack.c.l.b16 %v8036
      %v8213 = vunpack.c.h.b16 %v8036
      %v8214 = vunpack.c.l.b16 %v8037
      %v8215 = vunpack.c.h.b16 %v8037
      %v8216 = vunpack.c.l.b16 %v8038
      %v8217 = vunpack.c.h.b16 %v8038
      %v8218 = vunpack.c.l.b16 %v8039
      %v8219 = vunpack.c.h.b16 %v8039
      %v8220 = vunpack.c.l.b16 %v8040
      %v8221 = vunpack.c.h.b16 %v8040
      %v8222 = vunpack.c.l.b16 %v8041
      %v8223 = vunpack.c.h.b16 %v8041
      %v8224 = vunpack.c.l.b16 %v8042
      %v8225 = vunpack.c.h.b16 %v8042
      %v8226 = vunpack.c.l.b16 %v8043
      %v8227 = vunpack.c.h.b16 %v8043
      %v8228 = vunpack.c.l.b16 %v8044
      %v8229 = vunpack.c.h.b16 %v8044
      %v8230 = vunpack.c.l.b16 %v8045
      %v8231 = vunpack.c.h.b16 %v8045
      %v8232 = vunpack.c.l.b16 %v8046
      %v8233 = vunpack.c.h.b16 %v8046
      %v8234 = vunpack.c.l.b16 %v8047
      %v8235 = vunpack.c.h.b16 %v8047
      %v8236 = vunpack.c.l.b16 %v8048
      %v8237 = vunpack.c.h.b16 %v8048
      %v8238 = vunpack.c.l.b16 %v8049
      %v8239 = vunpack.c.h.b16 %v8049
      %v8240 = vunpack.c.l.b16 %v8050
      %v8241 = vunpack.c.h.b16 %v8050
      %v8242 = vunpack.c.l.b16 %v8051
      %v8243 = vunpack.c.h.b16 %v8051
      %v8244 = vunpack.c.l.b16 %v8052
      %v8245 = vunpack.c.h.b16 %v8052
      %v8246 = vunpack.c.l.b16 %v8053
      %v8247 = vunpack.c.h.b16 %v8053
      %v8248 = vunpack.c.l.b16 %v8054
      %v8249 = vunpack.c.h.b16 %v8054
      %v8250 = vunpack.c.l.b16 %v8055
      %v8251 = vunpack.c.h.b16 %v8055
      %v8252 = vunpack.c.l.b16 %v8056
      %v8253 = vunpack.c.h.b16 %v8056
      %v8254 = vunpack.c.l.b16 %v8057
      %v8255 = vunpack.c.h.b16 %v8057
      %v8256 = vunpack.c.l.b16 %v8058
      %v8257 = vunpack.c.h.b16 %v8058
      %v8258 = vunpack.c.l.b16 %v8059
      %v8259 = vunpack.c.h.b16 %v8059
      %v8260 = vunpack.c.l.b16 %v8060
      %v8261 = vunpack.c.h.b16 %v8060
      %v8262 = vunpack.c.l.b16 %v8061
      %v8263 = vunpack.c.h.b16 %v8061
      %v8264 = vunpack.c.l.b16 %v8062
      %v8265 = vunpack.c.h.b16 %v8062
      %v8266 = vunpack.c.l.b16 %v8063
      %v8267 = vunpack.c.h.b16 %v8063
      %v8268 = vunpack.c.l.b16 %v8064
      %v8269 = vunpack.c.h.b16 %v8064
      %v8270 = vunpack.c.l.b16 %v8065
      %v8271 = vunpack.c.h.b16 %v8065
      %v8272 = vunpack.c.l.b16 %v8066
      %v8273 = vunpack.c.h.b16 %v8066
      %v8274 = vunpack.c.l.b16 %v8067
      %v8275 = vunpack.c.h.b16 %v8067
      %v8276 = vunpack.c.l.b16 %v8068
      %v8277 = vunpack.c.h.b16 %v8068
      %v8278 = vunpack.c.l.b16 %v8069
      %v8279 = vunpack.c.h.b16 %v8069
      %v8280 = vunpack.c.l.b16 %v8070
      %v8281 = vunpack.c.h.b16 %v8070
      %v8282 = vunpack.c.l.b16 %v8071
      %v8283 = vunpack.c.h.b16 %v8071
      %v8284 = vunpack.c.l.b16 %v8072
      %v8285 = vunpack.c.h.b16 %v8072
      %v8286 = vunpack.c.l.b16 %v8073
      %v8287 = vunpack.c.h.b16 %v8073
      %v8288 = vunpack.c.l.b16 %v8074
      %v8289 = vunpack.c.h.b16 %v8074
      %v8290 = vunpack.c.l.b16 %v8075
      %v8291 = vunpack.c.h.b16 %v8075
      %v8292 = vunpack.c.l.b16 %v8076
      %v8293 = vunpack.c.h.b16 %v8076
      %v8294 = vunpack.c.l.b16 %v8077
      %v8295 = vunpack.c.h.b16 %v8077
      %v8296 = vunpack.c.l.b16 %v8078
      %v8297 = vunpack.c.h.b16 %v8078
      %v8298 = vunpack.c.l.b16 %v8079
      %v8299 = vunpack.c.h.b16 %v8079
      %v8300 = vunpack.c.l.b16 %v8080
      %v8301 = vunpack.c.h.b16 %v8080
      %v8302 = vunpack.c.l.b16 %v8081
      %v8303 = vunpack.c.h.b16 %v8081
      %v8304 = vunpack.c.l.b16 %v8082
      %v8305 = vunpack.c.h.b16 %v8082
      %v8306 = vunpack.c.l.b16 %v8083
      %v8307 = vunpack.c.h.b16 %v8083
      %v8308 = vunpack.c.l.b16 %v8084
      %v8309 = vunpack.c.h.b16 %v8084
      %v8310 = vunpack.c.l.b16 %v8085
      %v8311 = vunpack.c.h.b16 %v8085
      %v8312 = vunpack.c.l.b16 %v8086
      %v8313 = vunpack.c.h.b16 %v8086
      %v8314 = vunpack.c.l.b16 %v8087
      %v8315 = vunpack.c.h.b16 %v8087
      %v8316 = vunpack.c.l.b16 %v8088
      %v8317 = vunpack.c.h.b16 %v8088
      %v8318 = vunpack.c.l.b16 %v8089
      %v8319 = vunpack.c.h.b16 %v8089
      %v8320 = vunpack.c.l.b16 %v8090
      %v8321 = vunpack.c.h.b16 %v8090
      %v8322 = vunpack.c.l.b16 %v8091
      %v8323 = vunpack.c.h.b16 %v8091
      %v8324 = vunpack.c.l.b16 %v8092
      %v8325 = vunpack.c.h.b16 %v8092
      %v8326 = vunpack.c.l.b16 %v8093
      %v8327 = vunpack.c.h.b16 %v8093
      %v8328 = vunpack.c.l.b16 %v8094
      %v8329 = vunpack.c.h.b16 %v8094
      %v8330 = vunpack.c.l.b16 %v8095
      %v8331 = vunpack.c.h.b16 %v8095
      %v8332 = vunpack.c.l.b16 %v8096
      %v8333 = vunpack.c.h.b16 %v8096
      %v8334 = vunpack.c.l.b16 %v8097
      %v8335 = vunpack.c.h.b16 %v8097
      %v8336 = vunpack.c.l.b16 %v8098
      %v8337 = vunpack.c.h.b16 %v8098
      %v8338 = vunpack.c.l.b16 %v8099
      %v8339 = vunpack.c.h.b16 %v8099
      %v8340 = vunpack.c.l.b16 %v8100
      %v8341 = vunpack.c.h.b16 %v8100
      %v8342 = vunpack.c.l.b16 %v8101
      %v8343 = vunpack.c.h.b16 %v8101
      %v8344 = vunpack.c.l.b16 %v8102
      %v8345 = vunpack.c.h.b16 %v8102
      %v8346 = vunpack.c.l.b16 %v8103
      %v8347 = vunpack.c.h.b16 %v8103
      %v8348 = vunpack.c.l.b16 %v8104
      %v8349 = vunpack.c.h.b16 %v8104
      %v8350 = vunpack.c.l.b16 %v8105
      %v8351 = vunpack.c.h.b16 %v8105
      %v8352 = vunpack.c.l.b16 %v8106
      %v8353 = vunpack.c.h.b16 %v8106
      %v8354 = vunpack.c.l.b16 %v8107
      %v8355 = vunpack.c.h.b16 %v8107
      %v8356 = vunpack.c.l.b16 %v8108
      %v8357 = vunpack.c.h.b16 %v8108
      %v8358 = vunpack.c.l.b16 %v8109
      %v8359 = vunpack.c.h.b16 %v8109
      %v8360 = vpack.c.b16 %v8202, %v8200
      %v8361 = vpack.c.b16 %v8203, %v8201
      %v8362 = vpack.c.b16 %v8206, %v8204
      %v8363 = vpack.c.b16 %v8207, %v8205
      %v8364 = vpack.c.b16 %v8210, %v8208
      %v8365 = vpack.c.b16 %v8211, %v8209
      %v8366 = vpack.c.b16 %v8214, %v8212
      %v8367 = vpack.c.b16 %v8215, %v8213
      %v8368 = vpack.c.b16 %v8218, %v8216
      %v8369 = vpack.c.b16 %v8219, %v8217
      %v8370 = vpack.c.b16 %v8222, %v8220
      %v8371 = vpack.c.b16 %v8223, %v8221
      %v8372 = vpack.c.b16 %v8226, %v8224
      %v8373 = vpack.c.b16 %v8227, %v8225
      %v8374 = vpack.c.b16 %v8230, %v8228
      %v8375 = vpack.c.b16 %v8231, %v8229
      %v8376 = vpack.c.b16 %v8234, %v8232
      %v8377 = vpack.c.b16 %v8235, %v8233
      %v8378 = vpack.c.b16 %v8238, %v8236
      %v8379 = vpack.c.b16 %v8239, %v8237
      %v8380 = vpack.c.b16 %v8242, %v8240
      %v8381 = vpack.c.b16 %v8243, %v8241
      %v8382 = vpack.c.b16 %v8246, %v8244
      %v8383 = vpack.c.b16 %v8247, %v8245
      %v8384 = vpack.c.b16 %v8250, %v8248
      %v8385 = vpack.c.b16 %v8251, %v8249
      %v8386 = vpack.c.b16 %v8254, %v8252
      %v8387 = vpack.c.b16 %v8255, %v8253
      %v8388 = vpack.c.b16 %v8258, %v8256
      %v8389 = vpack.c.b16 %v8259, %v8257
      %v8390 = vpack.c.b16 %v8262, %v8260
      %v8391 = vpack.c.b16 %v8263, %v8261
      %v8392 = vpack.c.b16 %v8266, %v8264
      %v8393 = vpack.c.b16 %v8267, %v8265
      %v8394 = vpack.c.b16 %v8270, %v8268
      %v8395 = vpack.c.b16 %v8271, %v8269
      %v8396 = vpack.c.b16 %v8274, %v8272
      %v8397 = vpack.c.b16 %v8275, %v8273
      %v8398 = vpack.c.b16 %v8278, %v8276
      %v8399 = vpack.c.b16 %v8279, %v8277
      %v8400 = vpack.c.b16 %v8282, %v8280
      %v8401 = vpack.c.b16 %v8283, %v8281
      %v8402 = vpack.c.b16 %v8286, %v8284
      %v8403 = vpack.c.b16 %v8287, %v8285
      %v8404 = vpack.c.b16 %v8290, %v8288
      %v8405 = vpack.c.b16 %v8291, %v8289
      %v8406 = vpack.c.b16 %v8294, %v8292
      %v8407 = vpack.c.b16 %v8295, %v8293
      %v8408 = vpack.c.b16 %v8298, %v8296
      %v8409 = vpack.c.b16 %v8299, %v8297
      %v8410 = vpack.c.b16 %v8302, %v8300
      %v8411 = vpack.c.b16 %v8303, %v8301
      %v8412 = vpack.c.b16 %v8306, %v8304
      %v8413 = vpack.c.b16 %v8307, %v8305
      %v8414 = vpack.c.b16 %v8310, %v8308
      %v8415 = vpack.c.b16 %v8311, %v8309
      %v8416 = vpack.c.b16 %v8314, %v8312
      %v8417 = vpack.c.b16 %v8315, %v8313
      %v8418 = vpack.c.b16 %v8318, %v8316
      %v8419 = vpack.c.b16 %v8319, %v8317
      %v8420 = vpack.c.b16 %v8322, %v8320
      %v8421 = vpack.c.b16 %v8323, %v8321
      %v8422 = vpack.c.b16 %v8326, %v8324
      %v8423 = vpack.c.b16 %v8327, %v8325
      %v8424 = vpack.c.b16 %v8330, %v8328
      %v8425 = vpack.c.b16 %v8331, %v8329
      %v8426 = vpack.c.b16 %v8334, %v8332
      %v8427 = vpack.c.b16 %v8335, %v8333
      %v8428 = vpack.c.b16 %v8338, %v8336
      %v8429 = vpack.c.b16 %v8339, %v8337
      %v8430 = vpack.c.b16 %v8342, %v8340
      %v8431 = vpack.c.b16 %v8343, %v8341
      %v8432 = vpack.c.b16 %v8346, %v8344
      %v8433 = vpack.c.b16 %v8347, %v8345
      %v8434 = vpack.c.b16 %v8350, %v8348
      %v8435 = vpack.c.b16 %v8351, %v8349
      %v8436 = vpack.c.b16 %v8354, %v8352
      %v8437 = vpack.c.b16 %v8355, %v8353
      %v8438 = vpack.c.b16 %v8358, %v8356
      %v8439 = vpack.c.b16 %v8359, %v8357
      %8520 = vmatprep.subr.bf16.mxu0 %v8361
      %8521 = vmatpush1.bf16.msra.mxu0 %v8360
      %8522 = vmatprep.subr.bf16.mxu0 %v8363
      %8523 = vmatpush1.bf16.msra.mxu0 %v8362
      %8524 = vmatprep.subr.bf16.mxu0 %v8365
      %8525 = vmatpush1.bf16.msra.mxu0 %v8364
      %8526 = vmatprep.subr.bf16.mxu0 %v8367
      %8527 = vmatpush1.bf16.msra.mxu0 %v8366
      %8528 = vmatprep.subr.bf16.mxu0 %v8369
      %8529 = vmatpush1.bf16.msra.mxu0 %v8368
      %8530 = vmatprep.subr.bf16.mxu0 %v8371
      %8531 = vmatpush1.bf16.msra.mxu0 %v8370
      %8532 = vmatprep.subr.bf16.mxu0 %v8373
      %8533 = vmatpush1.bf16.msra.mxu0 %v8372
      %8534 = vmatprep.subr.bf16.mxu0 %v8375
      %8535 = vmatpush1.bf16.msra.mxu0 %v8374
      %8536 = vmatprep.subr.bf16.mxu0 %v8377
      %8537 = vmatpush1.bf16.msra.mxu0 %v8376
      %8538 = vmatprep.subr.bf16.mxu0 %v8379
      %8539 = vmatpush1.bf16.msra.mxu0 %v8378
      %8540 = vmatprep.subr.bf16.mxu0 %v8381
      %8541 = vmatpush1.bf16.msra.mxu0 %v8380
      %8542 = vmatprep.subr.bf16.mxu0 %v8383
      %8543 = vmatpush1.bf16.msra.mxu0 %v8382
      %8544 = vmatprep.subr.bf16.mxu0 %v8385
      %8545 = vmatpush1.bf16.msra.mxu0 %v8384
      %8546 = vmatprep.subr.bf16.mxu0 %v8387
      %8547 = vmatpush1.bf16.msra.mxu0 %v8386
      %8548 = vmatprep.subr.bf16.mxu0 %v8389
      %8549 = vmatpush1.bf16.msra.mxu0 %v8388
      %8550 = vmatprep.subr.bf16.mxu0 %v8391
      %8551 = vmatpush1.bf16.msra.mxu0 %v8390
      %8552 = vmatprep.mubr.bf16.mxu0 %v8111
      %8553 = vmatmul.mubr.bf16.gmra.mrb[0].mxu0 %v8110
      %v8554 = vpop.f32.mrb[0].mxu0
      %v8555 = vadd.f32 0.0, %v8554
      %v8556 = vpop.f32.mrb[0].mxu0
      %v8557 = vadd.f32 0.0, %v8556
      %v8558 = vpop.f32.mrb[0].mxu0
      %v8559 = vpop.f32.mrb[0].mxu0
      %8560 = vdwg.mxu0
      %8561 = vmatprep.subr.bf16.mxu0 %v8393
      %8562 = vmatpush1.bf16.msra.mxu0 %v8392
      %8563 = vmatprep.subr.bf16.mxu0 %v8395
      %8564 = vmatpush1.bf16.msra.mxu0 %v8394
      %8565 = vmatprep.subr.bf16.mxu0 %v8397
      %8566 = vmatpush1.bf16.msra.mxu0 %v8396
      %8567 = vmatprep.subr.bf16.mxu0 %v8399
      %8568 = vmatpush1.bf16.msra.mxu0 %v8398
      %8569 = vmatprep.subr.bf16.mxu0 %v8401
      %8570 = vmatpush1.bf16.msra.mxu0 %v8400
      %8571 = vmatprep.subr.bf16.mxu0 %v8403
      %8572 = vmatpush1.bf16.msra.mxu0 %v8402
      %8573 = vmatprep.subr.bf16.mxu0 %v8405
      %8574 = vmatpush1.bf16.msra.mxu0 %v8404
      %8575 = vmatprep.subr.bf16.mxu0 %v8407
      %8576 = vmatpush1.bf16.msra.mxu0 %v8406
      %8577 = vmatprep.subr.bf16.mxu0 %v8409
      %8578 = vmatpush1.bf16.msra.mxu0 %v8408
      %8579 = vmatprep.subr.bf16.mxu0 %v8411
      %8580 = vmatpush1.bf16.msra.mxu0 %v8410
      %8581 = vmatprep.subr.bf16.mxu0 %v8413
      %8582 = vmatpush1.bf16.msra.mxu0 %v8412
      %8583 = vmatprep.subr.bf16.mxu0 %v8415
      %8584 = vmatpush1.bf16.msra.mxu0 %v8414
      %8585 = vmatprep.subr.bf16.mxu0 %v8417
      %8586 = vmatpush1.bf16.msra.mxu0 %v8416
      %8587 = vmatprep.subr.bf16.mxu0 %v8419
      %8588 = vmatpush1.bf16.msra.mxu0 %v8418
      %8589 = vmatprep.subr.bf16.mxu0 %v8421
      %8590 = vmatpush1.bf16.msra.mxu0 %v8420
      %8591 = vmatprep.subr.bf16.mxu0 %v8423
      %8592 = vmatpush1.bf16.msra.mxu0 %v8422
      %8593 = vmatprep.mubr.bf16.mxu0 %v8113
      %8594 = vmatmul.mubr.bf16.gmra.mrb[0].mxu0 %v8112
      %v8595 = vpop.f32.mrb[0].mxu0
      %v8596 = vadd.f32 %v8555, %v8595
      %v8597 = vpop.f32.mrb[0].mxu0
      %v8598 = vadd.f32 %v8557, %v8597
      %v8599 = vpop.f32.mrb[0].mxu0
      %v8600 = vpop.f32.mrb[0].mxu0
      %8601 = vdwg.mxu0
      %8602 = vmatprep.subr.bf16.mxu0 %v8425
      %8603 = vmatpush1.bf16.msra.mxu0 %v8424
      %8604 = vmatprep.subr.bf16.mxu0 %v8427
      %8605 = vmatpush1.bf16.msra.mxu0 %v8426
      %8606 = vmatprep.subr.bf16.mxu0 %v8429
      %8607 = vmatpush1.bf16.msra.mxu0 %v8428
      %8608 = vmatprep.subr.bf16.mxu0 %v8431
      %8609 = vmatpush1.bf16.msra.mxu0 %v8430
      %8610 = vmatprep.subr.bf16.mxu0 %v8433
      %8611 = vmatpush1.bf16.msra.mxu0 %v8432
      %8612 = vmatprep.subr.bf16.mxu0 %v8435
      %8613 = vmatpush1.bf16.msra.mxu0 %v8434
      %8614 = vmatprep.subr.bf16.mxu0 %v8437
      %8615 = vmatpush1.bf16.msra.mxu0 %v8436
      %8616 = vmatprep.subr.bf16.mxu0 %v8439
      %8617 = vmatpush1.bf16.msra.mxu0 %v8438
      %8618 = vmatprep.subr.bf16.mxu0 0
      %8619 = vmatpush1.bf16.msra.mxu0 0
      %8620 = vmatprep.subr.bf16.mxu0 0
      %8621 = vmatpush1.bf16.msra.mxu0 0
      %8622 = vmatprep.subr.bf16.mxu0 0
      %8623 = vmatpush1.bf16.msra.mxu0 0
      %8624 = vmatprep.subr.bf16.mxu0 0
      %8625 = vmatpush1.bf16.msra.mxu0 0
      %8626 = vmatprep.subr.bf16.mxu0 0
      %8627 = vmatpush1.bf16.msra.mxu0 0
      %8628 = vmatprep.subr.bf16.mxu0 0
      %8629 = vmatpush1.bf16.msra.mxu0 0
      %8630 = vmatprep.subr.bf16.mxu0 0
      %8631 = vmatpush1.bf16.msra.mxu0 0
      %8632 = vmatprep.subr.bf16.mxu0 0
      %8633 = vmatpush1.bf16.msra.mxu0 0
      %8634 = vmatprep.mubr.bf16.mxu0 0
      %8635 = vmatmul.mubr.bf16.gmra.mrb[0].mxu0 %v8114
      %v8636 = vpop.f32.mrb[0].mxu0
      %v8637 = vadd.f32 %v8596, %v8636
      %v8638 = vpop.f32.mrb[0].mxu0
      %v8639 = vadd.f32 %v8598, %v8638
      %v8640 = vpop.f32.mrb[0].mxu0
      %v8641 = vpop.f32.mrb[0].mxu0
      %8642 = vdwg.mxu0
      %v8643 = vadd.f32 %v8027, %v8637
      %v8644 = vadd.f32 %v8028, %v8639
      %s8645 = scalar_lea.vmem %s6, 7680
      %v8646 = vld [vmem:[%s8645] sm:$0xff]
      %v8647 = vld [vmem:[%s8645 + $0x8] sm:$0xff]
      %v8648 = vld [vmem:[%s8645 + $0x10] sm:$0xff]
      %v8649 = vld [vmem:[%s8645 + $0x18] sm:$0xff]
      %v8650 = vld [vmem:[%s8645 + $0x20] sm:$0xff]
      %v8651 = vld [vmem:[%s8645 + $0x28] sm:$0xff]
      %v8652 = vld [vmem:[%s8645 + $0x30] sm:$0xff]
      %v8653 = vld [vmem:[%s8645 + $0x38] sm:$0xff]
      %v8654 = vld [vmem:[%s8645 + $0x40] sm:$0xff]
      %v8655 = vld [vmem:[%s8645 + $0x48] sm:$0xff]
      %v8656 = vld [vmem:[%s8645 + $0x50] sm:$0xff]
      %v8657 = vld [vmem:[%s8645 + $0x58] sm:$0xff]
      %v8658 = vld [vmem:[%s8645 + $0x60] sm:$0xff]
      %v8659 = vld [vmem:[%s8645 + $0x68] sm:$0xff]
      %v8660 = vld [vmem:[%s8645 + $0x70] sm:$0xff]
      %v8661 = vld [vmem:[%s8645 + $0x78] sm:$0xff]
      %v8662 = vld [vmem:[%s8645 + $0x80] sm:$0xff]
      %v8663 = vld [vmem:[%s8645 + $0x88] sm:$0xff]
      %v8664 = vld [vmem:[%s8645 + $0x90] sm:$0xff]
      %v8665 = vld [vmem:[%s8645 + $0x98] sm:$0xff]
      %v8666 = vld [vmem:[%s8645 + $0xa0] sm:$0xff]
      %v8667 = vld [vmem:[%s8645 + $0xa8] sm:$0xff]
      %v8668 = vld [vmem:[%s8645 + $0xb0] sm:$0xff]
      %v8669 = vld [vmem:[%s8645 + $0xb8] sm:$0xff]
      %v8670 = vld [vmem:[%s8645 + $0xc0] sm:$0xff]
      %v8671 = vld [vmem:[%s8645 + $0xc8] sm:$0xff]
      %v8672 = vld [vmem:[%s8645 + $0xd0] sm:$0xff]
      %v8673 = vld [vmem:[%s8645 + $0xd8] sm:$0xff]
      %v8674 = vld [vmem:[%s8645 + $0xe0] sm:$0xff]
      %v8675 = vld [vmem:[%s8645 + $0xe8] sm:$0xff]
      %v8676 = vld [vmem:[%s8645 + $0xf0] sm:$0xff]
      %v8677 = vld [vmem:[%s8645 + $0xf8] sm:$0xff]
      %v8678 = vld [vmem:[%s8645 + $0x100] sm:$0xff]
      %v8679 = vld [vmem:[%s8645 + $0x108] sm:$0xff]
      %v8680 = vld [vmem:[%s8645 + $0x110] sm:$0xff]
      %v8681 = vld [vmem:[%s8645 + $0x118] sm:$0xff]
      %v8682 = vld [vmem:[%s8645 + $0x120] sm:$0xff]
      %v8683 = vld [vmem:[%s8645 + $0x128] sm:$0xff]
      %v8684 = vld [vmem:[%s8645 + $0x130] sm:$0xff]
      %v8685 = vld [vmem:[%s8645 + $0x138] sm:$0xff]
      %v8686 = vld [vmem:[%s8645 + $0x140] sm:$0xff]
      %v8687 = vld [vmem:[%s8645 + $0x148] sm:$0xff]
      %v8688 = vld [vmem:[%s8645 + $0x150] sm:$0xff]
      %v8689 = vld [vmem:[%s8645 + $0x158] sm:$0xff]
      %v8690 = vld [vmem:[%s8645 + $0x160] sm:$0xff]
      %v8691 = vld [vmem:[%s8645 + $0x168] sm:$0xff]
      %v8692 = vld [vmem:[%s8645 + $0x170] sm:$0xff]
      %v8693 = vld [vmem:[%s8645 + $0x178] sm:$0xff]
      %v8694 = vld [vmem:[%s8645 + $0x180] sm:$0xff]
      %v8695 = vld [vmem:[%s8645 + $0x188] sm:$0xff]
      %v8696 = vld [vmem:[%s8645 + $0x190] sm:$0xff]
      %v8697 = vld [vmem:[%s8645 + $0x198] sm:$0xff]
      %v8698 = vld [vmem:[%s8645 + $0x1a0] sm:$0xff]
      %v8699 = vld [vmem:[%s8645 + $0x1a8] sm:$0xff]
      %v8700 = vld [vmem:[%s8645 + $0x1b0] sm:$0xff]
      %v8701 = vld [vmem:[%s8645 + $0x1b8] sm:$0xff]
      %v8702 = vld [vmem:[%s8645 + $0x1c0] sm:$0xff]
      %v8703 = vld [vmem:[%s8645 + $0x1c8] sm:$0xff]
      %v8704 = vld [vmem:[%s8645 + $0x1d0] sm:$0xff]
      %v8705 = vld [vmem:[%s8645 + $0x1d8] sm:$0xff]
      %v8706 = vld [vmem:[%s8645 + $0x1e0] sm:$0xff]
      %v8707 = vld [vmem:[%s8645 + $0x1e8] sm:$0xff]
      %v8708 = vld [vmem:[%s8645 + $0x1f0] sm:$0xff]
      %v8709 = vld [vmem:[%s8645 + $0x1f8] sm:$0xff]
      %v8710 = vld [vmem:[%s8645 + $0x200] sm:$0xff]
      %v8711 = vld [vmem:[%s8645 + $0x208] sm:$0xff]
      %v8712 = vld [vmem:[%s8645 + $0x210] sm:$0xff]
      %v8713 = vld [vmem:[%s8645 + $0x218] sm:$0xff]
      %v8714 = vld [vmem:[%s8645 + $0x220] sm:$0xff]
      %v8715 = vld [vmem:[%s8645 + $0x228] sm:$0xff]
      %v8716 = vld [vmem:[%s8645 + $0x230] sm:$0xff]
      %v8717 = vld [vmem:[%s8645 + $0x238] sm:$0xff]
      %v8718 = vld [vmem:[%s8645 + $0x240] sm:$0xff]
      %v8719 = vld [vmem:[%s8645 + $0x248] sm:$0xff]
      %v8720 = vld [vmem:[%s8645 + $0x250] sm:$0xff]
      %v8721 = vld [vmem:[%s8645 + $0x258] sm:$0xff]
      %v8722 = vld [vmem:[%s8645 + $0x260] sm:$0xff]
      %v8723 = vld [vmem:[%s8645 + $0x268] sm:$0xff]
      %v8724 = vld [vmem:[%s8645 + $0x270] sm:$0xff]
      %v8725 = vld [vmem:[%s8645 + $0x278] sm:$0xff]
      %v8726 = vrot.slane %v1243, 6
      %v8727 = vrot.slane %v1244, 6
      %v8728 = vrot.slane %v1245, 6
      %v8729 = vrot.slane %v1246, 6
      %v8730 = vrot.slane %v1247, 6
      %v8816 = vunpack.c.l.b16 %v8646
      %v8817 = vunpack.c.h.b16 %v8646
      %v8818 = vunpack.c.l.b16 %v8647
      %v8819 = vunpack.c.h.b16 %v8647
      %v8820 = vunpack.c.l.b16 %v8648
      %v8821 = vunpack.c.h.b16 %v8648
      %v8822 = vunpack.c.l.b16 %v8649
      %v8823 = vunpack.c.h.b16 %v8649
      %v8824 = vunpack.c.l.b16 %v8650
      %v8825 = vunpack.c.h.b16 %v8650
      %v8826 = vunpack.c.l.b16 %v8651
      %v8827 = vunpack.c.h.b16 %v8651
      %v8828 = vunpack.c.l.b16 %v8652
      %v8829 = vunpack.c.h.b16 %v8652
      %v8830 = vunpack.c.l.b16 %v8653
      %v8831 = vunpack.c.h.b16 %v8653
      %v8832 = vunpack.c.l.b16 %v8654
      %v8833 = vunpack.c.h.b16 %v8654
      %v8834 = vunpack.c.l.b16 %v8655
      %v8835 = vunpack.c.h.b16 %v8655
      %v8836 = vunpack.c.l.b16 %v8656
      %v8837 = vunpack.c.h.b16 %v8656
      %v8838 = vunpack.c.l.b16 %v8657
      %v8839 = vunpack.c.h.b16 %v8657
      %v8840 = vunpack.c.l.b16 %v8658
      %v8841 = vunpack.c.h.b16 %v8658
      %v8842 = vunpack.c.l.b16 %v8659
      %v8843 = vunpack.c.h.b16 %v8659
      %v8844 = vunpack.c.l.b16 %v8660
      %v8845 = vunpack.c.h.b16 %v8660
      %v8846 = vunpack.c.l.b16 %v8661
      %v8847 = vunpack.c.h.b16 %v8661
      %v8848 = vunpack.c.l.b16 %v8662
      %v8849 = vunpack.c.h.b16 %v8662
      %v8850 = vunpack.c.l.b16 %v8663
      %v8851 = vunpack.c.h.b16 %v8663
      %v8852 = vunpack.c.l.b16 %v8664
      %v8853 = vunpack.c.h.b16 %v8664
      %v8854 = vunpack.c.l.b16 %v8665
      %v8855 = vunpack.c.h.b16 %v8665
      %v8856 = vunpack.c.l.b16 %v8666
      %v8857 = vunpack.c.h.b16 %v8666
      %v8858 = vunpack.c.l.b16 %v8667
      %v8859 = vunpack.c.h.b16 %v8667
      %v8860 = vunpack.c.l.b16 %v8668
      %v8861 = vunpack.c.h.b16 %v8668
      %v8862 = vunpack.c.l.b16 %v8669
      %v8863 = vunpack.c.h.b16 %v8669
      %v8864 = vunpack.c.l.b16 %v8670
      %v8865 = vunpack.c.h.b16 %v8670
      %v8866 = vunpack.c.l.b16 %v8671
      %v8867 = vunpack.c.h.b16 %v8671
      %v8868 = vunpack.c.l.b16 %v8672
      %v8869 = vunpack.c.h.b16 %v8672
      %v8870 = vunpack.c.l.b16 %v8673
      %v8871 = vunpack.c.h.b16 %v8673
      %v8872 = vunpack.c.l.b16 %v8674
      %v8873 = vunpack.c.h.b16 %v8674
      %v8874 = vunpack.c.l.b16 %v8675
      %v8875 = vunpack.c.h.b16 %v8675
      %v8876 = vunpack.c.l.b16 %v8676
      %v8877 = vunpack.c.h.b16 %v8676
      %v8878 = vunpack.c.l.b16 %v8677
      %v8879 = vunpack.c.h.b16 %v8677
      %v8880 = vunpack.c.l.b16 %v8678
      %v8881 = vunpack.c.h.b16 %v8678
      %v8882 = vunpack.c.l.b16 %v8679
      %v8883 = vunpack.c.h.b16 %v8679
      %v8884 = vunpack.c.l.b16 %v8680
      %v8885 = vunpack.c.h.b16 %v8680
      %v8886 = vunpack.c.l.b16 %v8681
      %v8887 = vunpack.c.h.b16 %v8681
      %v8888 = vunpack.c.l.b16 %v8682
      %v8889 = vunpack.c.h.b16 %v8682
      %v8890 = vunpack.c.l.b16 %v8683
      %v8891 = vunpack.c.h.b16 %v8683
      %v8892 = vunpack.c.l.b16 %v8684
      %v8893 = vunpack.c.h.b16 %v8684
      %v8894 = vunpack.c.l.b16 %v8685
      %v8895 = vunpack.c.h.b16 %v8685
      %v8896 = vunpack.c.l.b16 %v8686
      %v8897 = vunpack.c.h.b16 %v8686
      %v8898 = vunpack.c.l.b16 %v8687
      %v8899 = vunpack.c.h.b16 %v8687
      %v8900 = vunpack.c.l.b16 %v8688
      %v8901 = vunpack.c.h.b16 %v8688
      %v8902 = vunpack.c.l.b16 %v8689
      %v8903 = vunpack.c.h.b16 %v8689
      %v8904 = vunpack.c.l.b16 %v8690
      %v8905 = vunpack.c.h.b16 %v8690
      %v8906 = vunpack.c.l.b16 %v8691
      %v8907 = vunpack.c.h.b16 %v8691
      %v8908 = vunpack.c.l.b16 %v8692
      %v8909 = vunpack.c.h.b16 %v8692
      %v8910 = vunpack.c.l.b16 %v8693
      %v8911 = vunpack.c.h.b16 %v8693
      %v8912 = vunpack.c.l.b16 %v8694
      %v8913 = vunpack.c.h.b16 %v8694
      %v8914 = vunpack.c.l.b16 %v8695
      %v8915 = vunpack.c.h.b16 %v8695
      %v8916 = vunpack.c.l.b16 %v8696
      %v8917 = vunpack.c.h.b16 %v8696
      %v8918 = vunpack.c.l.b16 %v8697
      %v8919 = vunpack.c.h.b16 %v8697
      %v8920 = vunpack.c.l.b16 %v8698
      %v8921 = vunpack.c.h.b16 %v8698
      %v8922 = vunpack.c.l.b16 %v8699
      %v8923 = vunpack.c.h.b16 %v8699
      %v8924 = vunpack.c.l.b16 %v8700
      %v8925 = vunpack.c.h.b16 %v8700
      %v8926 = vunpack.c.l.b16 %v8701
      %v8927 = vunpack.c.h.b16 %v8701
      %v8928 = vunpack.c.l.b16 %v8702
      %v8929 = vunpack.c.h.b16 %v8702
      %v8930 = vunpack.c.l.b16 %v8703
      %v8931 = vunpack.c.h.b16 %v8703
      %v8932 = vunpack.c.l.b16 %v8704
      %v8933 = vunpack.c.h.b16 %v8704
      %v8934 = vunpack.c.l.b16 %v8705
      %v8935 = vunpack.c.h.b16 %v8705
      %v8936 = vunpack.c.l.b16 %v8706
      %v8937 = vunpack.c.h.b16 %v8706
      %v8938 = vunpack.c.l.b16 %v8707
      %v8939 = vunpack.c.h.b16 %v8707
      %v8940 = vunpack.c.l.b16 %v8708
      %v8941 = vunpack.c.h.b16 %v8708
      %v8942 = vunpack.c.l.b16 %v8709
      %v8943 = vunpack.c.h.b16 %v8709
      %v8944 = vunpack.c.l.b16 %v8710
      %v8945 = vunpack.c.h.b16 %v8710
      %v8946 = vunpack.c.l.b16 %v8711
      %v8947 = vunpack.c.h.b16 %v8711
      %v8948 = vunpack.c.l.b16 %v8712
      %v8949 = vunpack.c.h.b16 %v8712
      %v8950 = vunpack.c.l.b16 %v8713
      %v8951 = vunpack.c.h.b16 %v8713
      %v8952 = vunpack.c.l.b16 %v8714
      %v8953 = vunpack.c.h.b16 %v8714
      %v8954 = vunpack.c.l.b16 %v8715
      %v8955 = vunpack.c.h.b16 %v8715
      %v8956 = vunpack.c.l.b16 %v8716
      %v8957 = vunpack.c.h.b16 %v8716
      %v8958 = vunpack.c.l.b16 %v8717
      %v8959 = vunpack.c.h.b16 %v8717
      %v8960 = vunpack.c.l.b16 %v8718
      %v8961 = vunpack.c.h.b16 %v8718
      %v8962 = vunpack.c.l.b16 %v8719
      %v8963 = vunpack.c.h.b16 %v8719
      %v8964 = vunpack.c.l.b16 %v8720
      %v8965 = vunpack.c.h.b16 %v8720
      %v8966 = vunpack.c.l.b16 %v8721
      %v8967 = vunpack.c.h.b16 %v8721
      %v8968 = vunpack.c.l.b16 %v8722
      %v8969 = vunpack.c.h.b16 %v8722
      %v8970 = vunpack.c.l.b16 %v8723
      %v8971 = vunpack.c.h.b16 %v8723
      %v8972 = vunpack.c.l.b16 %v8724
      %v8973 = vunpack.c.h.b16 %v8724
      %v8974 = vunpack.c.l.b16 %v8725
      %v8975 = vunpack.c.h.b16 %v8725
      %v8976 = vpack.c.b16 %v8818, %v8816
      %v8977 = vpack.c.b16 %v8819, %v8817
      %v8978 = vpack.c.b16 %v8822, %v8820
      %v8979 = vpack.c.b16 %v8823, %v8821
      %v8980 = vpack.c.b16 %v8826, %v8824
      %v8981 = vpack.c.b16 %v8827, %v8825
      %v8982 = vpack.c.b16 %v8830, %v8828
      %v8983 = vpack.c.b16 %v8831, %v8829
      %v8984 = vpack.c.b16 %v8834, %v8832
      %v8985 = vpack.c.b16 %v8835, %v8833
      %v8986 = vpack.c.b16 %v8838, %v8836
      %v8987 = vpack.c.b16 %v8839, %v8837
      %v8988 = vpack.c.b16 %v8842, %v8840
      %v8989 = vpack.c.b16 %v8843, %v8841
      %v8990 = vpack.c.b16 %v8846, %v8844
      %v8991 = vpack.c.b16 %v8847, %v8845
      %v8992 = vpack.c.b16 %v8850, %v8848
      %v8993 = vpack.c.b16 %v8851, %v8849
      %v8994 = vpack.c.b16 %v8854, %v8852
      %v8995 = vpack.c.b16 %v8855, %v8853
      %v8996 = vpack.c.b16 %v8858, %v8856
      %v8997 = vpack.c.b16 %v8859, %v8857
      %v8998 = vpack.c.b16 %v8862, %v8860
      %v8999 = vpack.c.b16 %v8863, %v8861
      %v9000 = vpack.c.b16 %v8866, %v8864
      %v9001 = vpack.c.b16 %v8867, %v8865
      %v9002 = vpack.c.b16 %v8870, %v8868
      %v9003 = vpack.c.b16 %v8871, %v8869
      %v9004 = vpack.c.b16 %v8874, %v8872
      %v9005 = vpack.c.b16 %v8875, %v8873
      %v9006 = vpack.c.b16 %v8878, %v8876
      %v9007 = vpack.c.b16 %v8879, %v8877
      %v9008 = vpack.c.b16 %v8882, %v8880
      %v9009 = vpack.c.b16 %v8883, %v8881
      %v9010 = vpack.c.b16 %v8886, %v8884
      %v9011 = vpack.c.b16 %v8887, %v8885
      %v9012 = vpack.c.b16 %v8890, %v8888
      %v9013 = vpack.c.b16 %v8891, %v8889
      %v9014 = vpack.c.b16 %v8894, %v8892
      %v9015 = vpack.c.b16 %v8895, %v8893
      %v9016 = vpack.c.b16 %v8898, %v8896
      %v9017 = vpack.c.b16 %v8899, %v8897
      %v9018 = vpack.c.b16 %v8902, %v8900
      %v9019 = vpack.c.b16 %v8903, %v8901
      %v9020 = vpack.c.b16 %v8906, %v8904
      %v9021 = vpack.c.b16 %v8907, %v8905
      %v9022 = vpack.c.b16 %v8910, %v8908
      %v9023 = vpack.c.b16 %v8911, %v8909
      %v9024 = vpack.c.b16 %v8914, %v8912
      %v9025 = vpack.c.b16 %v8915, %v8913
      %v9026 = vpack.c.b16 %v8918, %v8916
      %v9027 = vpack.c.b16 %v8919, %v8917
      %v9028 = vpack.c.b16 %v8922, %v8920
      %v9029 = vpack.c.b16 %v8923, %v8921
      %v9030 = vpack.c.b16 %v8926, %v8924
      %v9031 = vpack.c.b16 %v8927, %v8925
      %v9032 = vpack.c.b16 %v8930, %v8928
      %v9033 = vpack.c.b16 %v8931, %v8929
      %v9034 = vpack.c.b16 %v8934, %v8932
      %v9035 = vpack.c.b16 %v8935, %v8933
      %v9036 = vpack.c.b16 %v8938, %v8936
      %v9037 = vpack.c.b16 %v8939, %v8937
      %v9038 = vpack.c.b16 %v8942, %v8940
      %v9039 = vpack.c.b16 %v8943, %v8941
      %v9040 = vpack.c.b16 %v8946, %v8944
      %v9041 = vpack.c.b16 %v8947, %v8945
      %v9042 = vpack.c.b16 %v8950, %v8948
      %v9043 = vpack.c.b16 %v8951, %v8949
      %v9044 = vpack.c.b16 %v8954, %v8952
      %v9045 = vpack.c.b16 %v8955, %v8953
      %v9046 = vpack.c.b16 %v8958, %v8956
      %v9047 = vpack.c.b16 %v8959, %v8957
      %v9048 = vpack.c.b16 %v8962, %v8960
      %v9049 = vpack.c.b16 %v8963, %v8961
      %v9050 = vpack.c.b16 %v8966, %v8964
      %v9051 = vpack.c.b16 %v8967, %v8965
      %v9052 = vpack.c.b16 %v8970, %v8968
      %v9053 = vpack.c.b16 %v8971, %v8969
      %v9054 = vpack.c.b16 %v8974, %v8972
      %v9055 = vpack.c.b16 %v8975, %v8973
      %9136 = vmatprep.subr.bf16.mxu0 %v8977
      %9137 = vmatpush1.bf16.msra.mxu0 %v8976
      %9138 = vmatprep.subr.bf16.mxu0 %v8979
      %9139 = vmatpush1.bf16.msra.mxu0 %v8978
      %9140 = vmatprep.subr.bf16.mxu0 %v8981
      %9141 = vmatpush1.bf16.msra.mxu0 %v8980
      %9142 = vmatprep.subr.bf16.mxu0 %v8983
      %9143 = vmatpush1.bf16.msra.mxu0 %v8982
      %9144 = vmatprep.subr.bf16.mxu0 %v8985
      %9145 = vmatpush1.bf16.msra.mxu0 %v8984
      %9146 = vmatprep.subr.bf16.mxu0 %v8987
      %9147 = vmatpush1.bf16.msra.mxu0 %v8986
      %9148 = vmatprep.subr.bf16.mxu0 %v8989
      %9149 = vmatpush1.bf16.msra.mxu0 %v8988
      %9150 = vmatprep.subr.bf16.mxu0 %v8991
      %9151 = vmatpush1.bf16.msra.mxu0 %v8990
      %9152 = vmatprep.subr.bf16.mxu0 %v8993
      %9153 = vmatpush1.bf16.msra.mxu0 %v8992
      %9154 = vmatprep.subr.bf16.mxu0 %v8995
      %9155 = vmatpush1.bf16.msra.mxu0 %v8994
      %9156 = vmatprep.subr.bf16.mxu0 %v8997
      %9157 = vmatpush1.bf16.msra.mxu0 %v8996
      %9158 = vmatprep.subr.bf16.mxu0 %v8999
      %9159 = vmatpush1.bf16.msra.mxu0 %v8998
      %9160 = vmatprep.subr.bf16.mxu0 %v9001
      %9161 = vmatpush1.bf16.msra.mxu0 %v9000
      %9162 = vmatprep.subr.bf16.mxu0 %v9003
      %9163 = vmatpush1.bf16.msra.mxu0 %v9002
      %9164 = vmatprep.subr.bf16.mxu0 %v9005
      %9165 = vmatpush1.bf16.msra.mxu0 %v9004
      %9166 = vmatprep.subr.bf16.mxu0 %v9007
      %9167 = vmatpush1.bf16.msra.mxu0 %v9006
      %9168 = vmatprep.mubr.bf16.mxu0 %v8727
      %9169 = vmatmul.mubr.bf16.gmra.mrb[0].mxu0 %v8726
      %v9170 = vpop.f32.mrb[0].mxu0
      %v9171 = vadd.f32 0.0, %v9170
      %v9172 = vpop.f32.mrb[0].mxu0
      %v9173 = vadd.f32 0.0, %v9172
      %v9174 = vpop.f32.mrb[0].mxu0
      %v9175 = vpop.f32.mrb[0].mxu0
      %9176 = vdwg.mxu0
      %9177 = vmatprep.subr.bf16.mxu0 %v9009
      %9178 = vmatpush1.bf16.msra.mxu0 %v9008
      %9179 = vmatprep.subr.bf16.mxu0 %v9011
      %9180 = vmatpush1.bf16.msra.mxu0 %v9010
      %9181 = vmatprep.subr.bf16.mxu0 %v9013
      %9182 = vmatpush1.bf16.msra.mxu0 %v9012
      %9183 = vmatprep.subr.bf16.mxu0 %v9015
      %9184 = vmatpush1.bf16.msra.mxu0 %v9014
      %9185 = vmatprep.subr.bf16.mxu0 %v9017
      %9186 = vmatpush1.bf16.msra.mxu0 %v9016
      %9187 = vmatprep.subr.bf16.mxu0 %v9019
      %9188 = vmatpush1.bf16.msra.mxu0 %v9018
      %9189 = vmatprep.subr.bf16.mxu0 %v9021
      %9190 = vmatpush1.bf16.msra.mxu0 %v9020
      %9191 = vmatprep.subr.bf16.mxu0 %v9023
      %9192 = vmatpush1.bf16.msra.mxu0 %v9022
      %9193 = vmatprep.subr.bf16.mxu0 %v9025
      %9194 = vmatpush1.bf16.msra.mxu0 %v9024
      %9195 = vmatprep.subr.bf16.mxu0 %v9027
      %9196 = vmatpush1.bf16.msra.mxu0 %v9026
      %9197 = vmatprep.subr.bf16.mxu0 %v9029
      %9198 = vmatpush1.bf16.msra.mxu0 %v9028
      %9199 = vmatprep.subr.bf16.mxu0 %v9031
      %9200 = vmatpush1.bf16.msra.mxu0 %v9030
      %9201 = vmatprep.subr.bf16.mxu0 %v9033
      %9202 = vmatpush1.bf16.msra.mxu0 %v9032
      %9203 = vmatprep.subr.bf16.mxu0 %v9035
      %9204 = vmatpush1.bf16.msra.mxu0 %v9034
      %9205 = vmatprep.subr.bf16.mxu0 %v9037
      %9206 = vmatpush1.bf16.msra.mxu0 %v9036
      %9207 = vmatprep.subr.bf16.mxu0 %v9039
      %9208 = vmatpush1.bf16.msra.mxu0 %v9038
      %9209 = vmatprep.mubr.bf16.mxu0 %v8729
      %9210 = vmatmul.mubr.bf16.gmra.mrb[0].mxu0 %v8728
      %v9211 = vpop.f32.mrb[0].mxu0
      %v9212 = vadd.f32 %v9171, %v9211
      %v9213 = vpop.f32.mrb[0].mxu0
      %v9214 = vadd.f32 %v9173, %v9213
      %v9215 = vpop.f32.mrb[0].mxu0
      %v9216 = vpop.f32.mrb[0].mxu0
      %9217 = vdwg.mxu0
      %9218 = vmatprep.subr.bf16.mxu0 %v9041
      %9219 = vmatpush1.bf16.msra.mxu0 %v9040
      %9220 = vmatprep.subr.bf16.mxu0 %v9043
      %9221 = vmatpush1.bf16.msra.mxu0 %v9042
      %9222 = vmatprep.subr.bf16.mxu0 %v9045
      %9223 = vmatpush1.bf16.msra.mxu0 %v9044
      %9224 = vmatprep.subr.bf16.mxu0 %v9047
      %9225 = vmatpush1.bf16.msra.mxu0 %v9046
      %9226 = vmatprep.subr.bf16.mxu0 %v9049
      %9227 = vmatpush1.bf16.msra.mxu0 %v9048
      %9228 = vmatprep.subr.bf16.mxu0 %v9051
      %9229 = vmatpush1.bf16.msra.mxu0 %v9050
      %9230 = vmatprep.subr.bf16.mxu0 %v9053
      %9231 = vmatpush1.bf16.msra.mxu0 %v9052
      %9232 = vmatprep.subr.bf16.mxu0 %v9055
      %9233 = vmatpush1.bf16.msra.mxu0 %v9054
      %9234 = vmatprep.subr.bf16.mxu0 0
      %9235 = vmatpush1.bf16.msra.mxu0 0
      %9236 = vmatprep.subr.bf16.mxu0 0
      %9237 = vmatpush1.bf16.msra.mxu0 0
      %9238 = vmatprep.subr.bf16.mxu0 0
      %9239 = vmatpush1.bf16.msra.mxu0 0
      %9240 = vmatprep.subr.bf16.mxu0 0
      %9241 = vmatpush1.bf16.msra.mxu0 0
      %9242 = vmatprep.subr.bf16.mxu0 0
      %9243 = vmatpush1.bf16.msra.mxu0 0
      %9244 = vmatprep.subr.bf16.mxu0 0
      %9245 = vmatpush1.bf16.msra.mxu0 0
      %9246 = vmatprep.subr.bf16.mxu0 0
      %9247 = vmatpush1.bf16.msra.mxu0 0
      %9248 = vmatprep.subr.bf16.mxu0 0
      %9249 = vmatpush1.bf16.msra.mxu0 0
      %9250 = vmatprep.mubr.bf16.mxu0 0
      %9251 = vmatmul.mubr.bf16.gmra.mrb[0].mxu0 %v8730
      %v9252 = vpop.f32.mrb[0].mxu0
      %v9253 = vadd.f32 %v9212, %v9252
      %v9254 = vpop.f32.mrb[0].mxu0
      %v9255 = vadd.f32 %v9214, %v9254
      %v9256 = vpop.f32.mrb[0].mxu0
      %v9257 = vpop.f32.mrb[0].mxu0
      %9258 = vdwg.mxu0
      %v9259 = vadd.f32 %v8643, %v9253
      %v9260 = vadd.f32 %v8644, %v9255
      %s9261 = scalar_lea.vmem %s6, 8320
      %v9262 = vld [vmem:[%s9261] sm:$0xff]
      %v9263 = vld [vmem:[%s9261 + $0x8] sm:$0xff]
      %v9264 = vld [vmem:[%s9261 + $0x10] sm:$0xff]
      %v9265 = vld [vmem:[%s9261 + $0x18] sm:$0xff]
      %v9266 = vld [vmem:[%s9261 + $0x20] sm:$0xff]
      %v9267 = vld [vmem:[%s9261 + $0x28] sm:$0xff]
      %v9268 = vld [vmem:[%s9261 + $0x30] sm:$0xff]
      %v9269 = vld [vmem:[%s9261 + $0x38] sm:$0xff]
      %v9270 = vld [vmem:[%s9261 + $0x40] sm:$0xff]
      %v9271 = vld [vmem:[%s9261 + $0x48] sm:$0xff]
      %v9272 = vld [vmem:[%s9261 + $0x50] sm:$0xff]
      %v9273 = vld [vmem:[%s9261 + $0x58] sm:$0xff]
      %v9274 = vld [vmem:[%s9261 + $0x60] sm:$0xff]
      %v9275 = vld [vmem:[%s9261 + $0x68] sm:$0xff]
      %v9276 = vld [vmem:[%s9261 + $0x70] sm:$0xff]
      %v9277 = vld [vmem:[%s9261 + $0x78] sm:$0xff]
      %v9278 = vld [vmem:[%s9261 + $0x80] sm:$0xff]
      %v9279 = vld [vmem:[%s9261 + $0x88] sm:$0xff]
      %v9280 = vld [vmem:[%s9261 + $0x90] sm:$0xff]
      %v9281 = vld [vmem:[%s9261 + $0x98] sm:$0xff]
      %v9282 = vld [vmem:[%s9261 + $0xa0] sm:$0xff]
      %v9283 = vld [vmem:[%s9261 + $0xa8] sm:$0xff]
      %v9284 = vld [vmem:[%s9261 + $0xb0] sm:$0xff]
      %v9285 = vld [vmem:[%s9261 + $0xb8] sm:$0xff]
      %v9286 = vld [vmem:[%s9261 + $0xc0] sm:$0xff]
      %v9287 = vld [vmem:[%s9261 + $0xc8] sm:$0xff]
      %v9288 = vld [vmem:[%s9261 + $0xd0] sm:$0xff]
      %v9289 = vld [vmem:[%s9261 + $0xd8] sm:$0xff]
      %v9290 = vld [vmem:[%s9261 + $0xe0] sm:$0xff]
      %v9291 = vld [vmem:[%s9261 + $0xe8] sm:$0xff]
      %v9292 = vld [vmem:[%s9261 + $0xf0] sm:$0xff]
      %v9293 = vld [vmem:[%s9261 + $0xf8] sm:$0xff]
      %v9294 = vld [vmem:[%s9261 + $0x100] sm:$0xff]
      %v9295 = vld [vmem:[%s9261 + $0x108] sm:$0xff]
      %v9296 = vld [vmem:[%s9261 + $0x110] sm:$0xff]
      %v9297 = vld [vmem:[%s9261 + $0x118] sm:$0xff]
      %v9298 = vld [vmem:[%s9261 + $0x120] sm:$0xff]
      %v9299 = vld [vmem:[%s9261 + $0x128] sm:$0xff]
      %v9300 = vld [vmem:[%s9261 + $0x130] sm:$0xff]
      %v9301 = vld [vmem:[%s9261 + $0x138] sm:$0xff]
      %v9302 = vld [vmem:[%s9261 + $0x140] sm:$0xff]
      %v9303 = vld [vmem:[%s9261 + $0x148] sm:$0xff]
      %v9304 = vld [vmem:[%s9261 + $0x150] sm:$0xff]
      %v9305 = vld [vmem:[%s9261 + $0x158] sm:$0xff]
      %v9306 = vld [vmem:[%s9261 + $0x160] sm:$0xff]
      %v9307 = vld [vmem:[%s9261 + $0x168] sm:$0xff]
      %v9308 = vld [vmem:[%s9261 + $0x170] sm:$0xff]
      %v9309 = vld [vmem:[%s9261 + $0x178] sm:$0xff]
      %v9310 = vld [vmem:[%s9261 + $0x180] sm:$0xff]
      %v9311 = vld [vmem:[%s9261 + $0x188] sm:$0xff]
      %v9312 = vld [vmem:[%s9261 + $0x190] sm:$0xff]
      %v9313 = vld [vmem:[%s9261 + $0x198] sm:$0xff]
      %v9314 = vld [vmem:[%s9261 + $0x1a0] sm:$0xff]
      %v9315 = vld [vmem:[%s9261 + $0x1a8] sm:$0xff]
      %v9316 = vld [vmem:[%s9261 + $0x1b0] sm:$0xff]
      %v9317 = vld [vmem:[%s9261 + $0x1b8] sm:$0xff]
      %v9318 = vld [vmem:[%s9261 + $0x1c0] sm:$0xff]
      %v9319 = vld [vmem:[%s9261 + $0x1c8] sm:$0xff]
      %v9320 = vld [vmem:[%s9261 + $0x1d0] sm:$0xff]
      %v9321 = vld [vmem:[%s9261 + $0x1d8] sm:$0xff]
      %v9322 = vld [vmem:[%s9261 + $0x1e0] sm:$0xff]
      %v9323 = vld [vmem:[%s9261 + $0x1e8] sm:$0xff]
      %v9324 = vld [vmem:[%s9261 + $0x1f0] sm:$0xff]
      %v9325 = vld [vmem:[%s9261 + $0x1f8] sm:$0xff]
      %v9326 = vld [vmem:[%s9261 + $0x200] sm:$0xff]
      %v9327 = vld [vmem:[%s9261 + $0x208] sm:$0xff]
      %v9328 = vld [vmem:[%s9261 + $0x210] sm:$0xff]
      %v9329 = vld [vmem:[%s9261 + $0x218] sm:$0xff]
      %v9330 = vld [vmem:[%s9261 + $0x220] sm:$0xff]
      %v9331 = vld [vmem:[%s9261 + $0x228] sm:$0xff]
      %v9332 = vld [vmem:[%s9261 + $0x230] sm:$0xff]
      %v9333 = vld [vmem:[%s9261 + $0x238] sm:$0xff]
      %v9334 = vld [vmem:[%s9261 + $0x240] sm:$0xff]
      %v9335 = vld [vmem:[%s9261 + $0x248] sm:$0xff]
      %v9336 = vld [vmem:[%s9261 + $0x250] sm:$0xff]
      %v9337 = vld [vmem:[%s9261 + $0x258] sm:$0xff]
      %v9338 = vld [vmem:[%s9261 + $0x260] sm:$0xff]
      %v9339 = vld [vmem:[%s9261 + $0x268] sm:$0xff]
      %v9340 = vld [vmem:[%s9261 + $0x270] sm:$0xff]
      %v9341 = vld [vmem:[%s9261 + $0x278] sm:$0xff]
      %v9342 = vrot.slane %v1415, 6
      %v9343 = vrot.slane %v1418, 6
      %v9344 = vrot.slane %v1421, 6
      %v9345 = vrot.slane %v1424, 6
      %v9346 = vrot.slane %v1427, 6
      %v9432 = vunpack.c.l.b16 %v9262
      %v9433 = vunpack.c.h.b16 %v9262
      %v9434 = vunpack.c.l.b16 %v9263
      %v9435 = vunpack.c.h.b16 %v9263
      %v9436 = vunpack.c.l.b16 %v9264
      %v9437 = vunpack.c.h.b16 %v9264
      %v9438 = vunpack.c.l.b16 %v9265
      %v9439 = vunpack.c.h.b16 %v9265
      %v9440 = vunpack.c.l.b16 %v9266
      %v9441 = vunpack.c.h.b16 %v9266
      %v9442 = vunpack.c.l.b16 %v9267
      %v9443 = vunpack.c.h.b16 %v9267
      %v9444 = vunpack.c.l.b16 %v9268
      %v9445 = vunpack.c.h.b16 %v9268
      %v9446 = vunpack.c.l.b16 %v9269
      %v9447 = vunpack.c.h.b16 %v9269
      %v9448 = vunpack.c.l.b16 %v9270
      %v9449 = vunpack.c.h.b16 %v9270
      %v9450 = vunpack.c.l.b16 %v9271
      %v9451 = vunpack.c.h.b16 %v9271
      %v9452 = vunpack.c.l.b16 %v9272
      %v9453 = vunpack.c.h.b16 %v9272
      %v9454 = vunpack.c.l.b16 %v9273
      %v9455 = vunpack.c.h.b16 %v9273
      %v9456 = vunpack.c.l.b16 %v9274
      %v9457 = vunpack.c.h.b16 %v9274
      %v9458 = vunpack.c.l.b16 %v9275
      %v9459 = vunpack.c.h.b16 %v9275
      %v9460 = vunpack.c.l.b16 %v9276
      %v9461 = vunpack.c.h.b16 %v9276
      %v9462 = vunpack.c.l.b16 %v9277
      %v9463 = vunpack.c.h.b16 %v9277
      %v9464 = vunpack.c.l.b16 %v9278
      %v9465 = vunpack.c.h.b16 %v9278
      %v9466 = vunpack.c.l.b16 %v9279
      %v9467 = vunpack.c.h.b16 %v9279
      %v9468 = vunpack.c.l.b16 %v9280
      %v9469 = vunpack.c.h.b16 %v9280
      %v9470 = vunpack.c.l.b16 %v9281
      %v9471 = vunpack.c.h.b16 %v9281
      %v9472 = vunpack.c.l.b16 %v9282
      %v9473 = vunpack.c.h.b16 %v9282
      %v9474 = vunpack.c.l.b16 %v9283
      %v9475 = vunpack.c.h.b16 %v9283
      %v9476 = vunpack.c.l.b16 %v9284
      %v9477 = vunpack.c.h.b16 %v9284
      %v9478 = vunpack.c.l.b16 %v9285
      %v9479 = vunpack.c.h.b16 %v9285
      %v9480 = vunpack.c.l.b16 %v9286
      %v9481 = vunpack.c.h.b16 %v9286
      %v9482 = vunpack.c.l.b16 %v9287
      %v9483 = vunpack.c.h.b16 %v9287
      %v9484 = vunpack.c.l.b16 %v9288
      %v9485 = vunpack.c.h.b16 %v9288
      %v9486 = vunpack.c.l.b16 %v9289
      %v9487 = vunpack.c.h.b16 %v9289
      %v9488 = vunpack.c.l.b16 %v9290
      %v9489 = vunpack.c.h.b16 %v9290
      %v9490 = vunpack.c.l.b16 %v9291
      %v9491 = vunpack.c.h.b16 %v9291
      %v9492 = vunpack.c.l.b16 %v9292
      %v9493 = vunpack.c.h.b16 %v9292
      %v9494 = vunpack.c.l.b16 %v9293
      %v9495 = vunpack.c.h.b16 %v9293
      %v9496 = vunpack.c.l.b16 %v9294
      %v9497 = vunpack.c.h.b16 %v9294
      %v9498 = vunpack.c.l.b16 %v9295
      %v9499 = vunpack.c.h.b16 %v9295
      %v9500 = vunpack.c.l.b16 %v9296
      %v9501 = vunpack.c.h.b16 %v9296
      %v9502 = vunpack.c.l.b16 %v9297
      %v9503 = vunpack.c.h.b16 %v9297
      %v9504 = vunpack.c.l.b16 %v9298
      %v9505 = vunpack.c.h.b16 %v9298
      %v9506 = vunpack.c.l.b16 %v9299
      %v9507 = vunpack.c.h.b16 %v9299
      %v9508 = vunpack.c.l.b16 %v9300
      %v9509 = vunpack.c.h.b16 %v9300
      %v9510 = vunpack.c.l.b16 %v9301
      %v9511 = vunpack.c.h.b16 %v9301
      %v9512 = vunpack.c.l.b16 %v9302
      %v9513 = vunpack.c.h.b16 %v9302
      %v9514 = vunpack.c.l.b16 %v9303
      %v9515 = vunpack.c.h.b16 %v9303
      %v9516 = vunpack.c.l.b16 %v9304
      %v9517 = vunpack.c.h.b16 %v9304
      %v9518 = vunpack.c.l.b16 %v9305
      %v9519 = vunpack.c.h.b16 %v9305
      %v9520 = vunpack.c.l.b16 %v9306
      %v9521 = vunpack.c.h.b16 %v9306
      %v9522 = vunpack.c.l.b16 %v9307
      %v9523 = vunpack.c.h.b16 %v9307
      %v9524 = vunpack.c.l.b16 %v9308
      %v9525 = vunpack.c.h.b16 %v9308
      %v9526 = vunpack.c.l.b16 %v9309
      %v9527 = vunpack.c.h.b16 %v9309
      %v9528 = vunpack.c.l.b16 %v9310
      %v9529 = vunpack.c.h.b16 %v9310
      %v9530 = vunpack.c.l.b16 %v9311
      %v9531 = vunpack.c.h.b16 %v9311
      %v9532 = vunpack.c.l.b16 %v9312
      %v9533 = vunpack.c.h.b16 %v9312
      %v9534 = vunpack.c.l.b16 %v9313
      %v9535 = vunpack.c.h.b16 %v9313
      %v9536 = vunpack.c.l.b16 %v9314
      %v9537 = vunpack.c.h.b16 %v9314
      %v9538 = vunpack.c.l.b16 %v9315
      %v9539 = vunpack.c.h.b16 %v9315
      %v9540 = vunpack.c.l.b16 %v9316
      %v9541 = vunpack.c.h.b16 %v9316
      %v9542 = vunpack.c.l.b16 %v9317
      %v9543 = vunpack.c.h.b16 %v9317
      %v9544 = vunpack.c.l.b16 %v9318
      %v9545 = vunpack.c.h.b16 %v9318
      %v9546 = vunpack.c.l.b16 %v9319
      %v9547 = vunpack.c.h.b16 %v9319
      %v9548 = vunpack.c.l.b16 %v9320
      %v9549 = vunpack.c.h.b16 %v9320
      %v9550 = vunpack.c.l.b16 %v9321
      %v9551 = vunpack.c.h.b16 %v9321
      %v9552 = vunpack.c.l.b16 %v9322
      %v9553 = vunpack.c.h.b16 %v9322
      %v9554 = vunpack.c.l.b16 %v9323
      %v9555 = vunpack.c.h.b16 %v9323
      %v9556 = vunpack.c.l.b16 %v9324
      %v9557 = vunpack.c.h.b16 %v9324
      %v9558 = vunpack.c.l.b16 %v9325
      %v9559 = vunpack.c.h.b16 %v9325
      %v9560 = vunpack.c.l.b16 %v9326
      %v9561 = vunpack.c.h.b16 %v9326
      %v9562 = vunpack.c.l.b16 %v9327
      %v9563 = vunpack.c.h.b16 %v9327
      %v9564 = vunpack.c.l.b16 %v9328
      %v9565 = vunpack.c.h.b16 %v9328
      %v9566 = vunpack.c.l.b16 %v9329
      %v9567 = vunpack.c.h.b16 %v9329
      %v9568 = vunpack.c.l.b16 %v9330
      %v9569 = vunpack.c.h.b16 %v9330
      %v9570 = vunpack.c.l.b16 %v9331
      %v9571 = vunpack.c.h.b16 %v9331
      %v9572 = vunpack.c.l.b16 %v9332
      %v9573 = vunpack.c.h.b16 %v9332
      %v9574 = vunpack.c.l.b16 %v9333
      %v9575 = vunpack.c.h.b16 %v9333
      %v9576 = vunpack.c.l.b16 %v9334
      %v9577 = vunpack.c.h.b16 %v9334
      %v9578 = vunpack.c.l.b16 %v9335
      %v9579 = vunpack.c.h.b16 %v9335
      %v9580 = vunpack.c.l.b16 %v9336
      %v9581 = vunpack.c.h.b16 %v9336
      %v9582 = vunpack.c.l.b16 %v9337
      %v9583 = vunpack.c.h.b16 %v9337
      %v9584 = vunpack.c.l.b16 %v9338
      %v9585 = vunpack.c.h.b16 %v9338
      %v9586 = vunpack.c.l.b16 %v9339
      %v9587 = vunpack.c.h.b16 %v9339
      %v9588 = vunpack.c.l.b16 %v9340
      %v9589 = vunpack.c.h.b16 %v9340
      %v9590 = vunpack.c.l.b16 %v9341
      %v9591 = vunpack.c.h.b16 %v9341
      %v9592 = vpack.c.b16 %v9434, %v9432
      %v9593 = vpack.c.b16 %v9435, %v9433
      %v9594 = vpack.c.b16 %v9438, %v9436
      %v9595 = vpack.c.b16 %v9439, %v9437
      %v9596 = vpack.c.b16 %v9442, %v9440
      %v9597 = vpack.c.b16 %v9443, %v9441
      %v9598 = vpack.c.b16 %v9446, %v9444
      %v9599 = vpack.c.b16 %v9447, %v9445
      %v9600 = vpack.c.b16 %v9450, %v9448
      %v9601 = vpack.c.b16 %v9451, %v9449
      %v9602 = vpack.c.b16 %v9454, %v9452
      %v9603 = vpack.c.b16 %v9455, %v9453
      %v9604 = vpack.c.b16 %v9458, %v9456
      %v9605 = vpack.c.b16 %v9459, %v9457
      %v9606 = vpack.c.b16 %v9462, %v9460
      %v9607 = vpack.c.b16 %v9463, %v9461
      %v9608 = vpack.c.b16 %v9466, %v9464
      %v9609 = vpack.c.b16 %v9467, %v9465
      %v9610 = vpack.c.b16 %v9470, %v9468
      %v9611 = vpack.c.b16 %v9471, %v9469
      %v9612 = vpack.c.b16 %v9474, %v9472
      %v9613 = vpack.c.b16 %v9475, %v9473
      %v9614 = vpack.c.b16 %v9478, %v9476
      %v9615 = vpack.c.b16 %v9479, %v9477
      %v9616 = vpack.c.b16 %v9482, %v9480
      %v9617 = vpack.c.b16 %v9483, %v9481
      %v9618 = vpack.c.b16 %v9486, %v9484
      %v9619 = vpack.c.b16 %v9487, %v9485
      %v9620 = vpack.c.b16 %v9490, %v9488
      %v9621 = vpack.c.b16 %v9491, %v9489
      %v9622 = vpack.c.b16 %v9494, %v9492
      %v9623 = vpack.c.b16 %v9495, %v9493
      %v9624 = vpack.c.b16 %v9498, %v9496
      %v9625 = vpack.c.b16 %v9499, %v9497
      %v9626 = vpack.c.b16 %v9502, %v9500
      %v9627 = vpack.c.b16 %v9503, %v9501
      %v9628 = vpack.c.b16 %v9506, %v9504
      %v9629 = vpack.c.b16 %v9507, %v9505
      %v9630 = vpack.c.b16 %v9510, %v9508
      %v9631 = vpack.c.b16 %v9511, %v9509
      %v9632 = vpack.c.b16 %v9514, %v9512
      %v9633 = vpack.c.b16 %v9515, %v9513
      %v9634 = vpack.c.b16 %v9518, %v9516
      %v9635 = vpack.c.b16 %v9519, %v9517
      %v9636 = vpack.c.b16 %v9522, %v9520
      %v9637 = vpack.c.b16 %v9523, %v9521
      %v9638 = vpack.c.b16 %v9526, %v9524
      %v9639 = vpack.c.b16 %v9527, %v9525
      %v9640 = vpack.c.b16 %v9530, %v9528
      %v9641 = vpack.c.b16 %v9531, %v9529
      %v9642 = vpack.c.b16 %v9534, %v9532
      %v9643 = vpack.c.b16 %v9535, %v9533
      %v9644 = vpack.c.b16 %v9538, %v9536
      %v9645 = vpack.c.b16 %v9539, %v9537
      %v9646 = vpack.c.b16 %v9542, %v9540
      %v9647 = vpack.c.b16 %v9543, %v9541
      %v9648 = vpack.c.b16 %v9546, %v9544
      %v9649 = vpack.c.b16 %v9547, %v9545
      %v9650 = vpack.c.b16 %v9550, %v9548
      %v9651 = vpack.c.b16 %v9551, %v9549
      %v9652 = vpack.c.b16 %v9554, %v9552
      %v9653 = vpack.c.b16 %v9555, %v9553
      %v9654 = vpack.c.b16 %v9558, %v9556
      %v9655 = vpack.c.b16 %v9559, %v9557
      %v9656 = vpack.c.b16 %v9562, %v9560
      %v9657 = vpack.c.b16 %v9563, %v9561
      %v9658 = vpack.c.b16 %v9566, %v9564
      %v9659 = vpack.c.b16 %v9567, %v9565
      %v9660 = vpack.c.b16 %v9570, %v9568
      %v9661 = vpack.c.b16 %v9571, %v9569
      %v9662 = vpack.c.b16 %v9574, %v9572
      %v9663 = vpack.c.b16 %v9575, %v9573
      %v9664 = vpack.c.b16 %v9578, %v9576
      %v9665 = vpack.c.b16 %v9579, %v9577
      %v9666 = vpack.c.b16 %v9582, %v9580
      %v9667 = vpack.c.b16 %v9583, %v9581
      %v9668 = vpack.c.b16 %v9586, %v9584
      %v9669 = vpack.c.b16 %v9587, %v9585
      %v9670 = vpack.c.b16 %v9590, %v9588
      %v9671 = vpack.c.b16 %v9591, %v9589
      %9752 = vmatprep.subr.bf16.mxu0 %v9593
      %9753 = vmatpush1.bf16.msra.mxu0 %v9592
      %9754 = vmatprep.subr.bf16.mxu0 %v9595
      %9755 = vmatpush1.bf16.msra.mxu0 %v9594
      %9756 = vmatprep.subr.bf16.mxu0 %v9597
      %9757 = vmatpush1.bf16.msra.mxu0 %v9596
      %9758 = vmatprep.subr.bf16.mxu0 %v9599
      %9759 = vmatpush1.bf16.msra.mxu0 %v9598
      %9760 = vmatprep.subr.bf16.mxu0 %v9601
      %9761 = vmatpush1.bf16.msra.mxu0 %v9600
      %9762 = vmatprep.subr.bf16.mxu0 %v9603
      %9763 = vmatpush1.bf16.msra.mxu0 %v9602
      %9764 = vmatprep.subr.bf16.mxu0 %v9605
      %9765 = vmatpush1.bf16.msra.mxu0 %v9604
      %9766 = vmatprep.subr.bf16.mxu0 %v9607
      %9767 = vmatpush1.bf16.msra.mxu0 %v9606
      %9768 = vmatprep.subr.bf16.mxu0 %v9609
      %9769 = vmatpush1.bf16.msra.mxu0 %v9608
      %9770 = vmatprep.subr.bf16.mxu0 %v9611
      %9771 = vmatpush1.bf16.msra.mxu0 %v9610
      %9772 = vmatprep.subr.bf16.mxu0 %v9613
      %9773 = vmatpush1.bf16.msra.mxu0 %v9612
      %9774 = vmatprep.subr.bf16.mxu0 %v9615
      %9775 = vmatpush1.bf16.msra.mxu0 %v9614
      %9776 = vmatprep.subr.bf16.mxu0 %v9617
      %9777 = vmatpush1.bf16.msra.mxu0 %v9616
      %9778 = vmatprep.subr.bf16.mxu0 %v9619
      %9779 = vmatpush1.bf16.msra.mxu0 %v9618
      %9780 = vmatprep.subr.bf16.mxu0 %v9621
      %9781 = vmatpush1.bf16.msra.mxu0 %v9620
      %9782 = vmatprep.subr.bf16.mxu0 %v9623
      %9783 = vmatpush1.bf16.msra.mxu0 %v9622
      %9784 = vmatprep.mubr.bf16.mxu0 %v9343
      %9785 = vmatmul.mubr.bf16.gmra.mrb[0].mxu0 %v9342
      %v9786 = vpop.f32.mrb[0].mxu0
      %v9787 = vadd.f32 0.0, %v9786
      %v9788 = vpop.f32.mrb[0].mxu0
      %v9789 = vadd.f32 0.0, %v9788
      %v9790 = vpop.f32.mrb[0].mxu0
      %v9791 = vpop.f32.mrb[0].mxu0
      %9792 = vdwg.mxu0
      %9793 = vmatprep.subr.bf16.mxu0 %v9625
      %9794 = vmatpush1.bf16.msra.mxu0 %v9624
      %9795 = vmatprep.subr.bf16.mxu0 %v9627
      %9796 = vmatpush1.bf16.msra.mxu0 %v9626
      %9797 = vmatprep.subr.bf16.mxu0 %v9629
      %9798 = vmatpush1.bf16.msra.mxu0 %v9628
      %9799 = vmatprep.subr.bf16.mxu0 %v9631
      %9800 = vmatpush1.bf16.msra.mxu0 %v9630
      %9801 = vmatprep.subr.bf16.mxu0 %v9633
      %9802 = vmatpush1.bf16.msra.mxu0 %v9632
      %9803 = vmatprep.subr.bf16.mxu0 %v9635
      %9804 = vmatpush1.bf16.msra.mxu0 %v9634
      %9805 = vmatprep.subr.bf16.mxu0 %v9637
      %9806 = vmatpush1.bf16.msra.mxu0 %v9636
      %9807 = vmatprep.subr.bf16.mxu0 %v9639
      %9808 = vmatpush1.bf16.msra.mxu0 %v9638
      %9809 = vmatprep.subr.bf16.mxu0 %v9641
      %9810 = vmatpush1.bf16.msra.mxu0 %v9640
      %9811 = vmatprep.subr.bf16.mxu0 %v9643
      %9812 = vmatpush1.bf16.msra.mxu0 %v9642
      %9813 = vmatprep.subr.bf16.mxu0 %v9645
      %9814 = vmatpush1.bf16.msra.mxu0 %v9644
      %9815 = vmatprep.subr.bf16.mxu0 %v9647
      %9816 = vmatpush1.bf16.msra.mxu0 %v9646
      %9817 = vmatprep.subr.bf16.mxu0 %v9649
      %9818 = vmatpush1.bf16.msra.mxu0 %v9648
      %9819 = vmatprep.subr.bf16.mxu0 %v9651
      %9820 = vmatpush1.bf16.msra.mxu0 %v9650
      %9821 = vmatprep.subr.bf16.mxu0 %v9653
      %9822 = vmatpush1.bf16.msra.mxu0 %v9652
      %9823 = vmatprep.subr.bf16.mxu0 %v9655
      %9824 = vmatpush1.bf16.msra.mxu0 %v9654
      %9825 = vmatprep.mubr.bf16.mxu0 %v9345
      %9826 = vmatmul.mubr.bf16.gmra.mrb[0].mxu0 %v9344
      %v9827 = vpop.f32.mrb[0].mxu0
      %v9828 = vadd.f32 %v9787, %v9827
      %v9829 = vpop.f32.mrb[0].mxu0
      %v9830 = vadd.f32 %v9789, %v9829
      %v9831 = vpop.f32.mrb[0].mxu0
      %v9832 = vpop.f32.mrb[0].mxu0
      %9833 = vdwg.mxu0
      %9834 = vmatprep.subr.bf16.mxu0 %v9657
      %9835 = vmatpush1.bf16.msra.mxu0 %v9656
      %9836 = vmatprep.subr.bf16.mxu0 %v9659
      %9837 = vmatpush1.bf16.msra.mxu0 %v9658
      %9838 = vmatprep.subr.bf16.mxu0 %v9661
      %9839 = vmatpush1.bf16.msra.mxu0 %v9660
      %9840 = vmatprep.subr.bf16.mxu0 %v9663
      %9841 = vmatpush1.bf16.msra.mxu0 %v9662
      %9842 = vmatprep.subr.bf16.mxu0 %v9665
      %9843 = vmatpush1.bf16.msra.mxu0 %v9664
      %9844 = vmatprep.subr.bf16.mxu0 %v9667
      %9845 = vmatpush1.bf16.msra.mxu0 %v9666
      %9846 = vmatprep.subr.bf16.mxu0 %v9669
      %9847 = vmatpush1.bf16.msra.mxu0 %v9668
      %9848 = vmatprep.subr.bf16.mxu0 %v9671
      %9849 = vmatpush1.bf16.msra.mxu0 %v9670
      %9850 = vmatprep.subr.bf16.mxu0 0
      %9851 = vmatpush1.bf16.msra.mxu0 0
      %9852 = vmatprep.subr.bf16.mxu0 0
      %9853 = vmatpush1.bf16.msra.mxu0 0
      %9854 = vmatprep.subr.bf16.mxu0 0
      %9855 = vmatpush1.bf16.msra.mxu0 0
      %9856 = vmatprep.subr.bf16.mxu0 0
      %9857 = vmatpush1.bf16.msra.mxu0 0
      %9858 = vmatprep.subr.bf16.mxu0 0
      %9859 = vmatpush1.bf16.msra.mxu0 0
      %9860 = vmatprep.subr.bf16.mxu0 0
      %9861 = vmatpush1.bf16.msra.mxu0 0
      %9862 = vmatprep.subr.bf16.mxu0 0
      %9863 = vmatpush1.bf16.msra.mxu0 0
      %9864 = vmatprep.subr.bf16.mxu0 0
      %9865 = vmatpush1.bf16.msra.mxu0 0
      %9866 = vmatprep.mubr.bf16.mxu0 0
      %9867 = vmatmul.mubr.bf16.gmra.mrb[0].mxu0 %v9346
      %v9868 = vpop.f32.mrb[0].mxu0
      %v9869 = vadd.f32 %v9828, %v9868
      %v9870 = vpop.f32.mrb[0].mxu0
      %v9871 = vadd.f32 %v9830, %v9870
      %v9872 = vpop.f32.mrb[0].mxu0
      %v9873 = vpop.f32.mrb[0].mxu0
      %9874 = vdwg.mxu0
      %v9875 = vadd.f32 %v9259, %v9869
      %v9876 = vadd.f32 %v9260, %v9871
      %s9877 = scalar_lea.vmem %s6, 8960
      %v9878 = vld [vmem:[%s9877] sm:$0xff]
      %v9879 = vld [vmem:[%s9877 + $0x8] sm:$0xff]
      %v9880 = vld [vmem:[%s9877 + $0x10] sm:$0xff]
      %v9881 = vld [vmem:[%s9877 + $0x18] sm:$0xff]
      %v9882 = vld [vmem:[%s9877 + $0x20] sm:$0xff]
      %v9883 = vld [vmem:[%s9877 + $0x28] sm:$0xff]
      %v9884 = vld [vmem:[%s9877 + $0x30] sm:$0xff]
      %v9885 = vld [vmem:[%s9877 + $0x38] sm:$0xff]
      %v9886 = vld [vmem:[%s9877 + $0x40] sm:$0xff]
      %v9887 = vld [vmem:[%s9877 + $0x48] sm:$0xff]
      %v9888 = vld [vmem:[%s9877 + $0x50] sm:$0xff]
      %v9889 = vld [vmem:[%s9877 + $0x58] sm:$0xff]
      %v9890 = vld [vmem:[%s9877 + $0x60] sm:$0xff]
      %v9891 = vld [vmem:[%s9877 + $0x68] sm:$0xff]
      %v9892 = vld [vmem:[%s9877 + $0x70] sm:$0xff]
      %v9893 = vld [vmem:[%s9877 + $0x78] sm:$0xff]
      %v9894 = vld [vmem:[%s9877 + $0x80] sm:$0xff]
      %v9895 = vld [vmem:[%s9877 + $0x88] sm:$0xff]
      %v9896 = vld [vmem:[%s9877 + $0x90] sm:$0xff]
      %v9897 = vld [vmem:[%s9877 + $0x98] sm:$0xff]
      %v9898 = vld [vmem:[%s9877 + $0xa0] sm:$0xff]
      %v9899 = vld [vmem:[%s9877 + $0xa8] sm:$0xff]
      %v9900 = vld [vmem:[%s9877 + $0xb0] sm:$0xff]
      %v9901 = vld [vmem:[%s9877 + $0xb8] sm:$0xff]
      %v9902 = vld [vmem:[%s9877 + $0xc0] sm:$0xff]
      %v9903 = vld [vmem:[%s9877 + $0xc8] sm:$0xff]
      %v9904 = vld [vmem:[%s9877 + $0xd0] sm:$0xff]
      %v9905 = vld [vmem:[%s9877 + $0xd8] sm:$0xff]
      %v9906 = vld [vmem:[%s9877 + $0xe0] sm:$0xff]
      %v9907 = vld [vmem:[%s9877 + $0xe8] sm:$0xff]
      %v9908 = vld [vmem:[%s9877 + $0xf0] sm:$0xff]
      %v9909 = vld [vmem:[%s9877 + $0xf8] sm:$0xff]
      %v9910 = vld [vmem:[%s9877 + $0x100] sm:$0xff]
      %v9911 = vld [vmem:[%s9877 + $0x108] sm:$0xff]
      %v9912 = vld [vmem:[%s9877 + $0x110] sm:$0xff]
      %v9913 = vld [vmem:[%s9877 + $0x118] sm:$0xff]
      %v9914 = vld [vmem:[%s9877 + $0x120] sm:$0xff]
      %v9915 = vld [vmem:[%s9877 + $0x128] sm:$0xff]
      %v9916 = vld [vmem:[%s9877 + $0x130] sm:$0xff]
      %v9917 = vld [vmem:[%s9877 + $0x138] sm:$0xff]
      %v9918 = vld [vmem:[%s9877 + $0x140] sm:$0xff]
      %v9919 = vld [vmem:[%s9877 + $0x148] sm:$0xff]
      %v9920 = vld [vmem:[%s9877 + $0x150] sm:$0xff]
      %v9921 = vld [vmem:[%s9877 + $0x158] sm:$0xff]
      %v9922 = vld [vmem:[%s9877 + $0x160] sm:$0xff]
      %v9923 = vld [vmem:[%s9877 + $0x168] sm:$0xff]
      %v9924 = vld [vmem:[%s9877 + $0x170] sm:$0xff]
      %v9925 = vld [vmem:[%s9877 + $0x178] sm:$0xff]
      %v9926 = vld [vmem:[%s9877 + $0x180] sm:$0xff]
      %v9927 = vld [vmem:[%s9877 + $0x188] sm:$0xff]
      %v9928 = vld [vmem:[%s9877 + $0x190] sm:$0xff]
      %v9929 = vld [vmem:[%s9877 + $0x198] sm:$0xff]
      %v9930 = vld [vmem:[%s9877 + $0x1a0] sm:$0xff]
      %v9931 = vld [vmem:[%s9877 + $0x1a8] sm:$0xff]
      %v9932 = vld [vmem:[%s9877 + $0x1b0] sm:$0xff]
      %v9933 = vld [vmem:[%s9877 + $0x1b8] sm:$0xff]
      %v9934 = vld [vmem:[%s9877 + $0x1c0] sm:$0xff]
      %v9935 = vld [vmem:[%s9877 + $0x1c8] sm:$0xff]
      %v9936 = vld [vmem:[%s9877 + $0x1d0] sm:$0xff]
      %v9937 = vld [vmem:[%s9877 + $0x1d8] sm:$0xff]
      %v9938 = vld [vmem:[%s9877 + $0x1e0] sm:$0xff]
      %v9939 = vld [vmem:[%s9877 + $0x1e8] sm:$0xff]
      %v9940 = vld [vmem:[%s9877 + $0x1f0] sm:$0xff]
      %v9941 = vld [vmem:[%s9877 + $0x1f8] sm:$0xff]
      %v9942 = vld [vmem:[%s9877 + $0x200] sm:$0xff]
      %v9943 = vld [vmem:[%s9877 + $0x208] sm:$0xff]
      %v9944 = vld [vmem:[%s9877 + $0x210] sm:$0xff]
      %v9945 = vld [vmem:[%s9877 + $0x218] sm:$0xff]
      %v9946 = vld [vmem:[%s9877 + $0x220] sm:$0xff]
      %v9947 = vld [vmem:[%s9877 + $0x228] sm:$0xff]
      %v9948 = vld [vmem:[%s9877 + $0x230] sm:$0xff]
      %v9949 = vld [vmem:[%s9877 + $0x238] sm:$0xff]
      %v9950 = vld [vmem:[%s9877 + $0x240] sm:$0xff]
      %v9951 = vld [vmem:[%s9877 + $0x248] sm:$0xff]
      %v9952 = vld [vmem:[%s9877 + $0x250] sm:$0xff]
      %v9953 = vld [vmem:[%s9877 + $0x258] sm:$0xff]
      %v9954 = vld [vmem:[%s9877 + $0x260] sm:$0xff]
      %v9955 = vld [vmem:[%s9877 + $0x268] sm:$0xff]
      %v9956 = vld [vmem:[%s9877 + $0x270] sm:$0xff]
      %v9957 = vld [vmem:[%s9877 + $0x278] sm:$0xff]
      %v9958 = vrot.slane %v1243, 7
      %v9959 = vrot.slane %v1244, 7
      %v9960 = vrot.slane %v1245, 7
      %v9961 = vrot.slane %v1246, 7
      %v9962 = vrot.slane %v1247, 7
      %v10048 = vunpack.c.l.b16 %v9878
      %v10049 = vunpack.c.h.b16 %v9878
      %v10050 = vunpack.c.l.b16 %v9879
      %v10051 = vunpack.c.h.b16 %v9879
      %v10052 = vunpack.c.l.b16 %v9880
      %v10053 = vunpack.c.h.b16 %v9880
      %v10054 = vunpack.c.l.b16 %v9881
      %v10055 = vunpack.c.h.b16 %v9881
      %v10056 = vunpack.c.l.b16 %v9882
      %v10057 = vunpack.c.h.b16 %v9882
      %v10058 = vunpack.c.l.b16 %v9883
      %v10059 = vunpack.c.h.b16 %v9883
      %v10060 = vunpack.c.l.b16 %v9884
      %v10061 = vunpack.c.h.b16 %v9884
      %v10062 = vunpack.c.l.b16 %v9885
      %v10063 = vunpack.c.h.b16 %v9885
      %v10064 = vunpack.c.l.b16 %v9886
      %v10065 = vunpack.c.h.b16 %v9886
      %v10066 = vunpack.c.l.b16 %v9887
      %v10067 = vunpack.c.h.b16 %v9887
      %v10068 = vunpack.c.l.b16 %v9888
      %v10069 = vunpack.c.h.b16 %v9888
      %v10070 = vunpack.c.l.b16 %v9889
      %v10071 = vunpack.c.h.b16 %v9889
      %v10072 = vunpack.c.l.b16 %v9890
      %v10073 = vunpack.c.h.b16 %v9890
      %v10074 = vunpack.c.l.b16 %v9891
      %v10075 = vunpack.c.h.b16 %v9891
      %v10076 = vunpack.c.l.b16 %v9892
      %v10077 = vunpack.c.h.b16 %v9892
      %v10078 = vunpack.c.l.b16 %v9893
      %v10079 = vunpack.c.h.b16 %v9893
      %v10080 = vunpack.c.l.b16 %v9894
      %v10081 = vunpack.c.h.b16 %v9894
      %v10082 = vunpack.c.l.b16 %v9895
      %v10083 = vunpack.c.h.b16 %v9895
      %v10084 = vunpack.c.l.b16 %v9896
      %v10085 = vunpack.c.h.b16 %v9896
      %v10086 = vunpack.c.l.b16 %v9897
      %v10087 = vunpack.c.h.b16 %v9897
      %v10088 = vunpack.c.l.b16 %v9898
      %v10089 = vunpack.c.h.b16 %v9898
      %v10090 = vunpack.c.l.b16 %v9899
      %v10091 = vunpack.c.h.b16 %v9899
      %v10092 = vunpack.c.l.b16 %v9900
      %v10093 = vunpack.c.h.b16 %v9900
      %v10094 = vunpack.c.l.b16 %v9901
      %v10095 = vunpack.c.h.b16 %v9901
      %v10096 = vunpack.c.l.b16 %v9902
      %v10097 = vunpack.c.h.b16 %v9902
      %v10098 = vunpack.c.l.b16 %v9903
      %v10099 = vunpack.c.h.b16 %v9903
      %v10100 = vunpack.c.l.b16 %v9904
      %v10101 = vunpack.c.h.b16 %v9904
      %v10102 = vunpack.c.l.b16 %v9905
      %v10103 = vunpack.c.h.b16 %v9905
      %v10104 = vunpack.c.l.b16 %v9906
      %v10105 = vunpack.c.h.b16 %v9906
      %v10106 = vunpack.c.l.b16 %v9907
      %v10107 = vunpack.c.h.b16 %v9907
      %v10108 = vunpack.c.l.b16 %v9908
      %v10109 = vunpack.c.h.b16 %v9908
      %v10110 = vunpack.c.l.b16 %v9909
      %v10111 = vunpack.c.h.b16 %v9909
      %v10112 = vunpack.c.l.b16 %v9910
      %v10113 = vunpack.c.h.b16 %v9910
      %v10114 = vunpack.c.l.b16 %v9911
      %v10115 = vunpack.c.h.b16 %v9911
      %v10116 = vunpack.c.l.b16 %v9912
      %v10117 = vunpack.c.h.b16 %v9912
      %v10118 = vunpack.c.l.b16 %v9913
      %v10119 = vunpack.c.h.b16 %v9913
      %v10120 = vunpack.c.l.b16 %v9914
      %v10121 = vunpack.c.h.b16 %v9914
      %v10122 = vunpack.c.l.b16 %v9915
      %v10123 = vunpack.c.h.b16 %v9915
      %v10124 = vunpack.c.l.b16 %v9916
      %v10125 = vunpack.c.h.b16 %v9916
      %v10126 = vunpack.c.l.b16 %v9917
      %v10127 = vunpack.c.h.b16 %v9917
      %v10128 = vunpack.c.l.b16 %v9918
      %v10129 = vunpack.c.h.b16 %v9918
      %v10130 = vunpack.c.l.b16 %v9919
      %v10131 = vunpack.c.h.b16 %v9919
      %v10132 = vunpack.c.l.b16 %v9920
      %v10133 = vunpack.c.h.b16 %v9920
      %v10134 = vunpack.c.l.b16 %v9921
      %v10135 = vunpack.c.h.b16 %v9921
      %v10136 = vunpack.c.l.b16 %v9922
      %v10137 = vunpack.c.h.b16 %v9922
      %v10138 = vunpack.c.l.b16 %v9923
      %v10139 = vunpack.c.h.b16 %v9923
      %v10140 = vunpack.c.l.b16 %v9924
      %v10141 = vunpack.c.h.b16 %v9924
      %v10142 = vunpack.c.l.b16 %v9925
      %v10143 = vunpack.c.h.b16 %v9925
      %v10144 = vunpack.c.l.b16 %v9926
      %v10145 = vunpack.c.h.b16 %v9926
      %v10146 = vunpack.c.l.b16 %v9927
      %v10147 = vunpack.c.h.b16 %v9927
      %v10148 = vunpack.c.l.b16 %v9928
      %v10149 = vunpack.c.h.b16 %v9928
      %v10150 = vunpack.c.l.b16 %v9929
      %v10151 = vunpack.c.h.b16 %v9929
      %v10152 = vunpack.c.l.b16 %v9930
      %v10153 = vunpack.c.h.b16 %v9930
      %v10154 = vunpack.c.l.b16 %v9931
      %v10155 = vunpack.c.h.b16 %v9931
      %v10156 = vunpack.c.l.b16 %v9932
      %v10157 = vunpack.c.h.b16 %v9932
      %v10158 = vunpack.c.l.b16 %v9933
      %v10159 = vunpack.c.h.b16 %v9933
      %v10160 = vunpack.c.l.b16 %v9934
      %v10161 = vunpack.c.h.b16 %v9934
      %v10162 = vunpack.c.l.b16 %v9935
      %v10163 = vunpack.c.h.b16 %v9935
      %v10164 = vunpack.c.l.b16 %v9936
      %v10165 = vunpack.c.h.b16 %v9936
      %v10166 = vunpack.c.l.b16 %v9937
      %v10167 = vunpack.c.h.b16 %v9937
      %v10168 = vunpack.c.l.b16 %v9938
      %v10169 = vunpack.c.h.b16 %v9938
      %v10170 = vunpack.c.l.b16 %v9939
      %v10171 = vunpack.c.h.b16 %v9939
      %v10172 = vunpack.c.l.b16 %v9940
      %v10173 = vunpack.c.h.b16 %v9940
      %v10174 = vunpack.c.l.b16 %v9941
      %v10175 = vunpack.c.h.b16 %v9941
      %v10176 = vunpack.c.l.b16 %v9942
      %v10177 = vunpack.c.h.b16 %v9942
      %v10178 = vunpack.c.l.b16 %v9943
      %v10179 = vunpack.c.h.b16 %v9943
      %v10180 = vunpack.c.l.b16 %v9944
      %v10181 = vunpack.c.h.b16 %v9944
      %v10182 = vunpack.c.l.b16 %v9945
      %v10183 = vunpack.c.h.b16 %v9945
      %v10184 = vunpack.c.l.b16 %v9946
      %v10185 = vunpack.c.h.b16 %v9946
      %v10186 = vunpack.c.l.b16 %v9947
      %v10187 = vunpack.c.h.b16 %v9947
      %v10188 = vunpack.c.l.b16 %v9948
      %v10189 = vunpack.c.h.b16 %v9948
      %v10190 = vunpack.c.l.b16 %v9949
      %v10191 = vunpack.c.h.b16 %v9949
      %v10192 = vunpack.c.l.b16 %v9950
      %v10193 = vunpack.c.h.b16 %v9950
      %v10194 = vunpack.c.l.b16 %v9951
      %v10195 = vunpack.c.h.b16 %v9951
      %v10196 = vunpack.c.l.b16 %v9952
      %v10197 = vunpack.c.h.b16 %v9952
      %v10198 = vunpack.c.l.b16 %v9953
      %v10199 = vunpack.c.h.b16 %v9953
      %v10200 = vunpack.c.l.b16 %v9954
      %v10201 = vunpack.c.h.b16 %v9954
      %v10202 = vunpack.c.l.b16 %v9955
      %v10203 = vunpack.c.h.b16 %v9955
      %v10204 = vunpack.c.l.b16 %v9956
      %v10205 = vunpack.c.h.b16 %v9956
      %v10206 = vunpack.c.l.b16 %v9957
      %v10207 = vunpack.c.h.b16 %v9957
      %v10208 = vpack.c.b16 %v10050, %v10048
      %v10209 = vpack.c.b16 %v10051, %v10049
      %v10210 = vpack.c.b16 %v10054, %v10052
      %v10211 = vpack.c.b16 %v10055, %v10053
      %v10212 = vpack.c.b16 %v10058, %v10056
      %v10213 = vpack.c.b16 %v10059, %v10057
      %v10214 = vpack.c.b16 %v10062, %v10060
      %v10215 = vpack.c.b16 %v10063, %v10061
      %v10216 = vpack.c.b16 %v10066, %v10064
      %v10217 = vpack.c.b16 %v10067, %v10065
      %v10218 = vpack.c.b16 %v10070, %v10068
      %v10219 = vpack.c.b16 %v10071, %v10069
      %v10220 = vpack.c.b16 %v10074, %v10072
      %v10221 = vpack.c.b16 %v10075, %v10073
      %v10222 = vpack.c.b16 %v10078, %v10076
      %v10223 = vpack.c.b16 %v10079, %v10077
      %v10224 = vpack.c.b16 %v10082, %v10080
      %v10225 = vpack.c.b16 %v10083, %v10081
      %v10226 = vpack.c.b16 %v10086, %v10084
      %v10227 = vpack.c.b16 %v10087, %v10085
      %v10228 = vpack.c.b16 %v10090, %v10088
      %v10229 = vpack.c.b16 %v10091, %v10089
      %v10230 = vpack.c.b16 %v10094, %v10092
      %v10231 = vpack.c.b16 %v10095, %v10093
      %v10232 = vpack.c.b16 %v10098, %v10096
      %v10233 = vpack.c.b16 %v10099, %v10097
      %v10234 = vpack.c.b16 %v10102, %v10100
      %v10235 = vpack.c.b16 %v10103, %v10101
      %v10236 = vpack.c.b16 %v10106, %v10104
      %v10237 = vpack.c.b16 %v10107, %v10105
      %v10238 = vpack.c.b16 %v10110, %v10108
      %v10239 = vpack.c.b16 %v10111, %v10109
      %v10240 = vpack.c.b16 %v10114, %v10112
      %v10241 = vpack.c.b16 %v10115, %v10113
      %v10242 = vpack.c.b16 %v10118, %v10116
      %v10243 = vpack.c.b16 %v10119, %v10117
      %v10244 = vpack.c.b16 %v10122, %v10120
      %v10245 = vpack.c.b16 %v10123, %v10121
      %v10246 = vpack.c.b16 %v10126, %v10124
      %v10247 = vpack.c.b16 %v10127, %v10125
      %v10248 = vpack.c.b16 %v10130, %v10128
      %v10249 = vpack.c.b16 %v10131, %v10129
      %v10250 = vpack.c.b16 %v10134, %v10132
      %v10251 = vpack.c.b16 %v10135, %v10133
      %v10252 = vpack.c.b16 %v10138, %v10136
      %v10253 = vpack.c.b16 %v10139, %v10137
      %v10254 = vpack.c.b16 %v10142, %v10140
      %v10255 = vpack.c.b16 %v10143, %v10141
      %v10256 = vpack.c.b16 %v10146, %v10144
      %v10257 = vpack.c.b16 %v10147, %v10145
      %v10258 = vpack.c.b16 %v10150, %v10148
      %v10259 = vpack.c.b16 %v10151, %v10149
      %v10260 = vpack.c.b16 %v10154, %v10152
      %v10261 = vpack.c.b16 %v10155, %v10153
      %v10262 = vpack.c.b16 %v10158, %v10156
      %v10263 = vpack.c.b16 %v10159, %v10157
      %v10264 = vpack.c.b16 %v10162, %v10160
      %v10265 = vpack.c.b16 %v10163, %v10161
      %v10266 = vpack.c.b16 %v10166, %v10164
      %v10267 = vpack.c.b16 %v10167, %v10165
      %v10268 = vpack.c.b16 %v10170, %v10168
      %v10269 = vpack.c.b16 %v10171, %v10169
      %v10270 = vpack.c.b16 %v10174, %v10172
      %v10271 = vpack.c.b16 %v10175, %v10173
      %v10272 = vpack.c.b16 %v10178, %v10176
      %v10273 = vpack.c.b16 %v10179, %v10177
      %v10274 = vpack.c.b16 %v10182, %v10180
      %v10275 = vpack.c.b16 %v10183, %v10181
      %v10276 = vpack.c.b16 %v10186, %v10184
      %v10277 = vpack.c.b16 %v10187, %v10185
      %v10278 = vpack.c.b16 %v10190, %v10188
      %v10279 = vpack.c.b16 %v10191, %v10189
      %v10280 = vpack.c.b16 %v10194, %v10192
      %v10281 = vpack.c.b16 %v10195, %v10193
      %v10282 = vpack.c.b16 %v10198, %v10196
      %v10283 = vpack.c.b16 %v10199, %v10197
      %v10284 = vpack.c.b16 %v10202, %v10200
      %v10285 = vpack.c.b16 %v10203, %v10201
      %v10286 = vpack.c.b16 %v10206, %v10204
      %v10287 = vpack.c.b16 %v10207, %v10205
      %10368 = vmatprep.subr.bf16.mxu0 %v10209
      %10369 = vmatpush1.bf16.msra.mxu0 %v10208
      %10370 = vmatprep.subr.bf16.mxu0 %v10211
      %10371 = vmatpush1.bf16.msra.mxu0 %v10210
      %10372 = vmatprep.subr.bf16.mxu0 %v10213
      %10373 = vmatpush1.bf16.msra.mxu0 %v10212
      %10374 = vmatprep.subr.bf16.mxu0 %v10215
      %10375 = vmatpush1.bf16.msra.mxu0 %v10214
      %10376 = vmatprep.subr.bf16.mxu0 %v10217
      %10377 = vmatpush1.bf16.msra.mxu0 %v10216
      %10378 = vmatprep.subr.bf16.mxu0 %v10219
      %10379 = vmatpush1.bf16.msra.mxu0 %v10218
      %10380 = vmatprep.subr.bf16.mxu0 %v10221
      %10381 = vmatpush1.bf16.msra.mxu0 %v10220
      %10382 = vmatprep.subr.bf16.mxu0 %v10223
      %10383 = vmatpush1.bf16.msra.mxu0 %v10222
      %10384 = vmatprep.subr.bf16.mxu0 %v10225
      %10385 = vmatpush1.bf16.msra.mxu0 %v10224
      %10386 = vmatprep.subr.bf16.mxu0 %v10227
      %10387 = vmatpush1.bf16.msra.mxu0 %v10226
      %10388 = vmatprep.subr.bf16.mxu0 %v10229
      %10389 = vmatpush1.bf16.msra.mxu0 %v10228
      %10390 = vmatprep.subr.bf16.mxu0 %v10231
      %10391 = vmatpush1.bf16.msra.mxu0 %v10230
      %10392 = vmatprep.subr.bf16.mxu0 %v10233
      %10393 = vmatpush1.bf16.msra.mxu0 %v10232
      %10394 = vmatprep.subr.bf16.mxu0 %v10235
      %10395 = vmatpush1.bf16.msra.mxu0 %v10234
      %10396 = vmatprep.subr.bf16.mxu0 %v10237
      %10397 = vmatpush1.bf16.msra.mxu0 %v10236
      %10398 = vmatprep.subr.bf16.mxu0 %v10239
      %10399 = vmatpush1.bf16.msra.mxu0 %v10238
      %10400 = vmatprep.mubr.bf16.mxu0 %v9959
      %10401 = vmatmul.mubr.bf16.gmra.mrb[0].mxu0 %v9958
      %v10402 = vpop.f32.mrb[0].mxu0
      %v10403 = vadd.f32 0.0, %v10402
      %v10404 = vpop.f32.mrb[0].mxu0
      %v10405 = vadd.f32 0.0, %v10404
      %v10406 = vpop.f32.mrb[0].mxu0
      %v10407 = vpop.f32.mrb[0].mxu0
      %10408 = vdwg.mxu0
      %10409 = vmatprep.subr.bf16.mxu0 %v10241
      %10410 = vmatpush1.bf16.msra.mxu0 %v10240
      %10411 = vmatprep.subr.bf16.mxu0 %v10243
      %10412 = vmatpush1.bf16.msra.mxu0 %v10242
      %10413 = vmatprep.subr.bf16.mxu0 %v10245
      %10414 = vmatpush1.bf16.msra.mxu0 %v10244
      %10415 = vmatprep.subr.bf16.mxu0 %v10247
      %10416 = vmatpush1.bf16.msra.mxu0 %v10246
      %10417 = vmatprep.subr.bf16.mxu0 %v10249
      %10418 = vmatpush1.bf16.msra.mxu0 %v10248
      %10419 = vmatprep.subr.bf16.mxu0 %v10251
      %10420 = vmatpush1.bf16.msra.mxu0 %v10250
      %10421 = vmatprep.subr.bf16.mxu0 %v10253
      %10422 = vmatpush1.bf16.msra.mxu0 %v10252
      %10423 = vmatprep.subr.bf16.mxu0 %v10255
      %10424 = vmatpush1.bf16.msra.mxu0 %v10254
      %10425 = vmatprep.subr.bf16.mxu0 %v10257
      %10426 = vmatpush1.bf16.msra.mxu0 %v10256
      %10427 = vmatprep.subr.bf16.mxu0 %v10259
      %10428 = vmatpush1.bf16.msra.mxu0 %v10258
      %10429 = vmatprep.subr.bf16.mxu0 %v10261
      %10430 = vmatpush1.bf16.msra.mxu0 %v10260
      %10431 = vmatprep.subr.bf16.mxu0 %v10263
      %10432 = vmatpush1.bf16.msra.mxu0 %v10262
      %10433 = vmatprep.subr.bf16.mxu0 %v10265
      %10434 = vmatpush1.bf16.msra.mxu0 %v10264
      %10435 = vmatprep.subr.bf16.mxu0 %v10267
      %10436 = vmatpush1.bf16.msra.mxu0 %v10266
      %10437 = vmatprep.subr.bf16.mxu0 %v10269
      %10438 = vmatpush1.bf16.msra.mxu0 %v10268
      %10439 = vmatprep.subr.bf16.mxu0 %v10271
      %10440 = vmatpush1.bf16.msra.mxu0 %v10270
      %10441 = vmatprep.mubr.bf16.mxu0 %v9961
      %10442 = vmatmul.mubr.bf16.gmra.mrb[0].mxu0 %v9960
      %v10443 = vpop.f32.mrb[0].mxu0
      %v10444 = vadd.f32 %v10403, %v10443
      %v10445 = vpop.f32.mrb[0].mxu0
      %v10446 = vadd.f32 %v10405, %v10445
      %v10447 = vpop.f32.mrb[0].mxu0
      %v10448 = vpop.f32.mrb[0].mxu0
      %10449 = vdwg.mxu0
      %10450 = vmatprep.subr.bf16.mxu0 %v10273
      %10451 = vmatpush1.bf16.msra.mxu0 %v10272
      %10452 = vmatprep.subr.bf16.mxu0 %v10275
      %10453 = vmatpush1.bf16.msra.mxu0 %v10274
      %10454 = vmatprep.subr.bf16.mxu0 %v10277
      %10455 = vmatpush1.bf16.msra.mxu0 %v10276
      %10456 = vmatprep.subr.bf16.mxu0 %v10279
      %10457 = vmatpush1.bf16.msra.mxu0 %v10278
      %10458 = vmatprep.subr.bf16.mxu0 %v10281
      %10459 = vmatpush1.bf16.msra.mxu0 %v10280
      %10460 = vmatprep.subr.bf16.mxu0 %v10283
      %10461 = vmatpush1.bf16.msra.mxu0 %v10282
      %10462 = vmatprep.subr.bf16.mxu0 %v10285
      %10463 = vmatpush1.bf16.msra.mxu0 %v10284
      %10464 = vmatprep.subr.bf16.mxu0 %v10287
      %10465 = vmatpush1.bf16.msra.mxu0 %v10286
      %10466 = vmatprep.subr.bf16.mxu0 0
      %10467 = vmatpush1.bf16.msra.mxu0 0
      %10468 = vmatprep.subr.bf16.mxu0 0
      %10469 = vmatpush1.bf16.msra.mxu0 0
      %10470 = vmatprep.subr.bf16.mxu0 0
      %10471 = vmatpush1.bf16.msra.mxu0 0
      %10472 = vmatprep.subr.bf16.mxu0 0
      %10473 = vmatpush1.bf16.msra.mxu0 0
      %10474 = vmatprep.subr.bf16.mxu0 0
      %10475 = vmatpush1.bf16.msra.mxu0 0
      %10476 = vmatprep.subr.bf16.mxu0 0
      %10477 = vmatpush1.bf16.msra.mxu0 0
      %10478 = vmatprep.subr.bf16.mxu0 0
      %10479 = vmatpush1.bf16.msra.mxu0 0
      %10480 = vmatprep.subr.bf16.mxu0 0
      %10481 = vmatpush1.bf16.msra.mxu0 0
      %10482 = vmatprep.mubr.bf16.mxu0 0
      %10483 = vmatmul.mubr.bf16.gmra.mrb[0].mxu0 %v9962
      %v10484 = vpop.f32.mrb[0].mxu0
      %v10485 = vadd.f32 %v10444, %v10484
      %v10486 = vpop.f32.mrb[0].mxu0
      %v10487 = vadd.f32 %v10446, %v10486
      %v10488 = vpop.f32.mrb[0].mxu0
      %v10489 = vpop.f32.mrb[0].mxu0
      %10490 = vdwg.mxu0
      %v10491 = vadd.f32 %v9875, %v10485
      %v10492 = vadd.f32 %v9876, %v10487
      %s10493 = scalar_lea.vmem %s6, 9600
      %v10494 = vld [vmem:[%s10493] sm:$0xff]
      %v10495 = vld [vmem:[%s10493 + $0x8] sm:$0xff]
      %v10496 = vld [vmem:[%s10493 + $0x10] sm:$0xff]
      %v10497 = vld [vmem:[%s10493 + $0x18] sm:$0xff]
      %v10498 = vld [vmem:[%s10493 + $0x20] sm:$0xff]
      %v10499 = vld [vmem:[%s10493 + $0x28] sm:$0xff]
      %v10500 = vld [vmem:[%s10493 + $0x30] sm:$0xff]
      %v10501 = vld [vmem:[%s10493 + $0x38] sm:$0xff]
      %v10502 = vld [vmem:[%s10493 + $0x40] sm:$0xff]
      %v10503 = vld [vmem:[%s10493 + $0x48] sm:$0xff]
      %v10504 = vld [vmem:[%s10493 + $0x50] sm:$0xff]
      %v10505 = vld [vmem:[%s10493 + $0x58] sm:$0xff]
      %v10506 = vld [vmem:[%s10493 + $0x60] sm:$0xff]
      %v10507 = vld [vmem:[%s10493 + $0x68] sm:$0xff]
      %v10508 = vld [vmem:[%s10493 + $0x70] sm:$0xff]
      %v10509 = vld [vmem:[%s10493 + $0x78] sm:$0xff]
      %v10510 = vld [vmem:[%s10493 + $0x80] sm:$0xff]
      %v10511 = vld [vmem:[%s10493 + $0x88] sm:$0xff]
      %v10512 = vld [vmem:[%s10493 + $0x90] sm:$0xff]
      %v10513 = vld [vmem:[%s10493 + $0x98] sm:$0xff]
      %v10514 = vld [vmem:[%s10493 + $0xa0] sm:$0xff]
      %v10515 = vld [vmem:[%s10493 + $0xa8] sm:$0xff]
      %v10516 = vld [vmem:[%s10493 + $0xb0] sm:$0xff]
      %v10517 = vld [vmem:[%s10493 + $0xb8] sm:$0xff]
      %v10518 = vld [vmem:[%s10493 + $0xc0] sm:$0xff]
      %v10519 = vld [vmem:[%s10493 + $0xc8] sm:$0xff]
      %v10520 = vld [vmem:[%s10493 + $0xd0] sm:$0xff]
      %v10521 = vld [vmem:[%s10493 + $0xd8] sm:$0xff]
      %v10522 = vld [vmem:[%s10493 + $0xe0] sm:$0xff]
      %v10523 = vld [vmem:[%s10493 + $0xe8] sm:$0xff]
      %v10524 = vld [vmem:[%s10493 + $0xf0] sm:$0xff]
      %v10525 = vld [vmem:[%s10493 + $0xf8] sm:$0xff]
      %v10526 = vld [vmem:[%s10493 + $0x100] sm:$0xff]
      %v10527 = vld [vmem:[%s10493 + $0x108] sm:$0xff]
      %v10528 = vld [vmem:[%s10493 + $0x110] sm:$0xff]
      %v10529 = vld [vmem:[%s10493 + $0x118] sm:$0xff]
      %v10530 = vld [vmem:[%s10493 + $0x120] sm:$0xff]
      %v10531 = vld [vmem:[%s10493 + $0x128] sm:$0xff]
      %v10532 = vld [vmem:[%s10493 + $0x130] sm:$0xff]
      %v10533 = vld [vmem:[%s10493 + $0x138] sm:$0xff]
      %v10534 = vld [vmem:[%s10493 + $0x140] sm:$0xff]
      %v10535 = vld [vmem:[%s10493 + $0x148] sm:$0xff]
      %v10536 = vld [vmem:[%s10493 + $0x150] sm:$0xff]
      %v10537 = vld [vmem:[%s10493 + $0x158] sm:$0xff]
      %v10538 = vld [vmem:[%s10493 + $0x160] sm:$0xff]
      %v10539 = vld [vmem:[%s10493 + $0x168] sm:$0xff]
      %v10540 = vld [vmem:[%s10493 + $0x170] sm:$0xff]
      %v10541 = vld [vmem:[%s10493 + $0x178] sm:$0xff]
      %v10542 = vld [vmem:[%s10493 + $0x180] sm:$0xff]
      %v10543 = vld [vmem:[%s10493 + $0x188] sm:$0xff]
      %v10544 = vld [vmem:[%s10493 + $0x190] sm:$0xff]
      %v10545 = vld [vmem:[%s10493 + $0x198] sm:$0xff]
      %v10546 = vld [vmem:[%s10493 + $0x1a0] sm:$0xff]
      %v10547 = vld [vmem:[%s10493 + $0x1a8] sm:$0xff]
      %v10548 = vld [vmem:[%s10493 + $0x1b0] sm:$0xff]
      %v10549 = vld [vmem:[%s10493 + $0x1b8] sm:$0xff]
      %v10550 = vld [vmem:[%s10493 + $0x1c0] sm:$0xff]
      %v10551 = vld [vmem:[%s10493 + $0x1c8] sm:$0xff]
      %v10552 = vld [vmem:[%s10493 + $0x1d0] sm:$0xff]
      %v10553 = vld [vmem:[%s10493 + $0x1d8] sm:$0xff]
      %v10554 = vld [vmem:[%s10493 + $0x1e0] sm:$0xff]
      %v10555 = vld [vmem:[%s10493 + $0x1e8] sm:$0xff]
      %v10556 = vld [vmem:[%s10493 + $0x1f0] sm:$0xff]
      %v10557 = vld [vmem:[%s10493 + $0x1f8] sm:$0xff]
      %v10558 = vld [vmem:[%s10493 + $0x200] sm:$0xff]
      %v10559 = vld [vmem:[%s10493 + $0x208] sm:$0xff]
      %v10560 = vld [vmem:[%s10493 + $0x210] sm:$0xff]
      %v10561 = vld [vmem:[%s10493 + $0x218] sm:$0xff]
      %v10562 = vld [vmem:[%s10493 + $0x220] sm:$0xff]
      %v10563 = vld [vmem:[%s10493 + $0x228] sm:$0xff]
      %v10564 = vld [vmem:[%s10493 + $0x230] sm:$0xff]
      %v10565 = vld [vmem:[%s10493 + $0x238] sm:$0xff]
      %v10566 = vld [vmem:[%s10493 + $0x240] sm:$0xff]
      %v10567 = vld [vmem:[%s10493 + $0x248] sm:$0xff]
      %v10568 = vld [vmem:[%s10493 + $0x250] sm:$0xff]
      %v10569 = vld [vmem:[%s10493 + $0x258] sm:$0xff]
      %v10570 = vld [vmem:[%s10493 + $0x260] sm:$0xff]
      %v10571 = vld [vmem:[%s10493 + $0x268] sm:$0xff]
      %v10572 = vld [vmem:[%s10493 + $0x270] sm:$0xff]
      %v10573 = vld [vmem:[%s10493 + $0x278] sm:$0xff]
      %v10574 = vrot.slane %v1415, 7
      %v10575 = vrot.slane %v1418, 7
      %v10576 = vrot.slane %v1421, 7
      %v10577 = vrot.slane %v1424, 7
      %v10578 = vrot.slane %v1427, 7
      %v10664 = vunpack.c.l.b16 %v10494
      %v10665 = vunpack.c.h.b16 %v10494
      %v10666 = vunpack.c.l.b16 %v10495
      %v10667 = vunpack.c.h.b16 %v10495
      %v10668 = vunpack.c.l.b16 %v10496
      %v10669 = vunpack.c.h.b16 %v10496
      %v10670 = vunpack.c.l.b16 %v10497
      %v10671 = vunpack.c.h.b16 %v10497
      %v10672 = vunpack.c.l.b16 %v10498
      %v10673 = vunpack.c.h.b16 %v10498
      %v10674 = vunpack.c.l.b16 %v10499
      %v10675 = vunpack.c.h.b16 %v10499
      %v10676 = vunpack.c.l.b16 %v10500
      %v10677 = vunpack.c.h.b16 %v10500
      %v10678 = vunpack.c.l.b16 %v10501
      %v10679 = vunpack.c.h.b16 %v10501
      %v10680 = vunpack.c.l.b16 %v10502
      %v10681 = vunpack.c.h.b16 %v10502
      %v10682 = vunpack.c.l.b16 %v10503
      %v10683 = vunpack.c.h.b16 %v10503
      %v10684 = vunpack.c.l.b16 %v10504
      %v10685 = vunpack.c.h.b16 %v10504
      %v10686 = vunpack.c.l.b16 %v10505
      %v10687 = vunpack.c.h.b16 %v10505
      %v10688 = vunpack.c.l.b16 %v10506
      %v10689 = vunpack.c.h.b16 %v10506
      %v10690 = vunpack.c.l.b16 %v10507
      %v10691 = vunpack.c.h.b16 %v10507
      %v10692 = vunpack.c.l.b16 %v10508
      %v10693 = vunpack.c.h.b16 %v10508
      %v10694 = vunpack.c.l.b16 %v10509
      %v10695 = vunpack.c.h.b16 %v10509
      %v10696 = vunpack.c.l.b16 %v10510
      %v10697 = vunpack.c.h.b16 %v10510
      %v10698 = vunpack.c.l.b16 %v10511
      %v10699 = vunpack.c.h.b16 %v10511
      %v10700 = vunpack.c.l.b16 %v10512
      %v10701 = vunpack.c.h.b16 %v10512
      %v10702 = vunpack.c.l.b16 %v10513
      %v10703 = vunpack.c.h.b16 %v10513
      %v10704 = vunpack.c.l.b16 %v10514
      %v10705 = vunpack.c.h.b16 %v10514
      %v10706 = vunpack.c.l.b16 %v10515
      %v10707 = vunpack.c.h.b16 %v10515
      %v10708 = vunpack.c.l.b16 %v10516
      %v10709 = vunpack.c.h.b16 %v10516
      %v10710 = vunpack.c.l.b16 %v10517
      %v10711 = vunpack.c.h.b16 %v10517
      %v10712 = vunpack.c.l.b16 %v10518
      %v10713 = vunpack.c.h.b16 %v10518
      %v10714 = vunpack.c.l.b16 %v10519
      %v10715 = vunpack.c.h.b16 %v10519
      %v10716 = vunpack.c.l.b16 %v10520
      %v10717 = vunpack.c.h.b16 %v10520
      %v10718 = vunpack.c.l.b16 %v10521
      %v10719 = vunpack.c.h.b16 %v10521
      %v10720 = vunpack.c.l.b16 %v10522
      %v10721 = vunpack.c.h.b16 %v10522
      %v10722 = vunpack.c.l.b16 %v10523
      %v10723 = vunpack.c.h.b16 %v10523
      %v10724 = vunpack.c.l.b16 %v10524
      %v10725 = vunpack.c.h.b16 %v10524
      %v10726 = vunpack.c.l.b16 %v10525
      %v10727 = vunpack.c.h.b16 %v10525
      %v10728 = vunpack.c.l.b16 %v10526
      %v10729 = vunpack.c.h.b16 %v10526
      %v10730 = vunpack.c.l.b16 %v10527
      %v10731 = vunpack.c.h.b16 %v10527
      %v10732 = vunpack.c.l.b16 %v10528
      %v10733 = vunpack.c.h.b16 %v10528
      %v10734 = vunpack.c.l.b16 %v10529
      %v10735 = vunpack.c.h.b16 %v10529
      %v10736 = vunpack.c.l.b16 %v10530
      %v10737 = vunpack.c.h.b16 %v10530
      %v10738 = vunpack.c.l.b16 %v10531
      %v10739 = vunpack.c.h.b16 %v10531
      %v10740 = vunpack.c.l.b16 %v10532
      %v10741 = vunpack.c.h.b16 %v10532
      %v10742 = vunpack.c.l.b16 %v10533
      %v10743 = vunpack.c.h.b16 %v10533
      %v10744 = vunpack.c.l.b16 %v10534
      %v10745 = vunpack.c.h.b16 %v10534
      %v10746 = vunpack.c.l.b16 %v10535
      %v10747 = vunpack.c.h.b16 %v10535
      %v10748 = vunpack.c.l.b16 %v10536
      %v10749 = vunpack.c.h.b16 %v10536
      %v10750 = vunpack.c.l.b16 %v10537
      %v10751 = vunpack.c.h.b16 %v10537
      %v10752 = vunpack.c.l.b16 %v10538
      %v10753 = vunpack.c.h.b16 %v10538
      %v10754 = vunpack.c.l.b16 %v10539
      %v10755 = vunpack.c.h.b16 %v10539
      %v10756 = vunpack.c.l.b16 %v10540
      %v10757 = vunpack.c.h.b16 %v10540
      %v10758 = vunpack.c.l.b16 %v10541
      %v10759 = vunpack.c.h.b16 %v10541
      %v10760 = vunpack.c.l.b16 %v10542
      %v10761 = vunpack.c.h.b16 %v10542
      %v10762 = vunpack.c.l.b16 %v10543
      %v10763 = vunpack.c.h.b16 %v10543
      %v10764 = vunpack.c.l.b16 %v10544
      %v10765 = vunpack.c.h.b16 %v10544
      %v10766 = vunpack.c.l.b16 %v10545
      %v10767 = vunpack.c.h.b16 %v10545
      %v10768 = vunpack.c.l.b16 %v10546
      %v10769 = vunpack.c.h.b16 %v10546
      %v10770 = vunpack.c.l.b16 %v10547
      %v10771 = vunpack.c.h.b16 %v10547
      %v10772 = vunpack.c.l.b16 %v10548
      %v10773 = vunpack.c.h.b16 %v10548
      %v10774 = vunpack.c.l.b16 %v10549
      %v10775 = vunpack.c.h.b16 %v10549
      %v10776 = vunpack.c.l.b16 %v10550
      %v10777 = vunpack.c.h.b16 %v10550
      %v10778 = vunpack.c.l.b16 %v10551
      %v10779 = vunpack.c.h.b16 %v10551
      %v10780 = vunpack.c.l.b16 %v10552
      %v10781 = vunpack.c.h.b16 %v10552
      %v10782 = vunpack.c.l.b16 %v10553
      %v10783 = vunpack.c.h.b16 %v10553
      %v10784 = vunpack.c.l.b16 %v10554
      %v10785 = vunpack.c.h.b16 %v10554
      %v10786 = vunpack.c.l.b16 %v10555
      %v10787 = vunpack.c.h.b16 %v10555
      %v10788 = vunpack.c.l.b16 %v10556
      %v10789 = vunpack.c.h.b16 %v10556
      %v10790 = vunpack.c.l.b16 %v10557
      %v10791 = vunpack.c.h.b16 %v10557
      %v10792 = vunpack.c.l.b16 %v10558
      %v10793 = vunpack.c.h.b16 %v10558
      %v10794 = vunpack.c.l.b16 %v10559
      %v10795 = vunpack.c.h.b16 %v10559
      %v10796 = vunpack.c.l.b16 %v10560
      %v10797 = vunpack.c.h.b16 %v10560
      %v10798 = vunpack.c.l.b16 %v10561
      %v10799 = vunpack.c.h.b16 %v10561
      %v10800 = vunpack.c.l.b16 %v10562
      %v10801 = vunpack.c.h.b16 %v10562
      %v10802 = vunpack.c.l.b16 %v10563
      %v10803 = vunpack.c.h.b16 %v10563
      %v10804 = vunpack.c.l.b16 %v10564
      %v10805 = vunpack.c.h.b16 %v10564
      %v10806 = vunpack.c.l.b16 %v10565
      %v10807 = vunpack.c.h.b16 %v10565
      %v10808 = vunpack.c.l.b16 %v10566
      %v10809 = vunpack.c.h.b16 %v10566
      %v10810 = vunpack.c.l.b16 %v10567
      %v10811 = vunpack.c.h.b16 %v10567
      %v10812 = vunpack.c.l.b16 %v10568
      %v10813 = vunpack.c.h.b16 %v10568
      %v10814 = vunpack.c.l.b16 %v10569
      %v10815 = vunpack.c.h.b16 %v10569
      %v10816 = vunpack.c.l.b16 %v10570
      %v10817 = vunpack.c.h.b16 %v10570
      %v10818 = vunpack.c.l.b16 %v10571
      %v10819 = vunpack.c.h.b16 %v10571
      %v10820 = vunpack.c.l.b16 %v10572
      %v10821 = vunpack.c.h.b16 %v10572
      %v10822 = vunpack.c.l.b16 %v10573
      %v10823 = vunpack.c.h.b16 %v10573
      %v10824 = vpack.c.b16 %v10666, %v10664
      %v10825 = vpack.c.b16 %v10667, %v10665
      %v10826 = vpack.c.b16 %v10670, %v10668
      %v10827 = vpack.c.b16 %v10671, %v10669
      %v10828 = vpack.c.b16 %v10674, %v10672
      %v10829 = vpack.c.b16 %v10675, %v10673
      %v10830 = vpack.c.b16 %v10678, %v10676
      %v10831 = vpack.c.b16 %v10679, %v10677
      %v10832 = vpack.c.b16 %v10682, %v10680
      %v10833 = vpack.c.b16 %v10683, %v10681
      %v10834 = vpack.c.b16 %v10686, %v10684
      %v10835 = vpack.c.b16 %v10687, %v10685
      %v10836 = vpack.c.b16 %v10690, %v10688
      %v10837 = vpack.c.b16 %v10691, %v10689
      %v10838 = vpack.c.b16 %v10694, %v10692
      %v10839 = vpack.c.b16 %v10695, %v10693
      %v10840 = vpack.c.b16 %v10698, %v10696
      %v10841 = vpack.c.b16 %v10699, %v10697
      %v10842 = vpack.c.b16 %v10702, %v10700
      %v10843 = vpack.c.b16 %v10703, %v10701
      %v10844 = vpack.c.b16 %v10706, %v10704
      %v10845 = vpack.c.b16 %v10707, %v10705
      %v10846 = vpack.c.b16 %v10710, %v10708
      %v10847 = vpack.c.b16 %v10711, %v10709
      %v10848 = vpack.c.b16 %v10714, %v10712
      %v10849 = vpack.c.b16 %v10715, %v10713
      %v10850 = vpack.c.b16 %v10718, %v10716
      %v10851 = vpack.c.b16 %v10719, %v10717
      %v10852 = vpack.c.b16 %v10722, %v10720
      %v10853 = vpack.c.b16 %v10723, %v10721
      %v10854 = vpack.c.b16 %v10726, %v10724
      %v10855 = vpack.c.b16 %v10727, %v10725
      %v10856 = vpack.c.b16 %v10730, %v10728
      %v10857 = vpack.c.b16 %v10731, %v10729
      %v10858 = vpack.c.b16 %v10734, %v10732
      %v10859 = vpack.c.b16 %v10735, %v10733
      %v10860 = vpack.c.b16 %v10738, %v10736
      %v10861 = vpack.c.b16 %v10739, %v10737
      %v10862 = vpack.c.b16 %v10742, %v10740
      %v10863 = vpack.c.b16 %v10743, %v10741
      %v10864 = vpack.c.b16 %v10746, %v10744
      %v10865 = vpack.c.b16 %v10747, %v10745
      %v10866 = vpack.c.b16 %v10750, %v10748
      %v10867 = vpack.c.b16 %v10751, %v10749
      %v10868 = vpack.c.b16 %v10754, %v10752
      %v10869 = vpack.c.b16 %v10755, %v10753
      %v10870 = vpack.c.b16 %v10758, %v10756
      %v10871 = vpack.c.b16 %v10759, %v10757
      %v10872 = vpack.c.b16 %v10762, %v10760
      %v10873 = vpack.c.b16 %v10763, %v10761
      %v10874 = vpack.c.b16 %v10766, %v10764
      %v10875 = vpack.c.b16 %v10767, %v10765
      %v10876 = vpack.c.b16 %v10770, %v10768
      %v10877 = vpack.c.b16 %v10771, %v10769
      %v10878 = vpack.c.b16 %v10774, %v10772
      %v10879 = vpack.c.b16 %v10775, %v10773
      %v10880 = vpack.c.b16 %v10778, %v10776
      %v10881 = vpack.c.b16 %v10779, %v10777
      %v10882 = vpack.c.b16 %v10782, %v10780
      %v10883 = vpack.c.b16 %v10783, %v10781
      %v10884 = vpack.c.b16 %v10786, %v10784
      %v10885 = vpack.c.b16 %v10787, %v10785
      %v10886 = vpack.c.b16 %v10790, %v10788
      %v10887 = vpack.c.b16 %v10791, %v10789
      %v10888 = vpack.c.b16 %v10794, %v10792
      %v10889 = vpack.c.b16 %v10795, %v10793
      %v10890 = vpack.c.b16 %v10798, %v10796
      %v10891 = vpack.c.b16 %v10799, %v10797
      %v10892 = vpack.c.b16 %v10802, %v10800
      %v10893 = vpack.c.b16 %v10803, %v10801
      %v10894 = vpack.c.b16 %v10806, %v10804
      %v10895 = vpack.c.b16 %v10807, %v10805
      %v10896 = vpack.c.b16 %v10810, %v10808
      %v10897 = vpack.c.b16 %v10811, %v10809
      %v10898 = vpack.c.b16 %v10814, %v10812
      %v10899 = vpack.c.b16 %v10815, %v10813
      %v10900 = vpack.c.b16 %v10818, %v10816
      %v10901 = vpack.c.b16 %v10819, %v10817
      %v10902 = vpack.c.b16 %v10822, %v10820
      %v10903 = vpack.c.b16 %v10823, %v10821
      %10984 = vmatprep.subr.bf16.mxu0 %v10825
      %10985 = vmatpush1.bf16.msra.mxu0 %v10824
      %10986 = vmatprep.subr.bf16.mxu0 %v10827
      %10987 = vmatpush1.bf16.msra.mxu0 %v10826
      %10988 = vmatprep.subr.bf16.mxu0 %v10829
      %10989 = vmatpush1.bf16.msra.mxu0 %v10828
      %10990 = vmatprep.subr.bf16.mxu0 %v10831
      %10991 = vmatpush1.bf16.msra.mxu0 %v10830
      %10992 = vmatprep.subr.bf16.mxu0 %v10833
      %10993 = vmatpush1.bf16.msra.mxu0 %v10832
      %10994 = vmatprep.subr.bf16.mxu0 %v10835
      %10995 = vmatpush1.bf16.msra.mxu0 %v10834
      %10996 = vmatprep.subr.bf16.mxu0 %v10837
      %10997 = vmatpush1.bf16.msra.mxu0 %v10836
      %10998 = vmatprep.subr.bf16.mxu0 %v10839
      %10999 = vmatpush1.bf16.msra.mxu0 %v10838
      %11000 = vmatprep.subr.bf16.mxu0 %v10841
      %11001 = vmatpush1.bf16.msra.mxu0 %v10840
      %11002 = vmatprep.subr.bf16.mxu0 %v10843
      %11003 = vmatpush1.bf16.msra.mxu0 %v10842
      %11004 = vmatprep.subr.bf16.mxu0 %v10845
      %11005 = vmatpush1.bf16.msra.mxu0 %v10844
      %11006 = vmatprep.subr.bf16.mxu0 %v10847
      %11007 = vmatpush1.bf16.msra.mxu0 %v10846
      %11008 = vmatprep.subr.bf16.mxu0 %v10849
      %11009 = vmatpush1.bf16.msra.mxu0 %v10848
      %11010 = vmatprep.subr.bf16.mxu0 %v10851
      %11011 = vmatpush1.bf16.msra.mxu0 %v10850
      %11012 = vmatprep.subr.bf16.mxu0 %v10853
      %11013 = vmatpush1.bf16.msra.mxu0 %v10852
      %11014 = vmatprep.subr.bf16.mxu0 %v10855
      %11015 = vmatpush1.bf16.msra.mxu0 %v10854
      %11016 = vmatprep.mubr.bf16.mxu0 %v10575
      %11017 = vmatmul.mubr.bf16.gmra.mrb[0].mxu0 %v10574
      %v11018 = vpop.f32.mrb[0].mxu0
      %v11019 = vadd.f32 0.0, %v11018
      %v11020 = vpop.f32.mrb[0].mxu0
      %v11021 = vadd.f32 0.0, %v11020
      %v11022 = vpop.f32.mrb[0].mxu0
      %v11023 = vpop.f32.mrb[0].mxu0
      %11024 = vdwg.mxu0
      %11025 = vmatprep.subr.bf16.mxu0 %v10857
      %11026 = vmatpush1.bf16.msra.mxu0 %v10856
      %11027 = vmatprep.subr.bf16.mxu0 %v10859
      %11028 = vmatpush1.bf16.msra.mxu0 %v10858
      %11029 = vmatprep.subr.bf16.mxu0 %v10861
      %11030 = vmatpush1.bf16.msra.mxu0 %v10860
      %11031 = vmatprep.subr.bf16.mxu0 %v10863
      %11032 = vmatpush1.bf16.msra.mxu0 %v10862
      %11033 = vmatprep.subr.bf16.mxu0 %v10865
      %11034 = vmatpush1.bf16.msra.mxu0 %v10864
      %11035 = vmatprep.subr.bf16.mxu0 %v10867
      %11036 = vmatpush1.bf16.msra.mxu0 %v10866
      %11037 = vmatprep.subr.bf16.mxu0 %v10869
      %11038 = vmatpush1.bf16.msra.mxu0 %v10868
      %11039 = vmatprep.subr.bf16.mxu0 %v10871
      %11040 = vmatpush1.bf16.msra.mxu0 %v10870
      %11041 = vmatprep.subr.bf16.mxu0 %v10873
      %11042 = vmatpush1.bf16.msra.mxu0 %v10872
      %11043 = vmatprep.subr.bf16.mxu0 %v10875
      %11044 = vmatpush1.bf16.msra.mxu0 %v10874
      %11045 = vmatprep.subr.bf16.mxu0 %v10877
      %11046 = vmatpush1.bf16.msra.mxu0 %v10876
      %11047 = vmatprep.subr.bf16.mxu0 %v10879
      %11048 = vmatpush1.bf16.msra.mxu0 %v10878
      %11049 = vmatprep.subr.bf16.mxu0 %v10881
      %11050 = vmatpush1.bf16.msra.mxu0 %v10880
      %11051 = vmatprep.subr.bf16.mxu0 %v10883
      %11052 = vmatpush1.bf16.msra.mxu0 %v10882
      %11053 = vmatprep.subr.bf16.mxu0 %v10885
      %11054 = vmatpush1.bf16.msra.mxu0 %v10884
      %11055 = vmatprep.subr.bf16.mxu0 %v10887
      %11056 = vmatpush1.bf16.msra.mxu0 %v10886
      %11057 = vmatprep.mubr.bf16.mxu0 %v10577
      %11058 = vmatmul.mubr.bf16.gmra.mrb[0].mxu0 %v10576
      %v11059 = vpop.f32.mrb[0].mxu0
      %v11060 = vadd.f32 %v11019, %v11059
      %v11061 = vpop.f32.mrb[0].mxu0
      %v11062 = vadd.f32 %v11021, %v11061
      %v11063 = vpop.f32.mrb[0].mxu0
      %v11064 = vpop.f32.mrb[0].mxu0
      %11065 = vdwg.mxu0
      %11066 = vmatprep.subr.bf16.mxu0 %v10889
      %11067 = vmatpush1.bf16.msra.mxu0 %v10888
      %11068 = vmatprep.subr.bf16.mxu0 %v10891
      %11069 = vmatpush1.bf16.msra.mxu0 %v10890
      %11070 = vmatprep.subr.bf16.mxu0 %v10893
      %11071 = vmatpush1.bf16.msra.mxu0 %v10892
      %11072 = vmatprep.subr.bf16.mxu0 %v10895
      %11073 = vmatpush1.bf16.msra.mxu0 %v10894
      %11074 = vmatprep.subr.bf16.mxu0 %v10897
      %11075 = vmatpush1.bf16.msra.mxu0 %v10896
      %11076 = vmatprep.subr.bf16.mxu0 %v10899
      %11077 = vmatpush1.bf16.msra.mxu0 %v10898
      %11078 = vmatprep.subr.bf16.mxu0 %v10901
      %11079 = vmatpush1.bf16.msra.mxu0 %v10900
      %11080 = vmatprep.subr.bf16.mxu0 %v10903
      %11081 = vmatpush1.bf16.msra.mxu0 %v10902
      %11082 = vmatprep.subr.bf16.mxu0 0
      %11083 = vmatpush1.bf16.msra.mxu0 0
      %11084 = vmatprep.subr.bf16.mxu0 0
      %11085 = vmatpush1.bf16.msra.mxu0 0
      %11086 = vmatprep.subr.bf16.mxu0 0
      %11087 = vmatpush1.bf16.msra.mxu0 0
      %11088 = vmatprep.subr.bf16.mxu0 0
      %11089 = vmatpush1.bf16.msra.mxu0 0
      %11090 = vmatprep.subr.bf16.mxu0 0
      %11091 = vmatpush1.bf16.msra.mxu0 0
      %11092 = vmatprep.subr.bf16.mxu0 0
      %11093 = vmatpush1.bf16.msra.mxu0 0
      %11094 = vmatprep.subr.bf16.mxu0 0
      %11095 = vmatpush1.bf16.msra.mxu0 0
      %11096 = vmatprep.subr.bf16.mxu0 0
      %11097 = vmatpush1.bf16.msra.mxu0 0
      %11098 = vmatprep.mubr.bf16.mxu0 0
      %11099 = vmatmul.mubr.bf16.gmra.mrb[0].mxu0 %v10578
      %v11100 = vpop.f32.mrb[0].mxu0
      %v11101 = vadd.f32 %v11060, %v11100
      %v11102 = vpop.f32.mrb[0].mxu0
      %v11103 = vadd.f32 %v11062, %v11102
      %v11104 = vpop.f32.mrb[0].mxu0
      %v11105 = vpop.f32.mrb[0].mxu0
      %11106 = vdwg.mxu0
      %v11107 = vadd.f32 %v10491, %v11101
      %v11108 = vadd.f32 %v10492, %v11103
      %s11109 = scalar_lea.vmem %s6, 10240
      %v11110 = vld [vmem:[%s11109] sm:$0xff]
      %v11111 = vld [vmem:[%s11109 + $0x8] sm:$0xff]
      %v11112 = vld [vmem:[%s11109 + $0x10] sm:$0xff]
      %v11113 = vld [vmem:[%s11109 + $0x18] sm:$0xff]
      %v11114 = vld [vmem:[%s11109 + $0x20] sm:$0xff]
      %v11115 = vld [vmem:[%s11109 + $0x28] sm:$0xff]
      %v11116 = vld [vmem:[%s11109 + $0x30] sm:$0xff]
      %v11117 = vld [vmem:[%s11109 + $0x38] sm:$0xff]
      %v11118 = vld [vmem:[%s11109 + $0x40] sm:$0xff]
      %v11119 = vld [vmem:[%s11109 + $0x48] sm:$0xff]
      %v11120 = vld [vmem:[%s11109 + $0x50] sm:$0xff]
      %v11121 = vld [vmem:[%s11109 + $0x58] sm:$0xff]
      %v11122 = vld [vmem:[%s11109 + $0x60] sm:$0xff]
      %v11123 = vld [vmem:[%s11109 + $0x68] sm:$0xff]
      %v11124 = vld [vmem:[%s11109 + $0x70] sm:$0xff]
      %v11125 = vld [vmem:[%s11109 + $0x78] sm:$0xff]
      %v11126 = vld [vmem:[%s11109 + $0x80] sm:$0xff]
      %v11127 = vld [vmem:[%s11109 + $0x88] sm:$0xff]
      %v11128 = vld [vmem:[%s11109 + $0x90] sm:$0xff]
      %v11129 = vld [vmem:[%s11109 + $0x98] sm:$0xff]
      %v11130 = vld [vmem:[%s11109 + $0xa0] sm:$0xff]
      %v11131 = vld [vmem:[%s11109 + $0xa8] sm:$0xff]
      %v11132 = vld [vmem:[%s11109 + $0xb0] sm:$0xff]
      %v11133 = vld [vmem:[%s11109 + $0xb8] sm:$0xff]
      %v11134 = vld [vmem:[%s11109 + $0xc0] sm:$0xff]
      %v11135 = vld [vmem:[%s11109 + $0xc8] sm:$0xff]
      %v11136 = vld [vmem:[%s11109 + $0xd0] sm:$0xff]
      %v11137 = vld [vmem:[%s11109 + $0xd8] sm:$0xff]
      %v11138 = vld [vmem:[%s11109 + $0xe0] sm:$0xff]
      %v11139 = vld [vmem:[%s11109 + $0xe8] sm:$0xff]
      %v11140 = vld [vmem:[%s11109 + $0xf0] sm:$0xff]
      %v11141 = vld [vmem:[%s11109 + $0xf8] sm:$0xff]
      %v11142 = vld [vmem:[%s11109 + $0x100] sm:$0xff]
      %v11143 = vld [vmem:[%s11109 + $0x108] sm:$0xff]
      %v11144 = vld [vmem:[%s11109 + $0x110] sm:$0xff]
      %v11145 = vld [vmem:[%s11109 + $0x118] sm:$0xff]
      %v11146 = vld [vmem:[%s11109 + $0x120] sm:$0xff]
      %v11147 = vld [vmem:[%s11109 + $0x128] sm:$0xff]
      %v11148 = vld [vmem:[%s11109 + $0x130] sm:$0xff]
      %v11149 = vld [vmem:[%s11109 + $0x138] sm:$0xff]
      %v11150 = vld [vmem:[%s11109 + $0x140] sm:$0xff]
      %v11151 = vld [vmem:[%s11109 + $0x148] sm:$0xff]
      %v11152 = vld [vmem:[%s11109 + $0x150] sm:$0xff]
      %v11153 = vld [vmem:[%s11109 + $0x158] sm:$0xff]
      %v11154 = vld [vmem:[%s11109 + $0x160] sm:$0xff]
      %v11155 = vld [vmem:[%s11109 + $0x168] sm:$0xff]
      %v11156 = vld [vmem:[%s11109 + $0x170] sm:$0xff]
      %v11157 = vld [vmem:[%s11109 + $0x178] sm:$0xff]
      %v11158 = vld [vmem:[%s11109 + $0x180] sm:$0xff]
      %v11159 = vld [vmem:[%s11109 + $0x188] sm:$0xff]
      %v11160 = vld [vmem:[%s11109 + $0x190] sm:$0xff]
      %v11161 = vld [vmem:[%s11109 + $0x198] sm:$0xff]
      %v11162 = vld [vmem:[%s11109 + $0x1a0] sm:$0xff]
      %v11163 = vld [vmem:[%s11109 + $0x1a8] sm:$0xff]
      %v11164 = vld [vmem:[%s11109 + $0x1b0] sm:$0xff]
      %v11165 = vld [vmem:[%s11109 + $0x1b8] sm:$0xff]
      %v11166 = vld [vmem:[%s11109 + $0x1c0] sm:$0xff]
      %v11167 = vld [vmem:[%s11109 + $0x1c8] sm:$0xff]
      %v11168 = vld [vmem:[%s11109 + $0x1d0] sm:$0xff]
      %v11169 = vld [vmem:[%s11109 + $0x1d8] sm:$0xff]
      %v11170 = vld [vmem:[%s11109 + $0x1e0] sm:$0xff]
      %v11171 = vld [vmem:[%s11109 + $0x1e8] sm:$0xff]
      %v11172 = vld [vmem:[%s11109 + $0x1f0] sm:$0xff]
      %v11173 = vld [vmem:[%s11109 + $0x1f8] sm:$0xff]
      %v11174 = vld [vmem:[%s11109 + $0x200] sm:$0xff]
      %v11175 = vld [vmem:[%s11109 + $0x208] sm:$0xff]
      %v11176 = vld [vmem:[%s11109 + $0x210] sm:$0xff]
      %v11177 = vld [vmem:[%s11109 + $0x218] sm:$0xff]
      %v11178 = vld [vmem:[%s11109 + $0x220] sm:$0xff]
      %v11179 = vld [vmem:[%s11109 + $0x228] sm:$0xff]
      %v11180 = vld [vmem:[%s11109 + $0x230] sm:$0xff]
      %v11181 = vld [vmem:[%s11109 + $0x238] sm:$0xff]
      %v11182 = vld [vmem:[%s11109 + $0x240] sm:$0xff]
      %v11183 = vld [vmem:[%s11109 + $0x248] sm:$0xff]
      %v11184 = vld [vmem:[%s11109 + $0x250] sm:$0xff]
      %v11185 = vld [vmem:[%s11109 + $0x258] sm:$0xff]
      %v11186 = vld [vmem:[%s11109 + $0x260] sm:$0xff]
      %v11187 = vld [vmem:[%s11109 + $0x268] sm:$0xff]
      %v11188 = vld [vmem:[%s11109 + $0x270] sm:$0xff]
      %v11189 = vld [vmem:[%s11109 + $0x278] sm:$0xff]
      %v11270 = vunpack.c.l.b16 %v11110
      %v11271 = vunpack.c.h.b16 %v11110
      %v11272 = vunpack.c.l.b16 %v11111
      %v11273 = vunpack.c.h.b16 %v11111
      %v11274 = vunpack.c.l.b16 %v11112
      %v11275 = vunpack.c.h.b16 %v11112
      %v11276 = vunpack.c.l.b16 %v11113
      %v11277 = vunpack.c.h.b16 %v11113
      %v11278 = vunpack.c.l.b16 %v11114
      %v11279 = vunpack.c.h.b16 %v11114
      %v11280 = vunpack.c.l.b16 %v11115
      %v11281 = vunpack.c.h.b16 %v11115
      %v11282 = vunpack.c.l.b16 %v11116
      %v11283 = vunpack.c.h.b16 %v11116
      %v11284 = vunpack.c.l.b16 %v11117
      %v11285 = vunpack.c.h.b16 %v11117
      %v11286 = vunpack.c.l.b16 %v11118
      %v11287 = vunpack.c.h.b16 %v11118
      %v11288 = vunpack.c.l.b16 %v11119
      %v11289 = vunpack.c.h.b16 %v11119
      %v11290 = vunpack.c.l.b16 %v11120
      %v11291 = vunpack.c.h.b16 %v11120
      %v11292 = vunpack.c.l.b16 %v11121
      %v11293 = vunpack.c.h.b16 %v11121
      %v11294 = vunpack.c.l.b16 %v11122
      %v11295 = vunpack.c.h.b16 %v11122
      %v11296 = vunpack.c.l.b16 %v11123
      %v11297 = vunpack.c.h.b16 %v11123
      %v11298 = vunpack.c.l.b16 %v11124
      %v11299 = vunpack.c.h.b16 %v11124
      %v11300 = vunpack.c.l.b16 %v11125
      %v11301 = vunpack.c.h.b16 %v11125
      %v11302 = vunpack.c.l.b16 %v11126
      %v11303 = vunpack.c.h.b16 %v11126
      %v11304 = vunpack.c.l.b16 %v11127
      %v11305 = vunpack.c.h.b16 %v11127
      %v11306 = vunpack.c.l.b16 %v11128
      %v11307 = vunpack.c.h.b16 %v11128
      %v11308 = vunpack.c.l.b16 %v11129
      %v11309 = vunpack.c.h.b16 %v11129
      %v11310 = vunpack.c.l.b16 %v11130
      %v11311 = vunpack.c.h.b16 %v11130
      %v11312 = vunpack.c.l.b16 %v11131
      %v11313 = vunpack.c.h.b16 %v11131
      %v11314 = vunpack.c.l.b16 %v11132
      %v11315 = vunpack.c.h.b16 %v11132
      %v11316 = vunpack.c.l.b16 %v11133
      %v11317 = vunpack.c.h.b16 %v11133
      %v11318 = vunpack.c.l.b16 %v11134
      %v11319 = vunpack.c.h.b16 %v11134
      %v11320 = vunpack.c.l.b16 %v11135
      %v11321 = vunpack.c.h.b16 %v11135
      %v11322 = vunpack.c.l.b16 %v11136
      %v11323 = vunpack.c.h.b16 %v11136
      %v11324 = vunpack.c.l.b16 %v11137
      %v11325 = vunpack.c.h.b16 %v11137
      %v11326 = vunpack.c.l.b16 %v11138
      %v11327 = vunpack.c.h.b16 %v11138
      %v11328 = vunpack.c.l.b16 %v11139
      %v11329 = vunpack.c.h.b16 %v11139
      %v11330 = vunpack.c.l.b16 %v11140
      %v11331 = vunpack.c.h.b16 %v11140
      %v11332 = vunpack.c.l.b16 %v11141
      %v11333 = vunpack.c.h.b16 %v11141
      %v11334 = vunpack.c.l.b16 %v11142
      %v11335 = vunpack.c.h.b16 %v11142
      %v11336 = vunpack.c.l.b16 %v11143
      %v11337 = vunpack.c.h.b16 %v11143
      %v11338 = vunpack.c.l.b16 %v11144
      %v11339 = vunpack.c.h.b16 %v11144
      %v11340 = vunpack.c.l.b16 %v11145
      %v11341 = vunpack.c.h.b16 %v11145
      %v11342 = vunpack.c.l.b16 %v11146
      %v11343 = vunpack.c.h.b16 %v11146
      %v11344 = vunpack.c.l.b16 %v11147
      %v11345 = vunpack.c.h.b16 %v11147
      %v11346 = vunpack.c.l.b16 %v11148
      %v11347 = vunpack.c.h.b16 %v11148
      %v11348 = vunpack.c.l.b16 %v11149
      %v11349 = vunpack.c.h.b16 %v11149
      %v11350 = vunpack.c.l.b16 %v11150
      %v11351 = vunpack.c.h.b16 %v11150
      %v11352 = vunpack.c.l.b16 %v11151
      %v11353 = vunpack.c.h.b16 %v11151
      %v11354 = vunpack.c.l.b16 %v11152
      %v11355 = vunpack.c.h.b16 %v11152
      %v11356 = vunpack.c.l.b16 %v11153
      %v11357 = vunpack.c.h.b16 %v11153
      %v11358 = vunpack.c.l.b16 %v11154
      %v11359 = vunpack.c.h.b16 %v11154
      %v11360 = vunpack.c.l.b16 %v11155
      %v11361 = vunpack.c.h.b16 %v11155
      %v11362 = vunpack.c.l.b16 %v11156
      %v11363 = vunpack.c.h.b16 %v11156
      %v11364 = vunpack.c.l.b16 %v11157
      %v11365 = vunpack.c.h.b16 %v11157
      %v11366 = vunpack.c.l.b16 %v11158
      %v11367 = vunpack.c.h.b16 %v11158
      %v11368 = vunpack.c.l.b16 %v11159
      %v11369 = vunpack.c.h.b16 %v11159
      %v11370 = vunpack.c.l.b16 %v11160
      %v11371 = vunpack.c.h.b16 %v11160
      %v11372 = vunpack.c.l.b16 %v11161
      %v11373 = vunpack.c.h.b16 %v11161
      %v11374 = vunpack.c.l.b16 %v11162
      %v11375 = vunpack.c.h.b16 %v11162
      %v11376 = vunpack.c.l.b16 %v11163
      %v11377 = vunpack.c.h.b16 %v11163
      %v11378 = vunpack.c.l.b16 %v11164
      %v11379 = vunpack.c.h.b16 %v11164
      %v11380 = vunpack.c.l.b16 %v11165
      %v11381 = vunpack.c.h.b16 %v11165
      %v11382 = vunpack.c.l.b16 %v11166
      %v11383 = vunpack.c.h.b16 %v11166
      %v11384 = vunpack.c.l.b16 %v11167
      %v11385 = vunpack.c.h.b16 %v11167
      %v11386 = vunpack.c.l.b16 %v11168
      %v11387 = vunpack.c.h.b16 %v11168
      %v11388 = vunpack.c.l.b16 %v11169
      %v11389 = vunpack.c.h.b16 %v11169
      %v11390 = vunpack.c.l.b16 %v11170
      %v11391 = vunpack.c.h.b16 %v11170
      %v11392 = vunpack.c.l.b16 %v11171
      %v11393 = vunpack.c.h.b16 %v11171
      %v11394 = vunpack.c.l.b16 %v11172
      %v11395 = vunpack.c.h.b16 %v11172
      %v11396 = vunpack.c.l.b16 %v11173
      %v11397 = vunpack.c.h.b16 %v11173
      %v11398 = vunpack.c.l.b16 %v11174
      %v11399 = vunpack.c.h.b16 %v11174
      %v11400 = vunpack.c.l.b16 %v11175
      %v11401 = vunpack.c.h.b16 %v11175
      %v11402 = vunpack.c.l.b16 %v11176
      %v11403 = vunpack.c.h.b16 %v11176
      %v11404 = vunpack.c.l.b16 %v11177
      %v11405 = vunpack.c.h.b16 %v11177
      %v11406 = vunpack.c.l.b16 %v11178
      %v11407 = vunpack.c.h.b16 %v11178
      %v11408 = vunpack.c.l.b16 %v11179
      %v11409 = vunpack.c.h.b16 %v11179
      %v11410 = vunpack.c.l.b16 %v11180
      %v11411 = vunpack.c.h.b16 %v11180
      %v11412 = vunpack.c.l.b16 %v11181
      %v11413 = vunpack.c.h.b16 %v11181
      %v11414 = vunpack.c.l.b16 %v11182
      %v11415 = vunpack.c.h.b16 %v11182
      %v11416 = vunpack.c.l.b16 %v11183
      %v11417 = vunpack.c.h.b16 %v11183
      %v11418 = vunpack.c.l.b16 %v11184
      %v11419 = vunpack.c.h.b16 %v11184
      %v11420 = vunpack.c.l.b16 %v11185
      %v11421 = vunpack.c.h.b16 %v11185
      %v11422 = vunpack.c.l.b16 %v11186
      %v11423 = vunpack.c.h.b16 %v11186
      %v11424 = vunpack.c.l.b16 %v11187
      %v11425 = vunpack.c.h.b16 %v11187
      %v11426 = vunpack.c.l.b16 %v11188
      %v11427 = vunpack.c.h.b16 %v11188
      %v11428 = vunpack.c.l.b16 %v11189
      %v11429 = vunpack.c.h.b16 %v11189
      %v11430 = vpack.c.b16 %v11272, %v11270
      %v11431 = vpack.c.b16 %v11273, %v11271
      %v11432 = vpack.c.b16 %v11276, %v11274
      %v11433 = vpack.c.b16 %v11277, %v11275
      %v11434 = vpack.c.b16 %v11280, %v11278
      %v11435 = vpack.c.b16 %v11281, %v11279
      %v11436 = vpack.c.b16 %v11284, %v11282
      %v11437 = vpack.c.b16 %v11285, %v11283
      %v11438 = vpack.c.b16 %v11288, %v11286
      %v11439 = vpack.c.b16 %v11289, %v11287
      %v11440 = vpack.c.b16 %v11292, %v11290
      %v11441 = vpack.c.b16 %v11293, %v11291
      %v11442 = vpack.c.b16 %v11296, %v11294
      %v11443 = vpack.c.b16 %v11297, %v11295
      %v11444 = vpack.c.b16 %v11300, %v11298
      %v11445 = vpack.c.b16 %v11301, %v11299
      %v11446 = vpack.c.b16 %v11304, %v11302
      %v11447 = vpack.c.b16 %v11305, %v11303
      %v11448 = vpack.c.b16 %v11308, %v11306
      %v11449 = vpack.c.b16 %v11309, %v11307
      %v11450 = vpack.c.b16 %v11312, %v11310
      %v11451 = vpack.c.b16 %v11313, %v11311
      %v11452 = vpack.c.b16 %v11316, %v11314
      %v11453 = vpack.c.b16 %v11317, %v11315
      %v11454 = vpack.c.b16 %v11320, %v11318
      %v11455 = vpack.c.b16 %v11321, %v11319
      %v11456 = vpack.c.b16 %v11324, %v11322
      %v11457 = vpack.c.b16 %v11325, %v11323
      %v11458 = vpack.c.b16 %v11328, %v11326
      %v11459 = vpack.c.b16 %v11329, %v11327
      %v11460 = vpack.c.b16 %v11332, %v11330
      %v11461 = vpack.c.b16 %v11333, %v11331
      %v11462 = vpack.c.b16 %v11336, %v11334
      %v11463 = vpack.c.b16 %v11337, %v11335
      %v11464 = vpack.c.b16 %v11340, %v11338
      %v11465 = vpack.c.b16 %v11341, %v11339
      %v11466 = vpack.c.b16 %v11344, %v11342
      %v11467 = vpack.c.b16 %v11345, %v11343
      %v11468 = vpack.c.b16 %v11348, %v11346
      %v11469 = vpack.c.b16 %v11349, %v11347
      %v11470 = vpack.c.b16 %v11352, %v11350
      %v11471 = vpack.c.b16 %v11353, %v11351
      %v11472 = vpack.c.b16 %v11356, %v11354
      %v11473 = vpack.c.b16 %v11357, %v11355
      %v11474 = vpack.c.b16 %v11360, %v11358
      %v11475 = vpack.c.b16 %v11361, %v11359
      %v11476 = vpack.c.b16 %v11364, %v11362
      %v11477 = vpack.c.b16 %v11365, %v11363
      %v11478 = vpack.c.b16 %v11368, %v11366
      %v11479 = vpack.c.b16 %v11369, %v11367
      %v11480 = vpack.c.b16 %v11372, %v11370
      %v11481 = vpack.c.b16 %v11373, %v11371
      %v11482 = vpack.c.b16 %v11376, %v11374
      %v11483 = vpack.c.b16 %v11377, %v11375
      %v11484 = vpack.c.b16 %v11380, %v11378
      %v11485 = vpack.c.b16 %v11381, %v11379
      %v11486 = vpack.c.b16 %v11384, %v11382
      %v11487 = vpack.c.b16 %v11385, %v11383
      %v11488 = vpack.c.b16 %v11388, %v11386
      %v11489 = vpack.c.b16 %v11389, %v11387
      %v11490 = vpack.c.b16 %v11392, %v11390
      %v11491 = vpack.c.b16 %v11393, %v11391
      %v11492 = vpack.c.b16 %v11396, %v11394
      %v11493 = vpack.c.b16 %v11397, %v11395
      %v11494 = vpack.c.b16 %v11400, %v11398
      %v11495 = vpack.c.b16 %v11401, %v11399
      %v11496 = vpack.c.b16 %v11404, %v11402
      %v11497 = vpack.c.b16 %v11405, %v11403
      %v11498 = vpack.c.b16 %v11408, %v11406
      %v11499 = vpack.c.b16 %v11409, %v11407
      %v11500 = vpack.c.b16 %v11412, %v11410
      %v11501 = vpack.c.b16 %v11413, %v11411
      %v11502 = vpack.c.b16 %v11416, %v11414
      %v11503 = vpack.c.b16 %v11417, %v11415
      %v11504 = vpack.c.b16 %v11420, %v11418
      %v11505 = vpack.c.b16 %v11421, %v11419
      %v11506 = vpack.c.b16 %v11424, %v11422
      %v11507 = vpack.c.b16 %v11425, %v11423
      %v11508 = vpack.c.b16 %v11428, %v11426
      %v11509 = vpack.c.b16 %v11429, %v11427
      %11590 = vmatprep.subr.bf16.mxu0 %v11431
      %11591 = vmatpush1.bf16.msra.mxu0 %v11430
      %11592 = vmatprep.subr.bf16.mxu0 %v11433
      %11593 = vmatpush1.bf16.msra.mxu0 %v11432
      %11594 = vmatprep.subr.bf16.mxu0 %v11435
      %11595 = vmatpush1.bf16.msra.mxu0 %v11434
      %11596 = vmatprep.subr.bf16.mxu0 %v11437
      %11597 = vmatpush1.bf16.msra.mxu0 %v11436
      %11598 = vmatprep.subr.bf16.mxu0 %v11439
      %11599 = vmatpush1.bf16.msra.mxu0 %v11438
      %11600 = vmatprep.subr.bf16.mxu0 %v11441
      %11601 = vmatpush1.bf16.msra.mxu0 %v11440
      %11602 = vmatprep.subr.bf16.mxu0 %v11443
      %11603 = vmatpush1.bf16.msra.mxu0 %v11442
      %11604 = vmatprep.subr.bf16.mxu0 %v11445
      %11605 = vmatpush1.bf16.msra.mxu0 %v11444
      %11606 = vmatprep.subr.bf16.mxu0 %v11447
      %11607 = vmatpush1.bf16.msra.mxu0 %v11446
      %11608 = vmatprep.subr.bf16.mxu0 %v11449
      %11609 = vmatpush1.bf16.msra.mxu0 %v11448
      %11610 = vmatprep.subr.bf16.mxu0 %v11451
      %11611 = vmatpush1.bf16.msra.mxu0 %v11450
      %11612 = vmatprep.subr.bf16.mxu0 %v11453
      %11613 = vmatpush1.bf16.msra.mxu0 %v11452
      %11614 = vmatprep.subr.bf16.mxu0 %v11455
      %11615 = vmatpush1.bf16.msra.mxu0 %v11454
      %11616 = vmatprep.subr.bf16.mxu0 %v11457
      %11617 = vmatpush1.bf16.msra.mxu0 %v11456
      %11618 = vmatprep.subr.bf16.mxu0 %v11459
      %11619 = vmatpush1.bf16.msra.mxu0 %v11458
      %11620 = vmatprep.subr.bf16.mxu0 %v11461
      %11621 = vmatpush1.bf16.msra.mxu0 %v11460
      %11622 = vmatprep.mubr.bf16.mxu0 %v1249
      %11623 = vmatmul.mubr.bf16.gmra.mrb[0].mxu0 %v1248
      %v11624 = vpop.f32.mrb[0].mxu0
      %v11625 = vadd.f32 0.0, %v11624
      %v11626 = vpop.f32.mrb[0].mxu0
      %v11627 = vadd.f32 0.0, %v11626
      %v11628 = vpop.f32.mrb[0].mxu0
      %v11629 = vpop.f32.mrb[0].mxu0
      %11630 = vdwg.mxu0
      %11631 = vmatprep.subr.bf16.mxu0 %v11463
      %11632 = vmatpush1.bf16.msra.mxu0 %v11462
      %11633 = vmatprep.subr.bf16.mxu0 %v11465
      %11634 = vmatpush1.bf16.msra.mxu0 %v11464
      %11635 = vmatprep.subr.bf16.mxu0 %v11467
      %11636 = vmatpush1.bf16.msra.mxu0 %v11466
      %11637 = vmatprep.subr.bf16.mxu0 %v11469
      %11638 = vmatpush1.bf16.msra.mxu0 %v11468
      %11639 = vmatprep.subr.bf16.mxu0 %v11471
      %11640 = vmatpush1.bf16.msra.mxu0 %v11470
      %11641 = vmatprep.subr.bf16.mxu0 %v11473
      %11642 = vmatpush1.bf16.msra.mxu0 %v11472
      %11643 = vmatprep.subr.bf16.mxu0 %v11475
      %11644 = vmatpush1.bf16.msra.mxu0 %v11474
      %11645 = vmatprep.subr.bf16.mxu0 %v11477
      %11646 = vmatpush1.bf16.msra.mxu0 %v11476
      %11647 = vmatprep.subr.bf16.mxu0 %v11479
      %11648 = vmatpush1.bf16.msra.mxu0 %v11478
      %11649 = vmatprep.subr.bf16.mxu0 %v11481
      %11650 = vmatpush1.bf16.msra.mxu0 %v11480
      %11651 = vmatprep.subr.bf16.mxu0 %v11483
      %11652 = vmatpush1.bf16.msra.mxu0 %v11482
      %11653 = vmatprep.subr.bf16.mxu0 %v11485
      %11654 = vmatpush1.bf16.msra.mxu0 %v11484
      %11655 = vmatprep.subr.bf16.mxu0 %v11487
      %11656 = vmatpush1.bf16.msra.mxu0 %v11486
      %11657 = vmatprep.subr.bf16.mxu0 %v11489
      %11658 = vmatpush1.bf16.msra.mxu0 %v11488
      %11659 = vmatprep.subr.bf16.mxu0 %v11491
      %11660 = vmatpush1.bf16.msra.mxu0 %v11490
      %11661 = vmatprep.subr.bf16.mxu0 %v11493
      %11662 = vmatpush1.bf16.msra.mxu0 %v11492
      %11663 = vmatprep.mubr.bf16.mxu0 %v1251
      %11664 = vmatmul.mubr.bf16.gmra.mrb[0].mxu0 %v1250
      %v11665 = vpop.f32.mrb[0].mxu0
      %v11666 = vadd.f32 %v11625, %v11665
      %v11667 = vpop.f32.mrb[0].mxu0
      %v11668 = vadd.f32 %v11627, %v11667
      %v11669 = vpop.f32.mrb[0].mxu0
      %v11670 = vpop.f32.mrb[0].mxu0
      %11671 = vdwg.mxu0
      %11672 = vmatprep.subr.bf16.mxu0 %v11495
      %11673 = vmatpush1.bf16.msra.mxu0 %v11494
      %11674 = vmatprep.subr.bf16.mxu0 %v11497
      %11675 = vmatpush1.bf16.msra.mxu0 %v11496
      %11676 = vmatprep.subr.bf16.mxu0 %v11499
      %11677 = vmatpush1.bf16.msra.mxu0 %v11498
      %11678 = vmatprep.subr.bf16.mxu0 %v11501
      %11679 = vmatpush1.bf16.msra.mxu0 %v11500
      %11680 = vmatprep.subr.bf16.mxu0 %v11503
      %11681 = vmatpush1.bf16.msra.mxu0 %v11502
      %11682 = vmatprep.subr.bf16.mxu0 %v11505
      %11683 = vmatpush1.bf16.msra.mxu0 %v11504
      %11684 = vmatprep.subr.bf16.mxu0 %v11507
      %11685 = vmatpush1.bf16.msra.mxu0 %v11506
      %11686 = vmatprep.subr.bf16.mxu0 %v11509
      %11687 = vmatpush1.bf16.msra.mxu0 %v11508
      %11688 = vmatprep.subr.bf16.mxu0 0
      %11689 = vmatpush1.bf16.msra.mxu0 0
      %11690 = vmatprep.subr.bf16.mxu0 0
      %11691 = vmatpush1.bf16.msra.mxu0 0
      %11692 = vmatprep.subr.bf16.mxu0 0
      %11693 = vmatpush1.bf16.msra.mxu0 0
      %11694 = vmatprep.subr.bf16.mxu0 0
      %11695 = vmatpush1.bf16.msra.mxu0 0
      %11696 = vmatprep.subr.bf16.mxu0 0
      %11697 = vmatpush1.bf16.msra.mxu0 0
      %11698 = vmatprep.subr.bf16.mxu0 0
      %11699 = vmatpush1.bf16.msra.mxu0 0
      %11700 = vmatprep.subr.bf16.mxu0 0
      %11701 = vmatpush1.bf16.msra.mxu0 0
      %11702 = vmatprep.subr.bf16.mxu0 0
      %11703 = vmatpush1.bf16.msra.mxu0 0
      %11704 = vmatprep.mubr.bf16.mxu0 0
      %11705 = vmatmul.mubr.bf16.gmra.mrb[0].mxu0 %v1252
      %v11706 = vpop.f32.mrb[0].mxu0
      %v11707 = vadd.f32 %v11666, %v11706
      %v11708 = vpop.f32.mrb[0].mxu0
      %v11709 = vadd.f32 %v11668, %v11708
      %v11710 = vpop.f32.mrb[0].mxu0
      %v11711 = vpop.f32.mrb[0].mxu0
      %11712 = vdwg.mxu0
      %v11713 = vadd.f32 %v11107, %v11707
      %v11714 = vadd.f32 %v11108, %v11709
      %s11715 = scalar_lea.vmem %s6, 10880
      %v11716 = vld [vmem:[%s11715] sm:$0xff]
      %v11717 = vld [vmem:[%s11715 + $0x8] sm:$0xff]
      %v11718 = vld [vmem:[%s11715 + $0x10] sm:$0xff]
      %v11719 = vld [vmem:[%s11715 + $0x18] sm:$0xff]
      %v11720 = vld [vmem:[%s11715 + $0x20] sm:$0xff]
      %v11721 = vld [vmem:[%s11715 + $0x28] sm:$0xff]
      %v11722 = vld [vmem:[%s11715 + $0x30] sm:$0xff]
      %v11723 = vld [vmem:[%s11715 + $0x38] sm:$0xff]
      %v11724 = vld [vmem:[%s11715 + $0x40] sm:$0xff]
      %v11725 = vld [vmem:[%s11715 + $0x48] sm:$0xff]
      %v11726 = vld [vmem:[%s11715 + $0x50] sm:$0xff]
      %v11727 = vld [vmem:[%s11715 + $0x58] sm:$0xff]
      %v11728 = vld [vmem:[%s11715 + $0x60] sm:$0xff]
      %v11729 = vld [vmem:[%s11715 + $0x68] sm:$0xff]
      %v11730 = vld [vmem:[%s11715 + $0x70] sm:$0xff]
      %v11731 = vld [vmem:[%s11715 + $0x78] sm:$0xff]
      %v11732 = vld [vmem:[%s11715 + $0x80] sm:$0xff]
      %v11733 = vld [vmem:[%s11715 + $0x88] sm:$0xff]
      %v11734 = vld [vmem:[%s11715 + $0x90] sm:$0xff]
      %v11735 = vld [vmem:[%s11715 + $0x98] sm:$0xff]
      %v11736 = vld [vmem:[%s11715 + $0xa0] sm:$0xff]
      %v11737 = vld [vmem:[%s11715 + $0xa8] sm:$0xff]
      %v11738 = vld [vmem:[%s11715 + $0xb0] sm:$0xff]
      %v11739 = vld [vmem:[%s11715 + $0xb8] sm:$0xff]
      %v11740 = vld [vmem:[%s11715 + $0xc0] sm:$0xff]
      %v11741 = vld [vmem:[%s11715 + $0xc8] sm:$0xff]
      %v11742 = vld [vmem:[%s11715 + $0xd0] sm:$0xff]
      %v11743 = vld [vmem:[%s11715 + $0xd8] sm:$0xff]
      %v11744 = vld [vmem:[%s11715 + $0xe0] sm:$0xff]
      %v11745 = vld [vmem:[%s11715 + $0xe8] sm:$0xff]
      %v11746 = vld [vmem:[%s11715 + $0xf0] sm:$0xff]
      %v11747 = vld [vmem:[%s11715 + $0xf8] sm:$0xff]
      %v11748 = vld [vmem:[%s11715 + $0x100] sm:$0xff]
      %v11749 = vld [vmem:[%s11715 + $0x108] sm:$0xff]
      %v11750 = vld [vmem:[%s11715 + $0x110] sm:$0xff]
      %v11751 = vld [vmem:[%s11715 + $0x118] sm:$0xff]
      %v11752 = vld [vmem:[%s11715 + $0x120] sm:$0xff]
      %v11753 = vld [vmem:[%s11715 + $0x128] sm:$0xff]
      %v11754 = vld [vmem:[%s11715 + $0x130] sm:$0xff]
      %v11755 = vld [vmem:[%s11715 + $0x138] sm:$0xff]
      %v11756 = vld [vmem:[%s11715 + $0x140] sm:$0xff]
      %v11757 = vld [vmem:[%s11715 + $0x148] sm:$0xff]
      %v11758 = vld [vmem:[%s11715 + $0x150] sm:$0xff]
      %v11759 = vld [vmem:[%s11715 + $0x158] sm:$0xff]
      %v11760 = vld [vmem:[%s11715 + $0x160] sm:$0xff]
      %v11761 = vld [vmem:[%s11715 + $0x168] sm:$0xff]
      %v11762 = vld [vmem:[%s11715 + $0x170] sm:$0xff]
      %v11763 = vld [vmem:[%s11715 + $0x178] sm:$0xff]
      %v11764 = vld [vmem:[%s11715 + $0x180] sm:$0xff]
      %v11765 = vld [vmem:[%s11715 + $0x188] sm:$0xff]
      %v11766 = vld [vmem:[%s11715 + $0x190] sm:$0xff]
      %v11767 = vld [vmem:[%s11715 + $0x198] sm:$0xff]
      %v11768 = vld [vmem:[%s11715 + $0x1a0] sm:$0xff]
      %v11769 = vld [vmem:[%s11715 + $0x1a8] sm:$0xff]
      %v11770 = vld [vmem:[%s11715 + $0x1b0] sm:$0xff]
      %v11771 = vld [vmem:[%s11715 + $0x1b8] sm:$0xff]
      %v11772 = vld [vmem:[%s11715 + $0x1c0] sm:$0xff]
      %v11773 = vld [vmem:[%s11715 + $0x1c8] sm:$0xff]
      %v11774 = vld [vmem:[%s11715 + $0x1d0] sm:$0xff]
      %v11775 = vld [vmem:[%s11715 + $0x1d8] sm:$0xff]
      %v11776 = vld [vmem:[%s11715 + $0x1e0] sm:$0xff]
      %v11777 = vld [vmem:[%s11715 + $0x1e8] sm:$0xff]
      %v11778 = vld [vmem:[%s11715 + $0x1f0] sm:$0xff]
      %v11779 = vld [vmem:[%s11715 + $0x1f8] sm:$0xff]
      %v11780 = vld [vmem:[%s11715 + $0x200] sm:$0xff]
      %v11781 = vld [vmem:[%s11715 + $0x208] sm:$0xff]
      %v11782 = vld [vmem:[%s11715 + $0x210] sm:$0xff]
      %v11783 = vld [vmem:[%s11715 + $0x218] sm:$0xff]
      %v11784 = vld [vmem:[%s11715 + $0x220] sm:$0xff]
      %v11785 = vld [vmem:[%s11715 + $0x228] sm:$0xff]
      %v11786 = vld [vmem:[%s11715 + $0x230] sm:$0xff]
      %v11787 = vld [vmem:[%s11715 + $0x238] sm:$0xff]
      %v11788 = vld [vmem:[%s11715 + $0x240] sm:$0xff]
      %v11789 = vld [vmem:[%s11715 + $0x248] sm:$0xff]
      %v11790 = vld [vmem:[%s11715 + $0x250] sm:$0xff]
      %v11791 = vld [vmem:[%s11715 + $0x258] sm:$0xff]
      %v11792 = vld [vmem:[%s11715 + $0x260] sm:$0xff]
      %v11793 = vld [vmem:[%s11715 + $0x268] sm:$0xff]
      %v11794 = vld [vmem:[%s11715 + $0x270] sm:$0xff]
      %v11795 = vld [vmem:[%s11715 + $0x278] sm:$0xff]
      %v11797 = vshrl.u32 %v1248, 16
      %v11800 = vshrl.u32 %v1249, 16
      %v11803 = vshrl.u32 %v1250, 16
      %v11806 = vshrl.u32 %v1251, 16
      %v11809 = vshrl.u32 %v1252, 16
      %v11896 = vunpack.c.l.b16 %v11716
      %v11897 = vunpack.c.h.b16 %v11716
      %v11898 = vunpack.c.l.b16 %v11717
      %v11899 = vunpack.c.h.b16 %v11717
      %v11900 = vunpack.c.l.b16 %v11718
      %v11901 = vunpack.c.h.b16 %v11718
      %v11902 = vunpack.c.l.b16 %v11719
      %v11903 = vunpack.c.h.b16 %v11719
      %v11904 = vunpack.c.l.b16 %v11720
      %v11905 = vunpack.c.h.b16 %v11720
      %v11906 = vunpack.c.l.b16 %v11721
      %v11907 = vunpack.c.h.b16 %v11721
      %v11908 = vunpack.c.l.b16 %v11722
      %v11909 = vunpack.c.h.b16 %v11722
      %v11910 = vunpack.c.l.b16 %v11723
      %v11911 = vunpack.c.h.b16 %v11723
      %v11912 = vunpack.c.l.b16 %v11724
      %v11913 = vunpack.c.h.b16 %v11724
      %v11914 = vunpack.c.l.b16 %v11725
      %v11915 = vunpack.c.h.b16 %v11725
      %v11916 = vunpack.c.l.b16 %v11726
      %v11917 = vunpack.c.h.b16 %v11726
      %v11918 = vunpack.c.l.b16 %v11727
      %v11919 = vunpack.c.h.b16 %v11727
      %v11920 = vunpack.c.l.b16 %v11728
      %v11921 = vunpack.c.h.b16 %v11728
      %v11922 = vunpack.c.l.b16 %v11729
      %v11923 = vunpack.c.h.b16 %v11729
      %v11924 = vunpack.c.l.b16 %v11730
      %v11925 = vunpack.c.h.b16 %v11730
      %v11926 = vunpack.c.l.b16 %v11731
      %v11927 = vunpack.c.h.b16 %v11731
      %v11928 = vunpack.c.l.b16 %v11732
      %v11929 = vunpack.c.h.b16 %v11732
      %v11930 = vunpack.c.l.b16 %v11733
      %v11931 = vunpack.c.h.b16 %v11733
      %v11932 = vunpack.c.l.b16 %v11734
      %v11933 = vunpack.c.h.b16 %v11734
      %v11934 = vunpack.c.l.b16 %v11735
      %v11935 = vunpack.c.h.b16 %v11735
      %v11936 = vunpack.c.l.b16 %v11736
      %v11937 = vunpack.c.h.b16 %v11736
      %v11938 = vunpack.c.l.b16 %v11737
      %v11939 = vunpack.c.h.b16 %v11737
      %v11940 = vunpack.c.l.b16 %v11738
      %v11941 = vunpack.c.h.b16 %v11738
      %v11942 = vunpack.c.l.b16 %v11739
      %v11943 = vunpack.c.h.b16 %v11739
      %v11944 = vunpack.c.l.b16 %v11740
      %v11945 = vunpack.c.h.b16 %v11740
      %v11946 = vunpack.c.l.b16 %v11741
      %v11947 = vunpack.c.h.b16 %v11741
      %v11948 = vunpack.c.l.b16 %v11742
      %v11949 = vunpack.c.h.b16 %v11742
      %v11950 = vunpack.c.l.b16 %v11743
      %v11951 = vunpack.c.h.b16 %v11743
      %v11952 = vunpack.c.l.b16 %v11744
      %v11953 = vunpack.c.h.b16 %v11744
      %v11954 = vunpack.c.l.b16 %v11745
      %v11955 = vunpack.c.h.b16 %v11745
      %v11956 = vunpack.c.l.b16 %v11746
      %v11957 = vunpack.c.h.b16 %v11746
      %v11958 = vunpack.c.l.b16 %v11747
      %v11959 = vunpack.c.h.b16 %v11747
      %v11960 = vunpack.c.l.b16 %v11748
      %v11961 = vunpack.c.h.b16 %v11748
      %v11962 = vunpack.c.l.b16 %v11749
      %v11963 = vunpack.c.h.b16 %v11749
      %v11964 = vunpack.c.l.b16 %v11750
      %v11965 = vunpack.c.h.b16 %v11750
      %v11966 = vunpack.c.l.b16 %v11751
      %v11967 = vunpack.c.h.b16 %v11751
      %v11968 = vunpack.c.l.b16 %v11752
      %v11969 = vunpack.c.h.b16 %v11752
      %v11970 = vunpack.c.l.b16 %v11753
      %v11971 = vunpack.c.h.b16 %v11753
      %v11972 = vunpack.c.l.b16 %v11754
      %v11973 = vunpack.c.h.b16 %v11754
      %v11974 = vunpack.c.l.b16 %v11755
      %v11975 = vunpack.c.h.b16 %v11755
      %v11976 = vunpack.c.l.b16 %v11756
      %v11977 = vunpack.c.h.b16 %v11756
      %v11978 = vunpack.c.l.b16 %v11757
      %v11979 = vunpack.c.h.b16 %v11757
      %v11980 = vunpack.c.l.b16 %v11758
      %v11981 = vunpack.c.h.b16 %v11758
      %v11982 = vunpack.c.l.b16 %v11759
      %v11983 = vunpack.c.h.b16 %v11759
      %v11984 = vunpack.c.l.b16 %v11760
      %v11985 = vunpack.c.h.b16 %v11760
      %v11986 = vunpack.c.l.b16 %v11761
      %v11987 = vunpack.c.h.b16 %v11761
      %v11988 = vunpack.c.l.b16 %v11762
      %v11989 = vunpack.c.h.b16 %v11762
      %v11990 = vunpack.c.l.b16 %v11763
      %v11991 = vunpack.c.h.b16 %v11763
      %v11992 = vunpack.c.l.b16 %v11764
      %v11993 = vunpack.c.h.b16 %v11764
      %v11994 = vunpack.c.l.b16 %v11765
      %v11995 = vunpack.c.h.b16 %v11765
      %v11996 = vunpack.c.l.b16 %v11766
      %v11997 = vunpack.c.h.b16 %v11766
      %v11998 = vunpack.c.l.b16 %v11767
      %v11999 = vunpack.c.h.b16 %v11767
      %v12000 = vunpack.c.l.b16 %v11768
      %v12001 = vunpack.c.h.b16 %v11768
      %v12002 = vunpack.c.l.b16 %v11769
      %v12003 = vunpack.c.h.b16 %v11769
      %v12004 = vunpack.c.l.b16 %v11770
      %v12005 = vunpack.c.h.b16 %v11770
      %v12006 = vunpack.c.l.b16 %v11771
      %v12007 = vunpack.c.h.b16 %v11771
      %v12008 = vunpack.c.l.b16 %v11772
      %v12009 = vunpack.c.h.b16 %v11772
      %v12010 = vunpack.c.l.b16 %v11773
      %v12011 = vunpack.c.h.b16 %v11773
      %v12012 = vunpack.c.l.b16 %v11774
      %v12013 = vunpack.c.h.b16 %v11774
      %v12014 = vunpack.c.l.b16 %v11775
      %v12015 = vunpack.c.h.b16 %v11775
      %v12016 = vunpack.c.l.b16 %v11776
      %v12017 = vunpack.c.h.b16 %v11776
      %v12018 = vunpack.c.l.b16 %v11777
      %v12019 = vunpack.c.h.b16 %v11777
      %v12020 = vunpack.c.l.b16 %v11778
      %v12021 = vunpack.c.h.b16 %v11778
      %v12022 = vunpack.c.l.b16 %v11779
      %v12023 = vunpack.c.h.b16 %v11779
      %v12024 = vunpack.c.l.b16 %v11780
      %v12025 = vunpack.c.h.b16 %v11780
      %v12026 = vunpack.c.l.b16 %v11781
      %v12027 = vunpack.c.h.b16 %v11781
      %v12028 = vunpack.c.l.b16 %v11782
      %v12029 = vunpack.c.h.b16 %v11782
      %v12030 = vunpack.c.l.b16 %v11783
      %v12031 = vunpack.c.h.b16 %v11783
      %v12032 = vunpack.c.l.b16 %v11784
      %v12033 = vunpack.c.h.b16 %v11784
      %v12034 = vunpack.c.l.b16 %v11785
      %v12035 = vunpack.c.h.b16 %v11785
      %v12036 = vunpack.c.l.b16 %v11786
      %v12037 = vunpack.c.h.b16 %v11786
      %v12038 = vunpack.c.l.b16 %v11787
      %v12039 = vunpack.c.h.b16 %v11787
      %v12040 = vunpack.c.l.b16 %v11788
      %v12041 = vunpack.c.h.b16 %v11788
      %v12042 = vunpack.c.l.b16 %v11789
      %v12043 = vunpack.c.h.b16 %v11789
      %v12044 = vunpack.c.l.b16 %v11790
      %v12045 = vunpack.c.h.b16 %v11790
      %v12046 = vunpack.c.l.b16 %v11791
      %v12047 = vunpack.c.h.b16 %v11791
      %v12048 = vunpack.c.l.b16 %v11792
      %v12049 = vunpack.c.h.b16 %v11792
      %v12050 = vunpack.c.l.b16 %v11793
      %v12051 = vunpack.c.h.b16 %v11793
      %v12052 = vunpack.c.l.b16 %v11794
      %v12053 = vunpack.c.h.b16 %v11794
      %v12054 = vunpack.c.l.b16 %v11795
      %v12055 = vunpack.c.h.b16 %v11795
      %v12056 = vpack.c.b16 %v11898, %v11896
      %v12057 = vpack.c.b16 %v11899, %v11897
      %v12058 = vpack.c.b16 %v11902, %v11900
      %v12059 = vpack.c.b16 %v11903, %v11901
      %v12060 = vpack.c.b16 %v11906, %v11904
      %v12061 = vpack.c.b16 %v11907, %v11905
      %v12062 = vpack.c.b16 %v11910, %v11908
      %v12063 = vpack.c.b16 %v11911, %v11909
      %v12064 = vpack.c.b16 %v11914, %v11912
      %v12065 = vpack.c.b16 %v11915, %v11913
      %v12066 = vpack.c.b16 %v11918, %v11916
      %v12067 = vpack.c.b16 %v11919, %v11917
      %v12068 = vpack.c.b16 %v11922, %v11920
      %v12069 = vpack.c.b16 %v11923, %v11921
      %v12070 = vpack.c.b16 %v11926, %v11924
      %v12071 = vpack.c.b16 %v11927, %v11925
      %v12072 = vpack.c.b16 %v11930, %v11928
      %v12073 = vpack.c.b16 %v11931, %v11929
      %v12074 = vpack.c.b16 %v11934, %v11932
      %v12075 = vpack.c.b16 %v11935, %v11933
      %v12076 = vpack.c.b16 %v11938, %v11936
      %v12077 = vpack.c.b16 %v11939, %v11937
      %v12078 = vpack.c.b16 %v11942, %v11940
      %v12079 = vpack.c.b16 %v11943, %v11941
      %v12080 = vpack.c.b16 %v11946, %v11944
      %v12081 = vpack.c.b16 %v11947, %v11945
      %v12082 = vpack.c.b16 %v11950, %v11948
      %v12083 = vpack.c.b16 %v11951, %v11949
      %v12084 = vpack.c.b16 %v11954, %v11952
      %v12085 = vpack.c.b16 %v11955, %v11953
      %v12086 = vpack.c.b16 %v11958, %v11956
      %v12087 = vpack.c.b16 %v11959, %v11957
      %v12088 = vpack.c.b16 %v11962, %v11960
      %v12089 = vpack.c.b16 %v11963, %v11961
      %v12090 = vpack.c.b16 %v11966, %v11964
      %v12091 = vpack.c.b16 %v11967, %v11965
      %v12092 = vpack.c.b16 %v11970, %v11968
      %v12093 = vpack.c.b16 %v11971, %v11969
      %v12094 = vpack.c.b16 %v11974, %v11972
      %v12095 = vpack.c.b16 %v11975, %v11973
      %v12096 = vpack.c.b16 %v11978, %v11976
      %v12097 = vpack.c.b16 %v11979, %v11977
      %v12098 = vpack.c.b16 %v11982, %v11980
      %v12099 = vpack.c.b16 %v11983, %v11981
      %v12100 = vpack.c.b16 %v11986, %v11984
      %v12101 = vpack.c.b16 %v11987, %v11985
      %v12102 = vpack.c.b16 %v11990, %v11988
      %v12103 = vpack.c.b16 %v11991, %v11989
      %v12104 = vpack.c.b16 %v11994, %v11992
      %v12105 = vpack.c.b16 %v11995, %v11993
      %v12106 = vpack.c.b16 %v11998, %v11996
      %v12107 = vpack.c.b16 %v11999, %v11997
      %v12108 = vpack.c.b16 %v12002, %v12000
      %v12109 = vpack.c.b16 %v12003, %v12001
      %v12110 = vpack.c.b16 %v12006, %v12004
      %v12111 = vpack.c.b16 %v12007, %v12005
      %v12112 = vpack.c.b16 %v12010, %v12008
      %v12113 = vpack.c.b16 %v12011, %v12009
      %v12114 = vpack.c.b16 %v12014, %v12012
      %v12115 = vpack.c.b16 %v12015, %v12013
      %v12116 = vpack.c.b16 %v12018, %v12016
      %v12117 = vpack.c.b16 %v12019, %v12017
      %v12118 = vpack.c.b16 %v12022, %v12020
      %v12119 = vpack.c.b16 %v12023, %v12021
      %v12120 = vpack.c.b16 %v12026, %v12024
      %v12121 = vpack.c.b16 %v12027, %v12025
      %v12122 = vpack.c.b16 %v12030, %v12028
      %v12123 = vpack.c.b16 %v12031, %v12029
      %v12124 = vpack.c.b16 %v12034, %v12032
      %v12125 = vpack.c.b16 %v12035, %v12033
      %v12126 = vpack.c.b16 %v12038, %v12036
      %v12127 = vpack.c.b16 %v12039, %v12037
      %v12128 = vpack.c.b16 %v12042, %v12040
      %v12129 = vpack.c.b16 %v12043, %v12041
      %v12130 = vpack.c.b16 %v12046, %v12044
      %v12131 = vpack.c.b16 %v12047, %v12045
      %v12132 = vpack.c.b16 %v12050, %v12048
      %v12133 = vpack.c.b16 %v12051, %v12049
      %v12134 = vpack.c.b16 %v12054, %v12052
      %v12135 = vpack.c.b16 %v12055, %v12053
      %12216 = vmatprep.subr.bf16.mxu0 %v12057
      %12217 = vmatpush1.bf16.msra.mxu0 %v12056
      %12218 = vmatprep.subr.bf16.mxu0 %v12059
      %12219 = vmatpush1.bf16.msra.mxu0 %v12058
      %12220 = vmatprep.subr.bf16.mxu0 %v12061
      %12221 = vmatpush1.bf16.msra.mxu0 %v12060
      %12222 = vmatprep.subr.bf16.mxu0 %v12063
      %12223 = vmatpush1.bf16.msra.mxu0 %v12062
      %12224 = vmatprep.subr.bf16.mxu0 %v12065
      %12225 = vmatpush1.bf16.msra.mxu0 %v12064
      %12226 = vmatprep.subr.bf16.mxu0 %v12067
      %12227 = vmatpush1.bf16.msra.mxu0 %v12066
      %12228 = vmatprep.subr.bf16.mxu0 %v12069
      %12229 = vmatpush1.bf16.msra.mxu0 %v12068
      %12230 = vmatprep.subr.bf16.mxu0 %v12071
      %12231 = vmatpush1.bf16.msra.mxu0 %v12070
      %12232 = vmatprep.subr.bf16.mxu0 %v12073
      %12233 = vmatpush1.bf16.msra.mxu0 %v12072
      %12234 = vmatprep.subr.bf16.mxu0 %v12075
      %12235 = vmatpush1.bf16.msra.mxu0 %v12074
      %12236 = vmatprep.subr.bf16.mxu0 %v12077
      %12237 = vmatpush1.bf16.msra.mxu0 %v12076
      %12238 = vmatprep.subr.bf16.mxu0 %v12079
      %12239 = vmatpush1.bf16.msra.mxu0 %v12078
      %12240 = vmatprep.subr.bf16.mxu0 %v12081
      %12241 = vmatpush1.bf16.msra.mxu0 %v12080
      %12242 = vmatprep.subr.bf16.mxu0 %v12083
      %12243 = vmatpush1.bf16.msra.mxu0 %v12082
      %12244 = vmatprep.subr.bf16.mxu0 %v12085
      %12245 = vmatpush1.bf16.msra.mxu0 %v12084
      %12246 = vmatprep.subr.bf16.mxu0 %v12087
      %12247 = vmatpush1.bf16.msra.mxu0 %v12086
      %12248 = vmatprep.mubr.bf16.mxu0 %v11800
      %12249 = vmatmul.mubr.bf16.gmra.mrb[0].mxu0 %v11797
      %v12250 = vpop.f32.mrb[0].mxu0
      %v12251 = vadd.f32 0.0, %v12250
      %v12252 = vpop.f32.mrb[0].mxu0
      %v12253 = vadd.f32 0.0, %v12252
      %v12254 = vpop.f32.mrb[0].mxu0
      %v12255 = vpop.f32.mrb[0].mxu0
      %12256 = vdwg.mxu0
      %12257 = vmatprep.subr.bf16.mxu0 %v12089
      %12258 = vmatpush1.bf16.msra.mxu0 %v12088
      %12259 = vmatprep.subr.bf16.mxu0 %v12091
      %12260 = vmatpush1.bf16.msra.mxu0 %v12090
      %12261 = vmatprep.subr.bf16.mxu0 %v12093
      %12262 = vmatpush1.bf16.msra.mxu0 %v12092
      %12263 = vmatprep.subr.bf16.mxu0 %v12095
      %12264 = vmatpush1.bf16.msra.mxu0 %v12094
      %12265 = vmatprep.subr.bf16.mxu0 %v12097
      %12266 = vmatpush1.bf16.msra.mxu0 %v12096
      %12267 = vmatprep.subr.bf16.mxu0 %v12099
      %12268 = vmatpush1.bf16.msra.mxu0 %v12098
      %12269 = vmatprep.subr.bf16.mxu0 %v12101
      %12270 = vmatpush1.bf16.msra.mxu0 %v12100
      %12271 = vmatprep.subr.bf16.mxu0 %v12103
      %12272 = vmatpush1.bf16.msra.mxu0 %v12102
      %12273 = vmatprep.subr.bf16.mxu0 %v12105
      %12274 = vmatpush1.bf16.msra.mxu0 %v12104
      %12275 = vmatprep.subr.bf16.mxu0 %v12107
      %12276 = vmatpush1.bf16.msra.mxu0 %v12106
      %12277 = vmatprep.subr.bf16.mxu0 %v12109
      %12278 = vmatpush1.bf16.msra.mxu0 %v12108
      %12279 = vmatprep.subr.bf16.mxu0 %v12111
      %12280 = vmatpush1.bf16.msra.mxu0 %v12110
      %12281 = vmatprep.subr.bf16.mxu0 %v12113
      %12282 = vmatpush1.bf16.msra.mxu0 %v12112
      %12283 = vmatprep.subr.bf16.mxu0 %v12115
      %12284 = vmatpush1.bf16.msra.mxu0 %v12114
      %12285 = vmatprep.subr.bf16.mxu0 %v12117
      %12286 = vmatpush1.bf16.msra.mxu0 %v12116
      %12287 = vmatprep.subr.bf16.mxu0 %v12119
      %12288 = vmatpush1.bf16.msra.mxu0 %v12118
      %12289 = vmatprep.mubr.bf16.mxu0 %v11806
      %12290 = vmatmul.mubr.bf16.gmra.mrb[0].mxu0 %v11803
      %v12291 = vpop.f32.mrb[0].mxu0
      %v12292 = vadd.f32 %v12251, %v12291
      %v12293 = vpop.f32.mrb[0].mxu0
      %v12294 = vadd.f32 %v12253, %v12293
      %v12295 = vpop.f32.mrb[0].mxu0
      %v12296 = vpop.f32.mrb[0].mxu0
      %12297 = vdwg.mxu0
      %12298 = vmatprep.subr.bf16.mxu0 %v12121
      %12299 = vmatpush1.bf16.msra.mxu0 %v12120
      %12300 = vmatprep.subr.bf16.mxu0 %v12123
      %12301 = vmatpush1.bf16.msra.mxu0 %v12122
      %12302 = vmatprep.subr.bf16.mxu0 %v12125
      %12303 = vmatpush1.bf16.msra.mxu0 %v12124
      %12304 = vmatprep.subr.bf16.mxu0 %v12127
      %12305 = vmatpush1.bf16.msra.mxu0 %v12126
      %12306 = vmatprep.subr.bf16.mxu0 %v12129
      %12307 = vmatpush1.bf16.msra.mxu0 %v12128
      %12308 = vmatprep.subr.bf16.mxu0 %v12131
      %12309 = vmatpush1.bf16.msra.mxu0 %v12130
      %12310 = vmatprep.subr.bf16.mxu0 %v12133
      %12311 = vmatpush1.bf16.msra.mxu0 %v12132
      %12312 = vmatprep.subr.bf16.mxu0 %v12135
      %12313 = vmatpush1.bf16.msra.mxu0 %v12134
      %12314 = vmatprep.subr.bf16.mxu0 0
      %12315 = vmatpush1.bf16.msra.mxu0 0
      %12316 = vmatprep.subr.bf16.mxu0 0
      %12317 = vmatpush1.bf16.msra.mxu0 0
      %12318 = vmatprep.subr.bf16.mxu0 0
      %12319 = vmatpush1.bf16.msra.mxu0 0
      %12320 = vmatprep.subr.bf16.mxu0 0
      %12321 = vmatpush1.bf16.msra.mxu0 0
      %12322 = vmatprep.subr.bf16.mxu0 0
      %12323 = vmatpush1.bf16.msra.mxu0 0
      %12324 = vmatprep.subr.bf16.mxu0 0
      %12325 = vmatpush1.bf16.msra.mxu0 0
      %12326 = vmatprep.subr.bf16.mxu0 0
      %12327 = vmatpush1.bf16.msra.mxu0 0
      %12328 = vmatprep.subr.bf16.mxu0 0
      %12329 = vmatpush1.bf16.msra.mxu0 0
      %12330 = vmatprep.mubr.bf16.mxu0 0
      %12331 = vmatmul.mubr.bf16.gmra.mrb[0].mxu0 %v11809
      %v12332 = vpop.f32.mrb[0].mxu0
      %v12333 = vadd.f32 %v12292, %v12332
      %v12334 = vpop.f32.mrb[0].mxu0
      %v12335 = vadd.f32 %v12294, %v12334
      %v12336 = vpop.f32.mrb[0].mxu0
      %v12337 = vpop.f32.mrb[0].mxu0
      %12338 = vdwg.mxu0
      %v12339 = vadd.f32 %v11713, %v12333
      %v12340 = vadd.f32 %v11714, %v12335
      %v12341 = vld [vmem:[%s7] sm:$0x3]
      %v12343 = vlaneseq
      %v12344 = vshrl.u32 %v12343, 7
      %v12345 = vsub.s32 0, %v12344
      %v12346 = vrot.slane %v12341, %v12345
      %v12347 = vlaneseq
      %v12348 = vshrl.u32 %v12347, 7
      %v12349 = vsub.s32 1, %v12348
      %v12350 = vrot.slane %v12341, %v12349
      %v12353 = vadd.f32 %v12339, %v12346
      %v12354 = vadd.f32 %v12340, %v12350
      %v12355 = vmax.f32 %v12353, 0.0
      %v12356 = vmax.f32 %v12354, 0.0
      %v12359 = vcombine.low %v12355, %v12356
      %v12361 = vunpack.c.l.s4 1966171168
      %v12362 = vunpack.c.0.s8 %v12361
      %v12363 = vlaneseq
      %v12364 = vshrl.u32 %v12363, 7
      %v12365 = vsub.s32 %v12362, %v12364
      %v12366 = vrot.slane %v12359, %v12365
      %v12368 = vunpack.c.l.s4 1966171168
      %v12369 = vunpack.c.0.s8 %v12368
      %v12370 = vlaneseq
      %v12371 = vshrl.u32 %v12370, 7
      %v12372 = vsub.s32 %v12369, %v12371
      %v12373 = vrot.slane %v12366, %v12372
      %v12375 = vlaneseq
      %vm12376 = vcmp.ge.s32.totalorder %v12375, 0
      %vm12377 = vcmp.lt.s32.totalorder %v12375, 200
      %vm12378 = vmand %vm12376, %vm12377
      %12379 = vst.msk [vmem:[%s295] sm:$0x3] %vm12378, %v12373
      %p12380 = scmp.lt.s32.totalorder %s29, 3
      %s12381 = scalar_select %p12380, %s29, 3
      %s12382 = smul.addr %s12381, 2
      %s12383 = scalar_lea.vmem %s8, %s12382
      // Predicated region
      $region45: #{_lambda_.2} parent=43 // pred_check
        %p12384 = pneg %p187
      $region46: #{_lambda_.2} parent=43 // pred_check_branch
        %12386 = sbr.rel (%p12384) target = $region48
      $region47: #{_lambda_.2} parent=43 // pred_region
        _
      $region48: #{_lambda_.2} parent=43 // pred_fallthru
        _
    $region44: #{_lambda_.2} parent=5 // pred_fallthru
      _
    %p12387 = scmp.le.s32.totalorder 2, %s24
    // Predicated region
    $region49: #{_lambda_.2} parent=5 // pred_check
      %p12388 = pneg %p12387
    $region50: #{_lambda_.2} parent=5 // pred_check_branch
      %12390 = sbr.rel (%p12388) target = $region52
    $region51: #{_lambda_.2} parent=5 // pred_region
      %s12391 = ssub.s32 %s24, 2
      // Predicated region
      $region53: #{_lambda_.2} parent=51 // pred_check
        %p12392 = pneg %p193
      $region54: #{_lambda_.2} parent=51 // pred_check_branch
        %12394 = sbr.rel (%p12392) target = $region56
      $region55: #{_lambda_.2} parent=51 // pred_region
        %p12395 = scmp.lt.s32.totalorder %s30, 3
        %s12396 = scalar_select %p12395, %s30, 3
        %s12397 = smul.addr %s12396, 2
        %s12398 = scalar_lea.vmem %s8, %s12397
      $region56: #{_lambda_.2} parent=51 // pred_fallthru
        _
    $region52: #{_lambda_.2} parent=5 // pred_fallthru
      _
  $region6: #{_lambda_.2} parent=0 // loop_footer
    %s28 = sadd.s32 1, %s24
  $region7: #{_lambda_.2} parent=0 // loop_footer_branch
    %23 = sbr.rel target = $region3
  $region8: #{_lambda_.2} parent=0 // loop_exit
    _

</llo_original>
